<compile_context>
chip_gen: v5e
topology: v5e:2x2
jax: 0.10.0
libtpu: 0.0.40
codegen_flags: <defaults>
</compile_context>

<pallas_src>
import functools

import jax
import jax.numpy as jnp
from jax import lax
from jax.experimental import pallas as pl
from jax.experimental.pallas import tpu as pltpu


def _rows_per_conv(C):
    # 9 tap rows per output channel + C bias rows.
    return C * 9 + C


# ---------------------------------------------------------------------------
# In-kernel helpers (traced inside the Pallas body)
# ---------------------------------------------------------------------------
def _resblock_packed(w_ref, ring, xps, *, S, C, conv1, conv2):
    """ResBlock: x + conv2(relu(conv1(x))), input channels lane-packed.

    xps: tuple of 3 values, each (S+4, C*(S+2)) f32; xps[dj][r, ci*(S+2)+j]
    holds the pad-2 input x_pad[ci, r, j+dj] (dj pre-shifted in the wrapper,
    so every 3x3 tap is a plain sublane slice -- no in-kernel lane shifts).
    Weight rows in w_ref are lane-varying: lanes of segment ci carry
    w[co, ci, di, dj].  Returns the ResBlock output, shape (C, S, S), f32.
    """
    O1 = S + 2
    W1 = C * O1          # conv1 packed lane width
    W2 = C * S           # conv2 packed lane width
    rpc = _rows_per_conv(C)
    w1b = conv1 * rpc
    b1b = w1b + 9 * C
    w2b = conv2 * rpc
    b2b = w2b + 9 * C

    # conv1 on the (S+2)^2 grid; each MAC covers all C input channels.
    accp = [jnp.zeros((O1, W1), jnp.float32) for _ in range(C)]
    for di in range(3):
        for dj in range(3):
            xs = xps[dj][di:di + O1, :]                  # (O1, W1) sublane slice
            for co in range(C):
                r = w1b + co * 9 + di * 3 + dj
                accp[co] = accp[co] + w_ref[r:r + 1, :W1] * xs

    # Segment-reduce over ci, +bias, ReLU, ring mask (emulates conv2 zero pad).
    h = []
    for co in range(C):
        c1 = accp[co][:, 0:O1]
        for ci in range(1, C):
            c1 = c1 + accp[co][:, ci * O1:(ci + 1) * O1]
        h.append(jnp.maximum(c1 + w_ref[b1b + co:b1b + co + 1, :O1], 0.0) * ring)

    # Channel-packed, dj-shifted views of h for conv2 (in-kernel lane concat).
    hp = [jnp.concatenate([h[ci][:, dj:dj + S] for ci in range(C)], axis=1)
          for dj in range(3)]                            # 3 x (O1, W2)

    # conv2 on the S^2 grid.
    acc2 = [jnp.zeros((S, W2), jnp.float32) for _ in range(C)]
    for di in range(3):
        for dj in range(3):
            hs = hp[dj][di:di + S, :]                    # (S, W2)
            for co in range(C):
                r = w2b + co * 9 + di * 3 + dj
                acc2[co] = acc2[co] + w_ref[r:r + 1, :W2] * hs

    # Segment-reduce, +bias, identity skip (interior of the pad-2 input).
    out = []
    xp0 = xps[0]
    for co in range(C):
        c2 = acc2[co][:, 0:S]
        for ci in range(1, C):
            c2 = c2 + acc2[co][:, ci * S:(ci + 1) * S]
        x_int = xp0[2:2 + S, co * O1 + 2: co * O1 + 2 + S]   # (S, S)
        out.append(x_int + c2 + w_ref[b2b + co:b2b + co + 1, :S])
    return jnp.stack(out, axis=0)                        # (C, S, S)


def _fa_kernel(w_ref, ring_ref, xplq_ref, xpref_ref, ref_ref, out_ref, *, C, S, K):
    O1 = S + 2
    ring = ring_ref[...]

    # l = lq_res(lq_f): computed exactly once per batch element (K folded).
    xps_lq = (xplq_ref[0], xplq_ref[1], xplq_ref[2])
    l_bf = _resblock_packed(w_ref, ring, xps_lq, S=S, C=C,
                            conv1=0, conv2=1).astype(jnp.bfloat16)

    num = jnp.zeros((C, S, S), jnp.float32)
    den = jnp.zeros((C, S, S), jnp.float32)
    for k in range(K):   # static unroll; num/den stay in vregs (no scratch)
        xps_r = (xpref_ref[k, 0], xpref_ref[k, 1], xpref_ref[k, 2])
        r_t = _resblock_packed(w_ref, ring, xps_r, S=S, C=C, conv1=2, conv2=3)
        # sim[c] = sigmoid(r_t[c] @ l[c]); bf16 MXU operands, f32 accumulate.
        logits = lax.dot_general(
            r_t.astype(jnp.bfloat16), l_bf,
            dimension_numbers=(((2,), (1,)), ((0,), (0,))),
            preferred_element_type=jnp.float32)
        sim = jax.nn.sigmoid(logits)                     # (C, S, S)
        num = num + sim * ref_ref[k]
        den = den + sim

    # feature_agg + lq_f; lq interior re-extracted late to keep it off the
    # live set during the ref ResBlocks.
    xp0 = xplq_ref[0]
    lq_int = jnp.stack(
        [xp0[2:2 + S, ci * O1 + 2: ci * O1 + 2 + S] for ci in range(C)], axis=0)
    out_ref[...] = (num * pl.reciprocal(den, approx=True)
                    + lq_int).astype(out_ref.dtype)


# ---------------------------------------------------------------------------
# Wrapper
# ---------------------------------------------------------------------------
def feature_aggregation(lq_f, refs_a, params):
    """lq_f: (N, C, S, S); refs_a: (K, N, C, S, S); params: dict of conv w/b."""
    N, C, H, W = lq_f.shape
    assert H == W, "FeatureAggregation requires square feature maps (H == W)"
    S = H
    O1 = S + 2
    Sp = S + 4
    K = refs_a.shape[0]
    assert refs_a.shape == (K, N, C, S, S)
    for wn in ("lq_w1", "lq_w2", "ref_w1", "ref_w2"):
        assert params[wn].shape == (C, C, 3, 3), "in_nc == out_nc == C required"
    for bn in ("lq_b1", "lq_b2", "ref_b1", "ref_b2"):
        assert params[bn].shape == (C,)

    f32 = jnp.float32
    pad4 = ((0, 0), (0, 0), (2, 2), (2, 2))
    lq_pad = jnp.pad(lq_f.astype(f32), pad4)                        # (N,C,Sp,Sp)
    reft_pad = jnp.pad(jnp.swapaxes(refs_a.astype(f32), 3, 4),
                       ((0, 0),) + pad4)                            # (K,N,C,Sp,Sp)

    def pack_shifted(xp):
        # (..., C, Sp, Sp) -> (..., 3, Sp, C*O1)
        # out[..., dj, r, ci*O1 + j] = xp[..., ci, r, j + dj]
        planes = []
        for dj in range(3):
            sl = jnp.moveaxis(xp[..., dj:dj + O1], -3, -2)          # (..., Sp, C, O1)
            planes.append(sl.reshape(sl.shape[:-2] + (C * O1,)))
        return jnp.stack(planes, axis=-3)

    xplq = pack_shifted(lq_pad)                                     # (N,3,Sp,C*O1)
    xpref = jnp.moveaxis(pack_shifted(reft_pad), 0, 1)              # (N,K,3,Sp,C*O1)
    ref_raw = jnp.moveaxis(refs_a.astype(f32), 0, 1)                # (N,K,C,S,S)

    # Lane-varying weight table: row (co*9 + di*3 + dj) of each conv holds
    # w[co, ci, di, dj] in lanes [ci*segw, (ci+1)*segw); biases lane-replicated.
    lane = jnp.arange(128)

    def seg_onehot(segw):
        return ((lane[None, :] // segw) == jnp.arange(C)[:, None]).astype(f32)

    def pack_conv(w, b, segw):
        w_rows = jnp.transpose(w.astype(f32), (0, 2, 3, 1)).reshape(C * 9, C)
        w_rows = w_rows @ seg_onehot(segw)                          # (C*9, 128)
        b_rows = jnp.tile(b.astype(f32)[:, None], (1, 128))         # (C, 128)
        return jnp.concatenate([w_rows, b_rows], axis=0)

    # Ref-branch weights get their 3x3 taps transposed, which (together with
    # the transposed input) yields the spatially transposed ResBlock output.
    wrows = jnp.concatenate([
        pack_conv(params["lq_w1"], params["lq_b1"], O1),
        pack_conv(params["lq_w2"], params["lq_b2"], S),
        pack_conv(jnp.swapaxes(params["ref_w1"], 2, 3), params["ref_b1"], O1),
        pack_conv(jnp.swapaxes(params["ref_w2"], 2, 3), params["ref_b2"], S),
    ], axis=0)                                                      # (160, 128)
    R = wrows.shape[0]

    # Interior mask of the (S+2)^2 conv1 grid (hoisted out of the kernel).
    idx = jnp.arange(O1)
    inside = (idx >= 1) & (idx <= S)
    ring = (inside[:, None] & inside[None, :]).astype(f32)          # (O1, O1)

    kernel = functools.partial(_fa_kernel, C=C, S=S, K=K)

    return pl.pallas_call(
        kernel,
        out_shape=jax.ShapeDtypeStruct((N, C, S, S), lq_f.dtype),
        grid_spec=pltpu.PrefetchScalarGridSpec(
            num_scalar_prefetch=0,
            grid=(N,),   # batch only; K folded into the body
            in_specs=[
                pl.BlockSpec((R, 128), lambda n: (0, 0)),                 # weights
                pl.BlockSpec((O1, O1), lambda n: (0, 0)),                 # ring mask
                pl.BlockSpec((None, 3, Sp, C * O1),
                             lambda n: (n, 0, 0, 0)),                     # lq packed
                pl.BlockSpec((None, K, 3, Sp, C * O1),
                             lambda n: (n, 0, 0, 0, 0)),                  # refs^T packed
                pl.BlockSpec((None, K, C, S, S),
                             lambda n: (n, 0, 0, 0, 0)),                  # raw refs
            ],
            out_specs=pl.BlockSpec((None, C, S, S), lambda n: (n, 0, 0, 0)),
        ),
        compiler_params=pltpu.CompilerParams(
            dimension_semantics=("parallel",)),
    )(wrows, ring, xplq, xpref, ref_raw)


# ---------------------------------------------------------------------------
# Pure-JAX reference (for correctness check)
# ---------------------------------------------------------------------------
def _conv_ref(x, w, b):
    y = lax.conv_general_dilated(
        x, w, (1, 1), 'SAME',
        dimension_numbers=('NCHW', 'OIHW', 'NCHW'),
        precision=lax.Precision.HIGHEST)
    return y + b[None, :, None, None]


def _resblock_ref(x, w1, b1, w2, b2):
    h = jax.nn.relu(_conv_ref(x, w1, b1))
    return x + _conv_ref(h, w2, b2)


def feature_aggregation_ref(lq_f, refs_a, p):
    l = _resblock_ref(lq_f, p['lq_w1'], p['lq_b1'], p['lq_w2'], p['lq_b2'])
    num, den = 0.0, 0.0
    for k in range(refs_a.shape[0]):
        r = _resblock_ref(refs_a[k], p['ref_w1'], p['ref_b1'],
                          p['ref_w2'], p['ref_b2'])
        rt = jnp.swapaxes(r, 2, 3)
        sim = jax.nn.sigmoid(jnp.matmul(rt, l, precision=lax.Precision.HIGHEST))
        num = num + sim * refs_a[k]
        den = den + sim
    return num / den + lq_f


# ---------------------------------------------------------------------------
if __name__ == "__main__":
    N, C, S, K = 2, 4, 16, 3   # batch, channels (in_nc == out_nc), spatial, #refs

    key = jax.random.PRNGKey(0)
    k_lq, k_ref, k_w = jax.random.split(key, 3)
    lq_f = jax.random.normal(k_lq, (N, C, S, S), jnp.float32)
    refs_a = jax.random.normal(k_ref, (K, N, C, S, S), jnp.float32)

    # Deterministic parameter init for the two ResBlocks (lq_res, ref_res).
    wkeys = jax.random.split(k_w, 8)
    conv_w = lambda kk: 0.1 * jax.random.normal(kk, (C, C, 3, 3), jnp.float32)
    conv_b = lambda kk: 0.05 * jax.random.normal(kk, (C,), jnp.float32)
    p = dict(lq_w1=conv_w(wkeys[0]), lq_b1=conv_b(wkeys[1]),
             lq_w2=conv_w(wkeys[2]), lq_b2=conv_b(wkeys[3]),
             ref_w1=conv_w(wkeys[4]), ref_b1=conv_b(wkeys[5]),
             ref_w2=conv_w(wkeys[6]), ref_b2=conv_b(wkeys[7]))

    out = jax.block_until_ready(feature_aggregation(lq_f, refs_a, p))

    ref_out = feature_aggregation_ref(lq_f, refs_a, p)
    err = float(jnp.max(jnp.abs(out - ref_out)))
    assert out.shape == (N, C, S, S)
    assert bool(jnp.all(jnp.isfinite(out)))
    # Tolerance budget: bf16 MXU operands in the similarity matmul + approx
    # reciprocal in the epilogue vs. a Precision.HIGHEST f32 reference.
    assert err < 6e-2, f"max abs err too large: {err}"
    print("KERNEL_OK")
</pallas_src>

<mosaic_0001>
module attributes {stable_mosaic.version = 11 : i64} {
  func.func @_fa_kernel(%arg0: i32, %arg1: memref<160x128xf32, #tpu.memory_space<vmem>>, %arg2: memref<18x18xf32, #tpu.memory_space<vmem>>, %arg3: memref<1x3x20x72xf32, #tpu.memory_space<vmem>>, %arg4: memref<1x3x3x20x72xf32, #tpu.memory_space<vmem>>, %arg5: memref<1x3x4x16x16xf32, #tpu.memory_space<vmem>>, %arg6: memref<1x4x16x16xf32, #tpu.memory_space<vmem>>) attributes {dimension_semantics = [#tpu.dimension_semantics<parallel>], iteration_bounds = array<i64: 2>, scalar_prefetch = 0 : i64, scratch_operands = 0 : i64, tpu.core_type = #tpu.core_type<tc>, window_params = [{pipeline_mode = #tpu.pipeline_mode<synchronous>, transform_indices = @transform_0, window_bounds = array<i64: 160, 128>}, {pipeline_mode = #tpu.pipeline_mode<synchronous>, transform_indices = @transform_1, window_bounds = array<i64: 18, 18>}, {transform_indices = @transform_2, window_bounds = array<i64: 1, 3, 20, 72>}, {transform_indices = @transform_3, window_bounds = array<i64: 1, 3, 3, 20, 72>}, {transform_indices = @transform_4, window_bounds = array<i64: 1, 3, 4, 16, 16>}, {transform_indices = @transform_5, window_bounds = array<i64: 1, 4, 16, 16>}]} {
    %c0 = arith.constant 0 : index
    %c0_0 = arith.constant 0 : index
    %0 = vector.load %arg2[%c0, %c0_0] : memref<18x18xf32, #tpu.memory_space<vmem>>, vector<18x18xf32>
    %c0_1 = arith.constant 0 : index
    %c0_2 = arith.constant 0 : index
    %c0_3 = arith.constant 0 : index
    %c0_4 = arith.constant 0 : index
    %1 = vector.load %arg3[%c0_1, %c0_2, %c0_3, %c0_4] : memref<1x3x20x72xf32, #tpu.memory_space<vmem>>, vector<1x1x20x72xf32>
    %2 = vector.shape_cast %1 : vector<1x1x20x72xf32> to vector<20x72xf32>
    %c0_5 = arith.constant 0 : index
    %c1 = arith.constant 1 : index
    %c0_6 = arith.constant 0 : index
    %c0_7 = arith.constant 0 : index
    %3 = vector.load %arg3[%c0_5, %c1, %c0_6, %c0_7] : memref<1x3x20x72xf32, #tpu.memory_space<vmem>>, vector<1x1x20x72xf32>
    %4 = vector.shape_cast %3 : vector<1x1x20x72xf32> to vector<20x72xf32>
    %c0_8 = arith.constant 0 : index
    %c2 = arith.constant 2 : index
    %c0_9 = arith.constant 0 : index
    %c0_10 = arith.constant 0 : index
    %5 = vector.load %arg3[%c0_8, %c2, %c0_9, %c0_10] : memref<1x3x20x72xf32, #tpu.memory_space<vmem>>, vector<1x1x20x72xf32>
    %6 = vector.shape_cast %5 : vector<1x1x20x72xf32> to vector<20x72xf32>
    %cst = arith.constant 0.000000e+00 : f32
    %7 = vector.broadcast %cst : f32 to vector<18x72xf32>
    %cst_11 = arith.constant 0.000000e+00 : f32
    %8 = vector.broadcast %cst_11 : f32 to vector<18x72xf32>
    %cst_12 = arith.constant 0.000000e+00 : f32
    %9 = vector.broadcast %cst_12 : f32 to vector<18x72xf32>
    %cst_13 = arith.constant 0.000000e+00 : f32
    %10 = vector.broadcast %cst_13 : f32 to vector<18x72xf32>
    %11 = vector.extract_strided_slice %2 {offsets = [0, 0], sizes = [18, 72], strides = [1, 1]} : vector<20x72xf32> to vector<18x72xf32>
    %c0_14 = arith.constant 0 : index
    %c0_15 = arith.constant 0 : index
    %12 = vector.load %arg1[%c0_14, %c0_15] : memref<160x128xf32, #tpu.memory_space<vmem>>, vector<1x72xf32>
    %13 = vector.broadcast %12 : vector<1x72xf32> to vector<18x72xf32>
    %14 = arith.mulf %13, %11 : vector<18x72xf32>
    %15 = arith.addf %7, %14 : vector<18x72xf32>
    %c9 = arith.constant 9 : index
    %c0_16 = arith.constant 0 : index
    %16 = vector.load %arg1[%c9, %c0_16] : memref<160x128xf32, #tpu.memory_space<vmem>>, vector<1x72xf32>
    %17 = vector.broadcast %16 : vector<1x72xf32> to vector<18x72xf32>
    %18 = arith.mulf %17, %11 : vector<18x72xf32>
    %19 = arith.addf %8, %18 : vector<18x72xf32>
    %c18 = arith.constant 18 : index
    %c0_17 = arith.constant 0 : index
    %20 = vector.load %arg1[%c18, %c0_17] : memref<160x128xf32, #tpu.memory_space<vmem>>, vector<1x72xf32>
    %21 = vector.broadcast %20 : vector<1x72xf32> to vector<18x72xf32>
    %22 = arith.mulf %21, %11 : vector<18x72xf32>
    %23 = arith.addf %9, %22 : vector<18x72xf32>
    %c27 = arith.constant 27 : index
    %c0_18 = arith.constant 0 : index
    %24 = vector.load %arg1[%c27, %c0_18] : memref<160x128xf32, #tpu.memory_space<vmem>>, vector<1x72xf32>
    %25 = vector.broadcast %24 : vector<1x72xf32> to vector<18x72xf32>
    %26 = arith.mulf %25, %11 : vector<18x72xf32>
    %27 = arith.addf %10, %26 : vector<18x72xf32>
    %28 = vector.extract_strided_slice %4 {offsets = [0, 0], sizes = [18, 72], strides = [1, 1]} : vector<20x72xf32> to vector<18x72xf32>
    %c1_19 = arith.constant 1 : index
    %c0_20 = arith.constant 0 : index
    %29 = vector.load %arg1[%c1_19, %c0_20] : memref<160x128xf32, #tpu.memory_space<vmem>>, vector<1x72xf32>
    %30 = vector.broadcast %29 : vector<1x72xf32> to vector<18x72xf32>
    %31 = arith.mulf %30, %28 : vector<18x72xf32>
    %32 = arith.addf %15, %31 : vector<18x72xf32>
    %c10 = arith.constant 10 : index
    %c0_21 = arith.constant 0 : index
    %33 = vector.load %arg1[%c10, %c0_21] : memref<160x128xf32, #tpu.memory_space<vmem>>, vector<1x72xf32>
    %34 = vector.broadcast %33 : vector<1x72xf32> to vector<18x72xf32>
    %35 = arith.mulf %34, %28 : vector<18x72xf32>
    %36 = arith.addf %19, %35 : vector<18x72xf32>
    %c19 = arith.constant 19 : index
    %c0_22 = arith.constant 0 : index
    %37 = vector.load %arg1[%c19, %c0_22] : memref<160x128xf32, #tpu.memory_space<vmem>>, vector<1x72xf32>
    %38 = vector.broadcast %37 : vector<1x72xf32> to vector<18x72xf32>
    %39 = arith.mulf %38, %28 : vector<18x72xf32>
    %40 = arith.addf %23, %39 : vector<18x72xf32>
    %c28 = arith.constant 28 : index
    %c0_23 = arith.constant 0 : index
    %41 = vector.load %arg1[%c28, %c0_23] : memref<160x128xf32, #tpu.memory_space<vmem>>, vector<1x72xf32>
    %42 = vector.broadcast %41 : vector<1x72xf32> to vector<18x72xf32>
    %43 = arith.mulf %42, %28 : vector<18x72xf32>
    %44 = arith.addf %27, %43 : vector<18x72xf32>
    %45 = vector.extract_strided_slice %6 {offsets = [0, 0], sizes = [18, 72], strides = [1, 1]} : vector<20x72xf32> to vector<18x72xf32>
    %c2_24 = arith.constant 2 : index
    %c0_25 = arith.constant 0 : index
    %46 = vector.load %arg1[%c2_24, %c0_25] : memref<160x128xf32, #tpu.memory_space<vmem>>, vector<1x72xf32>
    %47 = vector.broadcast %46 : vector<1x72xf32> to vector<18x72xf32>
    %48 = arith.mulf %47, %45 : vector<18x72xf32>
    %49 = arith.addf %32, %48 : vector<18x72xf32>
    %c11 = arith.constant 11 : index
    %c0_26 = arith.constant 0 : index
    %50 = vector.load %arg1[%c11, %c0_26] : memref<160x128xf32, #tpu.memory_space<vmem>>, vector<1x72xf32>
    %51 = vector.broadcast %50 : vector<1x72xf32> to vector<18x72xf32>
    %52 = arith.mulf %51, %45 : vector<18x72xf32>
    %53 = arith.addf %36, %52 : vector<18x72xf32>
    %c20 = arith.constant 20 : index
    %c0_27 = arith.constant 0 : index
    %54 = vector.load %arg1[%c20, %c0_27] : memref<160x128xf32, #tpu.memory_space<vmem>>, vector<1x72xf32>
    %55 = vector.broadcast %54 : vector<1x72xf32> to vector<18x72xf32>
    %56 = arith.mulf %55, %45 : vector<18x72xf32>
    %57 = arith.addf %40, %56 : vector<18x72xf32>
    %c29 = arith.constant 29 : index
    %c0_28 = arith.constant 0 : index
    %58 = vector.load %arg1[%c29, %c0_28] : memref<160x128xf32, #tpu.memory_space<vmem>>, vector<1x72xf32>
    %59 = vector.broadcast %58 : vector<1x72xf32> to vector<18x72xf32>
    %60 = arith.mulf %59, %45 : vector<18x72xf32>
    %61 = arith.addf %44, %60 : vector<18x72xf32>
    %62 = vector.extract_strided_slice %2 {offsets = [1, 0], sizes = [18, 72], strides = [1, 1]} : vector<20x72xf32> to vector<18x72xf32>
    %c3 = arith.constant 3 : index
    %c0_29 = arith.constant 0 : index
    %63 = vector.load %arg1[%c3, %c0_29] : memref<160x128xf32, #tpu.memory_space<vmem>>, vector<1x72xf32>
    %64 = vector.broadcast %63 : vector<1x72xf32> to vector<18x72xf32>
    %65 = arith.mulf %64, %62 : vector<18x72xf32>
    %66 = arith.addf %49, %65 : vector<18x72xf32>
    %c12 = arith.constant 12 : index
    %c0_30 = arith.constant 0 : index
    %67 = vector.load %arg1[%c12, %c0_30] : memref<160x128xf32, #tpu.memory_space<vmem>>, vector<1x72xf32>
    %68 = vector.broadcast %67 : vector<1x72xf32> to vector<18x72xf32>
    %69 = arith.mulf %68, %62 : vector<18x72xf32>
    %70 = arith.addf %53, %69 : vector<18x72xf32>
    %c21 = arith.constant 21 : index
    %c0_31 = arith.constant 0 : index
    %71 = vector.load %arg1[%c21, %c0_31] : memref<160x128xf32, #tpu.memory_space<vmem>>, vector<1x72xf32>
    %72 = vector.broadcast %71 : vector<1x72xf32> to vector<18x72xf32>
    %73 = arith.mulf %72, %62 : vector<18x72xf32>
    %74 = arith.addf %57, %73 : vector<18x72xf32>
    %c30 = arith.constant 30 : index
    %c0_32 = arith.constant 0 : index
    %75 = vector.load %arg1[%c30, %c0_32] : memref<160x128xf32, #tpu.memory_space<vmem>>, vector<1x72xf32>
    %76 = vector.broadcast %75 : vector<1x72xf32> to vector<18x72xf32>
    %77 = arith.mulf %76, %62 : vector<18x72xf32>
    %78 = arith.addf %61, %77 : vector<18x72xf32>
    %79 = vector.extract_strided_slice %4 {offsets = [1, 0], sizes = [18, 72], strides = [1, 1]} : vector<20x72xf32> to vector<18x72xf32>
    %c4 = arith.constant 4 : index
    %c0_33 = arith.constant 0 : index
    %80 = vector.load %arg1[%c4, %c0_33] : memref<160x128xf32, #tpu.memory_space<vmem>>, vector<1x72xf32>
    %81 = vector.broadcast %80 : vector<1x72xf32> to vector<18x72xf32>
    %82 = arith.mulf %81, %79 : vector<18x72xf32>
    %83 = arith.addf %66, %82 : vector<18x72xf32>
    %c13 = arith.constant 13 : index
    %c0_34 = arith.constant 0 : index
    %84 = vector.load %arg1[%c13, %c0_34] : memref<160x128xf32, #tpu.memory_space<vmem>>, vector<1x72xf32>
    %85 = vector.broadcast %84 : vector<1x72xf32> to vector<18x72xf32>
    %86 = arith.mulf %85, %79 : vector<18x72xf32>
    %87 = arith.addf %70, %86 : vector<18x72xf32>
    %c22 = arith.constant 22 : index
    %c0_35 = arith.constant 0 : index
    %88 = vector.load %arg1[%c22, %c0_35] : memref<160x128xf32, #tpu.memory_space<vmem>>, vector<1x72xf32>
    %89 = vector.broadcast %88 : vector<1x72xf32> to vector<18x72xf32>
    %90 = arith.mulf %89, %79 : vector<18x72xf32>
    %91 = arith.addf %74, %90 : vector<18x72xf32>
    %c31 = arith.constant 31 : index
    %c0_36 = arith.constant 0 : index
    %92 = vector.load %arg1[%c31, %c0_36] : memref<160x128xf32, #tpu.memory_space<vmem>>, vector<1x72xf32>
    %93 = vector.broadcast %92 : vector<1x72xf32> to vector<18x72xf32>
    %94 = arith.mulf %93, %79 : vector<18x72xf32>
    %95 = arith.addf %78, %94 : vector<18x72xf32>
    %96 = vector.extract_strided_slice %6 {offsets = [1, 0], sizes = [18, 72], strides = [1, 1]} : vector<20x72xf32> to vector<18x72xf32>
    %c5 = arith.constant 5 : index
    %c0_37 = arith.constant 0 : index
    %97 = vector.load %arg1[%c5, %c0_37] : memref<160x128xf32, #tpu.memory_space<vmem>>, vector<1x72xf32>
    %98 = vector.broadcast %97 : vector<1x72xf32> to vector<18x72xf32>
    %99 = arith.mulf %98, %96 : vector<18x72xf32>
    %100 = arith.addf %83, %99 : vector<18x72xf32>
    %c14 = arith.constant 14 : index
    %c0_38 = arith.constant 0 : index
    %101 = vector.load %arg1[%c14, %c0_38] : memref<160x128xf32, #tpu.memory_space<vmem>>, vector<1x72xf32>
    %102 = vector.broadcast %101 : vector<1x72xf32> to vector<18x72xf32>
    %103 = arith.mulf %102, %96 : vector<18x72xf32>
    %104 = arith.addf %87, %103 : vector<18x72xf32>
    %c23 = arith.constant 23 : index
    %c0_39 = arith.constant 0 : index
    %105 = vector.load %arg1[%c23, %c0_39] : memref<160x128xf32, #tpu.memory_space<vmem>>, vector<1x72xf32>
    %106 = vector.broadcast %105 : vector<1x72xf32> to vector<18x72xf32>
    %107 = arith.mulf %106, %96 : vector<18x72xf32>
    %108 = arith.addf %91, %107 : vector<18x72xf32>
    %c32 = arith.constant 32 : index
    %c0_40 = arith.constant 0 : index
    %109 = vector.load %arg1[%c32, %c0_40] : memref<160x128xf32, #tpu.memory_space<vmem>>, vector<1x72xf32>
    %110 = vector.broadcast %109 : vector<1x72xf32> to vector<18x72xf32>
    %111 = arith.mulf %110, %96 : vector<18x72xf32>
    %112 = arith.addf %95, %111 : vector<18x72xf32>
    %113 = vector.extract_strided_slice %2 {offsets = [2, 0], sizes = [18, 72], strides = [1, 1]} : vector<20x72xf32> to vector<18x72xf32>
    %c6 = arith.constant 6 : index
    %c0_41 = arith.constant 0 : index
    %114 = vector.load %arg1[%c6, %c0_41] : memref<160x128xf32, #tpu.memory_space<vmem>>, vector<1x72xf32>
    %115 = vector.broadcast %114 : vector<1x72xf32> to vector<18x72xf32>
    %116 = arith.mulf %115, %113 : vector<18x72xf32>
    %117 = arith.addf %100, %116 : vector<18x72xf32>
    %c15 = arith.constant 15 : index
    %c0_42 = arith.constant 0 : index
    %118 = vector.load %arg1[%c15, %c0_42] : memref<160x128xf32, #tpu.memory_space<vmem>>, vector<1x72xf32>
    %119 = vector.broadcast %118 : vector<1x72xf32> to vector<18x72xf32>
    %120 = arith.mulf %119, %113 : vector<18x72xf32>
    %121 = arith.addf %104, %120 : vector<18x72xf32>
    %c24 = arith.constant 24 : index
    %c0_43 = arith.constant 0 : index
    %122 = vector.load %arg1[%c24, %c0_43] : memref<160x128xf32, #tpu.memory_space<vmem>>, vector<1x72xf32>
    %123 = vector.broadcast %122 : vector<1x72xf32> to vector<18x72xf32>
    %124 = arith.mulf %123, %113 : vector<18x72xf32>
    %125 = arith.addf %108, %124 : vector<18x72xf32>
    %c33 = arith.constant 33 : index
    %c0_44 = arith.constant 0 : index
    %126 = vector.load %arg1[%c33, %c0_44] : memref<160x128xf32, #tpu.memory_space<vmem>>, vector<1x72xf32>
    %127 = vector.broadcast %126 : vector<1x72xf32> to vector<18x72xf32>
    %128 = arith.mulf %127, %113 : vector<18x72xf32>
    %129 = arith.addf %112, %128 : vector<18x72xf32>
    %130 = vector.extract_strided_slice %4 {offsets = [2, 0], sizes = [18, 72], strides = [1, 1]} : vector<20x72xf32> to vector<18x72xf32>
    %c7 = arith.constant 7 : index
    %c0_45 = arith.constant 0 : index
    %131 = vector.load %arg1[%c7, %c0_45] : memref<160x128xf32, #tpu.memory_space<vmem>>, vector<1x72xf32>
    %132 = vector.broadcast %131 : vector<1x72xf32> to vector<18x72xf32>
    %133 = arith.mulf %132, %130 : vector<18x72xf32>
    %134 = arith.addf %117, %133 : vector<18x72xf32>
    %c16 = arith.constant 16 : index
    %c0_46 = arith.constant 0 : index
    %135 = vector.load %arg1[%c16, %c0_46] : memref<160x128xf32, #tpu.memory_space<vmem>>, vector<1x72xf32>
    %136 = vector.broadcast %135 : vector<1x72xf32> to vector<18x72xf32>
    %137 = arith.mulf %136, %130 : vector<18x72xf32>
    %138 = arith.addf %121, %137 : vector<18x72xf32>
    %c25 = arith.constant 25 : index
    %c0_47 = arith.constant 0 : index
    %139 = vector.load %arg1[%c25, %c0_47] : memref<160x128xf32, #tpu.memory_space<vmem>>, vector<1x72xf32>
    %140 = vector.broadcast %139 : vector<1x72xf32> to vector<18x72xf32>
    %141 = arith.mulf %140, %130 : vector<18x72xf32>
    %142 = arith.addf %125, %141 : vector<18x72xf32>
    %c34 = arith.constant 34 : index
    %c0_48 = arith.constant 0 : index
    %143 = vector.load %arg1[%c34, %c0_48] : memref<160x128xf32, #tpu.memory_space<vmem>>, vector<1x72xf32>
    %144 = vector.broadcast %143 : vector<1x72xf32> to vector<18x72xf32>
    %145 = arith.mulf %144, %130 : vector<18x72xf32>
    %146 = arith.addf %129, %145 : vector<18x72xf32>
    %147 = vector.extract_strided_slice %6 {offsets = [2, 0], sizes = [18, 72], strides = [1, 1]} : vector<20x72xf32> to vector<18x72xf32>
    %c8 = arith.constant 8 : index
    %c0_49 = arith.constant 0 : index
    %148 = vector.load %arg1[%c8, %c0_49] : memref<160x128xf32, #tpu.memory_space<vmem>>, vector<1x72xf32>
    %149 = vector.broadcast %148 : vector<1x72xf32> to vector<18x72xf32>
    %150 = arith.mulf %149, %147 : vector<18x72xf32>
    %151 = arith.addf %134, %150 : vector<18x72xf32>
    %c17 = arith.constant 17 : index
    %c0_50 = arith.constant 0 : index
    %152 = vector.load %arg1[%c17, %c0_50] : memref<160x128xf32, #tpu.memory_space<vmem>>, vector<1x72xf32>
    %153 = vector.broadcast %152 : vector<1x72xf32> to vector<18x72xf32>
    %154 = arith.mulf %153, %147 : vector<18x72xf32>
    %155 = arith.addf %138, %154 : vector<18x72xf32>
    %c26 = arith.constant 26 : index
    %c0_51 = arith.constant 0 : index
    %156 = vector.load %arg1[%c26, %c0_51] : memref<160x128xf32, #tpu.memory_space<vmem>>, vector<1x72xf32>
    %157 = vector.broadcast %156 : vector<1x72xf32> to vector<18x72xf32>
    %158 = arith.mulf %157, %147 : vector<18x72xf32>
    %159 = arith.addf %142, %158 : vector<18x72xf32>
    %c35 = arith.constant 35 : index
    %c0_52 = arith.constant 0 : index
    %160 = vector.load %arg1[%c35, %c0_52] : memref<160x128xf32, #tpu.memory_space<vmem>>, vector<1x72xf32>
    %161 = vector.broadcast %160 : vector<1x72xf32> to vector<18x72xf32>
    %162 = arith.mulf %161, %147 : vector<18x72xf32>
    %163 = arith.addf %146, %162 : vector<18x72xf32>
    %164 = vector.extract_strided_slice %151 {offsets = [0, 0], sizes = [18, 18], strides = [1, 1]} : vector<18x72xf32> to vector<18x18xf32>
    %165 = vector.extract_strided_slice %151 {offsets = [0, 18], sizes = [18, 18], strides = [1, 1]} : vector<18x72xf32> to vector<18x18xf32>
    %166 = arith.addf %164, %165 : vector<18x18xf32>
    %167 = vector.extract_strided_slice %151 {offsets = [0, 36], sizes = [18, 18], strides = [1, 1]} : vector<18x72xf32> to vector<18x18xf32>
    %168 = arith.addf %166, %167 : vector<18x18xf32>
    %169 = vector.extract_strided_slice %151 {offsets = [0, 54], sizes = [18, 18], strides = [1, 1]} : vector<18x72xf32> to vector<18x18xf32>
    %170 = arith.addf %168, %169 : vector<18x18xf32>
    %c36 = arith.constant 36 : index
    %c0_53 = arith.constant 0 : index
    %171 = vector.load %arg1[%c36, %c0_53] : memref<160x128xf32, #tpu.memory_space<vmem>>, vector<1x18xf32>
    %172 = vector.broadcast %171 : vector<1x18xf32> to vector<18x18xf32>
    %173 = arith.addf %170, %172 : vector<18x18xf32>
    %cst_54 = arith.constant 0.000000e+00 : f32
    %174 = vector.broadcast %cst_54 : f32 to vector<18x18xf32>
    %175 = arith.maximumf %173, %174 : vector<18x18xf32>
    %176 = arith.mulf %175, %0 : vector<18x18xf32>
    %177 = vector.extract_strided_slice %155 {offsets = [0, 0], sizes = [18, 18], strides = [1, 1]} : vector<18x72xf32> to vector<18x18xf32>
    %178 = vector.extract_strided_slice %155 {offsets = [0, 18], sizes = [18, 18], strides = [1, 1]} : vector<18x72xf32> to vector<18x18xf32>
    %179 = arith.addf %177, %178 : vector<18x18xf32>
    %180 = vector.extract_strided_slice %155 {offsets = [0, 36], sizes = [18, 18], strides = [1, 1]} : vector<18x72xf32> to vector<18x18xf32>
    %181 = arith.addf %179, %180 : vector<18x18xf32>
    %182 = vector.extract_strided_slice %155 {offsets = [0, 54], sizes = [18, 18], strides = [1, 1]} : vector<18x72xf32> to vector<18x18xf32>
    %183 = arith.addf %181, %182 : vector<18x18xf32>
    %c37 = arith.constant 37 : index
    %c0_55 = arith.constant 0 : index
    %184 = vector.load %arg1[%c37, %c0_55] : memref<160x128xf32, #tpu.memory_space<vmem>>, vector<1x18xf32>
    %185 = vector.broadcast %184 : vector<1x18xf32> to vector<18x18xf32>
    %186 = arith.addf %183, %185 : vector<18x18xf32>
    %cst_56 = arith.constant 0.000000e+00 : f32
    %187 = vector.broadcast %cst_56 : f32 to vector<18x18xf32>
    %188 = arith.maximumf %186, %187 : vector<18x18xf32>
    %189 = arith.mulf %188, %0 : vector<18x18xf32>
    %190 = vector.extract_strided_slice %159 {offsets = [0, 0], sizes = [18, 18], strides = [1, 1]} : vector<18x72xf32> to vector<18x18xf32>
    %191 = vector.extract_strided_slice %159 {offsets = [0, 18], sizes = [18, 18], strides = [1, 1]} : vector<18x72xf32> to vector<18x18xf32>
    %192 = arith.addf %190, %191 : vector<18x18xf32>
    %193 = vector.extract_strided_slice %159 {offsets = [0, 36], sizes = [18, 18], strides = [1, 1]} : vector<18x72xf32> to vector<18x18xf32>
    %194 = arith.addf %192, %193 : vector<18x18xf32>
    %195 = vector.extract_strided_slice %159 {offsets = [0, 54], sizes = [18, 18], strides = [1, 1]} : vector<18x72xf32> to vector<18x18xf32>
    %196 = arith.addf %194, %195 : vector<18x18xf32>
    %c38 = arith.constant 38 : index
    %c0_57 = arith.constant 0 : index
    %197 = vector.load %arg1[%c38, %c0_57] : memref<160x128xf32, #tpu.memory_space<vmem>>, vector<1x18xf32>
    %198 = vector.broadcast %197 : vector<1x18xf32> to vector<18x18xf32>
    %199 = arith.addf %196, %198 : vector<18x18xf32>
    %cst_58 = arith.constant 0.000000e+00 : f32
    %200 = vector.broadcast %cst_58 : f32 to vector<18x18xf32>
    %201 = arith.maximumf %199, %200 : vector<18x18xf32>
    %202 = arith.mulf %201, %0 : vector<18x18xf32>
    %203 = vector.extract_strided_slice %163 {offsets = [0, 0], sizes = [18, 18], strides = [1, 1]} : vector<18x72xf32> to vector<18x18xf32>
    %204 = vector.extract_strided_slice %163 {offsets = [0, 18], sizes = [18, 18], strides = [1, 1]} : vector<18x72xf32> to vector<18x18xf32>
    %205 = arith.addf %203, %204 : vector<18x18xf32>
    %206 = vector.extract_strided_slice %163 {offsets = [0, 36], sizes = [18, 18], strides = [1, 1]} : vector<18x72xf32> to vector<18x18xf32>
    %207 = arith.addf %205, %206 : vector<18x18xf32>
    %208 = vector.extract_strided_slice %163 {offsets = [0, 54], sizes = [18, 18], strides = [1, 1]} : vector<18x72xf32> to vector<18x18xf32>
    %209 = arith.addf %207, %208 : vector<18x18xf32>
    %c39 = arith.constant 39 : index
    %c0_59 = arith.constant 0 : index
    %210 = vector.load %arg1[%c39, %c0_59] : memref<160x128xf32, #tpu.memory_space<vmem>>, vector<1x18xf32>
    %211 = vector.broadcast %210 : vector<1x18xf32> to vector<18x18xf32>
    %212 = arith.addf %209, %211 : vector<18x18xf32>
    %cst_60 = arith.constant 0.000000e+00 : f32
    %213 = vector.broadcast %cst_60 : f32 to vector<18x18xf32>
    %214 = arith.maximumf %212, %213 : vector<18x18xf32>
    %215 = arith.mulf %214, %0 : vector<18x18xf32>
    %216 = vector.extract_strided_slice %176 {offsets = [0, 0], sizes = [18, 16], strides = [1, 1]} : vector<18x18xf32> to vector<18x16xf32>
    %217 = vector.extract_strided_slice %189 {offsets = [0, 0], sizes = [18, 16], strides = [1, 1]} : vector<18x18xf32> to vector<18x16xf32>
    %218 = vector.extract_strided_slice %202 {offsets = [0, 0], sizes = [18, 16], strides = [1, 1]} : vector<18x18xf32> to vector<18x16xf32>
    %219 = vector.extract_strided_slice %215 {offsets = [0, 0], sizes = [18, 16], strides = [1, 1]} : vector<18x18xf32> to vector<18x16xf32>
    %220 = tpu.concatenate %216, %217, %218, %219 in 1 : vector<18x16xf32>, vector<18x16xf32>, vector<18x16xf32>, vector<18x16xf32> -> vector<18x64xf32>
    %221 = vector.extract_strided_slice %176 {offsets = [0, 1], sizes = [18, 16], strides = [1, 1]} : vector<18x18xf32> to vector<18x16xf32>
    %222 = vector.extract_strided_slice %189 {offsets = [0, 1], sizes = [18, 16], strides = [1, 1]} : vector<18x18xf32> to vector<18x16xf32>
    %223 = vector.extract_strided_slice %202 {offsets = [0, 1], sizes = [18, 16], strides = [1, 1]} : vector<18x18xf32> to vector<18x16xf32>
    %224 = vector.extract_strided_slice %215 {offsets = [0, 1], sizes = [18, 16], strides = [1, 1]} : vector<18x18xf32> to vector<18x16xf32>
    %225 = tpu.concatenate %221, %222, %223, %224 in 1 : vector<18x16xf32>, vector<18x16xf32>, vector<18x16xf32>, vector<18x16xf32> -> vector<18x64xf32>
    %226 = vector.extract_strided_slice %176 {offsets = [0, 2], sizes = [18, 16], strides = [1, 1]} : vector<18x18xf32> to vector<18x16xf32>
    %227 = vector.extract_strided_slice %189 {offsets = [0, 2], sizes = [18, 16], strides = [1, 1]} : vector<18x18xf32> to vector<18x16xf32>
    %228 = vector.extract_strided_slice %202 {offsets = [0, 2], sizes = [18, 16], strides = [1, 1]} : vector<18x18xf32> to vector<18x16xf32>
    %229 = vector.extract_strided_slice %215 {offsets = [0, 2], sizes = [18, 16], strides = [1, 1]} : vector<18x18xf32> to vector<18x16xf32>
    %230 = tpu.concatenate %226, %227, %228, %229 in 1 : vector<18x16xf32>, vector<18x16xf32>, vector<18x16xf32>, vector<18x16xf32> -> vector<18x64xf32>
    %cst_61 = arith.constant 0.000000e+00 : f32
    %231 = vector.broadcast %cst_61 : f32 to vector<16x64xf32>
    %cst_62 = arith.constant 0.000000e+00 : f32
    %232 = vector.broadcast %cst_62 : f32 to vector<16x64xf32>
    %cst_63 = arith.constant 0.000000e+00 : f32
    %233 = vector.broadcast %cst_63 : f32 to vector<16x64xf32>
    %cst_64 = arith.constant 0.000000e+00 : f32
    %234 = vector.broadcast %cst_64 : f32 to vector<16x64xf32>
    %235 = vector.extract_strided_slice %220 {offsets = [0, 0], sizes = [16, 64], strides = [1, 1]} : vector<18x64xf32> to vector<16x64xf32>
    %c40 = arith.constant 40 : index
    %c0_65 = arith.constant 0 : index
    %236 = vector.load %arg1[%c40, %c0_65] : memref<160x128xf32, #tpu.memory_space<vmem>>, vector<1x64xf32>
    %237 = vector.broadcast %236 : vector<1x64xf32> to vector<16x64xf32>
    %238 = arith.mulf %237, %235 : vector<16x64xf32>
    %239 = arith.addf %231, %238 : vector<16x64xf32>
    %c49 = arith.constant 49 : index
    %c0_66 = arith.constant 0 : index
    %240 = vector.load %arg1[%c49, %c0_66] : memref<160x128xf32, #tpu.memory_space<vmem>>, vector<1x64xf32>
    %241 = vector.broadcast %240 : vector<1x64xf32> to vector<16x64xf32>
    %242 = arith.mulf %241, %235 : vector<16x64xf32>
    %243 = arith.addf %232, %242 : vector<16x64xf32>
    %c58 = arith.constant 58 : index
    %c0_67 = arith.constant 0 : index
    %244 = vector.load %arg1[%c58, %c0_67] : memref<160x128xf32, #tpu.memory_space<vmem>>, vector<1x64xf32>
    %245 = vector.broadcast %244 : vector<1x64xf32> to vector<16x64xf32>
    %246 = arith.mulf %245, %235 : vector<16x64xf32>
    %247 = arith.addf %233, %246 : vector<16x64xf32>
    %c67 = arith.constant 67 : index
    %c0_68 = arith.constant 0 : index
    %248 = vector.load %arg1[%c67, %c0_68] : memref<160x128xf32, #tpu.memory_space<vmem>>, vector<1x64xf32>
    %249 = vector.broadcast %248 : vector<1x64xf32> to vector<16x64xf32>
    %250 = arith.mulf %249, %235 : vector<16x64xf32>
    %251 = arith.addf %234, %250 : vector<16x64xf32>
    %252 = vector.extract_strided_slice %225 {offsets = [0, 0], sizes = [16, 64], strides = [1, 1]} : vector<18x64xf32> to vector<16x64xf32>
    %c41 = arith.constant 41 : index
    %c0_69 = arith.constant 0 : index
    %253 = vector.load %arg1[%c41, %c0_69] : memref<160x128xf32, #tpu.memory_space<vmem>>, vector<1x64xf32>
    %254 = vector.broadcast %253 : vector<1x64xf32> to vector<16x64xf32>
    %255 = arith.mulf %254, %252 : vector<16x64xf32>
    %256 = arith.addf %239, %255 : vector<16x64xf32>
    %c50 = arith.constant 50 : index
    %c0_70 = arith.constant 0 : index
    %257 = vector.load %arg1[%c50, %c0_70] : memref<160x128xf32, #tpu.memory_space<vmem>>, vector<1x64xf32>
    %258 = vector.broadcast %257 : vector<1x64xf32> to vector<16x64xf32>
    %259 = arith.mulf %258, %252 : vector<16x64xf32>
    %260 = arith.addf %243, %259 : vector<16x64xf32>
    %c59 = arith.constant 59 : index
    %c0_71 = arith.constant 0 : index
    %261 = vector.load %arg1[%c59, %c0_71] : memref<160x128xf32, #tpu.memory_space<vmem>>, vector<1x64xf32>
    %262 = vector.broadcast %261 : vector<1x64xf32> to vector<16x64xf32>
    %263 = arith.mulf %262, %252 : vector<16x64xf32>
    %264 = arith.addf %247, %263 : vector<16x64xf32>
    %c68 = arith.constant 68 : index
    %c0_72 = arith.constant 0 : index
    %265 = vector.load %arg1[%c68, %c0_72] : memref<160x128xf32, #tpu.memory_space<vmem>>, vector<1x64xf32>
    %266 = vector.broadcast %265 : vector<1x64xf32> to vector<16x64xf32>
    %267 = arith.mulf %266, %252 : vector<16x64xf32>
    %268 = arith.addf %251, %267 : vector<16x64xf32>
    %269 = vector.extract_strided_slice %230 {offsets = [0, 0], sizes = [16, 64], strides = [1, 1]} : vector<18x64xf32> to vector<16x64xf32>
    %c42 = arith.constant 42 : index
    %c0_73 = arith.constant 0 : index
    %270 = vector.load %arg1[%c42, %c0_73] : memref<160x128xf32, #tpu.memory_space<vmem>>, vector<1x64xf32>
    %271 = vector.broadcast %270 : vector<1x64xf32> to vector<16x64xf32>
    %272 = arith.mulf %271, %269 : vector<16x64xf32>
    %273 = arith.addf %256, %272 : vector<16x64xf32>
    %c51 = arith.constant 51 : index
    %c0_74 = arith.constant 0 : index
    %274 = vector.load %arg1[%c51, %c0_74] : memref<160x128xf32, #tpu.memory_space<vmem>>, vector<1x64xf32>
    %275 = vector.broadcast %274 : vector<1x64xf32> to vector<16x64xf32>
    %276 = arith.mulf %275, %269 : vector<16x64xf32>
    %277 = arith.addf %260, %276 : vector<16x64xf32>
    %c60 = arith.constant 60 : index
    %c0_75 = arith.constant 0 : index
    %278 = vector.load %arg1[%c60, %c0_75] : memref<160x128xf32, #tpu.memory_space<vmem>>, vector<1x64xf32>
    %279 = vector.broadcast %278 : vector<1x64xf32> to vector<16x64xf32>
    %280 = arith.mulf %279, %269 : vector<16x64xf32>
    %281 = arith.addf %264, %280 : vector<16x64xf32>
    %c69 = arith.constant 69 : index
    %c0_76 = arith.constant 0 : index
    %282 = vector.load %arg1[%c69, %c0_76] : memref<160x128xf32, #tpu.memory_space<vmem>>, vector<1x64xf32>
    %283 = vector.broadcast %282 : vector<1x64xf32> to vector<16x64xf32>
    %284 = arith.mulf %283, %269 : vector<16x64xf32>
    %285 = arith.addf %268, %284 : vector<16x64xf32>
    %286 = vector.extract_strided_slice %220 {offsets = [1, 0], sizes = [16, 64], strides = [1, 1]} : vector<18x64xf32> to vector<16x64xf32>
    %c43 = arith.constant 43 : index
    %c0_77 = arith.constant 0 : index
    %287 = vector.load %arg1[%c43, %c0_77] : memref<160x128xf32, #tpu.memory_space<vmem>>, vector<1x64xf32>
    %288 = vector.broadcast %287 : vector<1x64xf32> to vector<16x64xf32>
    %289 = arith.mulf %288, %286 : vector<16x64xf32>
    %290 = arith.addf %273, %289 : vector<16x64xf32>
    %c52 = arith.constant 52 : index
    %c0_78 = arith.constant 0 : index
    %291 = vector.load %arg1[%c52, %c0_78] : memref<160x128xf32, #tpu.memory_space<vmem>>, vector<1x64xf32>
    %292 = vector.broadcast %291 : vector<1x64xf32> to vector<16x64xf32>
    %293 = arith.mulf %292, %286 : vector<16x64xf32>
    %294 = arith.addf %277, %293 : vector<16x64xf32>
    %c61 = arith.constant 61 : index
    %c0_79 = arith.constant 0 : index
    %295 = vector.load %arg1[%c61, %c0_79] : memref<160x128xf32, #tpu.memory_space<vmem>>, vector<1x64xf32>
    %296 = vector.broadcast %295 : vector<1x64xf32> to vector<16x64xf32>
    %297 = arith.mulf %296, %286 : vector<16x64xf32>
    %298 = arith.addf %281, %297 : vector<16x64xf32>
    %c70 = arith.constant 70 : index
    %c0_80 = arith.constant 0 : index
    %299 = vector.load %arg1[%c70, %c0_80] : memref<160x128xf32, #tpu.memory_space<vmem>>, vector<1x64xf32>
    %300 = vector.broadcast %299 : vector<1x64xf32> to vector<16x64xf32>
    %301 = arith.mulf %300, %286 : vector<16x64xf32>
    %302 = arith.addf %285, %301 : vector<16x64xf32>
    %303 = vector.extract_strided_slice %225 {offsets = [1, 0], sizes = [16, 64], strides = [1, 1]} : vector<18x64xf32> to vector<16x64xf32>
    %c44 = arith.constant 44 : index
    %c0_81 = arith.constant 0 : index
    %304 = vector.load %arg1[%c44, %c0_81] : memref<160x128xf32, #tpu.memory_space<vmem>>, vector<1x64xf32>
    %305 = vector.broadcast %304 : vector<1x64xf32> to vector<16x64xf32>
    %306 = arith.mulf %305, %303 : vector<16x64xf32>
    %307 = arith.addf %290, %306 : vector<16x64xf32>
    %c53 = arith.constant 53 : index
    %c0_82 = arith.constant 0 : index
    %308 = vector.load %arg1[%c53, %c0_82] : memref<160x128xf32, #tpu.memory_space<vmem>>, vector<1x64xf32>
    %309 = vector.broadcast %308 : vector<1x64xf32> to vector<16x64xf32>
    %310 = arith.mulf %309, %303 : vector<16x64xf32>
    %311 = arith.addf %294, %310 : vector<16x64xf32>
    %c62 = arith.constant 62 : index
    %c0_83 = arith.constant 0 : index
    %312 = vector.load %arg1[%c62, %c0_83] : memref<160x128xf32, #tpu.memory_space<vmem>>, vector<1x64xf32>
    %313 = vector.broadcast %312 : vector<1x64xf32> to vector<16x64xf32>
    %314 = arith.mulf %313, %303 : vector<16x64xf32>
    %315 = arith.addf %298, %314 : vector<16x64xf32>
    %c71 = arith.constant 71 : index
    %c0_84 = arith.constant 0 : index
    %316 = vector.load %arg1[%c71, %c0_84] : memref<160x128xf32, #tpu.memory_space<vmem>>, vector<1x64xf32>
    %317 = vector.broadcast %316 : vector<1x64xf32> to vector<16x64xf32>
    %318 = arith.mulf %317, %303 : vector<16x64xf32>
    %319 = arith.addf %302, %318 : vector<16x64xf32>
    %320 = vector.extract_strided_slice %230 {offsets = [1, 0], sizes = [16, 64], strides = [1, 1]} : vector<18x64xf32> to vector<16x64xf32>
    %c45 = arith.constant 45 : index
    %c0_85 = arith.constant 0 : index
    %321 = vector.load %arg1[%c45, %c0_85] : memref<160x128xf32, #tpu.memory_space<vmem>>, vector<1x64xf32>
    %322 = vector.broadcast %321 : vector<1x64xf32> to vector<16x64xf32>
    %323 = arith.mulf %322, %320 : vector<16x64xf32>
    %324 = arith.addf %307, %323 : vector<16x64xf32>
    %c54 = arith.constant 54 : index
    %c0_86 = arith.constant 0 : index
    %325 = vector.load %arg1[%c54, %c0_86] : memref<160x128xf32, #tpu.memory_space<vmem>>, vector<1x64xf32>
    %326 = vector.broadcast %325 : vector<1x64xf32> to vector<16x64xf32>
    %327 = arith.mulf %326, %320 : vector<16x64xf32>
    %328 = arith.addf %311, %327 : vector<16x64xf32>
    %c63 = arith.constant 63 : index
    %c0_87 = arith.constant 0 : index
    %329 = vector.load %arg1[%c63, %c0_87] : memref<160x128xf32, #tpu.memory_space<vmem>>, vector<1x64xf32>
    %330 = vector.broadcast %329 : vector<1x64xf32> to vector<16x64xf32>
    %331 = arith.mulf %330, %320 : vector<16x64xf32>
    %332 = arith.addf %315, %331 : vector<16x64xf32>
    %c72 = arith.constant 72 : index
    %c0_88 = arith.constant 0 : index
    %333 = vector.load %arg1[%c72, %c0_88] : memref<160x128xf32, #tpu.memory_space<vmem>>, vector<1x64xf32>
    %334 = vector.broadcast %333 : vector<1x64xf32> to vector<16x64xf32>
    %335 = arith.mulf %334, %320 : vector<16x64xf32>
    %336 = arith.addf %319, %335 : vector<16x64xf32>
    %337 = vector.extract_strided_slice %220 {offsets = [2, 0], sizes = [16, 64], strides = [1, 1]} : vector<18x64xf32> to vector<16x64xf32>
    %c46 = arith.constant 46 : index
    %c0_89 = arith.constant 0 : index
    %338 = vector.load %arg1[%c46, %c0_89] : memref<160x128xf32, #tpu.memory_space<vmem>>, vector<1x64xf32>
    %339 = vector.broadcast %338 : vector<1x64xf32> to vector<16x64xf32>
    %340 = arith.mulf %339, %337 : vector<16x64xf32>
    %341 = arith.addf %324, %340 : vector<16x64xf32>
    %c55 = arith.constant 55 : index
    %c0_90 = arith.constant 0 : index
    %342 = vector.load %arg1[%c55, %c0_90] : memref<160x128xf32, #tpu.memory_space<vmem>>, vector<1x64xf32>
    %343 = vector.broadcast %342 : vector<1x64xf32> to vector<16x64xf32>
    %344 = arith.mulf %343, %337 : vector<16x64xf32>
    %345 = arith.addf %328, %344 : vector<16x64xf32>
    %c64 = arith.constant 64 : index
    %c0_91 = arith.constant 0 : index
    %346 = vector.load %arg1[%c64, %c0_91] : memref<160x128xf32, #tpu.memory_space<vmem>>, vector<1x64xf32>
    %347 = vector.broadcast %346 : vector<1x64xf32> to vector<16x64xf32>
    %348 = arith.mulf %347, %337 : vector<16x64xf32>
    %349 = arith.addf %332, %348 : vector<16x64xf32>
    %c73 = arith.constant 73 : index
    %c0_92 = arith.constant 0 : index
    %350 = vector.load %arg1[%c73, %c0_92] : memref<160x128xf32, #tpu.memory_space<vmem>>, vector<1x64xf32>
    %351 = vector.broadcast %350 : vector<1x64xf32> to vector<16x64xf32>
    %352 = arith.mulf %351, %337 : vector<16x64xf32>
    %353 = arith.addf %336, %352 : vector<16x64xf32>
    %354 = vector.extract_strided_slice %225 {offsets = [2, 0], sizes = [16, 64], strides = [1, 1]} : vector<18x64xf32> to vector<16x64xf32>
    %c47 = arith.constant 47 : index
    %c0_93 = arith.constant 0 : index
    %355 = vector.load %arg1[%c47, %c0_93] : memref<160x128xf32, #tpu.memory_space<vmem>>, vector<1x64xf32>
    %356 = vector.broadcast %355 : vector<1x64xf32> to vector<16x64xf32>
    %357 = arith.mulf %356, %354 : vector<16x64xf32>
    %358 = arith.addf %341, %357 : vector<16x64xf32>
    %c56 = arith.constant 56 : index
    %c0_94 = arith.constant 0 : index
    %359 = vector.load %arg1[%c56, %c0_94] : memref<160x128xf32, #tpu.memory_space<vmem>>, vector<1x64xf32>
    %360 = vector.broadcast %359 : vector<1x64xf32> to vector<16x64xf32>
    %361 = arith.mulf %360, %354 : vector<16x64xf32>
    %362 = arith.addf %345, %361 : vector<16x64xf32>
    %c65 = arith.constant 65 : index
    %c0_95 = arith.constant 0 : index
    %363 = vector.load %arg1[%c65, %c0_95] : memref<160x128xf32, #tpu.memory_space<vmem>>, vector<1x64xf32>
    %364 = vector.broadcast %363 : vector<1x64xf32> to vector<16x64xf32>
    %365 = arith.mulf %364, %354 : vector<16x64xf32>
    %366 = arith.addf %349, %365 : vector<16x64xf32>
    %c74 = arith.constant 74 : index
    %c0_96 = arith.constant 0 : index
    %367 = vector.load %arg1[%c74, %c0_96] : memref<160x128xf32, #tpu.memory_space<vmem>>, vector<1x64xf32>
    %368 = vector.broadcast %367 : vector<1x64xf32> to vector<16x64xf32>
    %369 = arith.mulf %368, %354 : vector<16x64xf32>
    %370 = arith.addf %353, %369 : vector<16x64xf32>
    %371 = vector.extract_strided_slice %230 {offsets = [2, 0], sizes = [16, 64], strides = [1, 1]} : vector<18x64xf32> to vector<16x64xf32>
    %c48 = arith.constant 48 : index
    %c0_97 = arith.constant 0 : index
    %372 = vector.load %arg1[%c48, %c0_97] : memref<160x128xf32, #tpu.memory_space<vmem>>, vector<1x64xf32>
    %373 = vector.broadcast %372 : vector<1x64xf32> to vector<16x64xf32>
    %374 = arith.mulf %373, %371 : vector<16x64xf32>
    %375 = arith.addf %358, %374 : vector<16x64xf32>
    %c57 = arith.constant 57 : index
    %c0_98 = arith.constant 0 : index
    %376 = vector.load %arg1[%c57, %c0_98] : memref<160x128xf32, #tpu.memory_space<vmem>>, vector<1x64xf32>
    %377 = vector.broadcast %376 : vector<1x64xf32> to vector<16x64xf32>
    %378 = arith.mulf %377, %371 : vector<16x64xf32>
    %379 = arith.addf %362, %378 : vector<16x64xf32>
    %c66 = arith.constant 66 : index
    %c0_99 = arith.constant 0 : index
    %380 = vector.load %arg1[%c66, %c0_99] : memref<160x128xf32, #tpu.memory_space<vmem>>, vector<1x64xf32>
    %381 = vector.broadcast %380 : vector<1x64xf32> to vector<16x64xf32>
    %382 = arith.mulf %381, %371 : vector<16x64xf32>
    %383 = arith.addf %366, %382 : vector<16x64xf32>
    %c75 = arith.constant 75 : index
    %c0_100 = arith.constant 0 : index
    %384 = vector.load %arg1[%c75, %c0_100] : memref<160x128xf32, #tpu.memory_space<vmem>>, vector<1x64xf32>
    %385 = vector.broadcast %384 : vector<1x64xf32> to vector<16x64xf32>
    %386 = arith.mulf %385, %371 : vector<16x64xf32>
    %387 = arith.addf %370, %386 : vector<16x64xf32>
    %388 = vector.extract_strided_slice %375 {offsets = [0, 0], sizes = [16, 16], strides = [1, 1]} : vector<16x64xf32> to vector<16x16xf32>
    %389 = vector.extract_strided_slice %375 {offsets = [0, 16], sizes = [16, 16], strides = [1, 1]} : vector<16x64xf32> to vector<16x16xf32>
    %390 = arith.addf %388, %389 : vector<16x16xf32>
    %391 = vector.extract_strided_slice %375 {offsets = [0, 32], sizes = [16, 16], strides = [1, 1]} : vector<16x64xf32> to vector<16x16xf32>
    %392 = arith.addf %390, %391 : vector<16x16xf32>
    %393 = vector.extract_strided_slice %375 {offsets = [0, 48], sizes = [16, 16], strides = [1, 1]} : vector<16x64xf32> to vector<16x16xf32>
    %394 = arith.addf %392, %393 : vector<16x16xf32>
    %395 = vector.extract_strided_slice %2 {offsets = [2, 2], sizes = [16, 16], strides = [1, 1]} : vector<20x72xf32> to vector<16x16xf32>
    %396 = arith.addf %395, %394 : vector<16x16xf32>
    %c76 = arith.constant 76 : index
    %c0_101 = arith.constant 0 : index
    %397 = vector.load %arg1[%c76, %c0_101] : memref<160x128xf32, #tpu.memory_space<vmem>>, vector<1x16xf32>
    %398 = vector.broadcast %397 : vector<1x16xf32> to vector<16x16xf32>
    %399 = arith.addf %396, %398 : vector<16x16xf32>
    %400 = vector.extract_strided_slice %379 {offsets = [0, 0], sizes = [16, 16], strides = [1, 1]} : vector<16x64xf32> to vector<16x16xf32>
    %401 = vector.extract_strided_slice %379 {offsets = [0, 16], sizes = [16, 16], strides = [1, 1]} : vector<16x64xf32> to vector<16x16xf32>
    %402 = arith.addf %400, %401 : vector<16x16xf32>
    %403 = vector.extract_strided_slice %379 {offsets = [0, 32], sizes = [16, 16], strides = [1, 1]} : vector<16x64xf32> to vector<16x16xf32>
    %404 = arith.addf %402, %403 : vector<16x16xf32>
    %405 = vector.extract_strided_slice %379 {offsets = [0, 48], sizes = [16, 16], strides = [1, 1]} : vector<16x64xf32> to vector<16x16xf32>
    %406 = arith.addf %404, %405 : vector<16x16xf32>
    %407 = vector.extract_strided_slice %2 {offsets = [2, 20], sizes = [16, 16], strides = [1, 1]} : vector<20x72xf32> to vector<16x16xf32>
    %408 = arith.addf %407, %406 : vector<16x16xf32>
    %c77 = arith.constant 77 : index
    %c0_102 = arith.constant 0 : index
    %409 = vector.load %arg1[%c77, %c0_102] : memref<160x128xf32, #tpu.memory_space<vmem>>, vector<1x16xf32>
    %410 = vector.broadcast %409 : vector<1x16xf32> to vector<16x16xf32>
    %411 = arith.addf %408, %410 : vector<16x16xf32>
    %412 = vector.extract_strided_slice %383 {offsets = [0, 0], sizes = [16, 16], strides = [1, 1]} : vector<16x64xf32> to vector<16x16xf32>
    %413 = vector.extract_strided_slice %383 {offsets = [0, 16], sizes = [16, 16], strides = [1, 1]} : vector<16x64xf32> to vector<16x16xf32>
    %414 = arith.addf %412, %413 : vector<16x16xf32>
    %415 = vector.extract_strided_slice %383 {offsets = [0, 32], sizes = [16, 16], strides = [1, 1]} : vector<16x64xf32> to vector<16x16xf32>
    %416 = arith.addf %414, %415 : vector<16x16xf32>
    %417 = vector.extract_strided_slice %383 {offsets = [0, 48], sizes = [16, 16], strides = [1, 1]} : vector<16x64xf32> to vector<16x16xf32>
    %418 = arith.addf %416, %417 : vector<16x16xf32>
    %419 = vector.extract_strided_slice %2 {offsets = [2, 38], sizes = [16, 16], strides = [1, 1]} : vector<20x72xf32> to vector<16x16xf32>
    %420 = arith.addf %419, %418 : vector<16x16xf32>
    %c78 = arith.constant 78 : index
    %c0_103 = arith.constant 0 : index
    %421 = vector.load %arg1[%c78, %c0_103] : memref<160x128xf32, #tpu.memory_space<vmem>>, vector<1x16xf32>
    %422 = vector.broadcast %421 : vector<1x16xf32> to vector<16x16xf32>
    %423 = arith.addf %420, %422 : vector<16x16xf32>
    %424 = vector.extract_strided_slice %387 {offsets = [0, 0], sizes = [16, 16], strides = [1, 1]} : vector<16x64xf32> to vector<16x16xf32>
    %425 = vector.extract_strided_slice %387 {offsets = [0, 16], sizes = [16, 16], strides = [1, 1]} : vector<16x64xf32> to vector<16x16xf32>
    %426 = arith.addf %424, %425 : vector<16x16xf32>
    %427 = vector.extract_strided_slice %387 {offsets = [0, 32], sizes = [16, 16], strides = [1, 1]} : vector<16x64xf32> to vector<16x16xf32>
    %428 = arith.addf %426, %427 : vector<16x16xf32>
    %429 = vector.extract_strided_slice %387 {offsets = [0, 48], sizes = [16, 16], strides = [1, 1]} : vector<16x64xf32> to vector<16x16xf32>
    %430 = arith.addf %428, %429 : vector<16x16xf32>
    %431 = vector.extract_strided_slice %2 {offsets = [2, 56], sizes = [16, 16], strides = [1, 1]} : vector<20x72xf32> to vector<16x16xf32>
    %432 = arith.addf %431, %430 : vector<16x16xf32>
    %c79 = arith.constant 79 : index
    %c0_104 = arith.constant 0 : index
    %433 = vector.load %arg1[%c79, %c0_104] : memref<160x128xf32, #tpu.memory_space<vmem>>, vector<1x16xf32>
    %434 = vector.broadcast %433 : vector<1x16xf32> to vector<16x16xf32>
    %435 = arith.addf %432, %434 : vector<16x16xf32>
    %436 = vector.shape_cast %399 : vector<16x16xf32> to vector<1x16x16xf32>
    %437 = vector.shape_cast %411 : vector<16x16xf32> to vector<1x16x16xf32>
    %438 = vector.shape_cast %423 : vector<16x16xf32> to vector<1x16x16xf32>
    %439 = vector.shape_cast %435 : vector<16x16xf32> to vector<1x16x16xf32>
    %440 = tpu.concatenate %436, %437, %438, %439 in 0 : vector<1x16x16xf32>, vector<1x16x16xf32>, vector<1x16x16xf32>, vector<1x16x16xf32> -> vector<4x16x16xf32>
    %441 = arith.truncf %440 : vector<4x16x16xf32> to vector<4x16x16xbf16>
    %cst_105 = arith.constant 0.000000e+00 : f32
    %442 = vector.broadcast %cst_105 : f32 to vector<4x16x16xf32>
    %cst_106 = arith.constant 0.000000e+00 : f32
    %443 = vector.broadcast %cst_106 : f32 to vector<4x16x16xf32>
    %c0_107 = arith.constant 0 : index
    %c0_108 = arith.constant 0 : index
    %c0_109 = arith.constant 0 : index
    %c0_110 = arith.constant 0 : index
    %c0_111 = arith.constant 0 : index
    %444 = vector.load %arg4[%c0_107, %c0_108, %c0_109, %c0_110, %c0_111] : memref<1x3x3x20x72xf32, #tpu.memory_space<vmem>>, vector<1x1x1x20x72xf32>
    %445 = vector.shape_cast %444 : vector<1x1x1x20x72xf32> to vector<20x72xf32>
    %c0_112 = arith.constant 0 : index
    %c0_113 = arith.constant 0 : index
    %c1_114 = arith.constant 1 : index
    %c0_115 = arith.constant 0 : index
    %c0_116 = arith.constant 0 : index
    %446 = vector.load %arg4[%c0_112, %c0_113, %c1_114, %c0_115, %c0_116] : memref<1x3x3x20x72xf32, #tpu.memory_space<vmem>>, vector<1x1x1x20x72xf32>
    %447 = vector.shape_cast %446 : vector<1x1x1x20x72xf32> to vector<20x72xf32>
    %c0_117 = arith.constant 0 : index
    %c0_118 = arith.constant 0 : index
    %c2_119 = arith.constant 2 : index
    %c0_120 = arith.constant 0 : index
    %c0_121 = arith.constant 0 : index
    %448 = vector.load %arg4[%c0_117, %c0_118, %c2_119, %c0_120, %c0_121] : memref<1x3x3x20x72xf32, #tpu.memory_space<vmem>>, vector<1x1x1x20x72xf32>
    %449 = vector.shape_cast %448 : vector<1x1x1x20x72xf32> to vector<20x72xf32>
    %cst_122 = arith.constant 0.000000e+00 : f32
    %450 = vector.broadcast %cst_122 : f32 to vector<18x72xf32>
    %cst_123 = arith.constant 0.000000e+00 : f32
    %451 = vector.broadcast %cst_123 : f32 to vector<18x72xf32>
    %cst_124 = arith.constant 0.000000e+00 : f32
    %452 = vector.broadcast %cst_124 : f32 to vector<18x72xf32>
    %cst_125 = arith.constant 0.000000e+00 : f32
    %453 = vector.broadcast %cst_125 : f32 to vector<18x72xf32>
    %454 = vector.extract_strided_slice %445 {offsets = [0, 0], sizes = [18, 72], strides = [1, 1]} : vector<20x72xf32> to vector<18x72xf32>
    %c80 = arith.constant 80 : index
    %c0_126 = arith.constant 0 : index
    %455 = vector.load %arg1[%c80, %c0_126] : memref<160x128xf32, #tpu.memory_space<vmem>>, vector<1x72xf32>
    %456 = vector.broadcast %455 : vector<1x72xf32> to vector<18x72xf32>
    %457 = arith.mulf %456, %454 : vector<18x72xf32>
    %458 = arith.addf %450, %457 : vector<18x72xf32>
    %c89 = arith.constant 89 : index
    %c0_127 = arith.constant 0 : index
    %459 = vector.load %arg1[%c89, %c0_127] : memref<160x128xf32, #tpu.memory_space<vmem>>, vector<1x72xf32>
    %460 = vector.broadcast %459 : vector<1x72xf32> to vector<18x72xf32>
    %461 = arith.mulf %460, %454 : vector<18x72xf32>
    %462 = arith.addf %451, %461 : vector<18x72xf32>
    %c98 = arith.constant 98 : index
    %c0_128 = arith.constant 0 : index
    %463 = vector.load %arg1[%c98, %c0_128] : memref<160x128xf32, #tpu.memory_space<vmem>>, vector<1x72xf32>
    %464 = vector.broadcast %463 : vector<1x72xf32> to vector<18x72xf32>
    %465 = arith.mulf %464, %454 : vector<18x72xf32>
    %466 = arith.addf %452, %465 : vector<18x72xf32>
    %c107 = arith.constant 107 : index
    %c0_129 = arith.constant 0 : index
    %467 = vector.load %arg1[%c107, %c0_129] : memref<160x128xf32, #tpu.memory_space<vmem>>, vector<1x72xf32>
    %468 = vector.broadcast %467 : vector<1x72xf32> to vector<18x72xf32>
    %469 = arith.mulf %468, %454 : vector<18x72xf32>
    %470 = arith.addf %453, %469 : vector<18x72xf32>
    %471 = vector.extract_strided_slice %447 {offsets = [0, 0], sizes = [18, 72], strides = [1, 1]} : vector<20x72xf32> to vector<18x72xf32>
    %c81 = arith.constant 81 : index
    %c0_130 = arith.constant 0 : index
    %472 = vector.load %arg1[%c81, %c0_130] : memref<160x128xf32, #tpu.memory_space<vmem>>, vector<1x72xf32>
    %473 = vector.broadcast %472 : vector<1x72xf32> to vector<18x72xf32>
    %474 = arith.mulf %473, %471 : vector<18x72xf32>
    %475 = arith.addf %458, %474 : vector<18x72xf32>
    %c90 = arith.constant 90 : index
    %c0_131 = arith.constant 0 : index
    %476 = vector.load %arg1[%c90, %c0_131] : memref<160x128xf32, #tpu.memory_space<vmem>>, vector<1x72xf32>
    %477 = vector.broadcast %476 : vector<1x72xf32> to vector<18x72xf32>
    %478 = arith.mulf %477, %471 : vector<18x72xf32>
    %479 = arith.addf %462, %478 : vector<18x72xf32>
    %c99 = arith.constant 99 : index
    %c0_132 = arith.constant 0 : index
    %480 = vector.load %arg1[%c99, %c0_132] : memref<160x128xf32, #tpu.memory_space<vmem>>, vector<1x72xf32>
    %481 = vector.broadcast %480 : vector<1x72xf32> to vector<18x72xf32>
    %482 = arith.mulf %481, %471 : vector<18x72xf32>
    %483 = arith.addf %466, %482 : vector<18x72xf32>
    %c108 = arith.constant 108 : index
    %c0_133 = arith.constant 0 : index
    %484 = vector.load %arg1[%c108, %c0_133] : memref<160x128xf32, #tpu.memory_space<vmem>>, vector<1x72xf32>
    %485 = vector.broadcast %484 : vector<1x72xf32> to vector<18x72xf32>
    %486 = arith.mulf %485, %471 : vector<18x72xf32>
    %487 = arith.addf %470, %486 : vector<18x72xf32>
    %488 = vector.extract_strided_slice %449 {offsets = [0, 0], sizes = [18, 72], strides = [1, 1]} : vector<20x72xf32> to vector<18x72xf32>
    %c82 = arith.constant 82 : index
    %c0_134 = arith.constant 0 : index
    %489 = vector.load %arg1[%c82, %c0_134] : memref<160x128xf32, #tpu.memory_space<vmem>>, vector<1x72xf32>
    %490 = vector.broadcast %489 : vector<1x72xf32> to vector<18x72xf32>
    %491 = arith.mulf %490, %488 : vector<18x72xf32>
    %492 = arith.addf %475, %491 : vector<18x72xf32>
    %c91 = arith.constant 91 : index
    %c0_135 = arith.constant 0 : index
    %493 = vector.load %arg1[%c91, %c0_135] : memref<160x128xf32, #tpu.memory_space<vmem>>, vector<1x72xf32>
    %494 = vector.broadcast %493 : vector<1x72xf32> to vector<18x72xf32>
    %495 = arith.mulf %494, %488 : vector<18x72xf32>
    %496 = arith.addf %479, %495 : vector<18x72xf32>
    %c100 = arith.constant 100 : index
    %c0_136 = arith.constant 0 : index
    %497 = vector.load %arg1[%c100, %c0_136] : memref<160x128xf32, #tpu.memory_space<vmem>>, vector<1x72xf32>
    %498 = vector.broadcast %497 : vector<1x72xf32> to vector<18x72xf32>
    %499 = arith.mulf %498, %488 : vector<18x72xf32>
    %500 = arith.addf %483, %499 : vector<18x72xf32>
    %c109 = arith.constant 109 : index
    %c0_137 = arith.constant 0 : index
    %501 = vector.load %arg1[%c109, %c0_137] : memref<160x128xf32, #tpu.memory_space<vmem>>, vector<1x72xf32>
    %502 = vector.broadcast %501 : vector<1x72xf32> to vector<18x72xf32>
    %503 = arith.mulf %502, %488 : vector<18x72xf32>
    %504 = arith.addf %487, %503 : vector<18x72xf32>
    %505 = vector.extract_strided_slice %445 {offsets = [1, 0], sizes = [18, 72], strides = [1, 1]} : vector<20x72xf32> to vector<18x72xf32>
    %c83 = arith.constant 83 : index
    %c0_138 = arith.constant 0 : index
    %506 = vector.load %arg1[%c83, %c0_138] : memref<160x128xf32, #tpu.memory_space<vmem>>, vector<1x72xf32>
    %507 = vector.broadcast %506 : vector<1x72xf32> to vector<18x72xf32>
    %508 = arith.mulf %507, %505 : vector<18x72xf32>
    %509 = arith.addf %492, %508 : vector<18x72xf32>
    %c92 = arith.constant 92 : index
    %c0_139 = arith.constant 0 : index
    %510 = vector.load %arg1[%c92, %c0_139] : memref<160x128xf32, #tpu.memory_space<vmem>>, vector<1x72xf32>
    %511 = vector.broadcast %510 : vector<1x72xf32> to vector<18x72xf32>
    %512 = arith.mulf %511, %505 : vector<18x72xf32>
    %513 = arith.addf %496, %512 : vector<18x72xf32>
    %c101 = arith.constant 101 : index
    %c0_140 = arith.constant 0 : index
    %514 = vector.load %arg1[%c101, %c0_140] : memref<160x128xf32, #tpu.memory_space<vmem>>, vector<1x72xf32>
    %515 = vector.broadcast %514 : vector<1x72xf32> to vector<18x72xf32>
    %516 = arith.mulf %515, %505 : vector<18x72xf32>
    %517 = arith.addf %500, %516 : vector<18x72xf32>
    %c110 = arith.constant 110 : index
    %c0_141 = arith.constant 0 : index
    %518 = vector.load %arg1[%c110, %c0_141] : memref<160x128xf32, #tpu.memory_space<vmem>>, vector<1x72xf32>
    %519 = vector.broadcast %518 : vector<1x72xf32> to vector<18x72xf32>
    %520 = arith.mulf %519, %505 : vector<18x72xf32>
    %521 = arith.addf %504, %520 : vector<18x72xf32>
    %522 = vector.extract_strided_slice %447 {offsets = [1, 0], sizes = [18, 72], strides = [1, 1]} : vector<20x72xf32> to vector<18x72xf32>
    %c84 = arith.constant 84 : index
    %c0_142 = arith.constant 0 : index
    %523 = vector.load %arg1[%c84, %c0_142] : memref<160x128xf32, #tpu.memory_space<vmem>>, vector<1x72xf32>
    %524 = vector.broadcast %523 : vector<1x72xf32> to vector<18x72xf32>
    %525 = arith.mulf %524, %522 : vector<18x72xf32>
    %526 = arith.addf %509, %525 : vector<18x72xf32>
    %c93 = arith.constant 93 : index
    %c0_143 = arith.constant 0 : index
    %527 = vector.load %arg1[%c93, %c0_143] : memref<160x128xf32, #tpu.memory_space<vmem>>, vector<1x72xf32>
    %528 = vector.broadcast %527 : vector<1x72xf32> to vector<18x72xf32>
    %529 = arith.mulf %528, %522 : vector<18x72xf32>
    %530 = arith.addf %513, %529 : vector<18x72xf32>
    %c102 = arith.constant 102 : index
    %c0_144 = arith.constant 0 : index
    %531 = vector.load %arg1[%c102, %c0_144] : memref<160x128xf32, #tpu.memory_space<vmem>>, vector<1x72xf32>
    %532 = vector.broadcast %531 : vector<1x72xf32> to vector<18x72xf32>
    %533 = arith.mulf %532, %522 : vector<18x72xf32>
    %534 = arith.addf %517, %533 : vector<18x72xf32>
    %c111 = arith.constant 111 : index
    %c0_145 = arith.constant 0 : index
    %535 = vector.load %arg1[%c111, %c0_145] : memref<160x128xf32, #tpu.memory_space<vmem>>, vector<1x72xf32>
    %536 = vector.broadcast %535 : vector<1x72xf32> to vector<18x72xf32>
    %537 = arith.mulf %536, %522 : vector<18x72xf32>
    %538 = arith.addf %521, %537 : vector<18x72xf32>
    %539 = vector.extract_strided_slice %449 {offsets = [1, 0], sizes = [18, 72], strides = [1, 1]} : vector<20x72xf32> to vector<18x72xf32>
    %c85 = arith.constant 85 : index
    %c0_146 = arith.constant 0 : index
    %540 = vector.load %arg1[%c85, %c0_146] : memref<160x128xf32, #tpu.memory_space<vmem>>, vector<1x72xf32>
    %541 = vector.broadcast %540 : vector<1x72xf32> to vector<18x72xf32>
    %542 = arith.mulf %541, %539 : vector<18x72xf32>
    %543 = arith.addf %526, %542 : vector<18x72xf32>
    %c94 = arith.constant 94 : index
    %c0_147 = arith.constant 0 : index
    %544 = vector.load %arg1[%c94, %c0_147] : memref<160x128xf32, #tpu.memory_space<vmem>>, vector<1x72xf32>
    %545 = vector.broadcast %544 : vector<1x72xf32> to vector<18x72xf32>
    %546 = arith.mulf %545, %539 : vector<18x72xf32>
    %547 = arith.addf %530, %546 : vector<18x72xf32>
    %c103 = arith.constant 103 : index
    %c0_148 = arith.constant 0 : index
    %548 = vector.load %arg1[%c103, %c0_148] : memref<160x128xf32, #tpu.memory_space<vmem>>, vector<1x72xf32>
    %549 = vector.broadcast %548 : vector<1x72xf32> to vector<18x72xf32>
    %550 = arith.mulf %549, %539 : vector<18x72xf32>
    %551 = arith.addf %534, %550 : vector<18x72xf32>
    %c112 = arith.constant 112 : index
    %c0_149 = arith.constant 0 : index
    %552 = vector.load %arg1[%c112, %c0_149] : memref<160x128xf32, #tpu.memory_space<vmem>>, vector<1x72xf32>
    %553 = vector.broadcast %552 : vector<1x72xf32> to vector<18x72xf32>
    %554 = arith.mulf %553, %539 : vector<18x72xf32>
    %555 = arith.addf %538, %554 : vector<18x72xf32>
    %556 = vector.extract_strided_slice %445 {offsets = [2, 0], sizes = [18, 72], strides = [1, 1]} : vector<20x72xf32> to vector<18x72xf32>
    %c86 = arith.constant 86 : index
    %c0_150 = arith.constant 0 : index
    %557 = vector.load %arg1[%c86, %c0_150] : memref<160x128xf32, #tpu.memory_space<vmem>>, vector<1x72xf32>
    %558 = vector.broadcast %557 : vector<1x72xf32> to vector<18x72xf32>
    %559 = arith.mulf %558, %556 : vector<18x72xf32>
    %560 = arith.addf %543, %559 : vector<18x72xf32>
    %c95 = arith.constant 95 : index
    %c0_151 = arith.constant 0 : index
    %561 = vector.load %arg1[%c95, %c0_151] : memref<160x128xf32, #tpu.memory_space<vmem>>, vector<1x72xf32>
    %562 = vector.broadcast %561 : vector<1x72xf32> to vector<18x72xf32>
    %563 = arith.mulf %562, %556 : vector<18x72xf32>
    %564 = arith.addf %547, %563 : vector<18x72xf32>
    %c104 = arith.constant 104 : index
    %c0_152 = arith.constant 0 : index
    %565 = vector.load %arg1[%c104, %c0_152] : memref<160x128xf32, #tpu.memory_space<vmem>>, vector<1x72xf32>
    %566 = vector.broadcast %565 : vector<1x72xf32> to vector<18x72xf32>
    %567 = arith.mulf %566, %556 : vector<18x72xf32>
    %568 = arith.addf %551, %567 : vector<18x72xf32>
    %c113 = arith.constant 113 : index
    %c0_153 = arith.constant 0 : index
    %569 = vector.load %arg1[%c113, %c0_153] : memref<160x128xf32, #tpu.memory_space<vmem>>, vector<1x72xf32>
    %570 = vector.broadcast %569 : vector<1x72xf32> to vector<18x72xf32>
    %571 = arith.mulf %570, %556 : vector<18x72xf32>
    %572 = arith.addf %555, %571 : vector<18x72xf32>
    %573 = vector.extract_strided_slice %447 {offsets = [2, 0], sizes = [18, 72], strides = [1, 1]} : vector<20x72xf32> to vector<18x72xf32>
    %c87 = arith.constant 87 : index
    %c0_154 = arith.constant 0 : index
    %574 = vector.load %arg1[%c87, %c0_154] : memref<160x128xf32, #tpu.memory_space<vmem>>, vector<1x72xf32>
    %575 = vector.broadcast %574 : vector<1x72xf32> to vector<18x72xf32>
    %576 = arith.mulf %575, %573 : vector<18x72xf32>
    %577 = arith.addf %560, %576 : vector<18x72xf32>
    %c96 = arith.constant 96 : index
    %c0_155 = arith.constant 0 : index
    %578 = vector.load %arg1[%c96, %c0_155] : memref<160x128xf32, #tpu.memory_space<vmem>>, vector<1x72xf32>
    %579 = vector.broadcast %578 : vector<1x72xf32> to vector<18x72xf32>
    %580 = arith.mulf %579, %573 : vector<18x72xf32>
    %581 = arith.addf %564, %580 : vector<18x72xf32>
    %c105 = arith.constant 105 : index
    %c0_156 = arith.constant 0 : index
    %582 = vector.load %arg1[%c105, %c0_156] : memref<160x128xf32, #tpu.memory_space<vmem>>, vector<1x72xf32>
    %583 = vector.broadcast %582 : vector<1x72xf32> to vector<18x72xf32>
    %584 = arith.mulf %583, %573 : vector<18x72xf32>
    %585 = arith.addf %568, %584 : vector<18x72xf32>
    %c114 = arith.constant 114 : index
    %c0_157 = arith.constant 0 : index
    %586 = vector.load %arg1[%c114, %c0_157] : memref<160x128xf32, #tpu.memory_space<vmem>>, vector<1x72xf32>
    %587 = vector.broadcast %586 : vector<1x72xf32> to vector<18x72xf32>
    %588 = arith.mulf %587, %573 : vector<18x72xf32>
    %589 = arith.addf %572, %588 : vector<18x72xf32>
    %590 = vector.extract_strided_slice %449 {offsets = [2, 0], sizes = [18, 72], strides = [1, 1]} : vector<20x72xf32> to vector<18x72xf32>
    %c88 = arith.constant 88 : index
    %c0_158 = arith.constant 0 : index
    %591 = vector.load %arg1[%c88, %c0_158] : memref<160x128xf32, #tpu.memory_space<vmem>>, vector<1x72xf32>
    %592 = vector.broadcast %591 : vector<1x72xf32> to vector<18x72xf32>
    %593 = arith.mulf %592, %590 : vector<18x72xf32>
    %594 = arith.addf %577, %593 : vector<18x72xf32>
    %c97 = arith.constant 97 : index
    %c0_159 = arith.constant 0 : index
    %595 = vector.load %arg1[%c97, %c0_159] : memref<160x128xf32, #tpu.memory_space<vmem>>, vector<1x72xf32>
    %596 = vector.broadcast %595 : vector<1x72xf32> to vector<18x72xf32>
    %597 = arith.mulf %596, %590 : vector<18x72xf32>
    %598 = arith.addf %581, %597 : vector<18x72xf32>
    %c106 = arith.constant 106 : index
    %c0_160 = arith.constant 0 : index
    %599 = vector.load %arg1[%c106, %c0_160] : memref<160x128xf32, #tpu.memory_space<vmem>>, vector<1x72xf32>
    %600 = vector.broadcast %599 : vector<1x72xf32> to vector<18x72xf32>
    %601 = arith.mulf %600, %590 : vector<18x72xf32>
    %602 = arith.addf %585, %601 : vector<18x72xf32>
    %c115 = arith.constant 115 : index
    %c0_161 = arith.constant 0 : index
    %603 = vector.load %arg1[%c115, %c0_161] : memref<160x128xf32, #tpu.memory_space<vmem>>, vector<1x72xf32>
    %604 = vector.broadcast %603 : vector<1x72xf32> to vector<18x72xf32>
    %605 = arith.mulf %604, %590 : vector<18x72xf32>
    %606 = arith.addf %589, %605 : vector<18x72xf32>
    %607 = vector.extract_strided_slice %594 {offsets = [0, 0], sizes = [18, 18], strides = [1, 1]} : vector<18x72xf32> to vector<18x18xf32>
    %608 = vector.extract_strided_slice %594 {offsets = [0, 18], sizes = [18, 18], strides = [1, 1]} : vector<18x72xf32> to vector<18x18xf32>
    %609 = arith.addf %607, %608 : vector<18x18xf32>
    %610 = vector.extract_strided_slice %594 {offsets = [0, 36], sizes = [18, 18], strides = [1, 1]} : vector<18x72xf32> to vector<18x18xf32>
    %611 = arith.addf %609, %610 : vector<18x18xf32>
    %612 = vector.extract_strided_slice %594 {offsets = [0, 54], sizes = [18, 18], strides = [1, 1]} : vector<18x72xf32> to vector<18x18xf32>
    %613 = arith.addf %611, %612 : vector<18x18xf32>
    %c116 = arith.constant 116 : index
    %c0_162 = arith.constant 0 : index
    %614 = vector.load %arg1[%c116, %c0_162] : memref<160x128xf32, #tpu.memory_space<vmem>>, vector<1x18xf32>
    %615 = vector.broadcast %614 : vector<1x18xf32> to vector<18x18xf32>
    %616 = arith.addf %613, %615 : vector<18x18xf32>
    %cst_163 = arith.constant 0.000000e+00 : f32
    %617 = vector.broadcast %cst_163 : f32 to vector<18x18xf32>
    %618 = arith.maximumf %616, %617 : vector<18x18xf32>
    %619 = arith.mulf %618, %0 : vector<18x18xf32>
    %620 = vector.extract_strided_slice %598 {offsets = [0, 0], sizes = [18, 18], strides = [1, 1]} : vector<18x72xf32> to vector<18x18xf32>
    %621 = vector.extract_strided_slice %598 {offsets = [0, 18], sizes = [18, 18], strides = [1, 1]} : vector<18x72xf32> to vector<18x18xf32>
    %622 = arith.addf %620, %621 : vector<18x18xf32>
    %623 = vector.extract_strided_slice %598 {offsets = [0, 36], sizes = [18, 18], strides = [1, 1]} : vector<18x72xf32> to vector<18x18xf32>
    %624 = arith.addf %622, %623 : vector<18x18xf32>
    %625 = vector.extract_strided_slice %598 {offsets = [0, 54], sizes = [18, 18], strides = [1, 1]} : vector<18x72xf32> to vector<18x18xf32>
    %626 = arith.addf %624, %625 : vector<18x18xf32>
    %c117 = arith.constant 117 : index
    %c0_164 = arith.constant 0 : index
    %627 = vector.load %arg1[%c117, %c0_164] : memref<160x128xf32, #tpu.memory_space<vmem>>, vector<1x18xf32>
    %628 = vector.broadcast %627 : vector<1x18xf32> to vector<18x18xf32>
    %629 = arith.addf %626, %628 : vector<18x18xf32>
    %cst_165 = arith.constant 0.000000e+00 : f32
    %630 = vector.broadcast %cst_165 : f32 to vector<18x18xf32>
    %631 = arith.maximumf %629, %630 : vector<18x18xf32>
    %632 = arith.mulf %631, %0 : vector<18x18xf32>
    %633 = vector.extract_strided_slice %602 {offsets = [0, 0], sizes = [18, 18], strides = [1, 1]} : vector<18x72xf32> to vector<18x18xf32>
    %634 = vector.extract_strided_slice %602 {offsets = [0, 18], sizes = [18, 18], strides = [1, 1]} : vector<18x72xf32> to vector<18x18xf32>
    %635 = arith.addf %633, %634 : vector<18x18xf32>
    %636 = vector.extract_strided_slice %602 {offsets = [0, 36], sizes = [18, 18], strides = [1, 1]} : vector<18x72xf32> to vector<18x18xf32>
    %637 = arith.addf %635, %636 : vector<18x18xf32>
    %638 = vector.extract_strided_slice %602 {offsets = [0, 54], sizes = [18, 18], strides = [1, 1]} : vector<18x72xf32> to vector<18x18xf32>
    %639 = arith.addf %637, %638 : vector<18x18xf32>
    %c118 = arith.constant 118 : index
    %c0_166 = arith.constant 0 : index
    %640 = vector.load %arg1[%c118, %c0_166] : memref<160x128xf32, #tpu.memory_space<vmem>>, vector<1x18xf32>
    %641 = vector.broadcast %640 : vector<1x18xf32> to vector<18x18xf32>
    %642 = arith.addf %639, %641 : vector<18x18xf32>
    %cst_167 = arith.constant 0.000000e+00 : f32
    %643 = vector.broadcast %cst_167 : f32 to vector<18x18xf32>
    %644 = arith.maximumf %642, %643 : vector<18x18xf32>
    %645 = arith.mulf %644, %0 : vector<18x18xf32>
    %646 = vector.extract_strided_slice %606 {offsets = [0, 0], sizes = [18, 18], strides = [1, 1]} : vector<18x72xf32> to vector<18x18xf32>
    %647 = vector.extract_strided_slice %606 {offsets = [0, 18], sizes = [18, 18], strides = [1, 1]} : vector<18x72xf32> to vector<18x18xf32>
    %648 = arith.addf %646, %647 : vector<18x18xf32>
    %649 = vector.extract_strided_slice %606 {offsets = [0, 36], sizes = [18, 18], strides = [1, 1]} : vector<18x72xf32> to vector<18x18xf32>
    %650 = arith.addf %648, %649 : vector<18x18xf32>
    %651 = vector.extract_strided_slice %606 {offsets = [0, 54], sizes = [18, 18], strides = [1, 1]} : vector<18x72xf32> to vector<18x18xf32>
    %652 = arith.addf %650, %651 : vector<18x18xf32>
    %c119 = arith.constant 119 : index
    %c0_168 = arith.constant 0 : index
    %653 = vector.load %arg1[%c119, %c0_168] : memref<160x128xf32, #tpu.memory_space<vmem>>, vector<1x18xf32>
    %654 = vector.broadcast %653 : vector<1x18xf32> to vector<18x18xf32>
    %655 = arith.addf %652, %654 : vector<18x18xf32>
    %cst_169 = arith.constant 0.000000e+00 : f32
    %656 = vector.broadcast %cst_169 : f32 to vector<18x18xf32>
    %657 = arith.maximumf %655, %656 : vector<18x18xf32>
    %658 = arith.mulf %657, %0 : vector<18x18xf32>
    %659 = vector.extract_strided_slice %619 {offsets = [0, 0], sizes = [18, 16], strides = [1, 1]} : vector<18x18xf32> to vector<18x16xf32>
    %660 = vector.extract_strided_slice %632 {offsets = [0, 0], sizes = [18, 16], strides = [1, 1]} : vector<18x18xf32> to vector<18x16xf32>
    %661 = vector.extract_strided_slice %645 {offsets = [0, 0], sizes = [18, 16], strides = [1, 1]} : vector<18x18xf32> to vector<18x16xf32>
    %662 = vector.extract_strided_slice %658 {offsets = [0, 0], sizes = [18, 16], strides = [1, 1]} : vector<18x18xf32> to vector<18x16xf32>
    %663 = tpu.concatenate %659, %660, %661, %662 in 1 : vector<18x16xf32>, vector<18x16xf32>, vector<18x16xf32>, vector<18x16xf32> -> vector<18x64xf32>
    %664 = vector.extract_strided_slice %619 {offsets = [0, 1], sizes = [18, 16], strides = [1, 1]} : vector<18x18xf32> to vector<18x16xf32>
    %665 = vector.extract_strided_slice %632 {offsets = [0, 1], sizes = [18, 16], strides = [1, 1]} : vector<18x18xf32> to vector<18x16xf32>
    %666 = vector.extract_strided_slice %645 {offsets = [0, 1], sizes = [18, 16], strides = [1, 1]} : vector<18x18xf32> to vector<18x16xf32>
    %667 = vector.extract_strided_slice %658 {offsets = [0, 1], sizes = [18, 16], strides = [1, 1]} : vector<18x18xf32> to vector<18x16xf32>
    %668 = tpu.concatenate %664, %665, %666, %667 in 1 : vector<18x16xf32>, vector<18x16xf32>, vector<18x16xf32>, vector<18x16xf32> -> vector<18x64xf32>
    %669 = vector.extract_strided_slice %619 {offsets = [0, 2], sizes = [18, 16], strides = [1, 1]} : vector<18x18xf32> to vector<18x16xf32>
    %670 = vector.extract_strided_slice %632 {offsets = [0, 2], sizes = [18, 16], strides = [1, 1]} : vector<18x18xf32> to vector<18x16xf32>
    %671 = vector.extract_strided_slice %645 {offsets = [0, 2], sizes = [18, 16], strides = [1, 1]} : vector<18x18xf32> to vector<18x16xf32>
    %672 = vector.extract_strided_slice %658 {offsets = [0, 2], sizes = [18, 16], strides = [1, 1]} : vector<18x18xf32> to vector<18x16xf32>
    %673 = tpu.concatenate %669, %670, %671, %672 in 1 : vector<18x16xf32>, vector<18x16xf32>, vector<18x16xf32>, vector<18x16xf32> -> vector<18x64xf32>
    %cst_170 = arith.constant 0.000000e+00 : f32
    %674 = vector.broadcast %cst_170 : f32 to vector<16x64xf32>
    %cst_171 = arith.constant 0.000000e+00 : f32
    %675 = vector.broadcast %cst_171 : f32 to vector<16x64xf32>
    %cst_172 = arith.constant 0.000000e+00 : f32
    %676 = vector.broadcast %cst_172 : f32 to vector<16x64xf32>
    %cst_173 = arith.constant 0.000000e+00 : f32
    %677 = vector.broadcast %cst_173 : f32 to vector<16x64xf32>
    %678 = vector.extract_strided_slice %663 {offsets = [0, 0], sizes = [16, 64], strides = [1, 1]} : vector<18x64xf32> to vector<16x64xf32>
    %c120 = arith.constant 120 : index
    %c0_174 = arith.constant 0 : index
    %679 = vector.load %arg1[%c120, %c0_174] : memref<160x128xf32, #tpu.memory_space<vmem>>, vector<1x64xf32>
    %680 = vector.broadcast %679 : vector<1x64xf32> to vector<16x64xf32>
    %681 = arith.mulf %680, %678 : vector<16x64xf32>
    %682 = arith.addf %674, %681 : vector<16x64xf32>
    %c129 = arith.constant 129 : index
    %c0_175 = arith.constant 0 : index
    %683 = vector.load %arg1[%c129, %c0_175] : memref<160x128xf32, #tpu.memory_space<vmem>>, vector<1x64xf32>
    %684 = vector.broadcast %683 : vector<1x64xf32> to vector<16x64xf32>
    %685 = arith.mulf %684, %678 : vector<16x64xf32>
    %686 = arith.addf %675, %685 : vector<16x64xf32>
    %c138 = arith.constant 138 : index
    %c0_176 = arith.constant 0 : index
    %687 = vector.load %arg1[%c138, %c0_176] : memref<160x128xf32, #tpu.memory_space<vmem>>, vector<1x64xf32>
    %688 = vector.broadcast %687 : vector<1x64xf32> to vector<16x64xf32>
    %689 = arith.mulf %688, %678 : vector<16x64xf32>
    %690 = arith.addf %676, %689 : vector<16x64xf32>
    %c147 = arith.constant 147 : index
    %c0_177 = arith.constant 0 : index
    %691 = vector.load %arg1[%c147, %c0_177] : memref<160x128xf32, #tpu.memory_space<vmem>>, vector<1x64xf32>
    %692 = vector.broadcast %691 : vector<1x64xf32> to vector<16x64xf32>
    %693 = arith.mulf %692, %678 : vector<16x64xf32>
    %694 = arith.addf %677, %693 : vector<16x64xf32>
    %695 = vector.extract_strided_slice %668 {offsets = [0, 0], sizes = [16, 64], strides = [1, 1]} : vector<18x64xf32> to vector<16x64xf32>
    %c121 = arith.constant 121 : index
    %c0_178 = arith.constant 0 : index
    %696 = vector.load %arg1[%c121, %c0_178] : memref<160x128xf32, #tpu.memory_space<vmem>>, vector<1x64xf32>
    %697 = vector.broadcast %696 : vector<1x64xf32> to vector<16x64xf32>
    %698 = arith.mulf %697, %695 : vector<16x64xf32>
    %699 = arith.addf %682, %698 : vector<16x64xf32>
    %c130 = arith.constant 130 : index
    %c0_179 = arith.constant 0 : index
    %700 = vector.load %arg1[%c130, %c0_179] : memref<160x128xf32, #tpu.memory_space<vmem>>, vector<1x64xf32>
    %701 = vector.broadcast %700 : vector<1x64xf32> to vector<16x64xf32>
    %702 = arith.mulf %701, %695 : vector<16x64xf32>
    %703 = arith.addf %686, %702 : vector<16x64xf32>
    %c139 = arith.constant 139 : index
    %c0_180 = arith.constant 0 : index
    %704 = vector.load %arg1[%c139, %c0_180] : memref<160x128xf32, #tpu.memory_space<vmem>>, vector<1x64xf32>
    %705 = vector.broadcast %704 : vector<1x64xf32> to vector<16x64xf32>
    %706 = arith.mulf %705, %695 : vector<16x64xf32>
    %707 = arith.addf %690, %706 : vector<16x64xf32>
    %c148 = arith.constant 148 : index
    %c0_181 = arith.constant 0 : index
    %708 = vector.load %arg1[%c148, %c0_181] : memref<160x128xf32, #tpu.memory_space<vmem>>, vector<1x64xf32>
    %709 = vector.broadcast %708 : vector<1x64xf32> to vector<16x64xf32>
    %710 = arith.mulf %709, %695 : vector<16x64xf32>
    %711 = arith.addf %694, %710 : vector<16x64xf32>
    %712 = vector.extract_strided_slice %673 {offsets = [0, 0], sizes = [16, 64], strides = [1, 1]} : vector<18x64xf32> to vector<16x64xf32>
    %c122 = arith.constant 122 : index
    %c0_182 = arith.constant 0 : index
    %713 = vector.load %arg1[%c122, %c0_182] : memref<160x128xf32, #tpu.memory_space<vmem>>, vector<1x64xf32>
    %714 = vector.broadcast %713 : vector<1x64xf32> to vector<16x64xf32>
    %715 = arith.mulf %714, %712 : vector<16x64xf32>
    %716 = arith.addf %699, %715 : vector<16x64xf32>
    %c131 = arith.constant 131 : index
    %c0_183 = arith.constant 0 : index
    %717 = vector.load %arg1[%c131, %c0_183] : memref<160x128xf32, #tpu.memory_space<vmem>>, vector<1x64xf32>
    %718 = vector.broadcast %717 : vector<1x64xf32> to vector<16x64xf32>
    %719 = arith.mulf %718, %712 : vector<16x64xf32>
    %720 = arith.addf %703, %719 : vector<16x64xf32>
    %c140 = arith.constant 140 : index
    %c0_184 = arith.constant 0 : index
    %721 = vector.load %arg1[%c140, %c0_184] : memref<160x128xf32, #tpu.memory_space<vmem>>, vector<1x64xf32>
    %722 = vector.broadcast %721 : vector<1x64xf32> to vector<16x64xf32>
    %723 = arith.mulf %722, %712 : vector<16x64xf32>
    %724 = arith.addf %707, %723 : vector<16x64xf32>
    %c149 = arith.constant 149 : index
    %c0_185 = arith.constant 0 : index
    %725 = vector.load %arg1[%c149, %c0_185] : memref<160x128xf32, #tpu.memory_space<vmem>>, vector<1x64xf32>
    %726 = vector.broadcast %725 : vector<1x64xf32> to vector<16x64xf32>
    %727 = arith.mulf %726, %712 : vector<16x64xf32>
    %728 = arith.addf %711, %727 : vector<16x64xf32>
    %729 = vector.extract_strided_slice %663 {offsets = [1, 0], sizes = [16, 64], strides = [1, 1]} : vector<18x64xf32> to vector<16x64xf32>
    %c123 = arith.constant 123 : index
    %c0_186 = arith.constant 0 : index
    %730 = vector.load %arg1[%c123, %c0_186] : memref<160x128xf32, #tpu.memory_space<vmem>>, vector<1x64xf32>
    %731 = vector.broadcast %730 : vector<1x64xf32> to vector<16x64xf32>
    %732 = arith.mulf %731, %729 : vector<16x64xf32>
    %733 = arith.addf %716, %732 : vector<16x64xf32>
    %c132 = arith.constant 132 : index
    %c0_187 = arith.constant 0 : index
    %734 = vector.load %arg1[%c132, %c0_187] : memref<160x128xf32, #tpu.memory_space<vmem>>, vector<1x64xf32>
    %735 = vector.broadcast %734 : vector<1x64xf32> to vector<16x64xf32>
    %736 = arith.mulf %735, %729 : vector<16x64xf32>
    %737 = arith.addf %720, %736 : vector<16x64xf32>
    %c141 = arith.constant 141 : index
    %c0_188 = arith.constant 0 : index
    %738 = vector.load %arg1[%c141, %c0_188] : memref<160x128xf32, #tpu.memory_space<vmem>>, vector<1x64xf32>
    %739 = vector.broadcast %738 : vector<1x64xf32> to vector<16x64xf32>
    %740 = arith.mulf %739, %729 : vector<16x64xf32>
    %741 = arith.addf %724, %740 : vector<16x64xf32>
    %c150 = arith.constant 150 : index
    %c0_189 = arith.constant 0 : index
    %742 = vector.load %arg1[%c150, %c0_189] : memref<160x128xf32, #tpu.memory_space<vmem>>, vector<1x64xf32>
    %743 = vector.broadcast %742 : vector<1x64xf32> to vector<16x64xf32>
    %744 = arith.mulf %743, %729 : vector<16x64xf32>
    %745 = arith.addf %728, %744 : vector<16x64xf32>
    %746 = vector.extract_strided_slice %668 {offsets = [1, 0], sizes = [16, 64], strides = [1, 1]} : vector<18x64xf32> to vector<16x64xf32>
    %c124 = arith.constant 124 : index
    %c0_190 = arith.constant 0 : index
    %747 = vector.load %arg1[%c124, %c0_190] : memref<160x128xf32, #tpu.memory_space<vmem>>, vector<1x64xf32>
    %748 = vector.broadcast %747 : vector<1x64xf32> to vector<16x64xf32>
    %749 = arith.mulf %748, %746 : vector<16x64xf32>
    %750 = arith.addf %733, %749 : vector<16x64xf32>
    %c133 = arith.constant 133 : index
    %c0_191 = arith.constant 0 : index
    %751 = vector.load %arg1[%c133, %c0_191] : memref<160x128xf32, #tpu.memory_space<vmem>>, vector<1x64xf32>
    %752 = vector.broadcast %751 : vector<1x64xf32> to vector<16x64xf32>
    %753 = arith.mulf %752, %746 : vector<16x64xf32>
    %754 = arith.addf %737, %753 : vector<16x64xf32>
    %c142 = arith.constant 142 : index
    %c0_192 = arith.constant 0 : index
    %755 = vector.load %arg1[%c142, %c0_192] : memref<160x128xf32, #tpu.memory_space<vmem>>, vector<1x64xf32>
    %756 = vector.broadcast %755 : vector<1x64xf32> to vector<16x64xf32>
    %757 = arith.mulf %756, %746 : vector<16x64xf32>
    %758 = arith.addf %741, %757 : vector<16x64xf32>
    %c151 = arith.constant 151 : index
    %c0_193 = arith.constant 0 : index
    %759 = vector.load %arg1[%c151, %c0_193] : memref<160x128xf32, #tpu.memory_space<vmem>>, vector<1x64xf32>
    %760 = vector.broadcast %759 : vector<1x64xf32> to vector<16x64xf32>
    %761 = arith.mulf %760, %746 : vector<16x64xf32>
    %762 = arith.addf %745, %761 : vector<16x64xf32>
    %763 = vector.extract_strided_slice %673 {offsets = [1, 0], sizes = [16, 64], strides = [1, 1]} : vector<18x64xf32> to vector<16x64xf32>
    %c125 = arith.constant 125 : index
    %c0_194 = arith.constant 0 : index
    %764 = vector.load %arg1[%c125, %c0_194] : memref<160x128xf32, #tpu.memory_space<vmem>>, vector<1x64xf32>
    %765 = vector.broadcast %764 : vector<1x64xf32> to vector<16x64xf32>
    %766 = arith.mulf %765, %763 : vector<16x64xf32>
    %767 = arith.addf %750, %766 : vector<16x64xf32>
    %c134 = arith.constant 134 : index
    %c0_195 = arith.constant 0 : index
    %768 = vector.load %arg1[%c134, %c0_195] : memref<160x128xf32, #tpu.memory_space<vmem>>, vector<1x64xf32>
    %769 = vector.broadcast %768 : vector<1x64xf32> to vector<16x64xf32>
    %770 = arith.mulf %769, %763 : vector<16x64xf32>
    %771 = arith.addf %754, %770 : vector<16x64xf32>
    %c143 = arith.constant 143 : index
    %c0_196 = arith.constant 0 : index
    %772 = vector.load %arg1[%c143, %c0_196] : memref<160x128xf32, #tpu.memory_space<vmem>>, vector<1x64xf32>
    %773 = vector.broadcast %772 : vector<1x64xf32> to vector<16x64xf32>
    %774 = arith.mulf %773, %763 : vector<16x64xf32>
    %775 = arith.addf %758, %774 : vector<16x64xf32>
    %c152 = arith.constant 152 : index
    %c0_197 = arith.constant 0 : index
    %776 = vector.load %arg1[%c152, %c0_197] : memref<160x128xf32, #tpu.memory_space<vmem>>, vector<1x64xf32>
    %777 = vector.broadcast %776 : vector<1x64xf32> to vector<16x64xf32>
    %778 = arith.mulf %777, %763 : vector<16x64xf32>
    %779 = arith.addf %762, %778 : vector<16x64xf32>
    %780 = vector.extract_strided_slice %663 {offsets = [2, 0], sizes = [16, 64], strides = [1, 1]} : vector<18x64xf32> to vector<16x64xf32>
    %c126 = arith.constant 126 : index
    %c0_198 = arith.constant 0 : index
    %781 = vector.load %arg1[%c126, %c0_198] : memref<160x128xf32, #tpu.memory_space<vmem>>, vector<1x64xf32>
    %782 = vector.broadcast %781 : vector<1x64xf32> to vector<16x64xf32>
    %783 = arith.mulf %782, %780 : vector<16x64xf32>
    %784 = arith.addf %767, %783 : vector<16x64xf32>
    %c135 = arith.constant 135 : index
    %c0_199 = arith.constant 0 : index
    %785 = vector.load %arg1[%c135, %c0_199] : memref<160x128xf32, #tpu.memory_space<vmem>>, vector<1x64xf32>
    %786 = vector.broadcast %785 : vector<1x64xf32> to vector<16x64xf32>
    %787 = arith.mulf %786, %780 : vector<16x64xf32>
    %788 = arith.addf %771, %787 : vector<16x64xf32>
    %c144 = arith.constant 144 : index
    %c0_200 = arith.constant 0 : index
    %789 = vector.load %arg1[%c144, %c0_200] : memref<160x128xf32, #tpu.memory_space<vmem>>, vector<1x64xf32>
    %790 = vector.broadcast %789 : vector<1x64xf32> to vector<16x64xf32>
    %791 = arith.mulf %790, %780 : vector<16x64xf32>
    %792 = arith.addf %775, %791 : vector<16x64xf32>
    %c153 = arith.constant 153 : index
    %c0_201 = arith.constant 0 : index
    %793 = vector.load %arg1[%c153, %c0_201] : memref<160x128xf32, #tpu.memory_space<vmem>>, vector<1x64xf32>
    %794 = vector.broadcast %793 : vector<1x64xf32> to vector<16x64xf32>
    %795 = arith.mulf %794, %780 : vector<16x64xf32>
    %796 = arith.addf %779, %795 : vector<16x64xf32>
    %797 = vector.extract_strided_slice %668 {offsets = [2, 0], sizes = [16, 64], strides = [1, 1]} : vector<18x64xf32> to vector<16x64xf32>
    %c127 = arith.constant 127 : index
    %c0_202 = arith.constant 0 : index
    %798 = vector.load %arg1[%c127, %c0_202] : memref<160x128xf32, #tpu.memory_space<vmem>>, vector<1x64xf32>
    %799 = vector.broadcast %798 : vector<1x64xf32> to vector<16x64xf32>
    %800 = arith.mulf %799, %797 : vector<16x64xf32>
    %801 = arith.addf %784, %800 : vector<16x64xf32>
    %c136 = arith.constant 136 : index
    %c0_203 = arith.constant 0 : index
    %802 = vector.load %arg1[%c136, %c0_203] : memref<160x128xf32, #tpu.memory_space<vmem>>, vector<1x64xf32>
    %803 = vector.broadcast %802 : vector<1x64xf32> to vector<16x64xf32>
    %804 = arith.mulf %803, %797 : vector<16x64xf32>
    %805 = arith.addf %788, %804 : vector<16x64xf32>
    %c145 = arith.constant 145 : index
    %c0_204 = arith.constant 0 : index
    %806 = vector.load %arg1[%c145, %c0_204] : memref<160x128xf32, #tpu.memory_space<vmem>>, vector<1x64xf32>
    %807 = vector.broadcast %806 : vector<1x64xf32> to vector<16x64xf32>
    %808 = arith.mulf %807, %797 : vector<16x64xf32>
    %809 = arith.addf %792, %808 : vector<16x64xf32>
    %c154 = arith.constant 154 : index
    %c0_205 = arith.constant 0 : index
    %810 = vector.load %arg1[%c154, %c0_205] : memref<160x128xf32, #tpu.memory_space<vmem>>, vector<1x64xf32>
    %811 = vector.broadcast %810 : vector<1x64xf32> to vector<16x64xf32>
    %812 = arith.mulf %811, %797 : vector<16x64xf32>
    %813 = arith.addf %796, %812 : vector<16x64xf32>
    %814 = vector.extract_strided_slice %673 {offsets = [2, 0], sizes = [16, 64], strides = [1, 1]} : vector<18x64xf32> to vector<16x64xf32>
    %c128 = arith.constant 128 : index
    %c0_206 = arith.constant 0 : index
    %815 = vector.load %arg1[%c128, %c0_206] : memref<160x128xf32, #tpu.memory_space<vmem>>, vector<1x64xf32>
    %816 = vector.broadcast %815 : vector<1x64xf32> to vector<16x64xf32>
    %817 = arith.mulf %816, %814 : vector<16x64xf32>
    %818 = arith.addf %801, %817 : vector<16x64xf32>
    %c137 = arith.constant 137 : index
    %c0_207 = arith.constant 0 : index
    %819 = vector.load %arg1[%c137, %c0_207] : memref<160x128xf32, #tpu.memory_space<vmem>>, vector<1x64xf32>
    %820 = vector.broadcast %819 : vector<1x64xf32> to vector<16x64xf32>
    %821 = arith.mulf %820, %814 : vector<16x64xf32>
    %822 = arith.addf %805, %821 : vector<16x64xf32>
    %c146 = arith.constant 146 : index
    %c0_208 = arith.constant 0 : index
    %823 = vector.load %arg1[%c146, %c0_208] : memref<160x128xf32, #tpu.memory_space<vmem>>, vector<1x64xf32>
    %824 = vector.broadcast %823 : vector<1x64xf32> to vector<16x64xf32>
    %825 = arith.mulf %824, %814 : vector<16x64xf32>
    %826 = arith.addf %809, %825 : vector<16x64xf32>
    %c155 = arith.constant 155 : index
    %c0_209 = arith.constant 0 : index
    %827 = vector.load %arg1[%c155, %c0_209] : memref<160x128xf32, #tpu.memory_space<vmem>>, vector<1x64xf32>
    %828 = vector.broadcast %827 : vector<1x64xf32> to vector<16x64xf32>
    %829 = arith.mulf %828, %814 : vector<16x64xf32>
    %830 = arith.addf %813, %829 : vector<16x64xf32>
    %831 = vector.extract_strided_slice %818 {offsets = [0, 0], sizes = [16, 16], strides = [1, 1]} : vector<16x64xf32> to vector<16x16xf32>
    %832 = vector.extract_strided_slice %818 {offsets = [0, 16], sizes = [16, 16], strides = [1, 1]} : vector<16x64xf32> to vector<16x16xf32>
    %833 = arith.addf %831, %832 : vector<16x16xf32>
    %834 = vector.extract_strided_slice %818 {offsets = [0, 32], sizes = [16, 16], strides = [1, 1]} : vector<16x64xf32> to vector<16x16xf32>
    %835 = arith.addf %833, %834 : vector<16x16xf32>
    %836 = vector.extract_strided_slice %818 {offsets = [0, 48], sizes = [16, 16], strides = [1, 1]} : vector<16x64xf32> to vector<16x16xf32>
    %837 = arith.addf %835, %836 : vector<16x16xf32>
    %838 = vector.extract_strided_slice %445 {offsets = [2, 2], sizes = [16, 16], strides = [1, 1]} : vector<20x72xf32> to vector<16x16xf32>
    %839 = arith.addf %838, %837 : vector<16x16xf32>
    %c156 = arith.constant 156 : index
    %c0_210 = arith.constant 0 : index
    %840 = vector.load %arg1[%c156, %c0_210] : memref<160x128xf32, #tpu.memory_space<vmem>>, vector<1x16xf32>
    %841 = vector.broadcast %840 : vector<1x16xf32> to vector<16x16xf32>
    %842 = arith.addf %839, %841 : vector<16x16xf32>
    %843 = vector.extract_strided_slice %822 {offsets = [0, 0], sizes = [16, 16], strides = [1, 1]} : vector<16x64xf32> to vector<16x16xf32>
    %844 = vector.extract_strided_slice %822 {offsets = [0, 16], sizes = [16, 16], strides = [1, 1]} : vector<16x64xf32> to vector<16x16xf32>
    %845 = arith.addf %843, %844 : vector<16x16xf32>
    %846 = vector.extract_strided_slice %822 {offsets = [0, 32], sizes = [16, 16], strides = [1, 1]} : vector<16x64xf32> to vector<16x16xf32>
    %847 = arith.addf %845, %846 : vector<16x16xf32>
    %848 = vector.extract_strided_slice %822 {offsets = [0, 48], sizes = [16, 16], strides = [1, 1]} : vector<16x64xf32> to vector<16x16xf32>
    %849 = arith.addf %847, %848 : vector<16x16xf32>
    %850 = vector.extract_strided_slice %445 {offsets = [2, 20], sizes = [16, 16], strides = [1, 1]} : vector<20x72xf32> to vector<16x16xf32>
    %851 = arith.addf %850, %849 : vector<16x16xf32>
    %c157 = arith.constant 157 : index
    %c0_211 = arith.constant 0 : index
    %852 = vector.load %arg1[%c157, %c0_211] : memref<160x128xf32, #tpu.memory_space<vmem>>, vector<1x16xf32>
    %853 = vector.broadcast %852 : vector<1x16xf32> to vector<16x16xf32>
    %854 = arith.addf %851, %853 : vector<16x16xf32>
    %855 = vector.extract_strided_slice %826 {offsets = [0, 0], sizes = [16, 16], strides = [1, 1]} : vector<16x64xf32> to vector<16x16xf32>
    %856 = vector.extract_strided_slice %826 {offsets = [0, 16], sizes = [16, 16], strides = [1, 1]} : vector<16x64xf32> to vector<16x16xf32>
    %857 = arith.addf %855, %856 : vector<16x16xf32>
    %858 = vector.extract_strided_slice %826 {offsets = [0, 32], sizes = [16, 16], strides = [1, 1]} : vector<16x64xf32> to vector<16x16xf32>
    %859 = arith.addf %857, %858 : vector<16x16xf32>
    %860 = vector.extract_strided_slice %826 {offsets = [0, 48], sizes = [16, 16], strides = [1, 1]} : vector<16x64xf32> to vector<16x16xf32>
    %861 = arith.addf %859, %860 : vector<16x16xf32>
    %862 = vector.extract_strided_slice %445 {offsets = [2, 38], sizes = [16, 16], strides = [1, 1]} : vector<20x72xf32> to vector<16x16xf32>
    %863 = arith.addf %862, %861 : vector<16x16xf32>
    %c158 = arith.constant 158 : index
    %c0_212 = arith.constant 0 : index
    %864 = vector.load %arg1[%c158, %c0_212] : memref<160x128xf32, #tpu.memory_space<vmem>>, vector<1x16xf32>
    %865 = vector.broadcast %864 : vector<1x16xf32> to vector<16x16xf32>
    %866 = arith.addf %863, %865 : vector<16x16xf32>
    %867 = vector.extract_strided_slice %830 {offsets = [0, 0], sizes = [16, 16], strides = [1, 1]} : vector<16x64xf32> to vector<16x16xf32>
    %868 = vector.extract_strided_slice %830 {offsets = [0, 16], sizes = [16, 16], strides = [1, 1]} : vector<16x64xf32> to vector<16x16xf32>
    %869 = arith.addf %867, %868 : vector<16x16xf32>
    %870 = vector.extract_strided_slice %830 {offsets = [0, 32], sizes = [16, 16], strides = [1, 1]} : vector<16x64xf32> to vector<16x16xf32>
    %871 = arith.addf %869, %870 : vector<16x16xf32>
    %872 = vector.extract_strided_slice %830 {offsets = [0, 48], sizes = [16, 16], strides = [1, 1]} : vector<16x64xf32> to vector<16x16xf32>
    %873 = arith.addf %871, %872 : vector<16x16xf32>
    %874 = vector.extract_strided_slice %445 {offsets = [2, 56], sizes = [16, 16], strides = [1, 1]} : vector<20x72xf32> to vector<16x16xf32>
    %875 = arith.addf %874, %873 : vector<16x16xf32>
    %c159 = arith.constant 159 : index
    %c0_213 = arith.constant 0 : index
    %876 = vector.load %arg1[%c159, %c0_213] : memref<160x128xf32, #tpu.memory_space<vmem>>, vector<1x16xf32>
    %877 = vector.broadcast %876 : vector<1x16xf32> to vector<16x16xf32>
    %878 = arith.addf %875, %877 : vector<16x16xf32>
    %879 = vector.shape_cast %842 : vector<16x16xf32> to vector<1x16x16xf32>
    %880 = vector.shape_cast %854 : vector<16x16xf32> to vector<1x16x16xf32>
    %881 = vector.shape_cast %866 : vector<16x16xf32> to vector<1x16x16xf32>
    %882 = vector.shape_cast %878 : vector<16x16xf32> to vector<1x16x16xf32>
    %883 = tpu.concatenate %879, %880, %881, %882 in 0 : vector<1x16x16xf32>, vector<1x16x16xf32>, vector<1x16x16xf32>, vector<1x16x16xf32> -> vector<4x16x16xf32>
    %884 = arith.truncf %883 : vector<4x16x16xf32> to vector<4x16x16xbf16>
    %cst_214 = arith.constant dense<0.000000e+00> : vector<4x16x16xf32>
    %885 = tpu.matmul %884, %441, %cst_214 {dimension_numbers = #tpu.dot_dimension_numbers<[2], [1], [1], [2], [0, 0, 0, 1, 1, 2], [0], [0]>} : vector<4x16x16xbf16>, vector<4x16x16xbf16>, vector<4x16x16xf32> -> vector<4x16x16xf32>
    %886 = arith.negf %885 : vector<4x16x16xf32>
    %887 = math.exp %886 : vector<4x16x16xf32>
    %cst_215 = arith.constant 1.000000e+00 : f32
    %888 = vector.broadcast %cst_215 : f32 to vector<4x16x16xf32>
    %889 = arith.addf %888, %887 : vector<4x16x16xf32>
    %890 = arith.divf %888, %889 : vector<4x16x16xf32>
    %c0_216 = arith.constant 0 : index
    %c0_217 = arith.constant 0 : index
    %c0_218 = arith.constant 0 : index
    %c0_219 = arith.constant 0 : index
    %c0_220 = arith.constant 0 : index
    %891 = vector.load %arg5[%c0_216, %c0_217, %c0_218, %c0_219, %c0_220] : memref<1x3x4x16x16xf32, #tpu.memory_space<vmem>>, vector<1x1x4x16x16xf32>
    %892 = vector.shape_cast %891 : vector<1x1x4x16x16xf32> to vector<4x16x16xf32>
    %893 = arith.mulf %890, %892 : vector<4x16x16xf32>
    %894 = arith.addf %442, %893 : vector<4x16x16xf32>
    %895 = arith.addf %443, %890 : vector<4x16x16xf32>
    %c0_221 = arith.constant 0 : index
    %c1_222 = arith.constant 1 : index
    %c0_223 = arith.constant 0 : index
    %c0_224 = arith.constant 0 : index
    %c0_225 = arith.constant 0 : index
    %896 = vector.load %arg4[%c0_221, %c1_222, %c0_223, %c0_224, %c0_225] : memref<1x3x3x20x72xf32, #tpu.memory_space<vmem>>, vector<1x1x1x20x72xf32>
    %897 = vector.shape_cast %896 : vector<1x1x1x20x72xf32> to vector<20x72xf32>
    %c0_226 = arith.constant 0 : index
    %c1_227 = arith.constant 1 : index
    %c1_228 = arith.constant 1 : index
    %c0_229 = arith.constant 0 : index
    %c0_230 = arith.constant 0 : index
    %898 = vector.load %arg4[%c0_226, %c1_227, %c1_228, %c0_229, %c0_230] : memref<1x3x3x20x72xf32, #tpu.memory_space<vmem>>, vector<1x1x1x20x72xf32>
    %899 = vector.shape_cast %898 : vector<1x1x1x20x72xf32> to vector<20x72xf32>
    %c0_231 = arith.constant 0 : index
    %c1_232 = arith.constant 1 : index
    %c2_233 = arith.constant 2 : index
    %c0_234 = arith.constant 0 : index
    %c0_235 = arith.constant 0 : index
    %900 = vector.load %arg4[%c0_231, %c1_232, %c2_233, %c0_234, %c0_235] : memref<1x3x3x20x72xf32, #tpu.memory_space<vmem>>, vector<1x1x1x20x72xf32>
    %901 = vector.shape_cast %900 : vector<1x1x1x20x72xf32> to vector<20x72xf32>
    %cst_236 = arith.constant 0.000000e+00 : f32
    %902 = vector.broadcast %cst_236 : f32 to vector<18x72xf32>
    %cst_237 = arith.constant 0.000000e+00 : f32
    %903 = vector.broadcast %cst_237 : f32 to vector<18x72xf32>
    %cst_238 = arith.constant 0.000000e+00 : f32
    %904 = vector.broadcast %cst_238 : f32 to vector<18x72xf32>
    %cst_239 = arith.constant 0.000000e+00 : f32
    %905 = vector.broadcast %cst_239 : f32 to vector<18x72xf32>
    %906 = vector.extract_strided_slice %897 {offsets = [0, 0], sizes = [18, 72], strides = [1, 1]} : vector<20x72xf32> to vector<18x72xf32>
    %c80_240 = arith.constant 80 : index
    %c0_241 = arith.constant 0 : index
    %907 = vector.load %arg1[%c80_240, %c0_241] : memref<160x128xf32, #tpu.memory_space<vmem>>, vector<1x72xf32>
    %908 = vector.broadcast %907 : vector<1x72xf32> to vector<18x72xf32>
    %909 = arith.mulf %908, %906 : vector<18x72xf32>
    %910 = arith.addf %902, %909 : vector<18x72xf32>
    %c89_242 = arith.constant 89 : index
    %c0_243 = arith.constant 0 : index
    %911 = vector.load %arg1[%c89_242, %c0_243] : memref<160x128xf32, #tpu.memory_space<vmem>>, vector<1x72xf32>
    %912 = vector.broadcast %911 : vector<1x72xf32> to vector<18x72xf32>
    %913 = arith.mulf %912, %906 : vector<18x72xf32>
    %914 = arith.addf %903, %913 : vector<18x72xf32>
    %c98_244 = arith.constant 98 : index
    %c0_245 = arith.constant 0 : index
    %915 = vector.load %arg1[%c98_244, %c0_245] : memref<160x128xf32, #tpu.memory_space<vmem>>, vector<1x72xf32>
    %916 = vector.broadcast %915 : vector<1x72xf32> to vector<18x72xf32>
    %917 = arith.mulf %916, %906 : vector<18x72xf32>
    %918 = arith.addf %904, %917 : vector<18x72xf32>
    %c107_246 = arith.constant 107 : index
    %c0_247 = arith.constant 0 : index
    %919 = vector.load %arg1[%c107_246, %c0_247] : memref<160x128xf32, #tpu.memory_space<vmem>>, vector<1x72xf32>
    %920 = vector.broadcast %919 : vector<1x72xf32> to vector<18x72xf32>
    %921 = arith.mulf %920, %906 : vector<18x72xf32>
    %922 = arith.addf %905, %921 : vector<18x72xf32>
    %923 = vector.extract_strided_slice %899 {offsets = [0, 0], sizes = [18, 72], strides = [1, 1]} : vector<20x72xf32> to vector<18x72xf32>
    %c81_248 = arith.constant 81 : index
    %c0_249 = arith.constant 0 : index
    %924 = vector.load %arg1[%c81_248, %c0_249] : memref<160x128xf32, #tpu.memory_space<vmem>>, vector<1x72xf32>
    %925 = vector.broadcast %924 : vector<1x72xf32> to vector<18x72xf32>
    %926 = arith.mulf %925, %923 : vector<18x72xf32>
    %927 = arith.addf %910, %926 : vector<18x72xf32>
    %c90_250 = arith.constant 90 : index
    %c0_251 = arith.constant 0 : index
    %928 = vector.load %arg1[%c90_250, %c0_251] : memref<160x128xf32, #tpu.memory_space<vmem>>, vector<1x72xf32>
    %929 = vector.broadcast %928 : vector<1x72xf32> to vector<18x72xf32>
    %930 = arith.mulf %929, %923 : vector<18x72xf32>
    %931 = arith.addf %914, %930 : vector<18x72xf32>
    %c99_252 = arith.constant 99 : index
    %c0_253 = arith.constant 0 : index
    %932 = vector.load %arg1[%c99_252, %c0_253] : memref<160x128xf32, #tpu.memory_space<vmem>>, vector<1x72xf32>
    %933 = vector.broadcast %932 : vector<1x72xf32> to vector<18x72xf32>
    %934 = arith.mulf %933, %923 : vector<18x72xf32>
    %935 = arith.addf %918, %934 : vector<18x72xf32>
    %c108_254 = arith.constant 108 : index
    %c0_255 = arith.constant 0 : index
    %936 = vector.load %arg1[%c108_254, %c0_255] : memref<160x128xf32, #tpu.memory_space<vmem>>, vector<1x72xf32>
    %937 = vector.broadcast %936 : vector<1x72xf32> to vector<18x72xf32>
    %938 = arith.mulf %937, %923 : vector<18x72xf32>
    %939 = arith.addf %922, %938 : vector<18x72xf32>
    %940 = vector.extract_strided_slice %901 {offsets = [0, 0], sizes = [18, 72], strides = [1, 1]} : vector<20x72xf32> to vector<18x72xf32>
    %c82_256 = arith.constant 82 : index
    %c0_257 = arith.constant 0 : index
    %941 = vector.load %arg1[%c82_256, %c0_257] : memref<160x128xf32, #tpu.memory_space<vmem>>, vector<1x72xf32>
    %942 = vector.broadcast %941 : vector<1x72xf32> to vector<18x72xf32>
    %943 = arith.mulf %942, %940 : vector<18x72xf32>
    %944 = arith.addf %927, %943 : vector<18x72xf32>
    %c91_258 = arith.constant 91 : index
    %c0_259 = arith.constant 0 : index
    %945 = vector.load %arg1[%c91_258, %c0_259] : memref<160x128xf32, #tpu.memory_space<vmem>>, vector<1x72xf32>
    %946 = vector.broadcast %945 : vector<1x72xf32> to vector<18x72xf32>
    %947 = arith.mulf %946, %940 : vector<18x72xf32>
    %948 = arith.addf %931, %947 : vector<18x72xf32>
    %c100_260 = arith.constant 100 : index
    %c0_261 = arith.constant 0 : index
    %949 = vector.load %arg1[%c100_260, %c0_261] : memref<160x128xf32, #tpu.memory_space<vmem>>, vector<1x72xf32>
    %950 = vector.broadcast %949 : vector<1x72xf32> to vector<18x72xf32>
    %951 = arith.mulf %950, %940 : vector<18x72xf32>
    %952 = arith.addf %935, %951 : vector<18x72xf32>
    %c109_262 = arith.constant 109 : index
    %c0_263 = arith.constant 0 : index
    %953 = vector.load %arg1[%c109_262, %c0_263] : memref<160x128xf32, #tpu.memory_space<vmem>>, vector<1x72xf32>
    %954 = vector.broadcast %953 : vector<1x72xf32> to vector<18x72xf32>
    %955 = arith.mulf %954, %940 : vector<18x72xf32>
    %956 = arith.addf %939, %955 : vector<18x72xf32>
    %957 = vector.extract_strided_slice %897 {offsets = [1, 0], sizes = [18, 72], strides = [1, 1]} : vector<20x72xf32> to vector<18x72xf32>
    %c83_264 = arith.constant 83 : index
    %c0_265 = arith.constant 0 : index
    %958 = vector.load %arg1[%c83_264, %c0_265] : memref<160x128xf32, #tpu.memory_space<vmem>>, vector<1x72xf32>
    %959 = vector.broadcast %958 : vector<1x72xf32> to vector<18x72xf32>
    %960 = arith.mulf %959, %957 : vector<18x72xf32>
    %961 = arith.addf %944, %960 : vector<18x72xf32>
    %c92_266 = arith.constant 92 : index
    %c0_267 = arith.constant 0 : index
    %962 = vector.load %arg1[%c92_266, %c0_267] : memref<160x128xf32, #tpu.memory_space<vmem>>, vector<1x72xf32>
    %963 = vector.broadcast %962 : vector<1x72xf32> to vector<18x72xf32>
    %964 = arith.mulf %963, %957 : vector<18x72xf32>
    %965 = arith.addf %948, %964 : vector<18x72xf32>
    %c101_268 = arith.constant 101 : index
    %c0_269 = arith.constant 0 : index
    %966 = vector.load %arg1[%c101_268, %c0_269] : memref<160x128xf32, #tpu.memory_space<vmem>>, vector<1x72xf32>
    %967 = vector.broadcast %966 : vector<1x72xf32> to vector<18x72xf32>
    %968 = arith.mulf %967, %957 : vector<18x72xf32>
    %969 = arith.addf %952, %968 : vector<18x72xf32>
    %c110_270 = arith.constant 110 : index
    %c0_271 = arith.constant 0 : index
    %970 = vector.load %arg1[%c110_270, %c0_271] : memref<160x128xf32, #tpu.memory_space<vmem>>, vector<1x72xf32>
    %971 = vector.broadcast %970 : vector<1x72xf32> to vector<18x72xf32>
    %972 = arith.mulf %971, %957 : vector<18x72xf32>
    %973 = arith.addf %956, %972 : vector<18x72xf32>
    %974 = vector.extract_strided_slice %899 {offsets = [1, 0], sizes = [18, 72], strides = [1, 1]} : vector<20x72xf32> to vector<18x72xf32>
    %c84_272 = arith.constant 84 : index
    %c0_273 = arith.constant 0 : index
    %975 = vector.load %arg1[%c84_272, %c0_273] : memref<160x128xf32, #tpu.memory_space<vmem>>, vector<1x72xf32>
    %976 = vector.broadcast %975 : vector<1x72xf32> to vector<18x72xf32>
    %977 = arith.mulf %976, %974 : vector<18x72xf32>
    %978 = arith.addf %961, %977 : vector<18x72xf32>
    %c93_274 = arith.constant 93 : index
    %c0_275 = arith.constant 0 : index
    %979 = vector.load %arg1[%c93_274, %c0_275] : memref<160x128xf32, #tpu.memory_space<vmem>>, vector<1x72xf32>
    %980 = vector.broadcast %979 : vector<1x72xf32> to vector<18x72xf32>
    %981 = arith.mulf %980, %974 : vector<18x72xf32>
    %982 = arith.addf %965, %981 : vector<18x72xf32>
    %c102_276 = arith.constant 102 : index
    %c0_277 = arith.constant 0 : index
    %983 = vector.load %arg1[%c102_276, %c0_277] : memref<160x128xf32, #tpu.memory_space<vmem>>, vector<1x72xf32>
    %984 = vector.broadcast %983 : vector<1x72xf32> to vector<18x72xf32>
    %985 = arith.mulf %984, %974 : vector<18x72xf32>
    %986 = arith.addf %969, %985 : vector<18x72xf32>
    %c111_278 = arith.constant 111 : index
    %c0_279 = arith.constant 0 : index
    %987 = vector.load %arg1[%c111_278, %c0_279] : memref<160x128xf32, #tpu.memory_space<vmem>>, vector<1x72xf32>
    %988 = vector.broadcast %987 : vector<1x72xf32> to vector<18x72xf32>
    %989 = arith.mulf %988, %974 : vector<18x72xf32>
    %990 = arith.addf %973, %989 : vector<18x72xf32>
    %991 = vector.extract_strided_slice %901 {offsets = [1, 0], sizes = [18, 72], strides = [1, 1]} : vector<20x72xf32> to vector<18x72xf32>
    %c85_280 = arith.constant 85 : index
    %c0_281 = arith.constant 0 : index
    %992 = vector.load %arg1[%c85_280, %c0_281] : memref<160x128xf32, #tpu.memory_space<vmem>>, vector<1x72xf32>
    %993 = vector.broadcast %992 : vector<1x72xf32> to vector<18x72xf32>
    %994 = arith.mulf %993, %991 : vector<18x72xf32>
    %995 = arith.addf %978, %994 : vector<18x72xf32>
    %c94_282 = arith.constant 94 : index
    %c0_283 = arith.constant 0 : index
    %996 = vector.load %arg1[%c94_282, %c0_283] : memref<160x128xf32, #tpu.memory_space<vmem>>, vector<1x72xf32>
    %997 = vector.broadcast %996 : vector<1x72xf32> to vector<18x72xf32>
    %998 = arith.mulf %997, %991 : vector<18x72xf32>
    %999 = arith.addf %982, %998 : vector<18x72xf32>
    %c103_284 = arith.constant 103 : index
    %c0_285 = arith.constant 0 : index
    %1000 = vector.load %arg1[%c103_284, %c0_285] : memref<160x128xf32, #tpu.memory_space<vmem>>, vector<1x72xf32>
    %1001 = vector.broadcast %1000 : vector<1x72xf32> to vector<18x72xf32>
    %1002 = arith.mulf %1001, %991 : vector<18x72xf32>
    %1003 = arith.addf %986, %1002 : vector<18x72xf32>
    %c112_286 = arith.constant 112 : index
    %c0_287 = arith.constant 0 : index
    %1004 = vector.load %arg1[%c112_286, %c0_287] : memref<160x128xf32, #tpu.memory_space<vmem>>, vector<1x72xf32>
    %1005 = vector.broadcast %1004 : vector<1x72xf32> to vector<18x72xf32>
    %1006 = arith.mulf %1005, %991 : vector<18x72xf32>
    %1007 = arith.addf %990, %1006 : vector<18x72xf32>
    %1008 = vector.extract_strided_slice %897 {offsets = [2, 0], sizes = [18, 72], strides = [1, 1]} : vector<20x72xf32> to vector<18x72xf32>
    %c86_288 = arith.constant 86 : index
    %c0_289 = arith.constant 0 : index
    %1009 = vector.load %arg1[%c86_288, %c0_289] : memref<160x128xf32, #tpu.memory_space<vmem>>, vector<1x72xf32>
    %1010 = vector.broadcast %1009 : vector<1x72xf32> to vector<18x72xf32>
    %1011 = arith.mulf %1010, %1008 : vector<18x72xf32>
    %1012 = arith.addf %995, %1011 : vector<18x72xf32>
    %c95_290 = arith.constant 95 : index
    %c0_291 = arith.constant 0 : index
    %1013 = vector.load %arg1[%c95_290, %c0_291] : memref<160x128xf32, #tpu.memory_space<vmem>>, vector<1x72xf32>
    %1014 = vector.broadcast %1013 : vector<1x72xf32> to vector<18x72xf32>
    %1015 = arith.mulf %1014, %1008 : vector<18x72xf32>
    %1016 = arith.addf %999, %1015 : vector<18x72xf32>
    %c104_292 = arith.constant 104 : index
    %c0_293 = arith.constant 0 : index
    %1017 = vector.load %arg1[%c104_292, %c0_293] : memref<160x128xf32, #tpu.memory_space<vmem>>, vector<1x72xf32>
    %1018 = vector.broadcast %1017 : vector<1x72xf32> to vector<18x72xf32>
    %1019 = arith.mulf %1018, %1008 : vector<18x72xf32>
    %1020 = arith.addf %1003, %1019 : vector<18x72xf32>
    %c113_294 = arith.constant 113 : index
    %c0_295 = arith.constant 0 : index
    %1021 = vector.load %arg1[%c113_294, %c0_295] : memref<160x128xf32, #tpu.memory_space<vmem>>, vector<1x72xf32>
    %1022 = vector.broadcast %1021 : vector<1x72xf32> to vector<18x72xf32>
    %1023 = arith.mulf %1022, %1008 : vector<18x72xf32>
    %1024 = arith.addf %1007, %1023 : vector<18x72xf32>
    %1025 = vector.extract_strided_slice %899 {offsets = [2, 0], sizes = [18, 72], strides = [1, 1]} : vector<20x72xf32> to vector<18x72xf32>
    %c87_296 = arith.constant 87 : index
    %c0_297 = arith.constant 0 : index
    %1026 = vector.load %arg1[%c87_296, %c0_297] : memref<160x128xf32, #tpu.memory_space<vmem>>, vector<1x72xf32>
    %1027 = vector.broadcast %1026 : vector<1x72xf32> to vector<18x72xf32>
    %1028 = arith.mulf %1027, %1025 : vector<18x72xf32>
    %1029 = arith.addf %1012, %1028 : vector<18x72xf32>
    %c96_298 = arith.constant 96 : index
    %c0_299 = arith.constant 0 : index
    %1030 = vector.load %arg1[%c96_298, %c0_299] : memref<160x128xf32, #tpu.memory_space<vmem>>, vector<1x72xf32>
    %1031 = vector.broadcast %1030 : vector<1x72xf32> to vector<18x72xf32>
    %1032 = arith.mulf %1031, %1025 : vector<18x72xf32>
    %1033 = arith.addf %1016, %1032 : vector<18x72xf32>
    %c105_300 = arith.constant 105 : index
    %c0_301 = arith.constant 0 : index
    %1034 = vector.load %arg1[%c105_300, %c0_301] : memref<160x128xf32, #tpu.memory_space<vmem>>, vector<1x72xf32>
    %1035 = vector.broadcast %1034 : vector<1x72xf32> to vector<18x72xf32>
    %1036 = arith.mulf %1035, %1025 : vector<18x72xf32>
    %1037 = arith.addf %1020, %1036 : vector<18x72xf32>
    %c114_302 = arith.constant 114 : index
    %c0_303 = arith.constant 0 : index
    %1038 = vector.load %arg1[%c114_302, %c0_303] : memref<160x128xf32, #tpu.memory_space<vmem>>, vector<1x72xf32>
    %1039 = vector.broadcast %1038 : vector<1x72xf32> to vector<18x72xf32>
    %1040 = arith.mulf %1039, %1025 : vector<18x72xf32>
    %1041 = arith.addf %1024, %1040 : vector<18x72xf32>
    %1042 = vector.extract_strided_slice %901 {offsets = [2, 0], sizes = [18, 72], strides = [1, 1]} : vector<20x72xf32> to vector<18x72xf32>
    %c88_304 = arith.constant 88 : index
    %c0_305 = arith.constant 0 : index
    %1043 = vector.load %arg1[%c88_304, %c0_305] : memref<160x128xf32, #tpu.memory_space<vmem>>, vector<1x72xf32>
    %1044 = vector.broadcast %1043 : vector<1x72xf32> to vector<18x72xf32>
    %1045 = arith.mulf %1044, %1042 : vector<18x72xf32>
    %1046 = arith.addf %1029, %1045 : vector<18x72xf32>
    %c97_306 = arith.constant 97 : index
    %c0_307 = arith.constant 0 : index
    %1047 = vector.load %arg1[%c97_306, %c0_307] : memref<160x128xf32, #tpu.memory_space<vmem>>, vector<1x72xf32>
    %1048 = vector.broadcast %1047 : vector<1x72xf32> to vector<18x72xf32>
    %1049 = arith.mulf %1048, %1042 : vector<18x72xf32>
    %1050 = arith.addf %1033, %1049 : vector<18x72xf32>
    %c106_308 = arith.constant 106 : index
    %c0_309 = arith.constant 0 : index
    %1051 = vector.load %arg1[%c106_308, %c0_309] : memref<160x128xf32, #tpu.memory_space<vmem>>, vector<1x72xf32>
    %1052 = vector.broadcast %1051 : vector<1x72xf32> to vector<18x72xf32>
    %1053 = arith.mulf %1052, %1042 : vector<18x72xf32>
    %1054 = arith.addf %1037, %1053 : vector<18x72xf32>
    %c115_310 = arith.constant 115 : index
    %c0_311 = arith.constant 0 : index
    %1055 = vector.load %arg1[%c115_310, %c0_311] : memref<160x128xf32, #tpu.memory_space<vmem>>, vector<1x72xf32>
    %1056 = vector.broadcast %1055 : vector<1x72xf32> to vector<18x72xf32>
    %1057 = arith.mulf %1056, %1042 : vector<18x72xf32>
    %1058 = arith.addf %1041, %1057 : vector<18x72xf32>
    %1059 = vector.extract_strided_slice %1046 {offsets = [0, 0], sizes = [18, 18], strides = [1, 1]} : vector<18x72xf32> to vector<18x18xf32>
    %1060 = vector.extract_strided_slice %1046 {offsets = [0, 18], sizes = [18, 18], strides = [1, 1]} : vector<18x72xf32> to vector<18x18xf32>
    %1061 = arith.addf %1059, %1060 : vector<18x18xf32>
    %1062 = vector.extract_strided_slice %1046 {offsets = [0, 36], sizes = [18, 18], strides = [1, 1]} : vector<18x72xf32> to vector<18x18xf32>
    %1063 = arith.addf %1061, %1062 : vector<18x18xf32>
    %1064 = vector.extract_strided_slice %1046 {offsets = [0, 54], sizes = [18, 18], strides = [1, 1]} : vector<18x72xf32> to vector<18x18xf32>
    %1065 = arith.addf %1063, %1064 : vector<18x18xf32>
    %c116_312 = arith.constant 116 : index
    %c0_313 = arith.constant 0 : index
    %1066 = vector.load %arg1[%c116_312, %c0_313] : memref<160x128xf32, #tpu.memory_space<vmem>>, vector<1x18xf32>
    %1067 = vector.broadcast %1066 : vector<1x18xf32> to vector<18x18xf32>
    %1068 = arith.addf %1065, %1067 : vector<18x18xf32>
    %cst_314 = arith.constant 0.000000e+00 : f32
    %1069 = vector.broadcast %cst_314 : f32 to vector<18x18xf32>
    %1070 = arith.maximumf %1068, %1069 : vector<18x18xf32>
    %1071 = arith.mulf %1070, %0 : vector<18x18xf32>
    %1072 = vector.extract_strided_slice %1050 {offsets = [0, 0], sizes = [18, 18], strides = [1, 1]} : vector<18x72xf32> to vector<18x18xf32>
    %1073 = vector.extract_strided_slice %1050 {offsets = [0, 18], sizes = [18, 18], strides = [1, 1]} : vector<18x72xf32> to vector<18x18xf32>
    %1074 = arith.addf %1072, %1073 : vector<18x18xf32>
    %1075 = vector.extract_strided_slice %1050 {offsets = [0, 36], sizes = [18, 18], strides = [1, 1]} : vector<18x72xf32> to vector<18x18xf32>
    %1076 = arith.addf %1074, %1075 : vector<18x18xf32>
    %1077 = vector.extract_strided_slice %1050 {offsets = [0, 54], sizes = [18, 18], strides = [1, 1]} : vector<18x72xf32> to vector<18x18xf32>
    %1078 = arith.addf %1076, %1077 : vector<18x18xf32>
    %c117_315 = arith.constant 117 : index
    %c0_316 = arith.constant 0 : index
    %1079 = vector.load %arg1[%c117_315, %c0_316] : memref<160x128xf32, #tpu.memory_space<vmem>>, vector<1x18xf32>
    %1080 = vector.broadcast %1079 : vector<1x18xf32> to vector<18x18xf32>
    %1081 = arith.addf %1078, %1080 : vector<18x18xf32>
    %cst_317 = arith.constant 0.000000e+00 : f32
    %1082 = vector.broadcast %cst_317 : f32 to vector<18x18xf32>
    %1083 = arith.maximumf %1081, %1082 : vector<18x18xf32>
    %1084 = arith.mulf %1083, %0 : vector<18x18xf32>
    %1085 = vector.extract_strided_slice %1054 {offsets = [0, 0], sizes = [18, 18], strides = [1, 1]} : vector<18x72xf32> to vector<18x18xf32>
    %1086 = vector.extract_strided_slice %1054 {offsets = [0, 18], sizes = [18, 18], strides = [1, 1]} : vector<18x72xf32> to vector<18x18xf32>
    %1087 = arith.addf %1085, %1086 : vector<18x18xf32>
    %1088 = vector.extract_strided_slice %1054 {offsets = [0, 36], sizes = [18, 18], strides = [1, 1]} : vector<18x72xf32> to vector<18x18xf32>
    %1089 = arith.addf %1087, %1088 : vector<18x18xf32>
    %1090 = vector.extract_strided_slice %1054 {offsets = [0, 54], sizes = [18, 18], strides = [1, 1]} : vector<18x72xf32> to vector<18x18xf32>
    %1091 = arith.addf %1089, %1090 : vector<18x18xf32>
    %c118_318 = arith.constant 118 : index
    %c0_319 = arith.constant 0 : index
    %1092 = vector.load %arg1[%c118_318, %c0_319] : memref<160x128xf32, #tpu.memory_space<vmem>>, vector<1x18xf32>
    %1093 = vector.broadcast %1092 : vector<1x18xf32> to vector<18x18xf32>
    %1094 = arith.addf %1091, %1093 : vector<18x18xf32>
    %cst_320 = arith.constant 0.000000e+00 : f32
    %1095 = vector.broadcast %cst_320 : f32 to vector<18x18xf32>
    %1096 = arith.maximumf %1094, %1095 : vector<18x18xf32>
    %1097 = arith.mulf %1096, %0 : vector<18x18xf32>
    %1098 = vector.extract_strided_slice %1058 {offsets = [0, 0], sizes = [18, 18], strides = [1, 1]} : vector<18x72xf32> to vector<18x18xf32>
    %1099 = vector.extract_strided_slice %1058 {offsets = [0, 18], sizes = [18, 18], strides = [1, 1]} : vector<18x72xf32> to vector<18x18xf32>
    %1100 = arith.addf %1098, %1099 : vector<18x18xf32>
    %1101 = vector.extract_strided_slice %1058 {offsets = [0, 36], sizes = [18, 18], strides = [1, 1]} : vector<18x72xf32> to vector<18x18xf32>
    %1102 = arith.addf %1100, %1101 : vector<18x18xf32>
    %1103 = vector.extract_strided_slice %1058 {offsets = [0, 54], sizes = [18, 18], strides = [1, 1]} : vector<18x72xf32> to vector<18x18xf32>
    %1104 = arith.addf %1102, %1103 : vector<18x18xf32>
    %c119_321 = arith.constant 119 : index
    %c0_322 = arith.constant 0 : index
    %1105 = vector.load %arg1[%c119_321, %c0_322] : memref<160x128xf32, #tpu.memory_space<vmem>>, vector<1x18xf32>
    %1106 = vector.broadcast %1105 : vector<1x18xf32> to vector<18x18xf32>
    %1107 = arith.addf %1104, %1106 : vector<18x18xf32>
    %cst_323 = arith.constant 0.000000e+00 : f32
    %1108 = vector.broadcast %cst_323 : f32 to vector<18x18xf32>
    %1109 = arith.maximumf %1107, %1108 : vector<18x18xf32>
    %1110 = arith.mulf %1109, %0 : vector<18x18xf32>
    %1111 = vector.extract_strided_slice %1071 {offsets = [0, 0], sizes = [18, 16], strides = [1, 1]} : vector<18x18xf32> to vector<18x16xf32>
    %1112 = vector.extract_strided_slice %1084 {offsets = [0, 0], sizes = [18, 16], strides = [1, 1]} : vector<18x18xf32> to vector<18x16xf32>
    %1113 = vector.extract_strided_slice %1097 {offsets = [0, 0], sizes = [18, 16], strides = [1, 1]} : vector<18x18xf32> to vector<18x16xf32>
    %1114 = vector.extract_strided_slice %1110 {offsets = [0, 0], sizes = [18, 16], strides = [1, 1]} : vector<18x18xf32> to vector<18x16xf32>
    %1115 = tpu.concatenate %1111, %1112, %1113, %1114 in 1 : vector<18x16xf32>, vector<18x16xf32>, vector<18x16xf32>, vector<18x16xf32> -> vector<18x64xf32>
    %1116 = vector.extract_strided_slice %1071 {offsets = [0, 1], sizes = [18, 16], strides = [1, 1]} : vector<18x18xf32> to vector<18x16xf32>
    %1117 = vector.extract_strided_slice %1084 {offsets = [0, 1], sizes = [18, 16], strides = [1, 1]} : vector<18x18xf32> to vector<18x16xf32>
    %1118 = vector.extract_strided_slice %1097 {offsets = [0, 1], sizes = [18, 16], strides = [1, 1]} : vector<18x18xf32> to vector<18x16xf32>
    %1119 = vector.extract_strided_slice %1110 {offsets = [0, 1], sizes = [18, 16], strides = [1, 1]} : vector<18x18xf32> to vector<18x16xf32>
    %1120 = tpu.concatenate %1116, %1117, %1118, %1119 in 1 : vector<18x16xf32>, vector<18x16xf32>, vector<18x16xf32>, vector<18x16xf32> -> vector<18x64xf32>
    %1121 = vector.extract_strided_slice %1071 {offsets = [0, 2], sizes = [18, 16], strides = [1, 1]} : vector<18x18xf32> to vector<18x16xf32>
    %1122 = vector.extract_strided_slice %1084 {offsets = [0, 2], sizes = [18, 16], strides = [1, 1]} : vector<18x18xf32> to vector<18x16xf32>
    %1123 = vector.extract_strided_slice %1097 {offsets = [0, 2], sizes = [18, 16], strides = [1, 1]} : vector<18x18xf32> to vector<18x16xf32>
    %1124 = vector.extract_strided_slice %1110 {offsets = [0, 2], sizes = [18, 16], strides = [1, 1]} : vector<18x18xf32> to vector<18x16xf32>
    %1125 = tpu.concatenate %1121, %1122, %1123, %1124 in 1 : vector<18x16xf32>, vector<18x16xf32>, vector<18x16xf32>, vector<18x16xf32> -> vector<18x64xf32>
    %cst_324 = arith.constant 0.000000e+00 : f32
    %1126 = vector.broadcast %cst_324 : f32 to vector<16x64xf32>
    %cst_325 = arith.constant 0.000000e+00 : f32
    %1127 = vector.broadcast %cst_325 : f32 to vector<16x64xf32>
    %cst_326 = arith.constant 0.000000e+00 : f32
    %1128 = vector.broadcast %cst_326 : f32 to vector<16x64xf32>
    %cst_327 = arith.constant 0.000000e+00 : f32
    %1129 = vector.broadcast %cst_327 : f32 to vector<16x64xf32>
    %1130 = vector.extract_strided_slice %1115 {offsets = [0, 0], sizes = [16, 64], strides = [1, 1]} : vector<18x64xf32> to vector<16x64xf32>
    %c120_328 = arith.constant 120 : index
    %c0_329 = arith.constant 0 : index
    %1131 = vector.load %arg1[%c120_328, %c0_329] : memref<160x128xf32, #tpu.memory_space<vmem>>, vector<1x64xf32>
    %1132 = vector.broadcast %1131 : vector<1x64xf32> to vector<16x64xf32>
    %1133 = arith.mulf %1132, %1130 : vector<16x64xf32>
    %1134 = arith.addf %1126, %1133 : vector<16x64xf32>
    %c129_330 = arith.constant 129 : index
    %c0_331 = arith.constant 0 : index
    %1135 = vector.load %arg1[%c129_330, %c0_331] : memref<160x128xf32, #tpu.memory_space<vmem>>, vector<1x64xf32>
    %1136 = vector.broadcast %1135 : vector<1x64xf32> to vector<16x64xf32>
    %1137 = arith.mulf %1136, %1130 : vector<16x64xf32>
    %1138 = arith.addf %1127, %1137 : vector<16x64xf32>
    %c138_332 = arith.constant 138 : index
    %c0_333 = arith.constant 0 : index
    %1139 = vector.load %arg1[%c138_332, %c0_333] : memref<160x128xf32, #tpu.memory_space<vmem>>, vector<1x64xf32>
    %1140 = vector.broadcast %1139 : vector<1x64xf32> to vector<16x64xf32>
    %1141 = arith.mulf %1140, %1130 : vector<16x64xf32>
    %1142 = arith.addf %1128, %1141 : vector<16x64xf32>
    %c147_334 = arith.constant 147 : index
    %c0_335 = arith.constant 0 : index
    %1143 = vector.load %arg1[%c147_334, %c0_335] : memref<160x128xf32, #tpu.memory_space<vmem>>, vector<1x64xf32>
    %1144 = vector.broadcast %1143 : vector<1x64xf32> to vector<16x64xf32>
    %1145 = arith.mulf %1144, %1130 : vector<16x64xf32>
    %1146 = arith.addf %1129, %1145 : vector<16x64xf32>
    %1147 = vector.extract_strided_slice %1120 {offsets = [0, 0], sizes = [16, 64], strides = [1, 1]} : vector<18x64xf32> to vector<16x64xf32>
    %c121_336 = arith.constant 121 : index
    %c0_337 = arith.constant 0 : index
    %1148 = vector.load %arg1[%c121_336, %c0_337] : memref<160x128xf32, #tpu.memory_space<vmem>>, vector<1x64xf32>
    %1149 = vector.broadcast %1148 : vector<1x64xf32> to vector<16x64xf32>
    %1150 = arith.mulf %1149, %1147 : vector<16x64xf32>
    %1151 = arith.addf %1134, %1150 : vector<16x64xf32>
    %c130_338 = arith.constant 130 : index
    %c0_339 = arith.constant 0 : index
    %1152 = vector.load %arg1[%c130_338, %c0_339] : memref<160x128xf32, #tpu.memory_space<vmem>>, vector<1x64xf32>
    %1153 = vector.broadcast %1152 : vector<1x64xf32> to vector<16x64xf32>
    %1154 = arith.mulf %1153, %1147 : vector<16x64xf32>
    %1155 = arith.addf %1138, %1154 : vector<16x64xf32>
    %c139_340 = arith.constant 139 : index
    %c0_341 = arith.constant 0 : index
    %1156 = vector.load %arg1[%c139_340, %c0_341] : memref<160x128xf32, #tpu.memory_space<vmem>>, vector<1x64xf32>
    %1157 = vector.broadcast %1156 : vector<1x64xf32> to vector<16x64xf32>
    %1158 = arith.mulf %1157, %1147 : vector<16x64xf32>
    %1159 = arith.addf %1142, %1158 : vector<16x64xf32>
    %c148_342 = arith.constant 148 : index
    %c0_343 = arith.constant 0 : index
    %1160 = vector.load %arg1[%c148_342, %c0_343] : memref<160x128xf32, #tpu.memory_space<vmem>>, vector<1x64xf32>
    %1161 = vector.broadcast %1160 : vector<1x64xf32> to vector<16x64xf32>
    %1162 = arith.mulf %1161, %1147 : vector<16x64xf32>
    %1163 = arith.addf %1146, %1162 : vector<16x64xf32>
    %1164 = vector.extract_strided_slice %1125 {offsets = [0, 0], sizes = [16, 64], strides = [1, 1]} : vector<18x64xf32> to vector<16x64xf32>
    %c122_344 = arith.constant 122 : index
    %c0_345 = arith.constant 0 : index
    %1165 = vector.load %arg1[%c122_344, %c0_345] : memref<160x128xf32, #tpu.memory_space<vmem>>, vector<1x64xf32>
    %1166 = vector.broadcast %1165 : vector<1x64xf32> to vector<16x64xf32>
    %1167 = arith.mulf %1166, %1164 : vector<16x64xf32>
    %1168 = arith.addf %1151, %1167 : vector<16x64xf32>
    %c131_346 = arith.constant 131 : index
    %c0_347 = arith.constant 0 : index
    %1169 = vector.load %arg1[%c131_346, %c0_347] : memref<160x128xf32, #tpu.memory_space<vmem>>, vector<1x64xf32>
    %1170 = vector.broadcast %1169 : vector<1x64xf32> to vector<16x64xf32>
    %1171 = arith.mulf %1170, %1164 : vector<16x64xf32>
    %1172 = arith.addf %1155, %1171 : vector<16x64xf32>
    %c140_348 = arith.constant 140 : index
    %c0_349 = arith.constant 0 : index
    %1173 = vector.load %arg1[%c140_348, %c0_349] : memref<160x128xf32, #tpu.memory_space<vmem>>, vector<1x64xf32>
    %1174 = vector.broadcast %1173 : vector<1x64xf32> to vector<16x64xf32>
    %1175 = arith.mulf %1174, %1164 : vector<16x64xf32>
    %1176 = arith.addf %1159, %1175 : vector<16x64xf32>
    %c149_350 = arith.constant 149 : index
    %c0_351 = arith.constant 0 : index
    %1177 = vector.load %arg1[%c149_350, %c0_351] : memref<160x128xf32, #tpu.memory_space<vmem>>, vector<1x64xf32>
    %1178 = vector.broadcast %1177 : vector<1x64xf32> to vector<16x64xf32>
    %1179 = arith.mulf %1178, %1164 : vector<16x64xf32>
    %1180 = arith.addf %1163, %1179 : vector<16x64xf32>
    %1181 = vector.extract_strided_slice %1115 {offsets = [1, 0], sizes = [16, 64], strides = [1, 1]} : vector<18x64xf32> to vector<16x64xf32>
    %c123_352 = arith.constant 123 : index
    %c0_353 = arith.constant 0 : index
    %1182 = vector.load %arg1[%c123_352, %c0_353] : memref<160x128xf32, #tpu.memory_space<vmem>>, vector<1x64xf32>
    %1183 = vector.broadcast %1182 : vector<1x64xf32> to vector<16x64xf32>
    %1184 = arith.mulf %1183, %1181 : vector<16x64xf32>
    %1185 = arith.addf %1168, %1184 : vector<16x64xf32>
    %c132_354 = arith.constant 132 : index
    %c0_355 = arith.constant 0 : index
    %1186 = vector.load %arg1[%c132_354, %c0_355] : memref<160x128xf32, #tpu.memory_space<vmem>>, vector<1x64xf32>
    %1187 = vector.broadcast %1186 : vector<1x64xf32> to vector<16x64xf32>
    %1188 = arith.mulf %1187, %1181 : vector<16x64xf32>
    %1189 = arith.addf %1172, %1188 : vector<16x64xf32>
    %c141_356 = arith.constant 141 : index
    %c0_357 = arith.constant 0 : index
    %1190 = vector.load %arg1[%c141_356, %c0_357] : memref<160x128xf32, #tpu.memory_space<vmem>>, vector<1x64xf32>
    %1191 = vector.broadcast %1190 : vector<1x64xf32> to vector<16x64xf32>
    %1192 = arith.mulf %1191, %1181 : vector<16x64xf32>
    %1193 = arith.addf %1176, %1192 : vector<16x64xf32>
    %c150_358 = arith.constant 150 : index
    %c0_359 = arith.constant 0 : index
    %1194 = vector.load %arg1[%c150_358, %c0_359] : memref<160x128xf32, #tpu.memory_space<vmem>>, vector<1x64xf32>
    %1195 = vector.broadcast %1194 : vector<1x64xf32> to vector<16x64xf32>
    %1196 = arith.mulf %1195, %1181 : vector<16x64xf32>
    %1197 = arith.addf %1180, %1196 : vector<16x64xf32>
    %1198 = vector.extract_strided_slice %1120 {offsets = [1, 0], sizes = [16, 64], strides = [1, 1]} : vector<18x64xf32> to vector<16x64xf32>
    %c124_360 = arith.constant 124 : index
    %c0_361 = arith.constant 0 : index
    %1199 = vector.load %arg1[%c124_360, %c0_361] : memref<160x128xf32, #tpu.memory_space<vmem>>, vector<1x64xf32>
    %1200 = vector.broadcast %1199 : vector<1x64xf32> to vector<16x64xf32>
    %1201 = arith.mulf %1200, %1198 : vector<16x64xf32>
    %1202 = arith.addf %1185, %1201 : vector<16x64xf32>
    %c133_362 = arith.constant 133 : index
    %c0_363 = arith.constant 0 : index
    %1203 = vector.load %arg1[%c133_362, %c0_363] : memref<160x128xf32, #tpu.memory_space<vmem>>, vector<1x64xf32>
    %1204 = vector.broadcast %1203 : vector<1x64xf32> to vector<16x64xf32>
    %1205 = arith.mulf %1204, %1198 : vector<16x64xf32>
    %1206 = arith.addf %1189, %1205 : vector<16x64xf32>
    %c142_364 = arith.constant 142 : index
    %c0_365 = arith.constant 0 : index
    %1207 = vector.load %arg1[%c142_364, %c0_365] : memref<160x128xf32, #tpu.memory_space<vmem>>, vector<1x64xf32>
    %1208 = vector.broadcast %1207 : vector<1x64xf32> to vector<16x64xf32>
    %1209 = arith.mulf %1208, %1198 : vector<16x64xf32>
    %1210 = arith.addf %1193, %1209 : vector<16x64xf32>
    %c151_366 = arith.constant 151 : index
    %c0_367 = arith.constant 0 : index
    %1211 = vector.load %arg1[%c151_366, %c0_367] : memref<160x128xf32, #tpu.memory_space<vmem>>, vector<1x64xf32>
    %1212 = vector.broadcast %1211 : vector<1x64xf32> to vector<16x64xf32>
    %1213 = arith.mulf %1212, %1198 : vector<16x64xf32>
    %1214 = arith.addf %1197, %1213 : vector<16x64xf32>
    %1215 = vector.extract_strided_slice %1125 {offsets = [1, 0], sizes = [16, 64], strides = [1, 1]} : vector<18x64xf32> to vector<16x64xf32>
    %c125_368 = arith.constant 125 : index
    %c0_369 = arith.constant 0 : index
    %1216 = vector.load %arg1[%c125_368, %c0_369] : memref<160x128xf32, #tpu.memory_space<vmem>>, vector<1x64xf32>
    %1217 = vector.broadcast %1216 : vector<1x64xf32> to vector<16x64xf32>
    %1218 = arith.mulf %1217, %1215 : vector<16x64xf32>
    %1219 = arith.addf %1202, %1218 : vector<16x64xf32>
    %c134_370 = arith.constant 134 : index
    %c0_371 = arith.constant 0 : index
    %1220 = vector.load %arg1[%c134_370, %c0_371] : memref<160x128xf32, #tpu.memory_space<vmem>>, vector<1x64xf32>
    %1221 = vector.broadcast %1220 : vector<1x64xf32> to vector<16x64xf32>
    %1222 = arith.mulf %1221, %1215 : vector<16x64xf32>
    %1223 = arith.addf %1206, %1222 : vector<16x64xf32>
    %c143_372 = arith.constant 143 : index
    %c0_373 = arith.constant 0 : index
    %1224 = vector.load %arg1[%c143_372, %c0_373] : memref<160x128xf32, #tpu.memory_space<vmem>>, vector<1x64xf32>
    %1225 = vector.broadcast %1224 : vector<1x64xf32> to vector<16x64xf32>
    %1226 = arith.mulf %1225, %1215 : vector<16x64xf32>
    %1227 = arith.addf %1210, %1226 : vector<16x64xf32>
    %c152_374 = arith.constant 152 : index
    %c0_375 = arith.constant 0 : index
    %1228 = vector.load %arg1[%c152_374, %c0_375] : memref<160x128xf32, #tpu.memory_space<vmem>>, vector<1x64xf32>
    %1229 = vector.broadcast %1228 : vector<1x64xf32> to vector<16x64xf32>
    %1230 = arith.mulf %1229, %1215 : vector<16x64xf32>
    %1231 = arith.addf %1214, %1230 : vector<16x64xf32>
    %1232 = vector.extract_strided_slice %1115 {offsets = [2, 0], sizes = [16, 64], strides = [1, 1]} : vector<18x64xf32> to vector<16x64xf32>
    %c126_376 = arith.constant 126 : index
    %c0_377 = arith.constant 0 : index
    %1233 = vector.load %arg1[%c126_376, %c0_377] : memref<160x128xf32, #tpu.memory_space<vmem>>, vector<1x64xf32>
    %1234 = vector.broadcast %1233 : vector<1x64xf32> to vector<16x64xf32>
    %1235 = arith.mulf %1234, %1232 : vector<16x64xf32>
    %1236 = arith.addf %1219, %1235 : vector<16x64xf32>
    %c135_378 = arith.constant 135 : index
    %c0_379 = arith.constant 0 : index
    %1237 = vector.load %arg1[%c135_378, %c0_379] : memref<160x128xf32, #tpu.memory_space<vmem>>, vector<1x64xf32>
    %1238 = vector.broadcast %1237 : vector<1x64xf32> to vector<16x64xf32>
    %1239 = arith.mulf %1238, %1232 : vector<16x64xf32>
    %1240 = arith.addf %1223, %1239 : vector<16x64xf32>
    %c144_380 = arith.constant 144 : index
    %c0_381 = arith.constant 0 : index
    %1241 = vector.load %arg1[%c144_380, %c0_381] : memref<160x128xf32, #tpu.memory_space<vmem>>, vector<1x64xf32>
    %1242 = vector.broadcast %1241 : vector<1x64xf32> to vector<16x64xf32>
    %1243 = arith.mulf %1242, %1232 : vector<16x64xf32>
    %1244 = arith.addf %1227, %1243 : vector<16x64xf32>
    %c153_382 = arith.constant 153 : index
    %c0_383 = arith.constant 0 : index
    %1245 = vector.load %arg1[%c153_382, %c0_383] : memref<160x128xf32, #tpu.memory_space<vmem>>, vector<1x64xf32>
    %1246 = vector.broadcast %1245 : vector<1x64xf32> to vector<16x64xf32>
    %1247 = arith.mulf %1246, %1232 : vector<16x64xf32>
    %1248 = arith.addf %1231, %1247 : vector<16x64xf32>
    %1249 = vector.extract_strided_slice %1120 {offsets = [2, 0], sizes = [16, 64], strides = [1, 1]} : vector<18x64xf32> to vector<16x64xf32>
    %c127_384 = arith.constant 127 : index
    %c0_385 = arith.constant 0 : index
    %1250 = vector.load %arg1[%c127_384, %c0_385] : memref<160x128xf32, #tpu.memory_space<vmem>>, vector<1x64xf32>
    %1251 = vector.broadcast %1250 : vector<1x64xf32> to vector<16x64xf32>
    %1252 = arith.mulf %1251, %1249 : vector<16x64xf32>
    %1253 = arith.addf %1236, %1252 : vector<16x64xf32>
    %c136_386 = arith.constant 136 : index
    %c0_387 = arith.constant 0 : index
    %1254 = vector.load %arg1[%c136_386, %c0_387] : memref<160x128xf32, #tpu.memory_space<vmem>>, vector<1x64xf32>
    %1255 = vector.broadcast %1254 : vector<1x64xf32> to vector<16x64xf32>
    %1256 = arith.mulf %1255, %1249 : vector<16x64xf32>
    %1257 = arith.addf %1240, %1256 : vector<16x64xf32>
    %c145_388 = arith.constant 145 : index
    %c0_389 = arith.constant 0 : index
    %1258 = vector.load %arg1[%c145_388, %c0_389] : memref<160x128xf32, #tpu.memory_space<vmem>>, vector<1x64xf32>
    %1259 = vector.broadcast %1258 : vector<1x64xf32> to vector<16x64xf32>
    %1260 = arith.mulf %1259, %1249 : vector<16x64xf32>
    %1261 = arith.addf %1244, %1260 : vector<16x64xf32>
    %c154_390 = arith.constant 154 : index
    %c0_391 = arith.constant 0 : index
    %1262 = vector.load %arg1[%c154_390, %c0_391] : memref<160x128xf32, #tpu.memory_space<vmem>>, vector<1x64xf32>
    %1263 = vector.broadcast %1262 : vector<1x64xf32> to vector<16x64xf32>
    %1264 = arith.mulf %1263, %1249 : vector<16x64xf32>
    %1265 = arith.addf %1248, %1264 : vector<16x64xf32>
    %1266 = vector.extract_strided_slice %1125 {offsets = [2, 0], sizes = [16, 64], strides = [1, 1]} : vector<18x64xf32> to vector<16x64xf32>
    %c128_392 = arith.constant 128 : index
    %c0_393 = arith.constant 0 : index
    %1267 = vector.load %arg1[%c128_392, %c0_393] : memref<160x128xf32, #tpu.memory_space<vmem>>, vector<1x64xf32>
    %1268 = vector.broadcast %1267 : vector<1x64xf32> to vector<16x64xf32>
    %1269 = arith.mulf %1268, %1266 : vector<16x64xf32>
    %1270 = arith.addf %1253, %1269 : vector<16x64xf32>
    %c137_394 = arith.constant 137 : index
    %c0_395 = arith.constant 0 : index
    %1271 = vector.load %arg1[%c137_394, %c0_395] : memref<160x128xf32, #tpu.memory_space<vmem>>, vector<1x64xf32>
    %1272 = vector.broadcast %1271 : vector<1x64xf32> to vector<16x64xf32>
    %1273 = arith.mulf %1272, %1266 : vector<16x64xf32>
    %1274 = arith.addf %1257, %1273 : vector<16x64xf32>
    %c146_396 = arith.constant 146 : index
    %c0_397 = arith.constant 0 : index
    %1275 = vector.load %arg1[%c146_396, %c0_397] : memref<160x128xf32, #tpu.memory_space<vmem>>, vector<1x64xf32>
    %1276 = vector.broadcast %1275 : vector<1x64xf32> to vector<16x64xf32>
    %1277 = arith.mulf %1276, %1266 : vector<16x64xf32>
    %1278 = arith.addf %1261, %1277 : vector<16x64xf32>
    %c155_398 = arith.constant 155 : index
    %c0_399 = arith.constant 0 : index
    %1279 = vector.load %arg1[%c155_398, %c0_399] : memref<160x128xf32, #tpu.memory_space<vmem>>, vector<1x64xf32>
    %1280 = vector.broadcast %1279 : vector<1x64xf32> to vector<16x64xf32>
    %1281 = arith.mulf %1280, %1266 : vector<16x64xf32>
    %1282 = arith.addf %1265, %1281 : vector<16x64xf32>
    %1283 = vector.extract_strided_slice %1270 {offsets = [0, 0], sizes = [16, 16], strides = [1, 1]} : vector<16x64xf32> to vector<16x16xf32>
    %1284 = vector.extract_strided_slice %1270 {offsets = [0, 16], sizes = [16, 16], strides = [1, 1]} : vector<16x64xf32> to vector<16x16xf32>
    %1285 = arith.addf %1283, %1284 : vector<16x16xf32>
    %1286 = vector.extract_strided_slice %1270 {offsets = [0, 32], sizes = [16, 16], strides = [1, 1]} : vector<16x64xf32> to vector<16x16xf32>
    %1287 = arith.addf %1285, %1286 : vector<16x16xf32>
    %1288 = vector.extract_strided_slice %1270 {offsets = [0, 48], sizes = [16, 16], strides = [1, 1]} : vector<16x64xf32> to vector<16x16xf32>
    %1289 = arith.addf %1287, %1288 : vector<16x16xf32>
    %1290 = vector.extract_strided_slice %897 {offsets = [2, 2], sizes = [16, 16], strides = [1, 1]} : vector<20x72xf32> to vector<16x16xf32>
    %1291 = arith.addf %1290, %1289 : vector<16x16xf32>
    %c156_400 = arith.constant 156 : index
    %c0_401 = arith.constant 0 : index
    %1292 = vector.load %arg1[%c156_400, %c0_401] : memref<160x128xf32, #tpu.memory_space<vmem>>, vector<1x16xf32>
    %1293 = vector.broadcast %1292 : vector<1x16xf32> to vector<16x16xf32>
    %1294 = arith.addf %1291, %1293 : vector<16x16xf32>
    %1295 = vector.extract_strided_slice %1274 {offsets = [0, 0], sizes = [16, 16], strides = [1, 1]} : vector<16x64xf32> to vector<16x16xf32>
    %1296 = vector.extract_strided_slice %1274 {offsets = [0, 16], sizes = [16, 16], strides = [1, 1]} : vector<16x64xf32> to vector<16x16xf32>
    %1297 = arith.addf %1295, %1296 : vector<16x16xf32>
    %1298 = vector.extract_strided_slice %1274 {offsets = [0, 32], sizes = [16, 16], strides = [1, 1]} : vector<16x64xf32> to vector<16x16xf32>
    %1299 = arith.addf %1297, %1298 : vector<16x16xf32>
    %1300 = vector.extract_strided_slice %1274 {offsets = [0, 48], sizes = [16, 16], strides = [1, 1]} : vector<16x64xf32> to vector<16x16xf32>
    %1301 = arith.addf %1299, %1300 : vector<16x16xf32>
    %1302 = vector.extract_strided_slice %897 {offsets = [2, 20], sizes = [16, 16], strides = [1, 1]} : vector<20x72xf32> to vector<16x16xf32>
    %1303 = arith.addf %1302, %1301 : vector<16x16xf32>
    %c157_402 = arith.constant 157 : index
    %c0_403 = arith.constant 0 : index
    %1304 = vector.load %arg1[%c157_402, %c0_403] : memref<160x128xf32, #tpu.memory_space<vmem>>, vector<1x16xf32>
    %1305 = vector.broadcast %1304 : vector<1x16xf32> to vector<16x16xf32>
    %1306 = arith.addf %1303, %1305 : vector<16x16xf32>
    %1307 = vector.extract_strided_slice %1278 {offsets = [0, 0], sizes = [16, 16], strides = [1, 1]} : vector<16x64xf32> to vector<16x16xf32>
    %1308 = vector.extract_strided_slice %1278 {offsets = [0, 16], sizes = [16, 16], strides = [1, 1]} : vector<16x64xf32> to vector<16x16xf32>
    %1309 = arith.addf %1307, %1308 : vector<16x16xf32>
    %1310 = vector.extract_strided_slice %1278 {offsets = [0, 32], sizes = [16, 16], strides = [1, 1]} : vector<16x64xf32> to vector<16x16xf32>
    %1311 = arith.addf %1309, %1310 : vector<16x16xf32>
    %1312 = vector.extract_strided_slice %1278 {offsets = [0, 48], sizes = [16, 16], strides = [1, 1]} : vector<16x64xf32> to vector<16x16xf32>
    %1313 = arith.addf %1311, %1312 : vector<16x16xf32>
    %1314 = vector.extract_strided_slice %897 {offsets = [2, 38], sizes = [16, 16], strides = [1, 1]} : vector<20x72xf32> to vector<16x16xf32>
    %1315 = arith.addf %1314, %1313 : vector<16x16xf32>
    %c158_404 = arith.constant 158 : index
    %c0_405 = arith.constant 0 : index
    %1316 = vector.load %arg1[%c158_404, %c0_405] : memref<160x128xf32, #tpu.memory_space<vmem>>, vector<1x16xf32>
    %1317 = vector.broadcast %1316 : vector<1x16xf32> to vector<16x16xf32>
    %1318 = arith.addf %1315, %1317 : vector<16x16xf32>
    %1319 = vector.extract_strided_slice %1282 {offsets = [0, 0], sizes = [16, 16], strides = [1, 1]} : vector<16x64xf32> to vector<16x16xf32>
    %1320 = vector.extract_strided_slice %1282 {offsets = [0, 16], sizes = [16, 16], strides = [1, 1]} : vector<16x64xf32> to vector<16x16xf32>
    %1321 = arith.addf %1319, %1320 : vector<16x16xf32>
    %1322 = vector.extract_strided_slice %1282 {offsets = [0, 32], sizes = [16, 16], strides = [1, 1]} : vector<16x64xf32> to vector<16x16xf32>
    %1323 = arith.addf %1321, %1322 : vector<16x16xf32>
    %1324 = vector.extract_strided_slice %1282 {offsets = [0, 48], sizes = [16, 16], strides = [1, 1]} : vector<16x64xf32> to vector<16x16xf32>
    %1325 = arith.addf %1323, %1324 : vector<16x16xf32>
    %1326 = vector.extract_strided_slice %897 {offsets = [2, 56], sizes = [16, 16], strides = [1, 1]} : vector<20x72xf32> to vector<16x16xf32>
    %1327 = arith.addf %1326, %1325 : vector<16x16xf32>
    %c159_406 = arith.constant 159 : index
    %c0_407 = arith.constant 0 : index
    %1328 = vector.load %arg1[%c159_406, %c0_407] : memref<160x128xf32, #tpu.memory_space<vmem>>, vector<1x16xf32>
    %1329 = vector.broadcast %1328 : vector<1x16xf32> to vector<16x16xf32>
    %1330 = arith.addf %1327, %1329 : vector<16x16xf32>
    %1331 = vector.shape_cast %1294 : vector<16x16xf32> to vector<1x16x16xf32>
    %1332 = vector.shape_cast %1306 : vector<16x16xf32> to vector<1x16x16xf32>
    %1333 = vector.shape_cast %1318 : vector<16x16xf32> to vector<1x16x16xf32>
    %1334 = vector.shape_cast %1330 : vector<16x16xf32> to vector<1x16x16xf32>
    %1335 = tpu.concatenate %1331, %1332, %1333, %1334 in 0 : vector<1x16x16xf32>, vector<1x16x16xf32>, vector<1x16x16xf32>, vector<1x16x16xf32> -> vector<4x16x16xf32>
    %1336 = arith.truncf %1335 : vector<4x16x16xf32> to vector<4x16x16xbf16>
    %cst_408 = arith.constant dense<0.000000e+00> : vector<4x16x16xf32>
    %1337 = tpu.matmul %1336, %441, %cst_408 {dimension_numbers = #tpu.dot_dimension_numbers<[2], [1], [1], [2], [0, 0, 0, 1, 1, 2], [0], [0]>} : vector<4x16x16xbf16>, vector<4x16x16xbf16>, vector<4x16x16xf32> -> vector<4x16x16xf32>
    %1338 = arith.negf %1337 : vector<4x16x16xf32>
    %1339 = math.exp %1338 : vector<4x16x16xf32>
    %cst_409 = arith.constant 1.000000e+00 : f32
    %1340 = vector.broadcast %cst_409 : f32 to vector<4x16x16xf32>
    %1341 = arith.addf %1340, %1339 : vector<4x16x16xf32>
    %1342 = arith.divf %1340, %1341 : vector<4x16x16xf32>
    %c0_410 = arith.constant 0 : index
    %c1_411 = arith.constant 1 : index
    %c0_412 = arith.constant 0 : index
    %c0_413 = arith.constant 0 : index
    %c0_414 = arith.constant 0 : index
    %1343 = vector.load %arg5[%c0_410, %c1_411, %c0_412, %c0_413, %c0_414] : memref<1x3x4x16x16xf32, #tpu.memory_space<vmem>>, vector<1x1x4x16x16xf32>
    %1344 = vector.shape_cast %1343 : vector<1x1x4x16x16xf32> to vector<4x16x16xf32>
    %1345 = arith.mulf %1342, %1344 : vector<4x16x16xf32>
    %1346 = arith.addf %894, %1345 : vector<4x16x16xf32>
    %1347 = arith.addf %895, %1342 : vector<4x16x16xf32>
    %c0_415 = arith.constant 0 : index
    %c2_416 = arith.constant 2 : index
    %c0_417 = arith.constant 0 : index
    %c0_418 = arith.constant 0 : index
    %c0_419 = arith.constant 0 : index
    %1348 = vector.load %arg4[%c0_415, %c2_416, %c0_417, %c0_418, %c0_419] : memref<1x3x3x20x72xf32, #tpu.memory_space<vmem>>, vector<1x1x1x20x72xf32>
    %1349 = vector.shape_cast %1348 : vector<1x1x1x20x72xf32> to vector<20x72xf32>
    %c0_420 = arith.constant 0 : index
    %c2_421 = arith.constant 2 : index
    %c1_422 = arith.constant 1 : index
    %c0_423 = arith.constant 0 : index
    %c0_424 = arith.constant 0 : index
    %1350 = vector.load %arg4[%c0_420, %c2_421, %c1_422, %c0_423, %c0_424] : memref<1x3x3x20x72xf32, #tpu.memory_space<vmem>>, vector<1x1x1x20x72xf32>
    %1351 = vector.shape_cast %1350 : vector<1x1x1x20x72xf32> to vector<20x72xf32>
    %c0_425 = arith.constant 0 : index
    %c2_426 = arith.constant 2 : index
    %c2_427 = arith.constant 2 : index
    %c0_428 = arith.constant 0 : index
    %c0_429 = arith.constant 0 : index
    %1352 = vector.load %arg4[%c0_425, %c2_426, %c2_427, %c0_428, %c0_429] : memref<1x3x3x20x72xf32, #tpu.memory_space<vmem>>, vector<1x1x1x20x72xf32>
    %1353 = vector.shape_cast %1352 : vector<1x1x1x20x72xf32> to vector<20x72xf32>
    %cst_430 = arith.constant 0.000000e+00 : f32
    %1354 = vector.broadcast %cst_430 : f32 to vector<18x72xf32>
    %cst_431 = arith.constant 0.000000e+00 : f32
    %1355 = vector.broadcast %cst_431 : f32 to vector<18x72xf32>
    %cst_432 = arith.constant 0.000000e+00 : f32
    %1356 = vector.broadcast %cst_432 : f32 to vector<18x72xf32>
    %cst_433 = arith.constant 0.000000e+00 : f32
    %1357 = vector.broadcast %cst_433 : f32 to vector<18x72xf32>
    %1358 = vector.extract_strided_slice %1349 {offsets = [0, 0], sizes = [18, 72], strides = [1, 1]} : vector<20x72xf32> to vector<18x72xf32>
    %c80_434 = arith.constant 80 : index
    %c0_435 = arith.constant 0 : index
    %1359 = vector.load %arg1[%c80_434, %c0_435] : memref<160x128xf32, #tpu.memory_space<vmem>>, vector<1x72xf32>
    %1360 = vector.broadcast %1359 : vector<1x72xf32> to vector<18x72xf32>
    %1361 = arith.mulf %1360, %1358 : vector<18x72xf32>
    %1362 = arith.addf %1354, %1361 : vector<18x72xf32>
    %c89_436 = arith.constant 89 : index
    %c0_437 = arith.constant 0 : index
    %1363 = vector.load %arg1[%c89_436, %c0_437] : memref<160x128xf32, #tpu.memory_space<vmem>>, vector<1x72xf32>
    %1364 = vector.broadcast %1363 : vector<1x72xf32> to vector<18x72xf32>
    %1365 = arith.mulf %1364, %1358 : vector<18x72xf32>
    %1366 = arith.addf %1355, %1365 : vector<18x72xf32>
    %c98_438 = arith.constant 98 : index
    %c0_439 = arith.constant 0 : index
    %1367 = vector.load %arg1[%c98_438, %c0_439] : memref<160x128xf32, #tpu.memory_space<vmem>>, vector<1x72xf32>
    %1368 = vector.broadcast %1367 : vector<1x72xf32> to vector<18x72xf32>
    %1369 = arith.mulf %1368, %1358 : vector<18x72xf32>
    %1370 = arith.addf %1356, %1369 : vector<18x72xf32>
    %c107_440 = arith.constant 107 : index
    %c0_441 = arith.constant 0 : index
    %1371 = vector.load %arg1[%c107_440, %c0_441] : memref<160x128xf32, #tpu.memory_space<vmem>>, vector<1x72xf32>
    %1372 = vector.broadcast %1371 : vector<1x72xf32> to vector<18x72xf32>
    %1373 = arith.mulf %1372, %1358 : vector<18x72xf32>
    %1374 = arith.addf %1357, %1373 : vector<18x72xf32>
    %1375 = vector.extract_strided_slice %1351 {offsets = [0, 0], sizes = [18, 72], strides = [1, 1]} : vector<20x72xf32> to vector<18x72xf32>
    %c81_442 = arith.constant 81 : index
    %c0_443 = arith.constant 0 : index
    %1376 = vector.load %arg1[%c81_442, %c0_443] : memref<160x128xf32, #tpu.memory_space<vmem>>, vector<1x72xf32>
    %1377 = vector.broadcast %1376 : vector<1x72xf32> to vector<18x72xf32>
    %1378 = arith.mulf %1377, %1375 : vector<18x72xf32>
    %1379 = arith.addf %1362, %1378 : vector<18x72xf32>
    %c90_444 = arith.constant 90 : index
    %c0_445 = arith.constant 0 : index
    %1380 = vector.load %arg1[%c90_444, %c0_445] : memref<160x128xf32, #tpu.memory_space<vmem>>, vector<1x72xf32>
    %1381 = vector.broadcast %1380 : vector<1x72xf32> to vector<18x72xf32>
    %1382 = arith.mulf %1381, %1375 : vector<18x72xf32>
    %1383 = arith.addf %1366, %1382 : vector<18x72xf32>
    %c99_446 = arith.constant 99 : index
    %c0_447 = arith.constant 0 : index
    %1384 = vector.load %arg1[%c99_446, %c0_447] : memref<160x128xf32, #tpu.memory_space<vmem>>, vector<1x72xf32>
    %1385 = vector.broadcast %1384 : vector<1x72xf32> to vector<18x72xf32>
    %1386 = arith.mulf %1385, %1375 : vector<18x72xf32>
    %1387 = arith.addf %1370, %1386 : vector<18x72xf32>
    %c108_448 = arith.constant 108 : index
    %c0_449 = arith.constant 0 : index
    %1388 = vector.load %arg1[%c108_448, %c0_449] : memref<160x128xf32, #tpu.memory_space<vmem>>, vector<1x72xf32>
    %1389 = vector.broadcast %1388 : vector<1x72xf32> to vector<18x72xf32>
    %1390 = arith.mulf %1389, %1375 : vector<18x72xf32>
    %1391 = arith.addf %1374, %1390 : vector<18x72xf32>
    %1392 = vector.extract_strided_slice %1353 {offsets = [0, 0], sizes = [18, 72], strides = [1, 1]} : vector<20x72xf32> to vector<18x72xf32>
    %c82_450 = arith.constant 82 : index
    %c0_451 = arith.constant 0 : index
    %1393 = vector.load %arg1[%c82_450, %c0_451] : memref<160x128xf32, #tpu.memory_space<vmem>>, vector<1x72xf32>
    %1394 = vector.broadcast %1393 : vector<1x72xf32> to vector<18x72xf32>
    %1395 = arith.mulf %1394, %1392 : vector<18x72xf32>
    %1396 = arith.addf %1379, %1395 : vector<18x72xf32>
    %c91_452 = arith.constant 91 : index
    %c0_453 = arith.constant 0 : index
    %1397 = vector.load %arg1[%c91_452, %c0_453] : memref<160x128xf32, #tpu.memory_space<vmem>>, vector<1x72xf32>
    %1398 = vector.broadcast %1397 : vector<1x72xf32> to vector<18x72xf32>
    %1399 = arith.mulf %1398, %1392 : vector<18x72xf32>
    %1400 = arith.addf %1383, %1399 : vector<18x72xf32>
    %c100_454 = arith.constant 100 : index
    %c0_455 = arith.constant 0 : index
    %1401 = vector.load %arg1[%c100_454, %c0_455] : memref<160x128xf32, #tpu.memory_space<vmem>>, vector<1x72xf32>
    %1402 = vector.broadcast %1401 : vector<1x72xf32> to vector<18x72xf32>
    %1403 = arith.mulf %1402, %1392 : vector<18x72xf32>
    %1404 = arith.addf %1387, %1403 : vector<18x72xf32>
    %c109_456 = arith.constant 109 : index
    %c0_457 = arith.constant 0 : index
    %1405 = vector.load %arg1[%c109_456, %c0_457] : memref<160x128xf32, #tpu.memory_space<vmem>>, vector<1x72xf32>
    %1406 = vector.broadcast %1405 : vector<1x72xf32> to vector<18x72xf32>
    %1407 = arith.mulf %1406, %1392 : vector<18x72xf32>
    %1408 = arith.addf %1391, %1407 : vector<18x72xf32>
    %1409 = vector.extract_strided_slice %1349 {offsets = [1, 0], sizes = [18, 72], strides = [1, 1]} : vector<20x72xf32> to vector<18x72xf32>
    %c83_458 = arith.constant 83 : index
    %c0_459 = arith.constant 0 : index
    %1410 = vector.load %arg1[%c83_458, %c0_459] : memref<160x128xf32, #tpu.memory_space<vmem>>, vector<1x72xf32>
    %1411 = vector.broadcast %1410 : vector<1x72xf32> to vector<18x72xf32>
    %1412 = arith.mulf %1411, %1409 : vector<18x72xf32>
    %1413 = arith.addf %1396, %1412 : vector<18x72xf32>
    %c92_460 = arith.constant 92 : index
    %c0_461 = arith.constant 0 : index
    %1414 = vector.load %arg1[%c92_460, %c0_461] : memref<160x128xf32, #tpu.memory_space<vmem>>, vector<1x72xf32>
    %1415 = vector.broadcast %1414 : vector<1x72xf32> to vector<18x72xf32>
    %1416 = arith.mulf %1415, %1409 : vector<18x72xf32>
    %1417 = arith.addf %1400, %1416 : vector<18x72xf32>
    %c101_462 = arith.constant 101 : index
    %c0_463 = arith.constant 0 : index
    %1418 = vector.load %arg1[%c101_462, %c0_463] : memref<160x128xf32, #tpu.memory_space<vmem>>, vector<1x72xf32>
    %1419 = vector.broadcast %1418 : vector<1x72xf32> to vector<18x72xf32>
    %1420 = arith.mulf %1419, %1409 : vector<18x72xf32>
    %1421 = arith.addf %1404, %1420 : vector<18x72xf32>
    %c110_464 = arith.constant 110 : index
    %c0_465 = arith.constant 0 : index
    %1422 = vector.load %arg1[%c110_464, %c0_465] : memref<160x128xf32, #tpu.memory_space<vmem>>, vector<1x72xf32>
    %1423 = vector.broadcast %1422 : vector<1x72xf32> to vector<18x72xf32>
    %1424 = arith.mulf %1423, %1409 : vector<18x72xf32>
    %1425 = arith.addf %1408, %1424 : vector<18x72xf32>
    %1426 = vector.extract_strided_slice %1351 {offsets = [1, 0], sizes = [18, 72], strides = [1, 1]} : vector<20x72xf32> to vector<18x72xf32>
    %c84_466 = arith.constant 84 : index
    %c0_467 = arith.constant 0 : index
    %1427 = vector.load %arg1[%c84_466, %c0_467] : memref<160x128xf32, #tpu.memory_space<vmem>>, vector<1x72xf32>
    %1428 = vector.broadcast %1427 : vector<1x72xf32> to vector<18x72xf32>
    %1429 = arith.mulf %1428, %1426 : vector<18x72xf32>
    %1430 = arith.addf %1413, %1429 : vector<18x72xf32>
    %c93_468 = arith.constant 93 : index
    %c0_469 = arith.constant 0 : index
    %1431 = vector.load %arg1[%c93_468, %c0_469] : memref<160x128xf32, #tpu.memory_space<vmem>>, vector<1x72xf32>
    %1432 = vector.broadcast %1431 : vector<1x72xf32> to vector<18x72xf32>
    %1433 = arith.mulf %1432, %1426 : vector<18x72xf32>
    %1434 = arith.addf %1417, %1433 : vector<18x72xf32>
    %c102_470 = arith.constant 102 : index
    %c0_471 = arith.constant 0 : index
    %1435 = vector.load %arg1[%c102_470, %c0_471] : memref<160x128xf32, #tpu.memory_space<vmem>>, vector<1x72xf32>
    %1436 = vector.broadcast %1435 : vector<1x72xf32> to vector<18x72xf32>
    %1437 = arith.mulf %1436, %1426 : vector<18x72xf32>
    %1438 = arith.addf %1421, %1437 : vector<18x72xf32>
    %c111_472 = arith.constant 111 : index
    %c0_473 = arith.constant 0 : index
    %1439 = vector.load %arg1[%c111_472, %c0_473] : memref<160x128xf32, #tpu.memory_space<vmem>>, vector<1x72xf32>
    %1440 = vector.broadcast %1439 : vector<1x72xf32> to vector<18x72xf32>
    %1441 = arith.mulf %1440, %1426 : vector<18x72xf32>
    %1442 = arith.addf %1425, %1441 : vector<18x72xf32>
    %1443 = vector.extract_strided_slice %1353 {offsets = [1, 0], sizes = [18, 72], strides = [1, 1]} : vector<20x72xf32> to vector<18x72xf32>
    %c85_474 = arith.constant 85 : index
    %c0_475 = arith.constant 0 : index
    %1444 = vector.load %arg1[%c85_474, %c0_475] : memref<160x128xf32, #tpu.memory_space<vmem>>, vector<1x72xf32>
    %1445 = vector.broadcast %1444 : vector<1x72xf32> to vector<18x72xf32>
    %1446 = arith.mulf %1445, %1443 : vector<18x72xf32>
    %1447 = arith.addf %1430, %1446 : vector<18x72xf32>
    %c94_476 = arith.constant 94 : index
    %c0_477 = arith.constant 0 : index
    %1448 = vector.load %arg1[%c94_476, %c0_477] : memref<160x128xf32, #tpu.memory_space<vmem>>, vector<1x72xf32>
    %1449 = vector.broadcast %1448 : vector<1x72xf32> to vector<18x72xf32>
    %1450 = arith.mulf %1449, %1443 : vector<18x72xf32>
    %1451 = arith.addf %1434, %1450 : vector<18x72xf32>
    %c103_478 = arith.constant 103 : index
    %c0_479 = arith.constant 0 : index
    %1452 = vector.load %arg1[%c103_478, %c0_479] : memref<160x128xf32, #tpu.memory_space<vmem>>, vector<1x72xf32>
    %1453 = vector.broadcast %1452 : vector<1x72xf32> to vector<18x72xf32>
    %1454 = arith.mulf %1453, %1443 : vector<18x72xf32>
    %1455 = arith.addf %1438, %1454 : vector<18x72xf32>
    %c112_480 = arith.constant 112 : index
    %c0_481 = arith.constant 0 : index
    %1456 = vector.load %arg1[%c112_480, %c0_481] : memref<160x128xf32, #tpu.memory_space<vmem>>, vector<1x72xf32>
    %1457 = vector.broadcast %1456 : vector<1x72xf32> to vector<18x72xf32>
    %1458 = arith.mulf %1457, %1443 : vector<18x72xf32>
    %1459 = arith.addf %1442, %1458 : vector<18x72xf32>
    %1460 = vector.extract_strided_slice %1349 {offsets = [2, 0], sizes = [18, 72], strides = [1, 1]} : vector<20x72xf32> to vector<18x72xf32>
    %c86_482 = arith.constant 86 : index
    %c0_483 = arith.constant 0 : index
    %1461 = vector.load %arg1[%c86_482, %c0_483] : memref<160x128xf32, #tpu.memory_space<vmem>>, vector<1x72xf32>
    %1462 = vector.broadcast %1461 : vector<1x72xf32> to vector<18x72xf32>
    %1463 = arith.mulf %1462, %1460 : vector<18x72xf32>
    %1464 = arith.addf %1447, %1463 : vector<18x72xf32>
    %c95_484 = arith.constant 95 : index
    %c0_485 = arith.constant 0 : index
    %1465 = vector.load %arg1[%c95_484, %c0_485] : memref<160x128xf32, #tpu.memory_space<vmem>>, vector<1x72xf32>
    %1466 = vector.broadcast %1465 : vector<1x72xf32> to vector<18x72xf32>
    %1467 = arith.mulf %1466, %1460 : vector<18x72xf32>
    %1468 = arith.addf %1451, %1467 : vector<18x72xf32>
    %c104_486 = arith.constant 104 : index
    %c0_487 = arith.constant 0 : index
    %1469 = vector.load %arg1[%c104_486, %c0_487] : memref<160x128xf32, #tpu.memory_space<vmem>>, vector<1x72xf32>
    %1470 = vector.broadcast %1469 : vector<1x72xf32> to vector<18x72xf32>
    %1471 = arith.mulf %1470, %1460 : vector<18x72xf32>
    %1472 = arith.addf %1455, %1471 : vector<18x72xf32>
    %c113_488 = arith.constant 113 : index
    %c0_489 = arith.constant 0 : index
    %1473 = vector.load %arg1[%c113_488, %c0_489] : memref<160x128xf32, #tpu.memory_space<vmem>>, vector<1x72xf32>
    %1474 = vector.broadcast %1473 : vector<1x72xf32> to vector<18x72xf32>
    %1475 = arith.mulf %1474, %1460 : vector<18x72xf32>
    %1476 = arith.addf %1459, %1475 : vector<18x72xf32>
    %1477 = vector.extract_strided_slice %1351 {offsets = [2, 0], sizes = [18, 72], strides = [1, 1]} : vector<20x72xf32> to vector<18x72xf32>
    %c87_490 = arith.constant 87 : index
    %c0_491 = arith.constant 0 : index
    %1478 = vector.load %arg1[%c87_490, %c0_491] : memref<160x128xf32, #tpu.memory_space<vmem>>, vector<1x72xf32>
    %1479 = vector.broadcast %1478 : vector<1x72xf32> to vector<18x72xf32>
    %1480 = arith.mulf %1479, %1477 : vector<18x72xf32>
    %1481 = arith.addf %1464, %1480 : vector<18x72xf32>
    %c96_492 = arith.constant 96 : index
    %c0_493 = arith.constant 0 : index
    %1482 = vector.load %arg1[%c96_492, %c0_493] : memref<160x128xf32, #tpu.memory_space<vmem>>, vector<1x72xf32>
    %1483 = vector.broadcast %1482 : vector<1x72xf32> to vector<18x72xf32>
    %1484 = arith.mulf %1483, %1477 : vector<18x72xf32>
    %1485 = arith.addf %1468, %1484 : vector<18x72xf32>
    %c105_494 = arith.constant 105 : index
    %c0_495 = arith.constant 0 : index
    %1486 = vector.load %arg1[%c105_494, %c0_495] : memref<160x128xf32, #tpu.memory_space<vmem>>, vector<1x72xf32>
    %1487 = vector.broadcast %1486 : vector<1x72xf32> to vector<18x72xf32>
    %1488 = arith.mulf %1487, %1477 : vector<18x72xf32>
    %1489 = arith.addf %1472, %1488 : vector<18x72xf32>
    %c114_496 = arith.constant 114 : index
    %c0_497 = arith.constant 0 : index
    %1490 = vector.load %arg1[%c114_496, %c0_497] : memref<160x128xf32, #tpu.memory_space<vmem>>, vector<1x72xf32>
    %1491 = vector.broadcast %1490 : vector<1x72xf32> to vector<18x72xf32>
    %1492 = arith.mulf %1491, %1477 : vector<18x72xf32>
    %1493 = arith.addf %1476, %1492 : vector<18x72xf32>
    %1494 = vector.extract_strided_slice %1353 {offsets = [2, 0], sizes = [18, 72], strides = [1, 1]} : vector<20x72xf32> to vector<18x72xf32>
    %c88_498 = arith.constant 88 : index
    %c0_499 = arith.constant 0 : index
    %1495 = vector.load %arg1[%c88_498, %c0_499] : memref<160x128xf32, #tpu.memory_space<vmem>>, vector<1x72xf32>
    %1496 = vector.broadcast %1495 : vector<1x72xf32> to vector<18x72xf32>
    %1497 = arith.mulf %1496, %1494 : vector<18x72xf32>
    %1498 = arith.addf %1481, %1497 : vector<18x72xf32>
    %c97_500 = arith.constant 97 : index
    %c0_501 = arith.constant 0 : index
    %1499 = vector.load %arg1[%c97_500, %c0_501] : memref<160x128xf32, #tpu.memory_space<vmem>>, vector<1x72xf32>
    %1500 = vector.broadcast %1499 : vector<1x72xf32> to vector<18x72xf32>
    %1501 = arith.mulf %1500, %1494 : vector<18x72xf32>
    %1502 = arith.addf %1485, %1501 : vector<18x72xf32>
    %c106_502 = arith.constant 106 : index
    %c0_503 = arith.constant 0 : index
    %1503 = vector.load %arg1[%c106_502, %c0_503] : memref<160x128xf32, #tpu.memory_space<vmem>>, vector<1x72xf32>
    %1504 = vector.broadcast %1503 : vector<1x72xf32> to vector<18x72xf32>
    %1505 = arith.mulf %1504, %1494 : vector<18x72xf32>
    %1506 = arith.addf %1489, %1505 : vector<18x72xf32>
    %c115_504 = arith.constant 115 : index
    %c0_505 = arith.constant 0 : index
    %1507 = vector.load %arg1[%c115_504, %c0_505] : memref<160x128xf32, #tpu.memory_space<vmem>>, vector<1x72xf32>
    %1508 = vector.broadcast %1507 : vector<1x72xf32> to vector<18x72xf32>
    %1509 = arith.mulf %1508, %1494 : vector<18x72xf32>
    %1510 = arith.addf %1493, %1509 : vector<18x72xf32>
    %1511 = vector.extract_strided_slice %1498 {offsets = [0, 0], sizes = [18, 18], strides = [1, 1]} : vector<18x72xf32> to vector<18x18xf32>
    %1512 = vector.extract_strided_slice %1498 {offsets = [0, 18], sizes = [18, 18], strides = [1, 1]} : vector<18x72xf32> to vector<18x18xf32>
    %1513 = arith.addf %1511, %1512 : vector<18x18xf32>
    %1514 = vector.extract_strided_slice %1498 {offsets = [0, 36], sizes = [18, 18], strides = [1, 1]} : vector<18x72xf32> to vector<18x18xf32>
    %1515 = arith.addf %1513, %1514 : vector<18x18xf32>
    %1516 = vector.extract_strided_slice %1498 {offsets = [0, 54], sizes = [18, 18], strides = [1, 1]} : vector<18x72xf32> to vector<18x18xf32>
    %1517 = arith.addf %1515, %1516 : vector<18x18xf32>
    %c116_506 = arith.constant 116 : index
    %c0_507 = arith.constant 0 : index
    %1518 = vector.load %arg1[%c116_506, %c0_507] : memref<160x128xf32, #tpu.memory_space<vmem>>, vector<1x18xf32>
    %1519 = vector.broadcast %1518 : vector<1x18xf32> to vector<18x18xf32>
    %1520 = arith.addf %1517, %1519 : vector<18x18xf32>
    %cst_508 = arith.constant 0.000000e+00 : f32
    %1521 = vector.broadcast %cst_508 : f32 to vector<18x18xf32>
    %1522 = arith.maximumf %1520, %1521 : vector<18x18xf32>
    %1523 = arith.mulf %1522, %0 : vector<18x18xf32>
    %1524 = vector.extract_strided_slice %1502 {offsets = [0, 0], sizes = [18, 18], strides = [1, 1]} : vector<18x72xf32> to vector<18x18xf32>
    %1525 = vector.extract_strided_slice %1502 {offsets = [0, 18], sizes = [18, 18], strides = [1, 1]} : vector<18x72xf32> to vector<18x18xf32>
    %1526 = arith.addf %1524, %1525 : vector<18x18xf32>
    %1527 = vector.extract_strided_slice %1502 {offsets = [0, 36], sizes = [18, 18], strides = [1, 1]} : vector<18x72xf32> to vector<18x18xf32>
    %1528 = arith.addf %1526, %1527 : vector<18x18xf32>
    %1529 = vector.extract_strided_slice %1502 {offsets = [0, 54], sizes = [18, 18], strides = [1, 1]} : vector<18x72xf32> to vector<18x18xf32>
    %1530 = arith.addf %1528, %1529 : vector<18x18xf32>
    %c117_509 = arith.constant 117 : index
    %c0_510 = arith.constant 0 : index
    %1531 = vector.load %arg1[%c117_509, %c0_510] : memref<160x128xf32, #tpu.memory_space<vmem>>, vector<1x18xf32>
    %1532 = vector.broadcast %1531 : vector<1x18xf32> to vector<18x18xf32>
    %1533 = arith.addf %1530, %1532 : vector<18x18xf32>
    %cst_511 = arith.constant 0.000000e+00 : f32
    %1534 = vector.broadcast %cst_511 : f32 to vector<18x18xf32>
    %1535 = arith.maximumf %1533, %1534 : vector<18x18xf32>
    %1536 = arith.mulf %1535, %0 : vector<18x18xf32>
    %1537 = vector.extract_strided_slice %1506 {offsets = [0, 0], sizes = [18, 18], strides = [1, 1]} : vector<18x72xf32> to vector<18x18xf32>
    %1538 = vector.extract_strided_slice %1506 {offsets = [0, 18], sizes = [18, 18], strides = [1, 1]} : vector<18x72xf32> to vector<18x18xf32>
    %1539 = arith.addf %1537, %1538 : vector<18x18xf32>
    %1540 = vector.extract_strided_slice %1506 {offsets = [0, 36], sizes = [18, 18], strides = [1, 1]} : vector<18x72xf32> to vector<18x18xf32>
    %1541 = arith.addf %1539, %1540 : vector<18x18xf32>
    %1542 = vector.extract_strided_slice %1506 {offsets = [0, 54], sizes = [18, 18], strides = [1, 1]} : vector<18x72xf32> to vector<18x18xf32>
    %1543 = arith.addf %1541, %1542 : vector<18x18xf32>
    %c118_512 = arith.constant 118 : index
    %c0_513 = arith.constant 0 : index
    %1544 = vector.load %arg1[%c118_512, %c0_513] : memref<160x128xf32, #tpu.memory_space<vmem>>, vector<1x18xf32>
    %1545 = vector.broadcast %1544 : vector<1x18xf32> to vector<18x18xf32>
    %1546 = arith.addf %1543, %1545 : vector<18x18xf32>
    %cst_514 = arith.constant 0.000000e+00 : f32
    %1547 = vector.broadcast %cst_514 : f32 to vector<18x18xf32>
    %1548 = arith.maximumf %1546, %1547 : vector<18x18xf32>
    %1549 = arith.mulf %1548, %0 : vector<18x18xf32>
    %1550 = vector.extract_strided_slice %1510 {offsets = [0, 0], sizes = [18, 18], strides = [1, 1]} : vector<18x72xf32> to vector<18x18xf32>
    %1551 = vector.extract_strided_slice %1510 {offsets = [0, 18], sizes = [18, 18], strides = [1, 1]} : vector<18x72xf32> to vector<18x18xf32>
    %1552 = arith.addf %1550, %1551 : vector<18x18xf32>
    %1553 = vector.extract_strided_slice %1510 {offsets = [0, 36], sizes = [18, 18], strides = [1, 1]} : vector<18x72xf32> to vector<18x18xf32>
    %1554 = arith.addf %1552, %1553 : vector<18x18xf32>
    %1555 = vector.extract_strided_slice %1510 {offsets = [0, 54], sizes = [18, 18], strides = [1, 1]} : vector<18x72xf32> to vector<18x18xf32>
    %1556 = arith.addf %1554, %1555 : vector<18x18xf32>
    %c119_515 = arith.constant 119 : index
    %c0_516 = arith.constant 0 : index
    %1557 = vector.load %arg1[%c119_515, %c0_516] : memref<160x128xf32, #tpu.memory_space<vmem>>, vector<1x18xf32>
    %1558 = vector.broadcast %1557 : vector<1x18xf32> to vector<18x18xf32>
    %1559 = arith.addf %1556, %1558 : vector<18x18xf32>
    %cst_517 = arith.constant 0.000000e+00 : f32
    %1560 = vector.broadcast %cst_517 : f32 to vector<18x18xf32>
    %1561 = arith.maximumf %1559, %1560 : vector<18x18xf32>
    %1562 = arith.mulf %1561, %0 : vector<18x18xf32>
    %1563 = vector.extract_strided_slice %1523 {offsets = [0, 0], sizes = [18, 16], strides = [1, 1]} : vector<18x18xf32> to vector<18x16xf32>
    %1564 = vector.extract_strided_slice %1536 {offsets = [0, 0], sizes = [18, 16], strides = [1, 1]} : vector<18x18xf32> to vector<18x16xf32>
    %1565 = vector.extract_strided_slice %1549 {offsets = [0, 0], sizes = [18, 16], strides = [1, 1]} : vector<18x18xf32> to vector<18x16xf32>
    %1566 = vector.extract_strided_slice %1562 {offsets = [0, 0], sizes = [18, 16], strides = [1, 1]} : vector<18x18xf32> to vector<18x16xf32>
    %1567 = tpu.concatenate %1563, %1564, %1565, %1566 in 1 : vector<18x16xf32>, vector<18x16xf32>, vector<18x16xf32>, vector<18x16xf32> -> vector<18x64xf32>
    %1568 = vector.extract_strided_slice %1523 {offsets = [0, 1], sizes = [18, 16], strides = [1, 1]} : vector<18x18xf32> to vector<18x16xf32>
    %1569 = vector.extract_strided_slice %1536 {offsets = [0, 1], sizes = [18, 16], strides = [1, 1]} : vector<18x18xf32> to vector<18x16xf32>
    %1570 = vector.extract_strided_slice %1549 {offsets = [0, 1], sizes = [18, 16], strides = [1, 1]} : vector<18x18xf32> to vector<18x16xf32>
    %1571 = vector.extract_strided_slice %1562 {offsets = [0, 1], sizes = [18, 16], strides = [1, 1]} : vector<18x18xf32> to vector<18x16xf32>
    %1572 = tpu.concatenate %1568, %1569, %1570, %1571 in 1 : vector<18x16xf32>, vector<18x16xf32>, vector<18x16xf32>, vector<18x16xf32> -> vector<18x64xf32>
    %1573 = vector.extract_strided_slice %1523 {offsets = [0, 2], sizes = [18, 16], strides = [1, 1]} : vector<18x18xf32> to vector<18x16xf32>
    %1574 = vector.extract_strided_slice %1536 {offsets = [0, 2], sizes = [18, 16], strides = [1, 1]} : vector<18x18xf32> to vector<18x16xf32>
    %1575 = vector.extract_strided_slice %1549 {offsets = [0, 2], sizes = [18, 16], strides = [1, 1]} : vector<18x18xf32> to vector<18x16xf32>
    %1576 = vector.extract_strided_slice %1562 {offsets = [0, 2], sizes = [18, 16], strides = [1, 1]} : vector<18x18xf32> to vector<18x16xf32>
    %1577 = tpu.concatenate %1573, %1574, %1575, %1576 in 1 : vector<18x16xf32>, vector<18x16xf32>, vector<18x16xf32>, vector<18x16xf32> -> vector<18x64xf32>
    %cst_518 = arith.constant 0.000000e+00 : f32
    %1578 = vector.broadcast %cst_518 : f32 to vector<16x64xf32>
    %cst_519 = arith.constant 0.000000e+00 : f32
    %1579 = vector.broadcast %cst_519 : f32 to vector<16x64xf32>
    %cst_520 = arith.constant 0.000000e+00 : f32
    %1580 = vector.broadcast %cst_520 : f32 to vector<16x64xf32>
    %cst_521 = arith.constant 0.000000e+00 : f32
    %1581 = vector.broadcast %cst_521 : f32 to vector<16x64xf32>
    %1582 = vector.extract_strided_slice %1567 {offsets = [0, 0], sizes = [16, 64], strides = [1, 1]} : vector<18x64xf32> to vector<16x64xf32>
    %c120_522 = arith.constant 120 : index
    %c0_523 = arith.constant 0 : index
    %1583 = vector.load %arg1[%c120_522, %c0_523] : memref<160x128xf32, #tpu.memory_space<vmem>>, vector<1x64xf32>
    %1584 = vector.broadcast %1583 : vector<1x64xf32> to vector<16x64xf32>
    %1585 = arith.mulf %1584, %1582 : vector<16x64xf32>
    %1586 = arith.addf %1578, %1585 : vector<16x64xf32>
    %c129_524 = arith.constant 129 : index
    %c0_525 = arith.constant 0 : index
    %1587 = vector.load %arg1[%c129_524, %c0_525] : memref<160x128xf32, #tpu.memory_space<vmem>>, vector<1x64xf32>
    %1588 = vector.broadcast %1587 : vector<1x64xf32> to vector<16x64xf32>
    %1589 = arith.mulf %1588, %1582 : vector<16x64xf32>
    %1590 = arith.addf %1579, %1589 : vector<16x64xf32>
    %c138_526 = arith.constant 138 : index
    %c0_527 = arith.constant 0 : index
    %1591 = vector.load %arg1[%c138_526, %c0_527] : memref<160x128xf32, #tpu.memory_space<vmem>>, vector<1x64xf32>
    %1592 = vector.broadcast %1591 : vector<1x64xf32> to vector<16x64xf32>
    %1593 = arith.mulf %1592, %1582 : vector<16x64xf32>
    %1594 = arith.addf %1580, %1593 : vector<16x64xf32>
    %c147_528 = arith.constant 147 : index
    %c0_529 = arith.constant 0 : index
    %1595 = vector.load %arg1[%c147_528, %c0_529] : memref<160x128xf32, #tpu.memory_space<vmem>>, vector<1x64xf32>
    %1596 = vector.broadcast %1595 : vector<1x64xf32> to vector<16x64xf32>
    %1597 = arith.mulf %1596, %1582 : vector<16x64xf32>
    %1598 = arith.addf %1581, %1597 : vector<16x64xf32>
    %1599 = vector.extract_strided_slice %1572 {offsets = [0, 0], sizes = [16, 64], strides = [1, 1]} : vector<18x64xf32> to vector<16x64xf32>
    %c121_530 = arith.constant 121 : index
    %c0_531 = arith.constant 0 : index
    %1600 = vector.load %arg1[%c121_530, %c0_531] : memref<160x128xf32, #tpu.memory_space<vmem>>, vector<1x64xf32>
    %1601 = vector.broadcast %1600 : vector<1x64xf32> to vector<16x64xf32>
    %1602 = arith.mulf %1601, %1599 : vector<16x64xf32>
    %1603 = arith.addf %1586, %1602 : vector<16x64xf32>
    %c130_532 = arith.constant 130 : index
    %c0_533 = arith.constant 0 : index
    %1604 = vector.load %arg1[%c130_532, %c0_533] : memref<160x128xf32, #tpu.memory_space<vmem>>, vector<1x64xf32>
    %1605 = vector.broadcast %1604 : vector<1x64xf32> to vector<16x64xf32>
    %1606 = arith.mulf %1605, %1599 : vector<16x64xf32>
    %1607 = arith.addf %1590, %1606 : vector<16x64xf32>
    %c139_534 = arith.constant 139 : index
    %c0_535 = arith.constant 0 : index
    %1608 = vector.load %arg1[%c139_534, %c0_535] : memref<160x128xf32, #tpu.memory_space<vmem>>, vector<1x64xf32>
    %1609 = vector.broadcast %1608 : vector<1x64xf32> to vector<16x64xf32>
    %1610 = arith.mulf %1609, %1599 : vector<16x64xf32>
    %1611 = arith.addf %1594, %1610 : vector<16x64xf32>
    %c148_536 = arith.constant 148 : index
    %c0_537 = arith.constant 0 : index
    %1612 = vector.load %arg1[%c148_536, %c0_537] : memref<160x128xf32, #tpu.memory_space<vmem>>, vector<1x64xf32>
    %1613 = vector.broadcast %1612 : vector<1x64xf32> to vector<16x64xf32>
    %1614 = arith.mulf %1613, %1599 : vector<16x64xf32>
    %1615 = arith.addf %1598, %1614 : vector<16x64xf32>
    %1616 = vector.extract_strided_slice %1577 {offsets = [0, 0], sizes = [16, 64], strides = [1, 1]} : vector<18x64xf32> to vector<16x64xf32>
    %c122_538 = arith.constant 122 : index
    %c0_539 = arith.constant 0 : index
    %1617 = vector.load %arg1[%c122_538, %c0_539] : memref<160x128xf32, #tpu.memory_space<vmem>>, vector<1x64xf32>
    %1618 = vector.broadcast %1617 : vector<1x64xf32> to vector<16x64xf32>
    %1619 = arith.mulf %1618, %1616 : vector<16x64xf32>
    %1620 = arith.addf %1603, %1619 : vector<16x64xf32>
    %c131_540 = arith.constant 131 : index
    %c0_541 = arith.constant 0 : index
    %1621 = vector.load %arg1[%c131_540, %c0_541] : memref<160x128xf32, #tpu.memory_space<vmem>>, vector<1x64xf32>
    %1622 = vector.broadcast %1621 : vector<1x64xf32> to vector<16x64xf32>
    %1623 = arith.mulf %1622, %1616 : vector<16x64xf32>
    %1624 = arith.addf %1607, %1623 : vector<16x64xf32>
    %c140_542 = arith.constant 140 : index
    %c0_543 = arith.constant 0 : index
    %1625 = vector.load %arg1[%c140_542, %c0_543] : memref<160x128xf32, #tpu.memory_space<vmem>>, vector<1x64xf32>
    %1626 = vector.broadcast %1625 : vector<1x64xf32> to vector<16x64xf32>
    %1627 = arith.mulf %1626, %1616 : vector<16x64xf32>
    %1628 = arith.addf %1611, %1627 : vector<16x64xf32>
    %c149_544 = arith.constant 149 : index
    %c0_545 = arith.constant 0 : index
    %1629 = vector.load %arg1[%c149_544, %c0_545] : memref<160x128xf32, #tpu.memory_space<vmem>>, vector<1x64xf32>
    %1630 = vector.broadcast %1629 : vector<1x64xf32> to vector<16x64xf32>
    %1631 = arith.mulf %1630, %1616 : vector<16x64xf32>
    %1632 = arith.addf %1615, %1631 : vector<16x64xf32>
    %1633 = vector.extract_strided_slice %1567 {offsets = [1, 0], sizes = [16, 64], strides = [1, 1]} : vector<18x64xf32> to vector<16x64xf32>
    %c123_546 = arith.constant 123 : index
    %c0_547 = arith.constant 0 : index
    %1634 = vector.load %arg1[%c123_546, %c0_547] : memref<160x128xf32, #tpu.memory_space<vmem>>, vector<1x64xf32>
    %1635 = vector.broadcast %1634 : vector<1x64xf32> to vector<16x64xf32>
    %1636 = arith.mulf %1635, %1633 : vector<16x64xf32>
    %1637 = arith.addf %1620, %1636 : vector<16x64xf32>
    %c132_548 = arith.constant 132 : index
    %c0_549 = arith.constant 0 : index
    %1638 = vector.load %arg1[%c132_548, %c0_549] : memref<160x128xf32, #tpu.memory_space<vmem>>, vector<1x64xf32>
    %1639 = vector.broadcast %1638 : vector<1x64xf32> to vector<16x64xf32>
    %1640 = arith.mulf %1639, %1633 : vector<16x64xf32>
    %1641 = arith.addf %1624, %1640 : vector<16x64xf32>
    %c141_550 = arith.constant 141 : index
    %c0_551 = arith.constant 0 : index
    %1642 = vector.load %arg1[%c141_550, %c0_551] : memref<160x128xf32, #tpu.memory_space<vmem>>, vector<1x64xf32>
    %1643 = vector.broadcast %1642 : vector<1x64xf32> to vector<16x64xf32>
    %1644 = arith.mulf %1643, %1633 : vector<16x64xf32>
    %1645 = arith.addf %1628, %1644 : vector<16x64xf32>
    %c150_552 = arith.constant 150 : index
    %c0_553 = arith.constant 0 : index
    %1646 = vector.load %arg1[%c150_552, %c0_553] : memref<160x128xf32, #tpu.memory_space<vmem>>, vector<1x64xf32>
    %1647 = vector.broadcast %1646 : vector<1x64xf32> to vector<16x64xf32>
    %1648 = arith.mulf %1647, %1633 : vector<16x64xf32>
    %1649 = arith.addf %1632, %1648 : vector<16x64xf32>
    %1650 = vector.extract_strided_slice %1572 {offsets = [1, 0], sizes = [16, 64], strides = [1, 1]} : vector<18x64xf32> to vector<16x64xf32>
    %c124_554 = arith.constant 124 : index
    %c0_555 = arith.constant 0 : index
    %1651 = vector.load %arg1[%c124_554, %c0_555] : memref<160x128xf32, #tpu.memory_space<vmem>>, vector<1x64xf32>
    %1652 = vector.broadcast %1651 : vector<1x64xf32> to vector<16x64xf32>
    %1653 = arith.mulf %1652, %1650 : vector<16x64xf32>
    %1654 = arith.addf %1637, %1653 : vector<16x64xf32>
    %c133_556 = arith.constant 133 : index
    %c0_557 = arith.constant 0 : index
    %1655 = vector.load %arg1[%c133_556, %c0_557] : memref<160x128xf32, #tpu.memory_space<vmem>>, vector<1x64xf32>
    %1656 = vector.broadcast %1655 : vector<1x64xf32> to vector<16x64xf32>
    %1657 = arith.mulf %1656, %1650 : vector<16x64xf32>
    %1658 = arith.addf %1641, %1657 : vector<16x64xf32>
    %c142_558 = arith.constant 142 : index
    %c0_559 = arith.constant 0 : index
    %1659 = vector.load %arg1[%c142_558, %c0_559] : memref<160x128xf32, #tpu.memory_space<vmem>>, vector<1x64xf32>
    %1660 = vector.broadcast %1659 : vector<1x64xf32> to vector<16x64xf32>
    %1661 = arith.mulf %1660, %1650 : vector<16x64xf32>
    %1662 = arith.addf %1645, %1661 : vector<16x64xf32>
    %c151_560 = arith.constant 151 : index
    %c0_561 = arith.constant 0 : index
    %1663 = vector.load %arg1[%c151_560, %c0_561] : memref<160x128xf32, #tpu.memory_space<vmem>>, vector<1x64xf32>
    %1664 = vector.broadcast %1663 : vector<1x64xf32> to vector<16x64xf32>
    %1665 = arith.mulf %1664, %1650 : vector<16x64xf32>
    %1666 = arith.addf %1649, %1665 : vector<16x64xf32>
    %1667 = vector.extract_strided_slice %1577 {offsets = [1, 0], sizes = [16, 64], strides = [1, 1]} : vector<18x64xf32> to vector<16x64xf32>
    %c125_562 = arith.constant 125 : index
    %c0_563 = arith.constant 0 : index
    %1668 = vector.load %arg1[%c125_562, %c0_563] : memref<160x128xf32, #tpu.memory_space<vmem>>, vector<1x64xf32>
    %1669 = vector.broadcast %1668 : vector<1x64xf32> to vector<16x64xf32>
    %1670 = arith.mulf %1669, %1667 : vector<16x64xf32>
    %1671 = arith.addf %1654, %1670 : vector<16x64xf32>
    %c134_564 = arith.constant 134 : index
    %c0_565 = arith.constant 0 : index
    %1672 = vector.load %arg1[%c134_564, %c0_565] : memref<160x128xf32, #tpu.memory_space<vmem>>, vector<1x64xf32>
    %1673 = vector.broadcast %1672 : vector<1x64xf32> to vector<16x64xf32>
    %1674 = arith.mulf %1673, %1667 : vector<16x64xf32>
    %1675 = arith.addf %1658, %1674 : vector<16x64xf32>
    %c143_566 = arith.constant 143 : index
    %c0_567 = arith.constant 0 : index
    %1676 = vector.load %arg1[%c143_566, %c0_567] : memref<160x128xf32, #tpu.memory_space<vmem>>, vector<1x64xf32>
    %1677 = vector.broadcast %1676 : vector<1x64xf32> to vector<16x64xf32>
    %1678 = arith.mulf %1677, %1667 : vector<16x64xf32>
    %1679 = arith.addf %1662, %1678 : vector<16x64xf32>
    %c152_568 = arith.constant 152 : index
    %c0_569 = arith.constant 0 : index
    %1680 = vector.load %arg1[%c152_568, %c0_569] : memref<160x128xf32, #tpu.memory_space<vmem>>, vector<1x64xf32>
    %1681 = vector.broadcast %1680 : vector<1x64xf32> to vector<16x64xf32>
    %1682 = arith.mulf %1681, %1667 : vector<16x64xf32>
    %1683 = arith.addf %1666, %1682 : vector<16x64xf32>
    %1684 = vector.extract_strided_slice %1567 {offsets = [2, 0], sizes = [16, 64], strides = [1, 1]} : vector<18x64xf32> to vector<16x64xf32>
    %c126_570 = arith.constant 126 : index
    %c0_571 = arith.constant 0 : index
    %1685 = vector.load %arg1[%c126_570, %c0_571] : memref<160x128xf32, #tpu.memory_space<vmem>>, vector<1x64xf32>
    %1686 = vector.broadcast %1685 : vector<1x64xf32> to vector<16x64xf32>
    %1687 = arith.mulf %1686, %1684 : vector<16x64xf32>
    %1688 = arith.addf %1671, %1687 : vector<16x64xf32>
    %c135_572 = arith.constant 135 : index
    %c0_573 = arith.constant 0 : index
    %1689 = vector.load %arg1[%c135_572, %c0_573] : memref<160x128xf32, #tpu.memory_space<vmem>>, vector<1x64xf32>
    %1690 = vector.broadcast %1689 : vector<1x64xf32> to vector<16x64xf32>
    %1691 = arith.mulf %1690, %1684 : vector<16x64xf32>
    %1692 = arith.addf %1675, %1691 : vector<16x64xf32>
    %c144_574 = arith.constant 144 : index
    %c0_575 = arith.constant 0 : index
    %1693 = vector.load %arg1[%c144_574, %c0_575] : memref<160x128xf32, #tpu.memory_space<vmem>>, vector<1x64xf32>
    %1694 = vector.broadcast %1693 : vector<1x64xf32> to vector<16x64xf32>
    %1695 = arith.mulf %1694, %1684 : vector<16x64xf32>
    %1696 = arith.addf %1679, %1695 : vector<16x64xf32>
    %c153_576 = arith.constant 153 : index
    %c0_577 = arith.constant 0 : index
    %1697 = vector.load %arg1[%c153_576, %c0_577] : memref<160x128xf32, #tpu.memory_space<vmem>>, vector<1x64xf32>
    %1698 = vector.broadcast %1697 : vector<1x64xf32> to vector<16x64xf32>
    %1699 = arith.mulf %1698, %1684 : vector<16x64xf32>
    %1700 = arith.addf %1683, %1699 : vector<16x64xf32>
    %1701 = vector.extract_strided_slice %1572 {offsets = [2, 0], sizes = [16, 64], strides = [1, 1]} : vector<18x64xf32> to vector<16x64xf32>
    %c127_578 = arith.constant 127 : index
    %c0_579 = arith.constant 0 : index
    %1702 = vector.load %arg1[%c127_578, %c0_579] : memref<160x128xf32, #tpu.memory_space<vmem>>, vector<1x64xf32>
    %1703 = vector.broadcast %1702 : vector<1x64xf32> to vector<16x64xf32>
    %1704 = arith.mulf %1703, %1701 : vector<16x64xf32>
    %1705 = arith.addf %1688, %1704 : vector<16x64xf32>
    %c136_580 = arith.constant 136 : index
    %c0_581 = arith.constant 0 : index
    %1706 = vector.load %arg1[%c136_580, %c0_581] : memref<160x128xf32, #tpu.memory_space<vmem>>, vector<1x64xf32>
    %1707 = vector.broadcast %1706 : vector<1x64xf32> to vector<16x64xf32>
    %1708 = arith.mulf %1707, %1701 : vector<16x64xf32>
    %1709 = arith.addf %1692, %1708 : vector<16x64xf32>
    %c145_582 = arith.constant 145 : index
    %c0_583 = arith.constant 0 : index
    %1710 = vector.load %arg1[%c145_582, %c0_583] : memref<160x128xf32, #tpu.memory_space<vmem>>, vector<1x64xf32>
    %1711 = vector.broadcast %1710 : vector<1x64xf32> to vector<16x64xf32>
    %1712 = arith.mulf %1711, %1701 : vector<16x64xf32>
    %1713 = arith.addf %1696, %1712 : vector<16x64xf32>
    %c154_584 = arith.constant 154 : index
    %c0_585 = arith.constant 0 : index
    %1714 = vector.load %arg1[%c154_584, %c0_585] : memref<160x128xf32, #tpu.memory_space<vmem>>, vector<1x64xf32>
    %1715 = vector.broadcast %1714 : vector<1x64xf32> to vector<16x64xf32>
    %1716 = arith.mulf %1715, %1701 : vector<16x64xf32>
    %1717 = arith.addf %1700, %1716 : vector<16x64xf32>
    %1718 = vector.extract_strided_slice %1577 {offsets = [2, 0], sizes = [16, 64], strides = [1, 1]} : vector<18x64xf32> to vector<16x64xf32>
    %c128_586 = arith.constant 128 : index
    %c0_587 = arith.constant 0 : index
    %1719 = vector.load %arg1[%c128_586, %c0_587] : memref<160x128xf32, #tpu.memory_space<vmem>>, vector<1x64xf32>
    %1720 = vector.broadcast %1719 : vector<1x64xf32> to vector<16x64xf32>
    %1721 = arith.mulf %1720, %1718 : vector<16x64xf32>
    %1722 = arith.addf %1705, %1721 : vector<16x64xf32>
    %c137_588 = arith.constant 137 : index
    %c0_589 = arith.constant 0 : index
    %1723 = vector.load %arg1[%c137_588, %c0_589] : memref<160x128xf32, #tpu.memory_space<vmem>>, vector<1x64xf32>
    %1724 = vector.broadcast %1723 : vector<1x64xf32> to vector<16x64xf32>
    %1725 = arith.mulf %1724, %1718 : vector<16x64xf32>
    %1726 = arith.addf %1709, %1725 : vector<16x64xf32>
    %c146_590 = arith.constant 146 : index
    %c0_591 = arith.constant 0 : index
    %1727 = vector.load %arg1[%c146_590, %c0_591] : memref<160x128xf32, #tpu.memory_space<vmem>>, vector<1x64xf32>
    %1728 = vector.broadcast %1727 : vector<1x64xf32> to vector<16x64xf32>
    %1729 = arith.mulf %1728, %1718 : vector<16x64xf32>
    %1730 = arith.addf %1713, %1729 : vector<16x64xf32>
    %c155_592 = arith.constant 155 : index
    %c0_593 = arith.constant 0 : index
    %1731 = vector.load %arg1[%c155_592, %c0_593] : memref<160x128xf32, #tpu.memory_space<vmem>>, vector<1x64xf32>
    %1732 = vector.broadcast %1731 : vector<1x64xf32> to vector<16x64xf32>
    %1733 = arith.mulf %1732, %1718 : vector<16x64xf32>
    %1734 = arith.addf %1717, %1733 : vector<16x64xf32>
    %1735 = vector.extract_strided_slice %1722 {offsets = [0, 0], sizes = [16, 16], strides = [1, 1]} : vector<16x64xf32> to vector<16x16xf32>
    %1736 = vector.extract_strided_slice %1722 {offsets = [0, 16], sizes = [16, 16], strides = [1, 1]} : vector<16x64xf32> to vector<16x16xf32>
    %1737 = arith.addf %1735, %1736 : vector<16x16xf32>
    %1738 = vector.extract_strided_slice %1722 {offsets = [0, 32], sizes = [16, 16], strides = [1, 1]} : vector<16x64xf32> to vector<16x16xf32>
    %1739 = arith.addf %1737, %1738 : vector<16x16xf32>
    %1740 = vector.extract_strided_slice %1722 {offsets = [0, 48], sizes = [16, 16], strides = [1, 1]} : vector<16x64xf32> to vector<16x16xf32>
    %1741 = arith.addf %1739, %1740 : vector<16x16xf32>
    %1742 = vector.extract_strided_slice %1349 {offsets = [2, 2], sizes = [16, 16], strides = [1, 1]} : vector<20x72xf32> to vector<16x16xf32>
    %1743 = arith.addf %1742, %1741 : vector<16x16xf32>
    %c156_594 = arith.constant 156 : index
    %c0_595 = arith.constant 0 : index
    %1744 = vector.load %arg1[%c156_594, %c0_595] : memref<160x128xf32, #tpu.memory_space<vmem>>, vector<1x16xf32>
    %1745 = vector.broadcast %1744 : vector<1x16xf32> to vector<16x16xf32>
    %1746 = arith.addf %1743, %1745 : vector<16x16xf32>
    %1747 = vector.extract_strided_slice %1726 {offsets = [0, 0], sizes = [16, 16], strides = [1, 1]} : vector<16x64xf32> to vector<16x16xf32>
    %1748 = vector.extract_strided_slice %1726 {offsets = [0, 16], sizes = [16, 16], strides = [1, 1]} : vector<16x64xf32> to vector<16x16xf32>
    %1749 = arith.addf %1747, %1748 : vector<16x16xf32>
    %1750 = vector.extract_strided_slice %1726 {offsets = [0, 32], sizes = [16, 16], strides = [1, 1]} : vector<16x64xf32> to vector<16x16xf32>
    %1751 = arith.addf %1749, %1750 : vector<16x16xf32>
    %1752 = vector.extract_strided_slice %1726 {offsets = [0, 48], sizes = [16, 16], strides = [1, 1]} : vector<16x64xf32> to vector<16x16xf32>
    %1753 = arith.addf %1751, %1752 : vector<16x16xf32>
    %1754 = vector.extract_strided_slice %1349 {offsets = [2, 20], sizes = [16, 16], strides = [1, 1]} : vector<20x72xf32> to vector<16x16xf32>
    %1755 = arith.addf %1754, %1753 : vector<16x16xf32>
    %c157_596 = arith.constant 157 : index
    %c0_597 = arith.constant 0 : index
    %1756 = vector.load %arg1[%c157_596, %c0_597] : memref<160x128xf32, #tpu.memory_space<vmem>>, vector<1x16xf32>
    %1757 = vector.broadcast %1756 : vector<1x16xf32> to vector<16x16xf32>
    %1758 = arith.addf %1755, %1757 : vector<16x16xf32>
    %1759 = vector.extract_strided_slice %1730 {offsets = [0, 0], sizes = [16, 16], strides = [1, 1]} : vector<16x64xf32> to vector<16x16xf32>
    %1760 = vector.extract_strided_slice %1730 {offsets = [0, 16], sizes = [16, 16], strides = [1, 1]} : vector<16x64xf32> to vector<16x16xf32>
    %1761 = arith.addf %1759, %1760 : vector<16x16xf32>
    %1762 = vector.extract_strided_slice %1730 {offsets = [0, 32], sizes = [16, 16], strides = [1, 1]} : vector<16x64xf32> to vector<16x16xf32>
    %1763 = arith.addf %1761, %1762 : vector<16x16xf32>
    %1764 = vector.extract_strided_slice %1730 {offsets = [0, 48], sizes = [16, 16], strides = [1, 1]} : vector<16x64xf32> to vector<16x16xf32>
    %1765 = arith.addf %1763, %1764 : vector<16x16xf32>
    %1766 = vector.extract_strided_slice %1349 {offsets = [2, 38], sizes = [16, 16], strides = [1, 1]} : vector<20x72xf32> to vector<16x16xf32>
    %1767 = arith.addf %1766, %1765 : vector<16x16xf32>
    %c158_598 = arith.constant 158 : index
    %c0_599 = arith.constant 0 : index
    %1768 = vector.load %arg1[%c158_598, %c0_599] : memref<160x128xf32, #tpu.memory_space<vmem>>, vector<1x16xf32>
    %1769 = vector.broadcast %1768 : vector<1x16xf32> to vector<16x16xf32>
    %1770 = arith.addf %1767, %1769 : vector<16x16xf32>
    %1771 = vector.extract_strided_slice %1734 {offsets = [0, 0], sizes = [16, 16], strides = [1, 1]} : vector<16x64xf32> to vector<16x16xf32>
    %1772 = vector.extract_strided_slice %1734 {offsets = [0, 16], sizes = [16, 16], strides = [1, 1]} : vector<16x64xf32> to vector<16x16xf32>
    %1773 = arith.addf %1771, %1772 : vector<16x16xf32>
    %1774 = vector.extract_strided_slice %1734 {offsets = [0, 32], sizes = [16, 16], strides = [1, 1]} : vector<16x64xf32> to vector<16x16xf32>
    %1775 = arith.addf %1773, %1774 : vector<16x16xf32>
    %1776 = vector.extract_strided_slice %1734 {offsets = [0, 48], sizes = [16, 16], strides = [1, 1]} : vector<16x64xf32> to vector<16x16xf32>
    %1777 = arith.addf %1775, %1776 : vector<16x16xf32>
    %1778 = vector.extract_strided_slice %1349 {offsets = [2, 56], sizes = [16, 16], strides = [1, 1]} : vector<20x72xf32> to vector<16x16xf32>
    %1779 = arith.addf %1778, %1777 : vector<16x16xf32>
    %c159_600 = arith.constant 159 : index
    %c0_601 = arith.constant 0 : index
    %1780 = vector.load %arg1[%c159_600, %c0_601] : memref<160x128xf32, #tpu.memory_space<vmem>>, vector<1x16xf32>
    %1781 = vector.broadcast %1780 : vector<1x16xf32> to vector<16x16xf32>
    %1782 = arith.addf %1779, %1781 : vector<16x16xf32>
    %1783 = vector.shape_cast %1746 : vector<16x16xf32> to vector<1x16x16xf32>
    %1784 = vector.shape_cast %1758 : vector<16x16xf32> to vector<1x16x16xf32>
    %1785 = vector.shape_cast %1770 : vector<16x16xf32> to vector<1x16x16xf32>
    %1786 = vector.shape_cast %1782 : vector<16x16xf32> to vector<1x16x16xf32>
    %1787 = tpu.concatenate %1783, %1784, %1785, %1786 in 0 : vector<1x16x16xf32>, vector<1x16x16xf32>, vector<1x16x16xf32>, vector<1x16x16xf32> -> vector<4x16x16xf32>
    %1788 = arith.truncf %1787 : vector<4x16x16xf32> to vector<4x16x16xbf16>
    %cst_602 = arith.constant dense<0.000000e+00> : vector<4x16x16xf32>
    %1789 = tpu.matmul %1788, %441, %cst_602 {dimension_numbers = #tpu.dot_dimension_numbers<[2], [1], [1], [2], [0, 0, 0, 1, 1, 2], [0], [0]>} : vector<4x16x16xbf16>, vector<4x16x16xbf16>, vector<4x16x16xf32> -> vector<4x16x16xf32>
    %1790 = arith.negf %1789 : vector<4x16x16xf32>
    %1791 = math.exp %1790 : vector<4x16x16xf32>
    %cst_603 = arith.constant 1.000000e+00 : f32
    %1792 = vector.broadcast %cst_603 : f32 to vector<4x16x16xf32>
    %1793 = arith.addf %1792, %1791 : vector<4x16x16xf32>
    %1794 = arith.divf %1792, %1793 : vector<4x16x16xf32>
    %c0_604 = arith.constant 0 : index
    %c2_605 = arith.constant 2 : index
    %c0_606 = arith.constant 0 : index
    %c0_607 = arith.constant 0 : index
    %c0_608 = arith.constant 0 : index
    %1795 = vector.load %arg5[%c0_604, %c2_605, %c0_606, %c0_607, %c0_608] : memref<1x3x4x16x16xf32, #tpu.memory_space<vmem>>, vector<1x1x4x16x16xf32>
    %1796 = vector.shape_cast %1795 : vector<1x1x4x16x16xf32> to vector<4x16x16xf32>
    %1797 = arith.mulf %1794, %1796 : vector<4x16x16xf32>
    %1798 = arith.addf %1346, %1797 : vector<4x16x16xf32>
    %1799 = arith.addf %1347, %1794 : vector<4x16x16xf32>
    %c0_609 = arith.constant 0 : index
    %c0_610 = arith.constant 0 : index
    %c0_611 = arith.constant 0 : index
    %c0_612 = arith.constant 0 : index
    %1800 = vector.load %arg3[%c0_609, %c0_610, %c0_611, %c0_612] : memref<1x3x20x72xf32, #tpu.memory_space<vmem>>, vector<1x1x20x72xf32>
    %1801 = vector.shape_cast %1800 : vector<1x1x20x72xf32> to vector<20x72xf32>
    %1802 = vector.extract_strided_slice %1801 {offsets = [2, 2], sizes = [16, 16], strides = [1, 1]} : vector<20x72xf32> to vector<16x16xf32>
    %1803 = vector.extract_strided_slice %1801 {offsets = [2, 20], sizes = [16, 16], strides = [1, 1]} : vector<20x72xf32> to vector<16x16xf32>
    %1804 = vector.extract_strided_slice %1801 {offsets = [2, 38], sizes = [16, 16], strides = [1, 1]} : vector<20x72xf32> to vector<16x16xf32>
    %1805 = vector.extract_strided_slice %1801 {offsets = [2, 56], sizes = [16, 16], strides = [1, 1]} : vector<20x72xf32> to vector<16x16xf32>
    %1806 = vector.shape_cast %1802 : vector<16x16xf32> to vector<1x16x16xf32>
    %1807 = vector.shape_cast %1803 : vector<16x16xf32> to vector<1x16x16xf32>
    %1808 = vector.shape_cast %1804 : vector<16x16xf32> to vector<1x16x16xf32>
    %1809 = vector.shape_cast %1805 : vector<16x16xf32> to vector<1x16x16xf32>
    %1810 = tpu.concatenate %1806, %1807, %1808, %1809 in 0 : vector<1x16x16xf32>, vector<1x16x16xf32>, vector<1x16x16xf32>, vector<1x16x16xf32> -> vector<4x16x16xf32>
    %1811 = tpu.reciprocal %1799 {approx = true} : vector<4x16x16xf32> -> vector<4x16x16xf32>
    %1812 = arith.mulf %1798, %1811 : vector<4x16x16xf32>
    %1813 = arith.addf %1812, %1810 : vector<4x16x16xf32>
    %c0_613 = arith.constant 0 : index
    %c0_614 = arith.constant 0 : index
    %c0_615 = arith.constant 0 : index
    %c0_616 = arith.constant 0 : index
    %1814 = vector.load %arg6[%c0_613, %c0_614, %c0_615, %c0_616] : memref<1x4x16x16xf32, #tpu.memory_space<vmem>>, vector<1x4x16x16xf32>
    %1815 = vector.shape_cast %1814 : vector<1x4x16x16xf32> to vector<4x16x16xf32>
    %1816 = vector.shape_cast %1813 : vector<4x16x16xf32> to vector<1x4x16x16xf32>
    tpu.vector_store %arg6[%c0_613, %c0_614, %c0_615, %c0_616], %1816 {strides = array<i32>} : memref<1x4x16x16xf32, #tpu.memory_space<vmem>>, vector<1x4x16x16xf32>,
    return
  }
  func.func @transform_0(%arg0: i32) -> (i32, i32) {
    %c0_i32 = arith.constant 0 : i32
    %c0_i32_0 = arith.constant 0 : i32
    %c0_i32_1 = arith.constant 0 : i32
    return %c0_i32, %c0_i32_0 : i32, i32
  }
  func.func @transform_1(%arg0: i32) -> (i32, i32) {
    %c0_i32 = arith.constant 0 : i32
    %c0_i32_0 = arith.constant 0 : i32
    %c0_i32_1 = arith.constant 0 : i32
    return %c0_i32, %c0_i32_0 : i32, i32
  }
  func.func @transform_2(%arg0: i32) -> (i32, i32, i32, i32) {
    %c0_i32 = arith.constant 0 : i32
    %c0_i32_0 = arith.constant 0 : i32
    %c0_i32_1 = arith.constant 0 : i32
    %c0_i32_2 = arith.constant 0 : i32
    return %arg0, %c0_i32, %c0_i32_0, %c0_i32_1 : i32, i32, i32, i32
  }
  func.func @transform_3(%arg0: i32) -> (i32, i32, i32, i32, i32) {
    %c0_i32 = arith.constant 0 : i32
    %c0_i32_0 = arith.constant 0 : i32
    %c0_i32_1 = arith.constant 0 : i32
    %c0_i32_2 = arith.constant 0 : i32
    %c0_i32_3 = arith.constant 0 : i32
    return %arg0, %c0_i32, %c0_i32_0, %c0_i32_1, %c0_i32_2 : i32, i32, i32, i32, i32
  }
  func.func @transform_4(%arg0: i32) -> (i32, i32, i32, i32, i32) {
    %c0_i32 = arith.constant 0 : i32
    %c0_i32_0 = arith.constant 0 : i32
    %c0_i32_1 = arith.constant 0 : i32
    %c0_i32_2 = arith.constant 0 : i32
    %c0_i32_3 = arith.constant 0 : i32
    return %arg0, %c0_i32, %c0_i32_0, %c0_i32_1, %c0_i32_2 : i32, i32, i32, i32, i32
  }
  func.func @transform_5(%arg0: i32) -> (i32, i32, i32, i32) {
    %c0_i32 = arith.constant 0 : i32
    %c0_i32_0 = arith.constant 0 : i32
    %c0_i32_1 = arith.constant 0 : i32
    %c0_i32_2 = arith.constant 0 : i32
    return %arg0, %c0_i32, %c0_i32_0, %c0_i32_1 : i32, i32, i32, i32
  }
}

</mosaic_0001>

<llo_original>
// kernel: tpu_custom_call.1
$region0: #{tpu_custom_call.1}
  #allocation0 [shape = 'u32[]', space=smem, size = 0x4, offset = 0x4, fixed_abs, tag = 'smem constant byte address 0x4 - core index']
  #allocation1 [shape = 'u32[72,128]{1,0:T(1,128)}', space=vmem, size = 0x9000, scoped, tag = 'internal scratch']
  %s0 = inlined_call_operand.vmem [shape: f32[160,128], index: 0, kind: input, shape index: {}]
  %s1 = inlined_call_operand.vmem [shape: f32[18,18], index: 1, kind: input, shape index: {}]
  %s2 = inlined_call_operand.vmem [shape: f32[2,3,20,72], index: 2, kind: input, shape index: {}]
  %s3 = inlined_call_operand.vmem [shape: f32[2,3,3,20,72], index: 3, kind: input, shape index: {}]
  %s4 = inlined_call_operand.vmem [shape: f32[2,3,4,16,16], index: 4, kind: input, shape index: {}]
  %s5 = inlined_call_operand.hbm [shape: f32[2,4,16,16], index: 5, kind: output, shape index: {}]
  %s6 = sld [smem:[#allocation0]]
  $region53: #{tpu_custom_call.1} parent=0
    _
  %s8 = ssub.s32 1, %s6
  %s9 = scalar_select 0, %s8, %s6
  $region1: #{tpu_custom_call.1} parent=0
    #allocation2 [shape = 'u8[65536]{0}', space=vmem, size = 0x10000, scoped, tag = 'output window, operand 0']
    #allocation3 [shape = 's32[2]{0}', space=sflag, size = 0x8, scoped, tag = 'scoped memory for tpu_custom_call.1']
    %10 = vsyncpa [#allocation3], 0
    %s11 = scalar_lea.sflag [#allocation3], 1
    %12 = vsyncpa %s11, 0
    loop: start=0, step=1, limit=4
    $region2: #{tpu_custom_call.1} parent=1 // loop_pre_header
      _
    $region3: #{tpu_custom_call.1} parent=1 // loop_header
      %s14 = sphi 0, %s18
      %p15 = scmp.ge.s32.totalorder %s14, 4
      %s22 = sphi 0, %s22
      %s24 = sphi 0, %s22
      %s25 = sphi 0, %s24
      %s39 = sphi 0, %s25
      %s43 = sphi 0, %s43
      %s45 = sphi 0, %s43
      %s46 = sphi 0, %s45
      %s60 = sphi 0, %s46
      %s66 = sphi 0, %s68
      %s69 = sphi 0, %s66
      %s70 = sphi 0, %s69
      %s86 = sphi 0, %s70
      %s92 = sphi 0, %s94
      %s95 = sphi 0, %s92
      %s96 = sphi 0, %s95
      %s112 = sphi 0, %s96
      %s118 = sphi 0, %s120
      %s121 = sphi 0, %s118
      %s122 = sphi 0, %s121
      %s138 = sphi 0, %s122
      %s144 = sphi 0, %s146
      %s147 = sphi 0, %s144
      %s148 = sphi 0, %s147
      %s164 = sphi 0, %s148
    $region4: #{tpu_custom_call.1} parent=1 // loop_header_branch
      %17 = sbr.rel (%p15) target = $region8
    $region5: #{tpu_custom_call.1} parent=1 // loop_body
      %s19 = ssub.s32 %s14, 1
      %s20 = ssub.s32 %s14, 2
      %s21 = sadd.s32 %s14, 1
      %s23 = sadd.s32 %s22, 1
      %p26 = scmp.eq.s32.totalorder %s14, 1
      %p27 = scmp.ne.s32.totalorder %s22, %s24
      %p28 = scmp.eq.s32.totalorder %s14, 0
      %p29 = por %p27, %p28
      %p30 = scmp.ne.s32.totalorder %s22, %s24
      %p31 = scmp.eq.s32.totalorder %s19, 1
      %p32 = por %p30, %p31
      %p33 = scmp.ne.s32.totalorder %s24, %s25
      %p34 = scmp.eq.s32.totalorder %s19, 0
      %p35 = por %p33, %p34
      %p36 = scmp.ne.s32.totalorder %s24, %s25
      %p37 = scmp.eq.s32.totalorder %s20, 1
      %p38 = por %p36, %p37
      %p40 = scmp.ne.s32.totalorder %s25, %s39
      %p41 = scmp.eq.s32.totalorder %s20, 0
      %p42 = por %p40, %p41
      %s44 = sadd.s32 %s43, 1
      %p47 = scmp.eq.s32.totalorder %s14, 1
      %p48 = scmp.ne.s32.totalorder %s43, %s45
      %p49 = scmp.eq.s32.totalorder %s14, 0
      %p50 = por %p48, %p49
      %p51 = scmp.ne.s32.totalorder %s43, %s45
      %p52 = scmp.eq.s32.totalorder %s19, 1
      %p53 = por %p51, %p52
      %p54 = scmp.ne.s32.totalorder %s45, %s46
      %p55 = scmp.eq.s32.totalorder %s19, 0
      %p56 = por %p54, %p55
      %p57 = scmp.ne.s32.totalorder %s45, %s46
      %p58 = scmp.eq.s32.totalorder %s20, 1
      %p59 = por %p57, %p58
      %p61 = scmp.ne.s32.totalorder %s46, %s60
      %p62 = scmp.eq.s32.totalorder %s20, 0
      %p63 = por %p61, %p62
      %s64 = ssub.s32 %s14, %s21
      %p65 = scmp.eq.s32.totalorder %s64, 0
      %s67 = sadd.s32 %s66, 1
      %s68 = scalar_select %p65, %s66, %s67
      %p71 = pneg %p65
      %p72 = scmp.eq.s32.totalorder %s14, 1
      %p73 = por %p71, %p72
      %p74 = scmp.ne.s32.totalorder %s66, %s69
      %p75 = scmp.eq.s32.totalorder %s14, 0
      %p76 = por %p74, %p75
      %p77 = scmp.ne.s32.totalorder %s66, %s69
      %p78 = scmp.eq.s32.totalorder %s19, 1
      %p79 = por %p77, %p78
      %p80 = scmp.ne.s32.totalorder %s69, %s70
      %p81 = scmp.eq.s32.totalorder %s19, 0
      %p82 = por %p80, %p81
      %p83 = scmp.ne.s32.totalorder %s69, %s70
      %p84 = scmp.eq.s32.totalorder %s20, 1
      %p85 = por %p83, %p84
      %p87 = scmp.ne.s32.totalorder %s70, %s86
      %p88 = scmp.eq.s32.totalorder %s20, 0
      %p89 = por %p87, %p88
      %s90 = ssub.s32 %s14, %s21
      %p91 = scmp.eq.s32.totalorder %s90, 0
      %s93 = sadd.s32 %s92, 1
      %s94 = scalar_select %p91, %s92, %s93
      %p97 = pneg %p91
      %p98 = scmp.eq.s32.totalorder %s14, 1
      %p99 = por %p97, %p98
      %p100 = scmp.ne.s32.totalorder %s92, %s95
      %p101 = scmp.eq.s32.totalorder %s14, 0
      %p102 = por %p100, %p101
      %p103 = scmp.ne.s32.totalorder %s92, %s95
      %p104 = scmp.eq.s32.totalorder %s19, 1
      %p105 = por %p103, %p104
      %p106 = scmp.ne.s32.totalorder %s95, %s96
      %p107 = scmp.eq.s32.totalorder %s19, 0
      %p108 = por %p106, %p107
      %p109 = scmp.ne.s32.totalorder %s95, %s96
      %p110 = scmp.eq.s32.totalorder %s20, 1
      %p111 = por %p109, %p110
      %p113 = scmp.ne.s32.totalorder %s96, %s112
      %p114 = scmp.eq.s32.totalorder %s20, 0
      %p115 = por %p113, %p114
      %s116 = ssub.s32 %s14, %s21
      %p117 = scmp.eq.s32.totalorder %s116, 0
      %s119 = sadd.s32 %s118, 1
      %s120 = scalar_select %p117, %s118, %s119
      %p123 = pneg %p117
      %p124 = scmp.eq.s32.totalorder %s14, 1
      %p125 = por %p123, %p124
      %p126 = scmp.ne.s32.totalorder %s118, %s121
      %p127 = scmp.eq.s32.totalorder %s14, 0
      %p128 = por %p126, %p127
      %p129 = scmp.ne.s32.totalorder %s118, %s121
      %p130 = scmp.eq.s32.totalorder %s19, 1
      %p131 = por %p129, %p130
      %p132 = scmp.ne.s32.totalorder %s121, %s122
      %p133 = scmp.eq.s32.totalorder %s19, 0
      %p134 = por %p132, %p133
      %p135 = scmp.ne.s32.totalorder %s121, %s122
      %p136 = scmp.eq.s32.totalorder %s20, 1
      %p137 = por %p135, %p136
      %p139 = scmp.ne.s32.totalorder %s122, %s138
      %p140 = scmp.eq.s32.totalorder %s20, 0
      %p141 = por %p139, %p140
      %s142 = ssub.s32 %s14, %s21
      %p143 = scmp.eq.s32.totalorder %s142, 0
      %s145 = sadd.s32 %s144, 1
      %s146 = scalar_select %p143, %s144, %s145
      %p149 = pneg %p143
      %p150 = scmp.eq.s32.totalorder %s14, 1
      %p151 = por %p149, %p150
      %p152 = scmp.ne.s32.totalorder %s144, %s147
      %p153 = scmp.eq.s32.totalorder %s14, 0
      %p154 = por %p152, %p153
      %p155 = scmp.ne.s32.totalorder %s144, %s147
      %p156 = scmp.eq.s32.totalorder %s19, 1
      %p157 = por %p155, %p156
      %p158 = scmp.ne.s32.totalorder %s147, %s148
      %p159 = scmp.eq.s32.totalorder %s19, 0
      %p160 = por %p158, %p159
      %p161 = scmp.ne.s32.totalorder %s147, %s148
      %p162 = scmp.eq.s32.totalorder %s20, 1
      %p163 = por %p161, %p162
      %p165 = scmp.ne.s32.totalorder %s148, %s164
      %p166 = scmp.eq.s32.totalorder %s20, 0
      %p167 = por %p165, %p166
      %p168 = scmp.le.s32.totalorder 1, %s14
      %p169 = scmp.lt.s32.totalorder %s14, 3
      %p170 = pnand %p168, %p169
      %p171 = pneg %p170
      // Predicated region
      $region9: #{tpu_custom_call.1} parent=5 // pred_check
        _
      $region10: #{tpu_custom_call.1} parent=5 // pred_check_branch
        %173 = sbr.rel (%p170) target = $region12
      $region11: #{tpu_custom_call.1} parent=5 // pred_region
        %s174 = ssub.s32 %s14, 1
        // Predicated region
        $region13: #{tpu_custom_call.1} parent=11 // pred_check
          %p175 = pneg %p35
        $region14: #{tpu_custom_call.1} parent=11 // pred_check_branch
          %177 = sbr.rel (%p175) target = $region16
        $region15: #{tpu_custom_call.1} parent=11 // pred_region
          _
        $region16: #{tpu_custom_call.1} parent=11 // pred_fallthru
          _
        // Predicated region
        $region17: #{tpu_custom_call.1} parent=11 // pred_check
          %p178 = pneg %p56
        $region18: #{tpu_custom_call.1} parent=11 // pred_check_branch
          %180 = sbr.rel (%p178) target = $region20
        $region19: #{tpu_custom_call.1} parent=11 // pred_region
          _
        $region20: #{tpu_custom_call.1} parent=11 // pred_fallthru
          _
      $region12: #{tpu_custom_call.1} parent=5 // pred_fallthru
        _
      %p181 = scmp.lt.s32.totalorder %s14, 2
      // Predicated region
      $region21: #{tpu_custom_call.1} parent=5 // pred_check
        %p182 = pneg %p181
      $region22: #{tpu_custom_call.1} parent=5 // pred_check_branch
        %184 = sbr.rel (%p182) target = $region24
      $region23: #{tpu_custom_call.1} parent=5 // pred_region
        // Predicated region
        $region25: #{tpu_custom_call.1} parent=23 // pred_check
          %p185 = pneg %p76
        $region26: #{tpu_custom_call.1} parent=23 // pred_check_branch
          %187 = sbr.rel (%p185) target = $region28
        $region27: #{tpu_custom_call.1} parent=23 // pred_region
          %p188 = scmp.lt.s32.totalorder %s14, 1
          %s189 = scalar_select %p188, %s14, 1
          %s190 = smul.addr %s189, 9
          %s191 = smul.addr %s190, 8
          %s192 = scalar_lea.vmem %s2, %s191
        $region28: #{tpu_custom_call.1} parent=23 // pred_fallthru
          _
        // Predicated region
        $region29: #{tpu_custom_call.1} parent=23 // pred_check
          %p193 = pneg %p102
        $region30: #{tpu_custom_call.1} parent=23 // pred_check_branch
          %195 = sbr.rel (%p193) target = $region32
        $region31: #{tpu_custom_call.1} parent=23 // pred_region
          %p196 = scmp.lt.s32.totalorder %s14, 1
          %s197 = scalar_select %p196, %s14, 1
          %s198 = smul.addr %s197, 27
          %s199 = smul.addr %s198, 8
          %s200 = scalar_lea.vmem %s3, %s199
        $region32: #{tpu_custom_call.1} parent=23 // pred_fallthru
          _
        // Predicated region
        $region33: #{tpu_custom_call.1} parent=23 // pred_check
          %p201 = pneg %p128
        $region34: #{tpu_custom_call.1} parent=23 // pred_check_branch
          %203 = sbr.rel (%p201) target = $region36
        $region35: #{tpu_custom_call.1} parent=23 // pred_region
          %p204 = scmp.lt.s32.totalorder %s14, 1
          %s205 = scalar_select %p204, %s14, 1
          %s206 = smul.addr %s205, 24
          %s207 = smul.addr %s206, 8
          %s208 = scalar_lea.vmem %s4, %s207
        $region36: #{tpu_custom_call.1} parent=23 // pred_fallthru
          _
      $region24: #{tpu_custom_call.1} parent=5 // pred_fallthru
        _
      %p209 = scmp.le.s32.totalorder 1, %s14
      %p210 = scmp.lt.s32.totalorder %s14, 3
      %p211 = pnand %p209, %p210
      %p212 = pneg %p211
      // Predicated region
      $region37: #{tpu_custom_call.1} parent=5 // pred_check
        _
      $region38: #{tpu_custom_call.1} parent=5 // pred_check_branch
        %214 = sbr.rel (%p211) target = $region40
      $region39: #{tpu_custom_call.1} parent=5 // pred_region
        %s215 = ssub.s32 %s14, 1
        %p216 = pneg %p35
        %p217 = pneg %p32
        %p218 = pneg %p56
        %p219 = pneg %p53
        %p220 = scmp.lt.s32.totalorder %s19, 1
        %s221 = scalar_select %p220, %s19, 1
        %s222 = smul.addr %s221, 9
        %s223 = smul.addr %s222, 8
        %s224 = scalar_lea.vmem %s2, %s223
        %p225 = pneg %p82
        %p226 = pneg %p79
        %p227 = scmp.lt.s32.totalorder %s19, 1
        %s228 = scalar_select %p227, %s19, 1
        %s229 = smul.addr %s228, 27
        %s230 = smul.addr %s229, 8
        %s231 = scalar_lea.vmem %s3, %s230
        %p232 = pneg %p108
        %p233 = pneg %p105
        %p234 = scmp.lt.s32.totalorder %s19, 1
        %s235 = scalar_select %p234, %s19, 1
        %s236 = smul.addr %s235, 24
        %s237 = smul.addr %s236, 8
        %s238 = scalar_lea.vmem %s4, %s237
        %p239 = pneg %p134
        %p240 = pneg %p131
        %p241 = pneg %p160
        %p242 = pneg %p157
        %s243 = sand.u32 %s147, 1
        %s244 = scalar_lea.sflag [#allocation3], %s243
        %s245 = sand.u32 %s147, 1
        %s246 = smul.addr %s245, 64
        %s247 = scalar_lea.vmem [#allocation2], %s246
        %p248 = scmp.lt.s32.totalorder %s19, 1
        %s249 = scalar_select %p248, %s19, 1
        %s250 = smul.addr %s249, 9
        %s251 = smul.addr %s250, 8
        %s252 = scalar_lea.vmem %s2, %s251
        %p253 = scmp.lt.s32.totalorder %s19, 1
        %s254 = scalar_select %p253, %s19, 1
        %s255 = smul.addr %s254, 27
        %s256 = smul.addr %s255, 8
        %s257 = scalar_lea.vmem %s3, %s256
        %p258 = scmp.lt.s32.totalorder %s19, 1
        %s259 = scalar_select %p258, %s19, 1
        %s260 = smul.addr %s259, 24
        %s261 = smul.addr %s260, 8
        %s262 = scalar_lea.vmem %s4, %s261
        %v264 = vld [vmem:[%s1] sm:$0xff]
        %v265 = vld [vmem:[%s1 + $0x8] sm:$0xff]
        %v266 = vld [vmem:[%s1 + $0x10] sm:$0x3]
        %v267 = vld [vmem:[%s252] sm:$0xff]
        %v268 = vld [vmem:[%s252 + $0x8] sm:$0xff]
        %v269 = vld [vmem:[%s252 + $0x10] sm:$0xf]
        %s270 = scalar_lea.vmem %s252, 24
        %v271 = vld [vmem:[%s270] sm:$0xff]
        %v272 = vld [vmem:[%s270 + $0x8] sm:$0xff]
        %v273 = vld [vmem:[%s270 + $0x10] sm:$0xf]
        %s274 = scalar_lea.vmem %s252, 48
        %v275 = vld [vmem:[%s274] sm:$0xff]
        %v276 = vld [vmem:[%s274 + $0x8] sm:$0xff]
        %v277 = vld [vmem:[%s274 + $0x10] sm:$0xf]
        %v278 = vld [vmem:[%s0] sm:$0x1]
        %v279 = vperm.slane %v278, 0
        %v280 = vmul.f32 %v279, %v267
        %v281 = vmul.f32 %v279, %v268
        %v282 = vmul.f32 %v279, %v269
        %v283 = vadd.f32 %v280, 0.0
        %v284 = vadd.f32 %v281, 0.0
        %v285 = vadd.f32 %v282, 0.0
        %v286 = vld [vmem:[%s0 + $0x9] sm:$0x1]
        %v287 = vperm.slane %v286, 0
        %v288 = vmul.f32 %v287, %v267
        %v289 = vmul.f32 %v287, %v268
        %v290 = vmul.f32 %v287, %v269
        %v291 = vadd.f32 %v288, 0.0
        %v292 = vadd.f32 %v289, 0.0
        %v293 = vadd.f32 %v290, 0.0
        %v294 = vld [vmem:[%s0 + $0x12] sm:$0x1]
        %v295 = vperm.slane %v294, 0
        %v296 = vmul.f32 %v295, %v267
        %v297 = vmul.f32 %v295, %v268
        %v298 = vmul.f32 %v295, %v269
        %v299 = vadd.f32 %v296, 0.0
        %v300 = vadd.f32 %v297, 0.0
        %v301 = vadd.f32 %v298, 0.0
        %v302 = vld [vmem:[%s0 + $0x1b] sm:$0x1]
        %v303 = vperm.slane %v302, 0
        %v304 = vmul.f32 %v303, %v267
        %v305 = vmul.f32 %v303, %v268
        %v306 = vmul.f32 %v303, %v269
        %v307 = vadd.f32 %v304, 0.0
        %v308 = vadd.f32 %v305, 0.0
        %v309 = vadd.f32 %v306, 0.0
        %v310 = vld [vmem:[%s0 + $0x1] sm:$0x1]
        %v311 = vperm.slane %v310, 0
        %v312 = vmul.f32 %v311, %v271
        %v313 = vmul.f32 %v311, %v272
        %v314 = vmul.f32 %v311, %v273
        %v315 = vadd.f32 %v283, %v312
        %v316 = vadd.f32 %v284, %v313
        %v317 = vadd.f32 %v285, %v314
        %v318 = vld [vmem:[%s0 + $0xa] sm:$0x1]
        %v319 = vperm.slane %v318, 0
        %v320 = vmul.f32 %v319, %v271
        %v321 = vmul.f32 %v319, %v272
        %v322 = vmul.f32 %v319, %v273
        %v323 = vadd.f32 %v291, %v320
        %v324 = vadd.f32 %v292, %v321
        %v325 = vadd.f32 %v293, %v322
        %v326 = vld [vmem:[%s0 + $0x13] sm:$0x1]
        %v327 = vperm.slane %v326, 0
        %v328 = vmul.f32 %v327, %v271
        %v329 = vmul.f32 %v327, %v272
        %v330 = vmul.f32 %v327, %v273
        %v331 = vadd.f32 %v299, %v328
        %v332 = vadd.f32 %v300, %v329
        %v333 = vadd.f32 %v301, %v330
        %v334 = vld [vmem:[%s0 + $0x1c] sm:$0x1]
        %v335 = vperm.slane %v334, 0
        %v336 = vmul.f32 %v335, %v271
        %v337 = vmul.f32 %v335, %v272
        %v338 = vmul.f32 %v335, %v273
        %v339 = vadd.f32 %v307, %v336
        %v340 = vadd.f32 %v308, %v337
        %v341 = vadd.f32 %v309, %v338
        %v342 = vld [vmem:[%s0 + $0x2] sm:$0x1]
        %v343 = vperm.slane %v342, 0
        %v344 = vmul.f32 %v343, %v275
        %v345 = vmul.f32 %v343, %v276
        %v346 = vmul.f32 %v343, %v277
        %v347 = vadd.f32 %v315, %v344
        %v348 = vadd.f32 %v316, %v345
        %v349 = vadd.f32 %v317, %v346
        %v350 = vld [vmem:[%s0 + $0xb] sm:$0x1]
        %v351 = vperm.slane %v350, 0
        %v352 = vmul.f32 %v351, %v275
        %v353 = vmul.f32 %v351, %v276
        %v354 = vmul.f32 %v351, %v277
        %v355 = vadd.f32 %v323, %v352
        %v356 = vadd.f32 %v324, %v353
        %v357 = vadd.f32 %v325, %v354
        %v358 = vld [vmem:[%s0 + $0x14] sm:$0x1]
        %v359 = vperm.slane %v358, 0
        %v360 = vmul.f32 %v359, %v275
        %v361 = vmul.f32 %v359, %v276
        %v362 = vmul.f32 %v359, %v277
        %v363 = vadd.f32 %v331, %v360
        %v364 = vadd.f32 %v332, %v361
        %v365 = vadd.f32 %v333, %v362
        %v366 = vld [vmem:[%s0 + $0x1d] sm:$0x1]
        %v367 = vperm.slane %v366, 0
        %v368 = vmul.f32 %v367, %v275
        %v369 = vmul.f32 %v367, %v276
        %v370 = vmul.f32 %v367, %v277
        %v371 = vadd.f32 %v339, %v368
        %v372 = vadd.f32 %v340, %v369
        %v373 = vadd.f32 %v341, %v370
        %v374 = vld [vmem:[%s0 + $0x3] sm:$0x1]
        %v375 = vperm.slane %v374, 0
        %v376 = vmul.f32 %v375, %v267
        %v377 = vmul.f32 %v375, %v268
        %v378 = vmul.f32 %v375, %v269
        %vm382 = vcmask 1046528
        %v383 = vrot.slane %v376, 1
        %v384 = vrot.slane %v377, 1
        %v385 = vsel %vm382, %v383, %v384
        %v386 = vrot.slane %v378, 1
        %v387 = vsel %vm382, %v384, %v386
        %v391 = vadd.f32 %v347, %v385
        %v392 = vadd.f32 %v348, %v387
        %v393 = vadd.f32 %v349, %v386
        %v394 = vld [vmem:[%s0 + $0xc] sm:$0x1]
        %v395 = vperm.slane %v394, 0
        %v396 = vmul.f32 %v395, %v267
        %v397 = vmul.f32 %v395, %v268
        %v398 = vmul.f32 %v395, %v269
        %v402 = vrot.slane %v396, 1
        %v403 = vrot.slane %v397, 1
        %v404 = vsel %vm382, %v402, %v403
        %v405 = vrot.slane %v398, 1
        %v406 = vsel %vm382, %v403, %v405
        %v410 = vadd.f32 %v355, %v404
        %v411 = vadd.f32 %v356, %v406
        %v412 = vadd.f32 %v357, %v405
        %v413 = vld [vmem:[%s0 + $0x15] sm:$0x1]
        %v414 = vperm.slane %v413, 0
        %v415 = vmul.f32 %v414, %v267
        %v416 = vmul.f32 %v414, %v268
        %v417 = vmul.f32 %v414, %v269
        %v421 = vrot.slane %v415, 1
        %v422 = vrot.slane %v416, 1
        %v423 = vsel %vm382, %v421, %v422
        %v424 = vrot.slane %v417, 1
        %v425 = vsel %vm382, %v422, %v424
        %v429 = vadd.f32 %v363, %v423
        %v430 = vadd.f32 %v364, %v425
        %v431 = vadd.f32 %v365, %v424
        %v432 = vld [vmem:[%s0 + $0x1e] sm:$0x1]
        %v433 = vperm.slane %v432, 0
        %v434 = vmul.f32 %v433, %v267
        %v435 = vmul.f32 %v433, %v268
        %v436 = vmul.f32 %v433, %v269
        %v440 = vrot.slane %v434, 1
        %v441 = vrot.slane %v435, 1
        %v442 = vsel %vm382, %v440, %v441
        %v443 = vrot.slane %v436, 1
        %v444 = vsel %vm382, %v441, %v443
        %v448 = vadd.f32 %v371, %v442
        %v449 = vadd.f32 %v372, %v444
        %v450 = vadd.f32 %v373, %v443
        %v451 = vld [vmem:[%s0 + $0x4] sm:$0x1]
        %v452 = vperm.slane %v451, 0
        %v453 = vmul.f32 %v452, %v271
        %v454 = vmul.f32 %v452, %v272
        %v455 = vmul.f32 %v452, %v273
        %v459 = vrot.slane %v453, 1
        %v460 = vrot.slane %v454, 1
        %v461 = vsel %vm382, %v459, %v460
        %v462 = vrot.slane %v455, 1
        %v463 = vsel %vm382, %v460, %v462
        %v467 = vadd.f32 %v391, %v461
        %v468 = vadd.f32 %v392, %v463
        %v469 = vadd.f32 %v393, %v462
        %v470 = vld [vmem:[%s0 + $0xd] sm:$0x1]
        %v471 = vperm.slane %v470, 0
        %v472 = vmul.f32 %v471, %v271
        %v473 = vmul.f32 %v471, %v272
        %v474 = vmul.f32 %v471, %v273
        %v478 = vrot.slane %v472, 1
        %v479 = vrot.slane %v473, 1
        %v480 = vsel %vm382, %v478, %v479
        %v481 = vrot.slane %v474, 1
        %v482 = vsel %vm382, %v479, %v481
        %v486 = vadd.f32 %v410, %v480
        %v487 = vadd.f32 %v411, %v482
        %v488 = vadd.f32 %v412, %v481
        %v489 = vld [vmem:[%s0 + $0x16] sm:$0x1]
        %v490 = vperm.slane %v489, 0
        %v491 = vmul.f32 %v490, %v271
        %v492 = vmul.f32 %v490, %v272
        %v493 = vmul.f32 %v490, %v273
        %v497 = vrot.slane %v491, 1
        %v498 = vrot.slane %v492, 1
        %v499 = vsel %vm382, %v497, %v498
        %v500 = vrot.slane %v493, 1
        %v501 = vsel %vm382, %v498, %v500
        %v505 = vadd.f32 %v429, %v499
        %v506 = vadd.f32 %v430, %v501
        %v507 = vadd.f32 %v431, %v500
        %v508 = vld [vmem:[%s0 + $0x1f] sm:$0x1]
        %v509 = vperm.slane %v508, 0
        %v510 = vmul.f32 %v509, %v271
        %v511 = vmul.f32 %v509, %v272
        %v512 = vmul.f32 %v509, %v273
        %v516 = vrot.slane %v510, 1
        %v517 = vrot.slane %v511, 1
        %v518 = vsel %vm382, %v516, %v517
        %v519 = vrot.slane %v512, 1
        %v520 = vsel %vm382, %v517, %v519
        %v524 = vadd.f32 %v448, %v518
        %v525 = vadd.f32 %v449, %v520
        %v526 = vadd.f32 %v450, %v519
        %v527 = vld [vmem:[%s0 + $0x5] sm:$0x1]
        %v528 = vperm.slane %v527, 0
        %v529 = vmul.f32 %v528, %v275
        %v530 = vmul.f32 %v528, %v276
        %v531 = vmul.f32 %v528, %v277
        %v535 = vrot.slane %v529, 1
        %v536 = vrot.slane %v530, 1
        %v537 = vsel %vm382, %v535, %v536
        %v538 = vrot.slane %v531, 1
        %v539 = vsel %vm382, %v536, %v538
        %v543 = vadd.f32 %v467, %v537
        %v544 = vadd.f32 %v468, %v539
        %v545 = vadd.f32 %v469, %v538
        %v546 = vld [vmem:[%s0 + $0xe] sm:$0x1]
        %v547 = vperm.slane %v546, 0
        %v548 = vmul.f32 %v547, %v275
        %v549 = vmul.f32 %v547, %v276
        %v550 = vmul.f32 %v547, %v277
        %v554 = vrot.slane %v548, 1
        %v555 = vrot.slane %v549, 1
        %v556 = vsel %vm382, %v554, %v555
        %v557 = vrot.slane %v550, 1
        %v558 = vsel %vm382, %v555, %v557
        %v562 = vadd.f32 %v486, %v556
        %v563 = vadd.f32 %v487, %v558
        %v564 = vadd.f32 %v488, %v557
        %v565 = vld [vmem:[%s0 + $0x17] sm:$0x1]
        %v566 = vperm.slane %v565, 0
        %v567 = vmul.f32 %v566, %v275
        %v568 = vmul.f32 %v566, %v276
        %v569 = vmul.f32 %v566, %v277
        %v573 = vrot.slane %v567, 1
        %v574 = vrot.slane %v568, 1
        %v575 = vsel %vm382, %v573, %v574
        %v576 = vrot.slane %v569, 1
        %v577 = vsel %vm382, %v574, %v576
        %v581 = vadd.f32 %v505, %v575
        %v582 = vadd.f32 %v506, %v577
        %v583 = vadd.f32 %v507, %v576
        %v584 = vld [vmem:[%s0 + $0x20] sm:$0x1]
        %v585 = vperm.slane %v584, 0
        %v586 = vmul.f32 %v585, %v275
        %v587 = vmul.f32 %v585, %v276
        %v588 = vmul.f32 %v585, %v277
        %v592 = vrot.slane %v586, 1
        %v593 = vrot.slane %v587, 1
        %v594 = vsel %vm382, %v592, %v593
        %v595 = vrot.slane %v588, 1
        %v596 = vsel %vm382, %v593, %v595
        %v600 = vadd.f32 %v524, %v594
        %v601 = vadd.f32 %v525, %v596
        %v602 = vadd.f32 %v526, %v595
        %v603 = vld [vmem:[%s0 + $0x6] sm:$0x1]
        %v604 = vperm.slane %v603, 0
        %v605 = vmul.f32 %v604, %v267
        %v606 = vmul.f32 %v604, %v268
        %v607 = vmul.f32 %v604, %v269
        %vm611 = vcmask 1045504
        %v612 = vrot.slane %v605, 2
        %v613 = vrot.slane %v606, 2
        %v614 = vsel %vm611, %v612, %v613
        %v615 = vrot.slane %v607, 2
        %v616 = vsel %vm611, %v613, %v615
        %v620 = vadd.f32 %v543, %v614
        %v621 = vadd.f32 %v544, %v616
        %v622 = vadd.f32 %v545, %v615
        %v623 = vld [vmem:[%s0 + $0xf] sm:$0x1]
        %v624 = vperm.slane %v623, 0
        %v625 = vmul.f32 %v624, %v267
        %v626 = vmul.f32 %v624, %v268
        %v627 = vmul.f32 %v624, %v269
        %v631 = vrot.slane %v625, 2
        %v632 = vrot.slane %v626, 2
        %v633 = vsel %vm611, %v631, %v632
        %v634 = vrot.slane %v627, 2
        %v635 = vsel %vm611, %v632, %v634
        %v639 = vadd.f32 %v562, %v633
        %v640 = vadd.f32 %v563, %v635
        %v641 = vadd.f32 %v564, %v634
        %v642 = vld [vmem:[%s0 + $0x18] sm:$0x1]
        %v643 = vperm.slane %v642, 0
        %v644 = vmul.f32 %v643, %v267
        %v645 = vmul.f32 %v643, %v268
        %v646 = vmul.f32 %v643, %v269
        %v650 = vrot.slane %v644, 2
        %v651 = vrot.slane %v645, 2
        %v652 = vsel %vm611, %v650, %v651
        %v653 = vrot.slane %v646, 2
        %v654 = vsel %vm611, %v651, %v653
        %v658 = vadd.f32 %v581, %v652
        %v659 = vadd.f32 %v582, %v654
        %v660 = vadd.f32 %v583, %v653
        %v661 = vld [vmem:[%s0 + $0x21] sm:$0x1]
        %v662 = vperm.slane %v661, 0
        %v663 = vmul.f32 %v662, %v267
        %v664 = vmul.f32 %v662, %v268
        %v665 = vmul.f32 %v662, %v269
        %v669 = vrot.slane %v663, 2
        %v670 = vrot.slane %v664, 2
        %v671 = vsel %vm611, %v669, %v670
        %v672 = vrot.slane %v665, 2
        %v673 = vsel %vm611, %v670, %v672
        %v677 = vadd.f32 %v600, %v671
        %v678 = vadd.f32 %v601, %v673
        %v679 = vadd.f32 %v602, %v672
        %v680 = vld [vmem:[%s0 + $0x7] sm:$0x1]
        %v681 = vperm.slane %v680, 0
        %v682 = vmul.f32 %v681, %v271
        %v683 = vmul.f32 %v681, %v272
        %v684 = vmul.f32 %v681, %v273
        %v688 = vrot.slane %v682, 2
        %v689 = vrot.slane %v683, 2
        %v690 = vsel %vm611, %v688, %v689
        %v691 = vrot.slane %v684, 2
        %v692 = vsel %vm611, %v689, %v691
        %v696 = vadd.f32 %v620, %v690
        %v697 = vadd.f32 %v621, %v692
        %v698 = vadd.f32 %v622, %v691
        %v699 = vld [vmem:[%s0 + $0x10] sm:$0x1]
        %v700 = vperm.slane %v699, 0
        %v701 = vmul.f32 %v700, %v271
        %v702 = vmul.f32 %v700, %v272
        %v703 = vmul.f32 %v700, %v273
        %v707 = vrot.slane %v701, 2
        %v708 = vrot.slane %v702, 2
        %v709 = vsel %vm611, %v707, %v708
        %v710 = vrot.slane %v703, 2
        %v711 = vsel %vm611, %v708, %v710
        %v715 = vadd.f32 %v639, %v709
        %v716 = vadd.f32 %v640, %v711
        %v717 = vadd.f32 %v641, %v710
        %v718 = vld [vmem:[%s0 + $0x19] sm:$0x1]
        %v719 = vperm.slane %v718, 0
        %v720 = vmul.f32 %v719, %v271
        %v721 = vmul.f32 %v719, %v272
        %v722 = vmul.f32 %v719, %v273
        %v726 = vrot.slane %v720, 2
        %v727 = vrot.slane %v721, 2
        %v728 = vsel %vm611, %v726, %v727
        %v729 = vrot.slane %v722, 2
        %v730 = vsel %vm611, %v727, %v729
        %v734 = vadd.f32 %v658, %v728
        %v735 = vadd.f32 %v659, %v730
        %v736 = vadd.f32 %v660, %v729
        %v737 = vld [vmem:[%s0 + $0x22] sm:$0x1]
        %v738 = vperm.slane %v737, 0
        %v739 = vmul.f32 %v738, %v271
        %v740 = vmul.f32 %v738, %v272
        %v741 = vmul.f32 %v738, %v273
        %v745 = vrot.slane %v739, 2
        %v746 = vrot.slane %v740, 2
        %v747 = vsel %vm611, %v745, %v746
        %v748 = vrot.slane %v741, 2
        %v749 = vsel %vm611, %v746, %v748
        %v753 = vadd.f32 %v677, %v747
        %v754 = vadd.f32 %v678, %v749
        %v755 = vadd.f32 %v679, %v748
        %v756 = vld [vmem:[%s0 + $0x8] sm:$0x1]
        %v757 = vperm.slane %v756, 0
        %v758 = vmul.f32 %v757, %v275
        %v759 = vmul.f32 %v757, %v276
        %v760 = vmul.f32 %v757, %v277
        %v764 = vrot.slane %v758, 2
        %v765 = vrot.slane %v759, 2
        %v766 = vsel %vm611, %v764, %v765
        %v767 = vrot.slane %v760, 2
        %v768 = vsel %vm611, %v765, %v767
        %v772 = vadd.f32 %v696, %v766
        %v773 = vadd.f32 %v697, %v768
        %v774 = vadd.f32 %v698, %v767
        %v775 = vld [vmem:[%s0 + $0x11] sm:$0x1]
        %v776 = vperm.slane %v775, 0
        %v777 = vmul.f32 %v776, %v275
        %v778 = vmul.f32 %v776, %v276
        %v779 = vmul.f32 %v776, %v277
        %v783 = vrot.slane %v777, 2
        %v784 = vrot.slane %v778, 2
        %v785 = vsel %vm611, %v783, %v784
        %v786 = vrot.slane %v779, 2
        %v787 = vsel %vm611, %v784, %v786
        %v791 = vadd.f32 %v715, %v785
        %v792 = vadd.f32 %v716, %v787
        %v793 = vadd.f32 %v717, %v786
        %v794 = vld [vmem:[%s0 + $0x1a] sm:$0x1]
        %v795 = vperm.slane %v794, 0
        %v796 = vmul.f32 %v795, %v275
        %v797 = vmul.f32 %v795, %v276
        %v798 = vmul.f32 %v795, %v277
        %v802 = vrot.slane %v796, 2
        %v803 = vrot.slane %v797, 2
        %v804 = vsel %vm611, %v802, %v803
        %v805 = vrot.slane %v798, 2
        %v806 = vsel %vm611, %v803, %v805
        %v810 = vadd.f32 %v734, %v804
        %v811 = vadd.f32 %v735, %v806
        %v812 = vadd.f32 %v736, %v805
        %v813 = vld [vmem:[%s0 + $0x23] sm:$0x1]
        %v814 = vperm.slane %v813, 0
        %v815 = vmul.f32 %v814, %v275
        %v816 = vmul.f32 %v814, %v276
        %v817 = vmul.f32 %v814, %v277
        %v821 = vrot.slane %v815, 2
        %v822 = vrot.slane %v816, 2
        %v823 = vsel %vm611, %v821, %v822
        %v824 = vrot.slane %v817, 2
        %v825 = vsel %vm611, %v822, %v824
        %v829 = vadd.f32 %v753, %v823
        %v830 = vadd.f32 %v754, %v825
        %v831 = vadd.f32 %v755, %v824
        %835 = vrot.lane.b32.xlu0 %v772, 110
        %v836 = vpop.permute.xlu0 %835
        %837 = vrot.lane.b32.xlu0 %v773, 110
        %v838 = vpop.permute.xlu0 %837
        %839 = vrot.lane.b32.xlu0 %v774, 110
        %v840 = vpop.permute.xlu0 %839
        %v844 = vadd.f32 %v772, %v836
        %v845 = vadd.f32 %v773, %v838
        %v846 = vadd.f32 %v774, %v840
        %847 = vrot.lane.b32.xlu0 %v772, 92
        %v848 = vpop.permute.xlu0 %847
        %849 = vrot.lane.b32.xlu0 %v773, 92
        %v850 = vpop.permute.xlu0 %849
        %851 = vrot.lane.b32.xlu0 %v774, 92
        %v852 = vpop.permute.xlu0 %851
        %v856 = vadd.f32 %v844, %v848
        %v857 = vadd.f32 %v845, %v850
        %v858 = vadd.f32 %v846, %v852
        %859 = vrot.lane.b32.xlu0 %v772, 74
        %v860 = vpop.permute.xlu0 %859
        %861 = vrot.lane.b32.xlu0 %v773, 74
        %v862 = vpop.permute.xlu0 %861
        %863 = vrot.lane.b32.xlu0 %v774, 74
        %v864 = vpop.permute.xlu0 %863
        %v868 = vadd.f32 %v856, %v860
        %v869 = vadd.f32 %v857, %v862
        %v870 = vadd.f32 %v858, %v864
        %v871 = vld [vmem:[%s0 + $0x24] sm:$0x1]
        %v872 = vperm.slane %v871, 0
        %v873 = vadd.f32 %v868, %v872
        %v874 = vadd.f32 %v869, %v872
        %v875 = vadd.f32 %v870, %v872
        %v876 = vmax.f32 %v873, 0.0
        %v877 = vmax.f32 %v874, 0.0
        %v878 = vmax.f32 %v875, 0.0
        %v879 = vmul.f32 %v876, %v264
        %v880 = vmul.f32 %v877, %v265
        %v881 = vmul.f32 %v878, %v266
        %885 = vrot.lane.b32.xlu0 %v791, 110
        %v886 = vpop.permute.xlu0 %885
        %887 = vrot.lane.b32.xlu0 %v792, 110
        %v888 = vpop.permute.xlu0 %887
        %889 = vrot.lane.b32.xlu0 %v793, 110
        %v890 = vpop.permute.xlu0 %889
        %v894 = vadd.f32 %v791, %v886
        %v895 = vadd.f32 %v792, %v888
        %v896 = vadd.f32 %v793, %v890
        %897 = vrot.lane.b32.xlu0 %v791, 92
        %v898 = vpop.permute.xlu0 %897
        %899 = vrot.lane.b32.xlu0 %v792, 92
        %v900 = vpop.permute.xlu0 %899
        %901 = vrot.lane.b32.xlu0 %v793, 92
        %v902 = vpop.permute.xlu0 %901
        %v906 = vadd.f32 %v894, %v898
        %v907 = vadd.f32 %v895, %v900
        %v908 = vadd.f32 %v896, %v902
        %909 = vrot.lane.b32.xlu0 %v791, 74
        %v910 = vpop.permute.xlu0 %909
        %911 = vrot.lane.b32.xlu0 %v792, 74
        %v912 = vpop.permute.xlu0 %911
        %913 = vrot.lane.b32.xlu0 %v793, 74
        %v914 = vpop.permute.xlu0 %913
        %v918 = vadd.f32 %v906, %v910
        %v919 = vadd.f32 %v907, %v912
        %v920 = vadd.f32 %v908, %v914
        %v921 = vld [vmem:[%s0 + $0x25] sm:$0x1]
        %v922 = vperm.slane %v921, 0
        %v923 = vadd.f32 %v918, %v922
        %v924 = vadd.f32 %v919, %v922
        %v925 = vadd.f32 %v920, %v922
        %v926 = vmax.f32 %v923, 0.0
        %v927 = vmax.f32 %v924, 0.0
        %v928 = vmax.f32 %v925, 0.0
        %v929 = vmul.f32 %v926, %v264
        %v930 = vmul.f32 %v927, %v265
        %v931 = vmul.f32 %v928, %v266
        %935 = vrot.lane.b32.xlu0 %v810, 110
        %v936 = vpop.permute.xlu0 %935
        %937 = vrot.lane.b32.xlu0 %v811, 110
        %v938 = vpop.permute.xlu0 %937
        %939 = vrot.lane.b32.xlu0 %v812, 110
        %v940 = vpop.permute.xlu0 %939
        %v944 = vadd.f32 %v810, %v936
        %v945 = vadd.f32 %v811, %v938
        %v946 = vadd.f32 %v812, %v940
        %947 = vrot.lane.b32.xlu0 %v810, 92
        %v948 = vpop.permute.xlu0 %947
        %949 = vrot.lane.b32.xlu0 %v811, 92
        %v950 = vpop.permute.xlu0 %949
        %951 = vrot.lane.b32.xlu0 %v812, 92
        %v952 = vpop.permute.xlu0 %951
        %v956 = vadd.f32 %v944, %v948
        %v957 = vadd.f32 %v945, %v950
        %v958 = vadd.f32 %v946, %v952
        %959 = vrot.lane.b32.xlu0 %v810, 74
        %v960 = vpop.permute.xlu0 %959
        %961 = vrot.lane.b32.xlu0 %v811, 74
        %v962 = vpop.permute.xlu0 %961
        %963 = vrot.lane.b32.xlu0 %v812, 74
        %v964 = vpop.permute.xlu0 %963
        %v968 = vadd.f32 %v956, %v960
        %v969 = vadd.f32 %v957, %v962
        %v970 = vadd.f32 %v958, %v964
        %v971 = vld [vmem:[%s0 + $0x26] sm:$0x1]
        %v972 = vperm.slane %v971, 0
        %v973 = vadd.f32 %v968, %v972
        %v974 = vadd.f32 %v969, %v972
        %v975 = vadd.f32 %v970, %v972
        %v976 = vmax.f32 %v973, 0.0
        %v977 = vmax.f32 %v974, 0.0
        %v978 = vmax.f32 %v975, 0.0
        %v979 = vmul.f32 %v976, %v264
        %v980 = vmul.f32 %v977, %v265
        %v981 = vmul.f32 %v978, %v266
        %985 = vrot.lane.b32.xlu0 %v829, 110
        %v986 = vpop.permute.xlu0 %985
        %987 = vrot.lane.b32.xlu0 %v830, 110
        %v988 = vpop.permute.xlu0 %987
        %989 = vrot.lane.b32.xlu0 %v831, 110
        %v990 = vpop.permute.xlu0 %989
        %v994 = vadd.f32 %v829, %v986
        %v995 = vadd.f32 %v830, %v988
        %v996 = vadd.f32 %v831, %v990
        %997 = vrot.lane.b32.xlu0 %v829, 92
        %v998 = vpop.permute.xlu0 %997
        %999 = vrot.lane.b32.xlu0 %v830, 92
        %v1000 = vpop.permute.xlu0 %999
        %1001 = vrot.lane.b32.xlu0 %v831, 92
        %v1002 = vpop.permute.xlu0 %1001
        %v1006 = vadd.f32 %v994, %v998
        %v1007 = vadd.f32 %v995, %v1000
        %v1008 = vadd.f32 %v996, %v1002
        %1009 = vrot.lane.b32.xlu0 %v829, 74
        %v1010 = vpop.permute.xlu0 %1009
        %1011 = vrot.lane.b32.xlu0 %v830, 74
        %v1012 = vpop.permute.xlu0 %1011
        %1013 = vrot.lane.b32.xlu0 %v831, 74
        %v1014 = vpop.permute.xlu0 %1013
        %v1018 = vadd.f32 %v1006, %v1010
        %v1019 = vadd.f32 %v1007, %v1012
        %v1020 = vadd.f32 %v1008, %v1014
        %v1021 = vld [vmem:[%s0 + $0x27] sm:$0x1]
        %v1022 = vperm.slane %v1021, 0
        %v1023 = vadd.f32 %v1018, %v1022
        %v1024 = vadd.f32 %v1019, %v1022
        %v1025 = vadd.f32 %v1020, %v1022
        %v1026 = vmax.f32 %v1023, 0.0
        %v1027 = vmax.f32 %v1024, 0.0
        %v1028 = vmax.f32 %v1025, 0.0
        %v1029 = vmul.f32 %v1026, %v264
        %v1030 = vmul.f32 %v1027, %v265
        %v1031 = vmul.f32 %v1028, %v266
        %1035 = vrot.lane.b32.xlu0 %v929, 16
        %v1036 = vpop.permute.xlu0 %1035
        %1037 = vrot.lane.b32.xlu0 %v930, 16
        %v1038 = vpop.permute.xlu0 %1037
        %1039 = vrot.lane.b32.xlu0 %v931, 16
        %v1040 = vpop.permute.xlu0 %1039
        %1047 = vrot.lane.b32.xlu0 %v979, 32
        %v1048 = vpop.permute.xlu0 %1047
        %1049 = vrot.lane.b32.xlu0 %v980, 32
        %v1050 = vpop.permute.xlu0 %1049
        %1051 = vrot.lane.b32.xlu0 %v981, 32
        %v1052 = vpop.permute.xlu0 %1051
        %1059 = vrot.lane.b32.xlu0 %v1029, 48
        %v1060 = vpop.permute.xlu0 %1059
        %1061 = vrot.lane.b32.xlu0 %v1030, 48
        %v1062 = vpop.permute.xlu0 %1061
        %1063 = vrot.lane.b32.xlu0 %v1031, 48
        %v1064 = vpop.permute.xlu0 %1063
        %vm1068 = vcmask 130048
        %v1069 = vsel %vm1068, %v879, %v1036
        %v1070 = vsel %vm1068, %v880, %v1038
        %v1071 = vsel %vm1068, %v881, %v1040
        %vm1072 = vcmask 261120
        %v1073 = vsel %vm1072, %v1069, %v1048
        %v1074 = vsel %vm1072, %v1070, %v1050
        %v1075 = vsel %vm1072, %v1071, %v1052
        %vm1076 = vcmask 392192
        %v1077 = vsel %vm1076, %v1073, %v1060
        %v1078 = vsel %vm1076, %v1074, %v1062
        %v1079 = vsel %vm1076, %v1075, %v1064
        %1083 = vrot.lane.b32.xlu0 %v879, 127
        %v1084 = vpop.permute.xlu0 %1083
        %1085 = vrot.lane.b32.xlu0 %v880, 127
        %v1086 = vpop.permute.xlu0 %1085
        %1087 = vrot.lane.b32.xlu0 %v881, 127
        %v1088 = vpop.permute.xlu0 %1087
        %1092 = vrot.lane.b32.xlu0 %v929, 15
        %v1093 = vpop.permute.xlu0 %1092
        %1094 = vrot.lane.b32.xlu0 %v930, 15
        %v1095 = vpop.permute.xlu0 %1094
        %1096 = vrot.lane.b32.xlu0 %v931, 15
        %v1097 = vpop.permute.xlu0 %1096
        %1101 = vrot.lane.b32.xlu0 %v979, 31
        %v1102 = vpop.permute.xlu0 %1101
        %1103 = vrot.lane.b32.xlu0 %v980, 31
        %v1104 = vpop.permute.xlu0 %1103
        %1105 = vrot.lane.b32.xlu0 %v981, 31
        %v1106 = vpop.permute.xlu0 %1105
        %1110 = vrot.lane.b32.xlu0 %v1029, 47
        %v1111 = vpop.permute.xlu0 %1110
        %1112 = vrot.lane.b32.xlu0 %v1030, 47
        %v1113 = vpop.permute.xlu0 %1112
        %1114 = vrot.lane.b32.xlu0 %v1031, 47
        %v1115 = vpop.permute.xlu0 %1114
        %v1119 = vsel %vm1068, %v1084, %v1093
        %v1120 = vsel %vm1068, %v1086, %v1095
        %v1121 = vsel %vm1068, %v1088, %v1097
        %v1122 = vsel %vm1072, %v1119, %v1102
        %v1123 = vsel %vm1072, %v1120, %v1104
        %v1124 = vsel %vm1072, %v1121, %v1106
        %v1125 = vsel %vm1076, %v1122, %v1111
        %v1126 = vsel %vm1076, %v1123, %v1113
        %v1127 = vsel %vm1076, %v1124, %v1115
        %1128 = vrot.lane.b32.xlu0 %v879, 126
        %v1129 = vpop.permute.xlu0 %1128
        %1130 = vrot.lane.b32.xlu0 %v880, 126
        %v1131 = vpop.permute.xlu0 %1130
        %1132 = vrot.lane.b32.xlu0 %v881, 126
        %v1133 = vpop.permute.xlu0 %1132
        %1137 = vrot.lane.b32.xlu0 %v929, 14
        %v1138 = vpop.permute.xlu0 %1137
        %1139 = vrot.lane.b32.xlu0 %v930, 14
        %v1140 = vpop.permute.xlu0 %1139
        %1141 = vrot.lane.b32.xlu0 %v931, 14
        %v1142 = vpop.permute.xlu0 %1141
        %1146 = vrot.lane.b32.xlu0 %v979, 30
        %v1147 = vpop.permute.xlu0 %1146
        %1148 = vrot.lane.b32.xlu0 %v980, 30
        %v1149 = vpop.permute.xlu0 %1148
        %1150 = vrot.lane.b32.xlu0 %v981, 30
        %v1151 = vpop.permute.xlu0 %1150
        %1155 = vrot.lane.b32.xlu0 %v1029, 46
        %v1156 = vpop.permute.xlu0 %1155
        %1157 = vrot.lane.b32.xlu0 %v1030, 46
        %v1158 = vpop.permute.xlu0 %1157
        %1159 = vrot.lane.b32.xlu0 %v1031, 46
        %v1160 = vpop.permute.xlu0 %1159
        %v1164 = vsel %vm1068, %v1129, %v1138
        %v1165 = vsel %vm1068, %v1131, %v1140
        %v1166 = vsel %vm1068, %v1133, %v1142
        %v1167 = vsel %vm1072, %v1164, %v1147
        %v1168 = vsel %vm1072, %v1165, %v1149
        %v1169 = vsel %vm1072, %v1166, %v1151
        %v1170 = vsel %vm1076, %v1167, %v1156
        %v1171 = vsel %vm1076, %v1168, %v1158
        %v1172 = vsel %vm1076, %v1169, %v1160
        %v1173 = vld [vmem:[%s0 + $0x28] sm:$0x1]
        %v1174 = vperm.slane %v1173, 0
        %v1175 = vmul.f32 %v1174, %v1077
        %v1176 = vmul.f32 %v1174, %v1078
        %v1177 = vadd.f32 %v1175, 0.0
        %v1178 = vadd.f32 %v1176, 0.0
        %v1179 = vld [vmem:[%s0 + $0x31] sm:$0x1]
        %v1180 = vperm.slane %v1179, 0
        %v1181 = vmul.f32 %v1180, %v1077
        %v1182 = vmul.f32 %v1180, %v1078
        %v1183 = vadd.f32 %v1181, 0.0
        %v1184 = vadd.f32 %v1182, 0.0
        %v1185 = vld [vmem:[%s0 + $0x3a] sm:$0x1]
        %v1186 = vperm.slane %v1185, 0
        %v1187 = vmul.f32 %v1186, %v1077
        %v1188 = vmul.f32 %v1186, %v1078
        %v1189 = vadd.f32 %v1187, 0.0
        %v1190 = vadd.f32 %v1188, 0.0
        %v1191 = vld [vmem:[%s0 + $0x43] sm:$0x1]
        %v1192 = vperm.slane %v1191, 0
        %v1193 = vmul.f32 %v1192, %v1077
        %v1194 = vmul.f32 %v1192, %v1078
        %v1195 = vadd.f32 %v1193, 0.0
        %v1196 = vadd.f32 %v1194, 0.0
        %v1197 = vld [vmem:[%s0 + $0x29] sm:$0x1]
        %v1198 = vperm.slane %v1197, 0
        %v1199 = vmul.f32 %v1198, %v1125
        %v1200 = vmul.f32 %v1198, %v1126
        %v1201 = vadd.f32 %v1177, %v1199
        %v1202 = vadd.f32 %v1178, %v1200
        %v1203 = vld [vmem:[%s0 + $0x32] sm:$0x1]
        %v1204 = vperm.slane %v1203, 0
        %v1205 = vmul.f32 %v1204, %v1125
        %v1206 = vmul.f32 %v1204, %v1126
        %v1207 = vadd.f32 %v1183, %v1205
        %v1208 = vadd.f32 %v1184, %v1206
        %v1209 = vld [vmem:[%s0 + $0x3b] sm:$0x1]
        %v1210 = vperm.slane %v1209, 0
        %v1211 = vmul.f32 %v1210, %v1125
        %v1212 = vmul.f32 %v1210, %v1126
        %v1213 = vadd.f32 %v1189, %v1211
        %v1214 = vadd.f32 %v1190, %v1212
        %v1215 = vld [vmem:[%s0 + $0x44] sm:$0x1]
        %v1216 = vperm.slane %v1215, 0
        %v1217 = vmul.f32 %v1216, %v1125
        %v1218 = vmul.f32 %v1216, %v1126
        %v1219 = vadd.f32 %v1195, %v1217
        %v1220 = vadd.f32 %v1196, %v1218
        %v1221 = vld [vmem:[%s0 + $0x2a] sm:$0x1]
        %v1222 = vperm.slane %v1221, 0
        %v1223 = vmul.f32 %v1222, %v1170
        %v1224 = vmul.f32 %v1222, %v1171
        %v1225 = vadd.f32 %v1201, %v1223
        %v1226 = vadd.f32 %v1202, %v1224
        %v1227 = vld [vmem:[%s0 + $0x33] sm:$0x1]
        %v1228 = vperm.slane %v1227, 0
        %v1229 = vmul.f32 %v1228, %v1170
        %v1230 = vmul.f32 %v1228, %v1171
        %v1231 = vadd.f32 %v1207, %v1229
        %v1232 = vadd.f32 %v1208, %v1230
        %v1233 = vld [vmem:[%s0 + $0x3c] sm:$0x1]
        %v1234 = vperm.slane %v1233, 0
        %v1235 = vmul.f32 %v1234, %v1170
        %v1236 = vmul.f32 %v1234, %v1171
        %v1237 = vadd.f32 %v1213, %v1235
        %v1238 = vadd.f32 %v1214, %v1236
        %v1239 = vld [vmem:[%s0 + $0x45] sm:$0x1]
        %v1240 = vperm.slane %v1239, 0
        %v1241 = vmul.f32 %v1240, %v1170
        %v1242 = vmul.f32 %v1240, %v1171
        %v1243 = vadd.f32 %v1219, %v1241
        %v1244 = vadd.f32 %v1220, %v1242
        %v1245 = vld [vmem:[%s0 + $0x2b] sm:$0x1]
        %v1246 = vperm.slane %v1245, 0
        %v1247 = vmul.f32 %v1246, %v1077
        %v1248 = vmul.f32 %v1246, %v1078
        %v1249 = vmul.f32 %v1246, %v1079
        %v1253 = vrot.slane %v1247, 1
        %v1254 = vrot.slane %v1248, 1
        %v1255 = vsel %vm382, %v1253, %v1254
        %v1256 = vrot.slane %v1249, 1
        %v1257 = vsel %vm382, %v1254, %v1256
        %v1260 = vadd.f32 %v1225, %v1255
        %v1261 = vadd.f32 %v1226, %v1257
        %v1262 = vld [vmem:[%s0 + $0x34] sm:$0x1]
        %v1263 = vperm.slane %v1262, 0
        %v1264 = vmul.f32 %v1263, %v1077
        %v1265 = vmul.f32 %v1263, %v1078
        %v1266 = vmul.f32 %v1263, %v1079
        %v1270 = vrot.slane %v1264, 1
        %v1271 = vrot.slane %v1265, 1
        %v1272 = vsel %vm382, %v1270, %v1271
        %v1273 = vrot.slane %v1266, 1
        %v1274 = vsel %vm382, %v1271, %v1273
        %v1277 = vadd.f32 %v1231, %v1272
        %v1278 = vadd.f32 %v1232, %v1274
        %v1279 = vld [vmem:[%s0 + $0x3d] sm:$0x1]
        %v1280 = vperm.slane %v1279, 0
        %v1281 = vmul.f32 %v1280, %v1077
        %v1282 = vmul.f32 %v1280, %v1078
        %v1283 = vmul.f32 %v1280, %v1079
        %v1287 = vrot.slane %v1281, 1
        %v1288 = vrot.slane %v1282, 1
        %v1289 = vsel %vm382, %v1287, %v1288
        %v1290 = vrot.slane %v1283, 1
        %v1291 = vsel %vm382, %v1288, %v1290
        %v1294 = vadd.f32 %v1237, %v1289
        %v1295 = vadd.f32 %v1238, %v1291
        %v1296 = vld [vmem:[%s0 + $0x46] sm:$0x1]
        %v1297 = vperm.slane %v1296, 0
        %v1298 = vmul.f32 %v1297, %v1077
        %v1299 = vmul.f32 %v1297, %v1078
        %v1300 = vmul.f32 %v1297, %v1079
        %v1304 = vrot.slane %v1298, 1
        %v1305 = vrot.slane %v1299, 1
        %v1306 = vsel %vm382, %v1304, %v1305
        %v1307 = vrot.slane %v1300, 1
        %v1308 = vsel %vm382, %v1305, %v1307
        %v1311 = vadd.f32 %v1243, %v1306
        %v1312 = vadd.f32 %v1244, %v1308
        %v1313 = vld [vmem:[%s0 + $0x2c] sm:$0x1]
        %v1314 = vperm.slane %v1313, 0
        %v1315 = vmul.f32 %v1314, %v1125
        %v1316 = vmul.f32 %v1314, %v1126
        %v1317 = vmul.f32 %v1314, %v1127
        %v1321 = vrot.slane %v1315, 1
        %v1322 = vrot.slane %v1316, 1
        %v1323 = vsel %vm382, %v1321, %v1322
        %v1324 = vrot.slane %v1317, 1
        %v1325 = vsel %vm382, %v1322, %v1324
        %v1328 = vadd.f32 %v1260, %v1323
        %v1329 = vadd.f32 %v1261, %v1325
        %v1330 = vld [vmem:[%s0 + $0x35] sm:$0x1]
        %v1331 = vperm.slane %v1330, 0
        %v1332 = vmul.f32 %v1331, %v1125
        %v1333 = vmul.f32 %v1331, %v1126
        %v1334 = vmul.f32 %v1331, %v1127
        %v1338 = vrot.slane %v1332, 1
        %v1339 = vrot.slane %v1333, 1
        %v1340 = vsel %vm382, %v1338, %v1339
        %v1341 = vrot.slane %v1334, 1
        %v1342 = vsel %vm382, %v1339, %v1341
        %v1345 = vadd.f32 %v1277, %v1340
        %v1346 = vadd.f32 %v1278, %v1342
        %v1347 = vld [vmem:[%s0 + $0x3e] sm:$0x1]
        %v1348 = vperm.slane %v1347, 0
        %v1349 = vmul.f32 %v1348, %v1125
        %v1350 = vmul.f32 %v1348, %v1126
        %v1351 = vmul.f32 %v1348, %v1127
        %v1355 = vrot.slane %v1349, 1
        %v1356 = vrot.slane %v1350, 1
        %v1357 = vsel %vm382, %v1355, %v1356
        %v1358 = vrot.slane %v1351, 1
        %v1359 = vsel %vm382, %v1356, %v1358
        %v1362 = vadd.f32 %v1294, %v1357
        %v1363 = vadd.f32 %v1295, %v1359
        %v1364 = vld [vmem:[%s0 + $0x47] sm:$0x1]
        %v1365 = vperm.slane %v1364, 0
        %v1366 = vmul.f32 %v1365, %v1125
        %v1367 = vmul.f32 %v1365, %v1126
        %v1368 = vmul.f32 %v1365, %v1127
        %v1372 = vrot.slane %v1366, 1
        %v1373 = vrot.slane %v1367, 1
        %v1374 = vsel %vm382, %v1372, %v1373
        %v1375 = vrot.slane %v1368, 1
        %v1376 = vsel %vm382, %v1373, %v1375
        %v1379 = vadd.f32 %v1311, %v1374
        %v1380 = vadd.f32 %v1312, %v1376
        %v1381 = vld [vmem:[%s0 + $0x2d] sm:$0x1]
        %v1382 = vperm.slane %v1381, 0
        %v1383 = vmul.f32 %v1382, %v1170
        %v1384 = vmul.f32 %v1382, %v1171
        %v1385 = vmul.f32 %v1382, %v1172
        %v1389 = vrot.slane %v1383, 1
        %v1390 = vrot.slane %v1384, 1
        %v1391 = vsel %vm382, %v1389, %v1390
        %v1392 = vrot.slane %v1385, 1
        %v1393 = vsel %vm382, %v1390, %v1392
        %v1396 = vadd.f32 %v1328, %v1391
        %v1397 = vadd.f32 %v1329, %v1393
        %v1398 = vld [vmem:[%s0 + $0x36] sm:$0x1]
        %v1399 = vperm.slane %v1398, 0
        %v1400 = vmul.f32 %v1399, %v1170
        %v1401 = vmul.f32 %v1399, %v1171
        %v1402 = vmul.f32 %v1399, %v1172
        %v1406 = vrot.slane %v1400, 1
        %v1407 = vrot.slane %v1401, 1
        %v1408 = vsel %vm382, %v1406, %v1407
        %v1409 = vrot.slane %v1402, 1
        %v1410 = vsel %vm382, %v1407, %v1409
        %v1413 = vadd.f32 %v1345, %v1408
        %v1414 = vadd.f32 %v1346, %v1410
        %v1415 = vld [vmem:[%s0 + $0x3f] sm:$0x1]
        %v1416 = vperm.slane %v1415, 0
        %v1417 = vmul.f32 %v1416, %v1170
        %v1418 = vmul.f32 %v1416, %v1171
        %v1419 = vmul.f32 %v1416, %v1172
        %v1423 = vrot.slane %v1417, 1
        %v1424 = vrot.slane %v1418, 1
        %v1425 = vsel %vm382, %v1423, %v1424
        %v1426 = vrot.slane %v1419, 1
        %v1427 = vsel %vm382, %v1424, %v1426
        %v1430 = vadd.f32 %v1362, %v1425
        %v1431 = vadd.f32 %v1363, %v1427
        %v1432 = vld [vmem:[%s0 + $0x48] sm:$0x1]
        %v1433 = vperm.slane %v1432, 0
        %v1434 = vmul.f32 %v1433, %v1170
        %v1435 = vmul.f32 %v1433, %v1171
        %v1436 = vmul.f32 %v1433, %v1172
        %v1440 = vrot.slane %v1434, 1
        %v1441 = vrot.slane %v1435, 1
        %v1442 = vsel %vm382, %v1440, %v1441
        %v1443 = vrot.slane %v1436, 1
        %v1444 = vsel %vm382, %v1441, %v1443
        %v1447 = vadd.f32 %v1379, %v1442
        %v1448 = vadd.f32 %v1380, %v1444
        %v1449 = vld [vmem:[%s0 + $0x2e] sm:$0x1]
        %v1450 = vperm.slane %v1449, 0
        %v1451 = vmul.f32 %v1450, %v1077
        %v1452 = vmul.f32 %v1450, %v1078
        %v1453 = vmul.f32 %v1450, %v1079
        %v1457 = vrot.slane %v1451, 2
        %v1458 = vrot.slane %v1452, 2
        %v1459 = vsel %vm611, %v1457, %v1458
        %v1460 = vrot.slane %v1453, 2
        %v1461 = vsel %vm611, %v1458, %v1460
        %v1464 = vadd.f32 %v1396, %v1459
        %v1465 = vadd.f32 %v1397, %v1461
        %v1466 = vld [vmem:[%s0 + $0x37] sm:$0x1]
        %v1467 = vperm.slane %v1466, 0
        %v1468 = vmul.f32 %v1467, %v1077
        %v1469 = vmul.f32 %v1467, %v1078
        %v1470 = vmul.f32 %v1467, %v1079
        %v1474 = vrot.slane %v1468, 2
        %v1475 = vrot.slane %v1469, 2
        %v1476 = vsel %vm611, %v1474, %v1475
        %v1477 = vrot.slane %v1470, 2
        %v1478 = vsel %vm611, %v1475, %v1477
        %v1481 = vadd.f32 %v1413, %v1476
        %v1482 = vadd.f32 %v1414, %v1478
        %v1483 = vld [vmem:[%s0 + $0x40] sm:$0x1]
        %v1484 = vperm.slane %v1483, 0
        %v1485 = vmul.f32 %v1484, %v1077
        %v1486 = vmul.f32 %v1484, %v1078
        %v1487 = vmul.f32 %v1484, %v1079
        %v1491 = vrot.slane %v1485, 2
        %v1492 = vrot.slane %v1486, 2
        %v1493 = vsel %vm611, %v1491, %v1492
        %v1494 = vrot.slane %v1487, 2
        %v1495 = vsel %vm611, %v1492, %v1494
        %v1498 = vadd.f32 %v1430, %v1493
        %v1499 = vadd.f32 %v1431, %v1495
        %v1500 = vld [vmem:[%s0 + $0x49] sm:$0x1]
        %v1501 = vperm.slane %v1500, 0
        %v1502 = vmul.f32 %v1501, %v1077
        %v1503 = vmul.f32 %v1501, %v1078
        %v1504 = vmul.f32 %v1501, %v1079
        %v1508 = vrot.slane %v1502, 2
        %v1509 = vrot.slane %v1503, 2
        %v1510 = vsel %vm611, %v1508, %v1509
        %v1511 = vrot.slane %v1504, 2
        %v1512 = vsel %vm611, %v1509, %v1511
        %v1515 = vadd.f32 %v1447, %v1510
        %v1516 = vadd.f32 %v1448, %v1512
        %v1517 = vld [vmem:[%s0 + $0x2f] sm:$0x1]
        %v1518 = vperm.slane %v1517, 0
        %v1519 = vmul.f32 %v1518, %v1125
        %v1520 = vmul.f32 %v1518, %v1126
        %v1521 = vmul.f32 %v1518, %v1127
        %v1525 = vrot.slane %v1519, 2
        %v1526 = vrot.slane %v1520, 2
        %v1527 = vsel %vm611, %v1525, %v1526
        %v1528 = vrot.slane %v1521, 2
        %v1529 = vsel %vm611, %v1526, %v1528
        %v1532 = vadd.f32 %v1464, %v1527
        %v1533 = vadd.f32 %v1465, %v1529
        %v1534 = vld [vmem:[%s0 + $0x38] sm:$0x1]
        %v1535 = vperm.slane %v1534, 0
        %v1536 = vmul.f32 %v1535, %v1125
        %v1537 = vmul.f32 %v1535, %v1126
        %v1538 = vmul.f32 %v1535, %v1127
        %v1542 = vrot.slane %v1536, 2
        %v1543 = vrot.slane %v1537, 2
        %v1544 = vsel %vm611, %v1542, %v1543
        %v1545 = vrot.slane %v1538, 2
        %v1546 = vsel %vm611, %v1543, %v1545
        %v1549 = vadd.f32 %v1481, %v1544
        %v1550 = vadd.f32 %v1482, %v1546
        %v1551 = vld [vmem:[%s0 + $0x41] sm:$0x1]
        %v1552 = vperm.slane %v1551, 0
        %v1553 = vmul.f32 %v1552, %v1125
        %v1554 = vmul.f32 %v1552, %v1126
        %v1555 = vmul.f32 %v1552, %v1127
        %v1559 = vrot.slane %v1553, 2
        %v1560 = vrot.slane %v1554, 2
        %v1561 = vsel %vm611, %v1559, %v1560
        %v1562 = vrot.slane %v1555, 2
        %v1563 = vsel %vm611, %v1560, %v1562
        %v1566 = vadd.f32 %v1498, %v1561
        %v1567 = vadd.f32 %v1499, %v1563
        %v1568 = vld [vmem:[%s0 + $0x4a] sm:$0x1]
        %v1569 = vperm.slane %v1568, 0
        %v1570 = vmul.f32 %v1569, %v1125
        %v1571 = vmul.f32 %v1569, %v1126
        %v1572 = vmul.f32 %v1569, %v1127
        %v1576 = vrot.slane %v1570, 2
        %v1577 = vrot.slane %v1571, 2
        %v1578 = vsel %vm611, %v1576, %v1577
        %v1579 = vrot.slane %v1572, 2
        %v1580 = vsel %vm611, %v1577, %v1579
        %v1583 = vadd.f32 %v1515, %v1578
        %v1584 = vadd.f32 %v1516, %v1580
        %v1585 = vld [vmem:[%s0 + $0x30] sm:$0x1]
        %v1586 = vperm.slane %v1585, 0
        %v1587 = vmul.f32 %v1586, %v1170
        %v1588 = vmul.f32 %v1586, %v1171
        %v1589 = vmul.f32 %v1586, %v1172
        %v1593 = vrot.slane %v1587, 2
        %v1594 = vrot.slane %v1588, 2
        %v1595 = vsel %vm611, %v1593, %v1594
        %v1596 = vrot.slane %v1589, 2
        %v1597 = vsel %vm611, %v1594, %v1596
        %v1600 = vadd.f32 %v1532, %v1595
        %v1601 = vadd.f32 %v1533, %v1597
        %v1602 = vld [vmem:[%s0 + $0x39] sm:$0x1]
        %v1603 = vperm.slane %v1602, 0
        %v1604 = vmul.f32 %v1603, %v1170
        %v1605 = vmul.f32 %v1603, %v1171
        %v1606 = vmul.f32 %v1603, %v1172
        %v1610 = vrot.slane %v1604, 2
        %v1611 = vrot.slane %v1605, 2
        %v1612 = vsel %vm611, %v1610, %v1611
        %v1613 = vrot.slane %v1606, 2
        %v1614 = vsel %vm611, %v1611, %v1613
        %v1617 = vadd.f32 %v1549, %v1612
        %v1618 = vadd.f32 %v1550, %v1614
        %v1619 = vld [vmem:[%s0 + $0x42] sm:$0x1]
        %v1620 = vperm.slane %v1619, 0
        %v1621 = vmul.f32 %v1620, %v1170
        %v1622 = vmul.f32 %v1620, %v1171
        %v1623 = vmul.f32 %v1620, %v1172
        %v1627 = vrot.slane %v1621, 2
        %v1628 = vrot.slane %v1622, 2
        %v1629 = vsel %vm611, %v1627, %v1628
        %v1630 = vrot.slane %v1623, 2
        %v1631 = vsel %vm611, %v1628, %v1630
        %v1634 = vadd.f32 %v1566, %v1629
        %v1635 = vadd.f32 %v1567, %v1631
        %v1636 = vld [vmem:[%s0 + $0x4b] sm:$0x1]
        %v1637 = vperm.slane %v1636, 0
        %v1638 = vmul.f32 %v1637, %v1170
        %v1639 = vmul.f32 %v1637, %v1171
        %v1640 = vmul.f32 %v1637, %v1172
        %v1644 = vrot.slane %v1638, 2
        %v1645 = vrot.slane %v1639, 2
        %v1646 = vsel %vm611, %v1644, %v1645
        %v1647 = vrot.slane %v1640, 2
        %v1648 = vsel %vm611, %v1645, %v1647
        %v1651 = vadd.f32 %v1583, %v1646
        %v1652 = vadd.f32 %v1584, %v1648
        %1655 = vrot.lane.b32.xlu0 %v1600, 112
        %v1656 = vpop.permute.xlu0 %1655
        %1657 = vrot.lane.b32.xlu0 %v1601, 112
        %v1658 = vpop.permute.xlu0 %1657
        %v1661 = vadd.f32 %v1600, %v1656
        %v1662 = vadd.f32 %v1601, %v1658
        %1663 = vrot.lane.b32.xlu0 %v1600, 96
        %v1664 = vpop.permute.xlu0 %1663
        %1665 = vrot.lane.b32.xlu0 %v1601, 96
        %v1666 = vpop.permute.xlu0 %1665
        %v1669 = vadd.f32 %v1661, %v1664
        %v1670 = vadd.f32 %v1662, %v1666
        %1671 = vrot.lane.b32.xlu0 %v1600, 80
        %v1672 = vpop.permute.xlu0 %1671
        %1673 = vrot.lane.b32.xlu0 %v1601, 80
        %v1674 = vpop.permute.xlu0 %1673
        %v1677 = vadd.f32 %v1669, %v1672
        %v1678 = vadd.f32 %v1670, %v1674
        %vm1681 = vcmask 1041408
        %v1682 = vrot.slane %v1677, 6
        %v1683 = vrot.slane %v1678, 6
        %v1684 = vsel %vm1681, %v1682, %v1683
        %1685 = vrot.lane.b32.xlu0 %v1682, 2
        %v1686 = vpop.permute.xlu0 %1685
        %1687 = vrot.lane.b32.xlu0 %v1684, 2
        %v1688 = vpop.permute.xlu0 %1687
        %1689 = vrot.lane.b32.xlu0 %v1683, 2
        %v1690 = vpop.permute.xlu0 %1689
        %v1694 = vadd.f32 %v267, %v1686
        %v1695 = vadd.f32 %v268, %v1688
        %v1696 = vadd.f32 %v269, %v1690
        %v1697 = vld [vmem:[%s0 + $0x4c] sm:$0x1]
        %v1698 = vperm.slane %v1697, 0
        %1700 = vrot.lane.b32.xlu0 %v1698, 2
        %v1701 = vpop.permute.xlu0 %1700
        %v1703 = vadd.f32 %v1694, %v1701
        %v1704 = vadd.f32 %v1695, %v1701
        %v1705 = vadd.f32 %v1696, %v1701
        %1708 = vrot.lane.b32.xlu0 %v1617, 112
        %v1709 = vpop.permute.xlu0 %1708
        %1710 = vrot.lane.b32.xlu0 %v1618, 112
        %v1711 = vpop.permute.xlu0 %1710
        %v1714 = vadd.f32 %v1617, %v1709
        %v1715 = vadd.f32 %v1618, %v1711
        %1716 = vrot.lane.b32.xlu0 %v1617, 96
        %v1717 = vpop.permute.xlu0 %1716
        %1718 = vrot.lane.b32.xlu0 %v1618, 96
        %v1719 = vpop.permute.xlu0 %1718
        %v1722 = vadd.f32 %v1714, %v1717
        %v1723 = vadd.f32 %v1715, %v1719
        %1724 = vrot.lane.b32.xlu0 %v1617, 80
        %v1725 = vpop.permute.xlu0 %1724
        %1726 = vrot.lane.b32.xlu0 %v1618, 80
        %v1727 = vpop.permute.xlu0 %1726
        %v1730 = vadd.f32 %v1722, %v1725
        %v1731 = vadd.f32 %v1723, %v1727
        %v1734 = vrot.slane %v1730, 6
        %v1735 = vrot.slane %v1731, 6
        %v1736 = vsel %vm1681, %v1734, %v1735
        %1737 = vrot.lane.b32.xlu0 %v1734, 20
        %v1738 = vpop.permute.xlu0 %1737
        %1739 = vrot.lane.b32.xlu0 %v1736, 20
        %v1740 = vpop.permute.xlu0 %1739
        %1741 = vrot.lane.b32.xlu0 %v1735, 20
        %v1742 = vpop.permute.xlu0 %1741
        %v1746 = vadd.f32 %v267, %v1738
        %v1747 = vadd.f32 %v268, %v1740
        %v1748 = vadd.f32 %v269, %v1742
        %v1749 = vld [vmem:[%s0 + $0x4d] sm:$0x1]
        %v1750 = vperm.slane %v1749, 0
        %1752 = vrot.lane.b32.xlu0 %v1750, 20
        %v1753 = vpop.permute.xlu0 %1752
        %v1755 = vadd.f32 %v1746, %v1753
        %v1756 = vadd.f32 %v1747, %v1753
        %v1757 = vadd.f32 %v1748, %v1753
        %1760 = vrot.lane.b32.xlu0 %v1634, 112
        %v1761 = vpop.permute.xlu0 %1760
        %1762 = vrot.lane.b32.xlu0 %v1635, 112
        %v1763 = vpop.permute.xlu0 %1762
        %v1766 = vadd.f32 %v1634, %v1761
        %v1767 = vadd.f32 %v1635, %v1763
        %1768 = vrot.lane.b32.xlu0 %v1634, 96
        %v1769 = vpop.permute.xlu0 %1768
        %1770 = vrot.lane.b32.xlu0 %v1635, 96
        %v1771 = vpop.permute.xlu0 %1770
        %v1774 = vadd.f32 %v1766, %v1769
        %v1775 = vadd.f32 %v1767, %v1771
        %1776 = vrot.lane.b32.xlu0 %v1634, 80
        %v1777 = vpop.permute.xlu0 %1776
        %1778 = vrot.lane.b32.xlu0 %v1635, 80
        %v1779 = vpop.permute.xlu0 %1778
        %v1782 = vadd.f32 %v1774, %v1777
        %v1783 = vadd.f32 %v1775, %v1779
        %v1786 = vrot.slane %v1782, 6
        %v1787 = vrot.slane %v1783, 6
        %v1788 = vsel %vm1681, %v1786, %v1787
        %1789 = vrot.lane.b32.xlu0 %v1786, 38
        %v1790 = vpop.permute.xlu0 %1789
        %1791 = vrot.lane.b32.xlu0 %v1788, 38
        %v1792 = vpop.permute.xlu0 %1791
        %1793 = vrot.lane.b32.xlu0 %v1787, 38
        %v1794 = vpop.permute.xlu0 %1793
        %v1798 = vadd.f32 %v267, %v1790
        %v1799 = vadd.f32 %v268, %v1792
        %v1800 = vadd.f32 %v269, %v1794
        %v1801 = vld [vmem:[%s0 + $0x4e] sm:$0x1]
        %v1802 = vperm.slane %v1801, 0
        %1804 = vrot.lane.b32.xlu0 %v1802, 38
        %v1805 = vpop.permute.xlu0 %1804
        %v1807 = vadd.f32 %v1798, %v1805
        %v1808 = vadd.f32 %v1799, %v1805
        %v1809 = vadd.f32 %v1800, %v1805
        %1812 = vrot.lane.b32.xlu0 %v1651, 112
        %v1813 = vpop.permute.xlu0 %1812
        %1814 = vrot.lane.b32.xlu0 %v1652, 112
        %v1815 = vpop.permute.xlu0 %1814
        %v1818 = vadd.f32 %v1651, %v1813
        %v1819 = vadd.f32 %v1652, %v1815
        %1820 = vrot.lane.b32.xlu0 %v1651, 96
        %v1821 = vpop.permute.xlu0 %1820
        %1822 = vrot.lane.b32.xlu0 %v1652, 96
        %v1823 = vpop.permute.xlu0 %1822
        %v1826 = vadd.f32 %v1818, %v1821
        %v1827 = vadd.f32 %v1819, %v1823
        %1828 = vrot.lane.b32.xlu0 %v1651, 80
        %v1829 = vpop.permute.xlu0 %1828
        %1830 = vrot.lane.b32.xlu0 %v1652, 80
        %v1831 = vpop.permute.xlu0 %1830
        %v1834 = vadd.f32 %v1826, %v1829
        %v1835 = vadd.f32 %v1827, %v1831
        %v1838 = vrot.slane %v1834, 6
        %v1839 = vrot.slane %v1835, 6
        %v1840 = vsel %vm1681, %v1838, %v1839
        %1841 = vrot.lane.b32.xlu0 %v1838, 56
        %v1842 = vpop.permute.xlu0 %1841
        %1843 = vrot.lane.b32.xlu0 %v1840, 56
        %v1844 = vpop.permute.xlu0 %1843
        %1845 = vrot.lane.b32.xlu0 %v1839, 56
        %v1846 = vpop.permute.xlu0 %1845
        %v1850 = vadd.f32 %v267, %v1842
        %v1851 = vadd.f32 %v268, %v1844
        %v1852 = vadd.f32 %v269, %v1846
        %v1853 = vld [vmem:[%s0 + $0x4f] sm:$0x1]
        %v1854 = vperm.slane %v1853, 0
        %1856 = vrot.lane.b32.xlu0 %v1854, 56
        %v1857 = vpop.permute.xlu0 %1856
        %v1859 = vadd.f32 %v1850, %v1857
        %v1860 = vadd.f32 %v1851, %v1857
        %v1861 = vadd.f32 %v1852, %v1857
        %1865 = vrot.lane.b32.xlu0 %v1755, 110
        %v1866 = vpop.permute.xlu0 %1865
        %1867 = vrot.lane.b32.xlu0 %v1756, 110
        %v1868 = vpop.permute.xlu0 %1867
        %1869 = vrot.lane.b32.xlu0 %v1757, 110
        %v1870 = vpop.permute.xlu0 %1869
        %1877 = vrot.lane.b32.xlu0 %v1807, 92
        %v1878 = vpop.permute.xlu0 %1877
        %1879 = vrot.lane.b32.xlu0 %v1808, 92
        %v1880 = vpop.permute.xlu0 %1879
        %1881 = vrot.lane.b32.xlu0 %v1809, 92
        %v1882 = vpop.permute.xlu0 %1881
        %1889 = vrot.lane.b32.xlu0 %v1859, 74
        %v1890 = vpop.permute.xlu0 %1889
        %1891 = vrot.lane.b32.xlu0 %v1860, 74
        %v1892 = vpop.permute.xlu0 %1891
        %1893 = vrot.lane.b32.xlu0 %v1861, 74
        %v1894 = vpop.permute.xlu0 %1893
        %v1898 = vpack.c.bf16 %v1703, %v1703
        %v1899 = vpack.c.bf16 %v1704, %v1704
        %v1900 = vpack.c.bf16 %v1705, %v1705
        %v1901 = vpack.c.bf16 %v1866, %v1866
        %v1902 = vpack.c.bf16 %v1868, %v1868
        %v1903 = vpack.c.bf16 %v1870, %v1870
        %v1904 = vpack.c.bf16 %v1878, %v1878
        %v1905 = vpack.c.bf16 %v1880, %v1880
        %v1906 = vpack.c.bf16 %v1882, %v1882
        %v1907 = vpack.c.bf16 %v1890, %v1890
        %v1908 = vpack.c.bf16 %v1892, %v1892
        %v1909 = vpack.c.bf16 %v1894, %v1894
        %v1910 = vld [vmem:[%s257] sm:$0xff]
        %v1911 = vld [vmem:[%s257 + $0x8] sm:$0xff]
        %v1912 = vld [vmem:[%s257 + $0x10] sm:$0xf]
        %s1913 = scalar_lea.vmem %s257, 24
        %v1914 = vld [vmem:[%s1913] sm:$0xff]
        %v1915 = vld [vmem:[%s1913 + $0x8] sm:$0xff]
        %v1916 = vld [vmem:[%s1913 + $0x10] sm:$0xf]
        %s1917 = scalar_lea.vmem %s257, 48
        %v1918 = vld [vmem:[%s1917] sm:$0xff]
        %v1919 = vld [vmem:[%s1917 + $0x8] sm:$0xff]
        %v1920 = vld [vmem:[%s1917 + $0x10] sm:$0xf]
        %v1921 = vld [vmem:[%s0 + $0x50] sm:$0x1]
        %v1922 = vperm.slane %v1921, 0
        %v1923 = vmul.f32 %v1922, %v1910
        %v1924 = vmul.f32 %v1922, %v1911
        %v1925 = vmul.f32 %v1922, %v1912
        %v1926 = vadd.f32 %v1923, 0.0
        %v1927 = vadd.f32 %v1924, 0.0
        %v1928 = vadd.f32 %v1925, 0.0
        %v1929 = vld [vmem:[%s0 + $0x59] sm:$0x1]
        %v1930 = vperm.slane %v1929, 0
        %v1931 = vmul.f32 %v1930, %v1910
        %v1932 = vmul.f32 %v1930, %v1911
        %v1933 = vmul.f32 %v1930, %v1912
        %v1934 = vadd.f32 %v1931, 0.0
        %v1935 = vadd.f32 %v1932, 0.0
        %v1936 = vadd.f32 %v1933, 0.0
        %v1937 = vld [vmem:[%s0 + $0x62] sm:$0x1]
        %v1938 = vperm.slane %v1937, 0
        %v1939 = vmul.f32 %v1938, %v1910
        %v1940 = vmul.f32 %v1938, %v1911
        %v1941 = vmul.f32 %v1938, %v1912
        %v1942 = vadd.f32 %v1939, 0.0
        %v1943 = vadd.f32 %v1940, 0.0
        %v1944 = vadd.f32 %v1941, 0.0
        %v1945 = vld [vmem:[%s0 + $0x6b] sm:$0x1]
        %v1946 = vperm.slane %v1945, 0
        %v1947 = vmul.f32 %v1946, %v1910
        %v1948 = vmul.f32 %v1946, %v1911
        %v1949 = vmul.f32 %v1946, %v1912
        %v1950 = vadd.f32 %v1947, 0.0
        %v1951 = vadd.f32 %v1948, 0.0
        %v1952 = vadd.f32 %v1949, 0.0
        %v1953 = vld [vmem:[%s0 + $0x51] sm:$0x1]
        %v1954 = vperm.slane %v1953, 0
        %v1955 = vmul.f32 %v1954, %v1914
        %v1956 = vmul.f32 %v1954, %v1915
        %v1957 = vmul.f32 %v1954, %v1916
        %v1958 = vadd.f32 %v1926, %v1955
        %v1959 = vadd.f32 %v1927, %v1956
        %v1960 = vadd.f32 %v1928, %v1957
        %v1961 = vld [vmem:[%s0 + $0x5a] sm:$0x1]
        %v1962 = vperm.slane %v1961, 0
        %v1963 = vmul.f32 %v1962, %v1914
        %v1964 = vmul.f32 %v1962, %v1915
        %v1965 = vmul.f32 %v1962, %v1916
        %v1966 = vadd.f32 %v1934, %v1963
        %v1967 = vadd.f32 %v1935, %v1964
        %v1968 = vadd.f32 %v1936, %v1965
        %v1969 = vld [vmem:[%s0 + $0x63] sm:$0x1]
        %v1970 = vperm.slane %v1969, 0
        %v1971 = vmul.f32 %v1970, %v1914
        %v1972 = vmul.f32 %v1970, %v1915
        %v1973 = vmul.f32 %v1970, %v1916
        %v1974 = vadd.f32 %v1942, %v1971
        %v1975 = vadd.f32 %v1943, %v1972
        %v1976 = vadd.f32 %v1944, %v1973
        %v1977 = vld [vmem:[%s0 + $0x6c] sm:$0x1]
        %v1978 = vperm.slane %v1977, 0
        %v1979 = vmul.f32 %v1978, %v1914
        %v1980 = vmul.f32 %v1978, %v1915
        %v1981 = vmul.f32 %v1978, %v1916
        %v1982 = vadd.f32 %v1950, %v1979
        %v1983 = vadd.f32 %v1951, %v1980
        %v1984 = vadd.f32 %v1952, %v1981
        %v1985 = vld [vmem:[%s0 + $0x52] sm:$0x1]
        %v1986 = vperm.slane %v1985, 0
        %v1987 = vmul.f32 %v1986, %v1918
        %v1988 = vmul.f32 %v1986, %v1919
        %v1989 = vmul.f32 %v1986, %v1920
        %v1990 = vadd.f32 %v1958, %v1987
        %v1991 = vadd.f32 %v1959, %v1988
        %v1992 = vadd.f32 %v1960, %v1989
        %v1993 = vld [vmem:[%s0 + $0x5b] sm:$0x1]
        %v1994 = vperm.slane %v1993, 0
        %v1995 = vmul.f32 %v1994, %v1918
        %v1996 = vmul.f32 %v1994, %v1919
        %v1997 = vmul.f32 %v1994, %v1920
        %v1998 = vadd.f32 %v1966, %v1995
        %v1999 = vadd.f32 %v1967, %v1996
        %v2000 = vadd.f32 %v1968, %v1997
        %v2001 = vld [vmem:[%s0 + $0x64] sm:$0x1]
        %v2002 = vperm.slane %v2001, 0
        %v2003 = vmul.f32 %v2002, %v1918
        %v2004 = vmul.f32 %v2002, %v1919
        %v2005 = vmul.f32 %v2002, %v1920
        %v2006 = vadd.f32 %v1974, %v2003
        %v2007 = vadd.f32 %v1975, %v2004
        %v2008 = vadd.f32 %v1976, %v2005
        %v2009 = vld [vmem:[%s0 + $0x6d] sm:$0x1]
        %v2010 = vperm.slane %v2009, 0
        %v2011 = vmul.f32 %v2010, %v1918
        %v2012 = vmul.f32 %v2010, %v1919
        %v2013 = vmul.f32 %v2010, %v1920
        %v2014 = vadd.f32 %v1982, %v2011
        %v2015 = vadd.f32 %v1983, %v2012
        %v2016 = vadd.f32 %v1984, %v2013
        %v2017 = vld [vmem:[%s0 + $0x53] sm:$0x1]
        %v2018 = vperm.slane %v2017, 0
        %v2019 = vmul.f32 %v2018, %v1910
        %v2020 = vmul.f32 %v2018, %v1911
        %v2021 = vmul.f32 %v2018, %v1912
        %v2025 = vrot.slane %v2019, 1
        %v2026 = vrot.slane %v2020, 1
        %v2027 = vsel %vm382, %v2025, %v2026
        %v2028 = vrot.slane %v2021, 1
        %v2029 = vsel %vm382, %v2026, %v2028
        %v2033 = vadd.f32 %v1990, %v2027
        %v2034 = vadd.f32 %v1991, %v2029
        %v2035 = vadd.f32 %v1992, %v2028
        %v2036 = vld [vmem:[%s0 + $0x5c] sm:$0x1]
        %v2037 = vperm.slane %v2036, 0
        %v2038 = vmul.f32 %v2037, %v1910
        %v2039 = vmul.f32 %v2037, %v1911
        %v2040 = vmul.f32 %v2037, %v1912
        %v2044 = vrot.slane %v2038, 1
        %v2045 = vrot.slane %v2039, 1
        %v2046 = vsel %vm382, %v2044, %v2045
        %v2047 = vrot.slane %v2040, 1
        %v2048 = vsel %vm382, %v2045, %v2047
        %v2052 = vadd.f32 %v1998, %v2046
        %v2053 = vadd.f32 %v1999, %v2048
        %v2054 = vadd.f32 %v2000, %v2047
        %v2055 = vld [vmem:[%s0 + $0x65] sm:$0x1]
        %v2056 = vperm.slane %v2055, 0
        %v2057 = vmul.f32 %v2056, %v1910
        %v2058 = vmul.f32 %v2056, %v1911
        %v2059 = vmul.f32 %v2056, %v1912
        %v2063 = vrot.slane %v2057, 1
        %v2064 = vrot.slane %v2058, 1
        %v2065 = vsel %vm382, %v2063, %v2064
        %v2066 = vrot.slane %v2059, 1
        %v2067 = vsel %vm382, %v2064, %v2066
        %v2071 = vadd.f32 %v2006, %v2065
        %v2072 = vadd.f32 %v2007, %v2067
        %v2073 = vadd.f32 %v2008, %v2066
        %v2074 = vld [vmem:[%s0 + $0x6e] sm:$0x1]
        %v2075 = vperm.slane %v2074, 0
        %v2076 = vmul.f32 %v2075, %v1910
        %v2077 = vmul.f32 %v2075, %v1911
        %v2078 = vmul.f32 %v2075, %v1912
        %v2082 = vrot.slane %v2076, 1
        %v2083 = vrot.slane %v2077, 1
        %v2084 = vsel %vm382, %v2082, %v2083
        %v2085 = vrot.slane %v2078, 1
        %v2086 = vsel %vm382, %v2083, %v2085
        %v2090 = vadd.f32 %v2014, %v2084
        %v2091 = vadd.f32 %v2015, %v2086
        %v2092 = vadd.f32 %v2016, %v2085
        %v2093 = vld [vmem:[%s0 + $0x54] sm:$0x1]
        %v2094 = vperm.slane %v2093, 0
        %v2095 = vmul.f32 %v2094, %v1914
        %v2096 = vmul.f32 %v2094, %v1915
        %v2097 = vmul.f32 %v2094, %v1916
        %v2101 = vrot.slane %v2095, 1
        %v2102 = vrot.slane %v2096, 1
        %v2103 = vsel %vm382, %v2101, %v2102
        %v2104 = vrot.slane %v2097, 1
        %v2105 = vsel %vm382, %v2102, %v2104
        %v2109 = vadd.f32 %v2033, %v2103
        %v2110 = vadd.f32 %v2034, %v2105
        %v2111 = vadd.f32 %v2035, %v2104
        %v2112 = vld [vmem:[%s0 + $0x5d] sm:$0x1]
        %v2113 = vperm.slane %v2112, 0
        %v2114 = vmul.f32 %v2113, %v1914
        %v2115 = vmul.f32 %v2113, %v1915
        %v2116 = vmul.f32 %v2113, %v1916
        %v2120 = vrot.slane %v2114, 1
        %v2121 = vrot.slane %v2115, 1
        %v2122 = vsel %vm382, %v2120, %v2121
        %v2123 = vrot.slane %v2116, 1
        %v2124 = vsel %vm382, %v2121, %v2123
        %v2128 = vadd.f32 %v2052, %v2122
        %v2129 = vadd.f32 %v2053, %v2124
        %v2130 = vadd.f32 %v2054, %v2123
        %v2131 = vld [vmem:[%s0 + $0x66] sm:$0x1]
        %v2132 = vperm.slane %v2131, 0
        %v2133 = vmul.f32 %v2132, %v1914
        %v2134 = vmul.f32 %v2132, %v1915
        %v2135 = vmul.f32 %v2132, %v1916
        %v2139 = vrot.slane %v2133, 1
        %v2140 = vrot.slane %v2134, 1
        %v2141 = vsel %vm382, %v2139, %v2140
        %v2142 = vrot.slane %v2135, 1
        %v2143 = vsel %vm382, %v2140, %v2142
        %v2147 = vadd.f32 %v2071, %v2141
        %v2148 = vadd.f32 %v2072, %v2143
        %v2149 = vadd.f32 %v2073, %v2142
        %v2150 = vld [vmem:[%s0 + $0x6f] sm:$0x1]
        %v2151 = vperm.slane %v2150, 0
        %v2152 = vmul.f32 %v2151, %v1914
        %v2153 = vmul.f32 %v2151, %v1915
        %v2154 = vmul.f32 %v2151, %v1916
        %v2158 = vrot.slane %v2152, 1
        %v2159 = vrot.slane %v2153, 1
        %v2160 = vsel %vm382, %v2158, %v2159
        %v2161 = vrot.slane %v2154, 1
        %v2162 = vsel %vm382, %v2159, %v2161
        %v2166 = vadd.f32 %v2090, %v2160
        %v2167 = vadd.f32 %v2091, %v2162
        %v2168 = vadd.f32 %v2092, %v2161
        %v2169 = vld [vmem:[%s0 + $0x55] sm:$0x1]
        %v2170 = vperm.slane %v2169, 0
        %v2171 = vmul.f32 %v2170, %v1918
        %v2172 = vmul.f32 %v2170, %v1919
        %v2173 = vmul.f32 %v2170, %v1920
        %v2177 = vrot.slane %v2171, 1
        %v2178 = vrot.slane %v2172, 1
        %v2179 = vsel %vm382, %v2177, %v2178
        %v2180 = vrot.slane %v2173, 1
        %v2181 = vsel %vm382, %v2178, %v2180
        %v2185 = vadd.f32 %v2109, %v2179
        %v2186 = vadd.f32 %v2110, %v2181
        %v2187 = vadd.f32 %v2111, %v2180
        %v2188 = vld [vmem:[%s0 + $0x5e] sm:$0x1]
        %v2189 = vperm.slane %v2188, 0
        %v2190 = vmul.f32 %v2189, %v1918
        %v2191 = vmul.f32 %v2189, %v1919
        %v2192 = vmul.f32 %v2189, %v1920
        %v2196 = vrot.slane %v2190, 1
        %v2197 = vrot.slane %v2191, 1
        %v2198 = vsel %vm382, %v2196, %v2197
        %v2199 = vrot.slane %v2192, 1
        %v2200 = vsel %vm382, %v2197, %v2199
        %v2204 = vadd.f32 %v2128, %v2198
        %v2205 = vadd.f32 %v2129, %v2200
        %v2206 = vadd.f32 %v2130, %v2199
        %v2207 = vld [vmem:[%s0 + $0x67] sm:$0x1]
        %v2208 = vperm.slane %v2207, 0
        %v2209 = vmul.f32 %v2208, %v1918
        %v2210 = vmul.f32 %v2208, %v1919
        %v2211 = vmul.f32 %v2208, %v1920
        %v2215 = vrot.slane %v2209, 1
        %v2216 = vrot.slane %v2210, 1
        %v2217 = vsel %vm382, %v2215, %v2216
        %v2218 = vrot.slane %v2211, 1
        %v2219 = vsel %vm382, %v2216, %v2218
        %v2223 = vadd.f32 %v2147, %v2217
        %v2224 = vadd.f32 %v2148, %v2219
        %v2225 = vadd.f32 %v2149, %v2218
        %v2226 = vld [vmem:[%s0 + $0x70] sm:$0x1]
        %v2227 = vperm.slane %v2226, 0
        %v2228 = vmul.f32 %v2227, %v1918
        %v2229 = vmul.f32 %v2227, %v1919
        %v2230 = vmul.f32 %v2227, %v1920
        %v2234 = vrot.slane %v2228, 1
        %v2235 = vrot.slane %v2229, 1
        %v2236 = vsel %vm382, %v2234, %v2235
        %v2237 = vrot.slane %v2230, 1
        %v2238 = vsel %vm382, %v2235, %v2237
        %v2242 = vadd.f32 %v2166, %v2236
        %v2243 = vadd.f32 %v2167, %v2238
        %v2244 = vadd.f32 %v2168, %v2237
        %v2245 = vld [vmem:[%s0 + $0x56] sm:$0x1]
        %v2246 = vperm.slane %v2245, 0
        %v2247 = vmul.f32 %v2246, %v1910
        %v2248 = vmul.f32 %v2246, %v1911
        %v2249 = vmul.f32 %v2246, %v1912
        %v2253 = vrot.slane %v2247, 2
        %v2254 = vrot.slane %v2248, 2
        %v2255 = vsel %vm611, %v2253, %v2254
        %v2256 = vrot.slane %v2249, 2
        %v2257 = vsel %vm611, %v2254, %v2256
        %v2261 = vadd.f32 %v2185, %v2255
        %v2262 = vadd.f32 %v2186, %v2257
        %v2263 = vadd.f32 %v2187, %v2256
        %v2264 = vld [vmem:[%s0 + $0x5f] sm:$0x1]
        %v2265 = vperm.slane %v2264, 0
        %v2266 = vmul.f32 %v2265, %v1910
        %v2267 = vmul.f32 %v2265, %v1911
        %v2268 = vmul.f32 %v2265, %v1912
        %v2272 = vrot.slane %v2266, 2
        %v2273 = vrot.slane %v2267, 2
        %v2274 = vsel %vm611, %v2272, %v2273
        %v2275 = vrot.slane %v2268, 2
        %v2276 = vsel %vm611, %v2273, %v2275
        %v2280 = vadd.f32 %v2204, %v2274
        %v2281 = vadd.f32 %v2205, %v2276
        %v2282 = vadd.f32 %v2206, %v2275
        %v2283 = vld [vmem:[%s0 + $0x68] sm:$0x1]
        %v2284 = vperm.slane %v2283, 0
        %v2285 = vmul.f32 %v2284, %v1910
        %v2286 = vmul.f32 %v2284, %v1911
        %v2287 = vmul.f32 %v2284, %v1912
        %v2291 = vrot.slane %v2285, 2
        %v2292 = vrot.slane %v2286, 2
        %v2293 = vsel %vm611, %v2291, %v2292
        %v2294 = vrot.slane %v2287, 2
        %v2295 = vsel %vm611, %v2292, %v2294
        %v2299 = vadd.f32 %v2223, %v2293
        %v2300 = vadd.f32 %v2224, %v2295
        %v2301 = vadd.f32 %v2225, %v2294
        %v2302 = vld [vmem:[%s0 + $0x71] sm:$0x1]
        %v2303 = vperm.slane %v2302, 0
        %v2304 = vmul.f32 %v2303, %v1910
        %v2305 = vmul.f32 %v2303, %v1911
        %v2306 = vmul.f32 %v2303, %v1912
        %v2310 = vrot.slane %v2304, 2
        %v2311 = vrot.slane %v2305, 2
        %v2312 = vsel %vm611, %v2310, %v2311
        %v2313 = vrot.slane %v2306, 2
        %v2314 = vsel %vm611, %v2311, %v2313
        %v2318 = vadd.f32 %v2242, %v2312
        %v2319 = vadd.f32 %v2243, %v2314
        %v2320 = vadd.f32 %v2244, %v2313
        %v2321 = vld [vmem:[%s0 + $0x57] sm:$0x1]
        %v2322 = vperm.slane %v2321, 0
        %v2323 = vmul.f32 %v2322, %v1914
        %v2324 = vmul.f32 %v2322, %v1915
        %v2325 = vmul.f32 %v2322, %v1916
        %v2329 = vrot.slane %v2323, 2
        %v2330 = vrot.slane %v2324, 2
        %v2331 = vsel %vm611, %v2329, %v2330
        %v2332 = vrot.slane %v2325, 2
        %v2333 = vsel %vm611, %v2330, %v2332
        %v2337 = vadd.f32 %v2261, %v2331
        %v2338 = vadd.f32 %v2262, %v2333
        %v2339 = vadd.f32 %v2263, %v2332
        %v2340 = vld [vmem:[%s0 + $0x60] sm:$0x1]
        %v2341 = vperm.slane %v2340, 0
        %v2342 = vmul.f32 %v2341, %v1914
        %v2343 = vmul.f32 %v2341, %v1915
        %v2344 = vmul.f32 %v2341, %v1916
        %v2348 = vrot.slane %v2342, 2
        %v2349 = vrot.slane %v2343, 2
        %v2350 = vsel %vm611, %v2348, %v2349
        %v2351 = vrot.slane %v2344, 2
        %v2352 = vsel %vm611, %v2349, %v2351
        %v2356 = vadd.f32 %v2280, %v2350
        %v2357 = vadd.f32 %v2281, %v2352
        %v2358 = vadd.f32 %v2282, %v2351
        %v2359 = vld [vmem:[%s0 + $0x69] sm:$0x1]
        %v2360 = vperm.slane %v2359, 0
        %v2361 = vmul.f32 %v2360, %v1914
        %v2362 = vmul.f32 %v2360, %v1915
        %v2363 = vmul.f32 %v2360, %v1916
        %v2367 = vrot.slane %v2361, 2
        %v2368 = vrot.slane %v2362, 2
        %v2369 = vsel %vm611, %v2367, %v2368
        %v2370 = vrot.slane %v2363, 2
        %v2371 = vsel %vm611, %v2368, %v2370
        %v2375 = vadd.f32 %v2299, %v2369
        %v2376 = vadd.f32 %v2300, %v2371
        %v2377 = vadd.f32 %v2301, %v2370
        %v2378 = vld [vmem:[%s0 + $0x72] sm:$0x1]
        %v2379 = vperm.slane %v2378, 0
        %v2380 = vmul.f32 %v2379, %v1914
        %v2381 = vmul.f32 %v2379, %v1915
        %v2382 = vmul.f32 %v2379, %v1916
        %v2386 = vrot.slane %v2380, 2
        %v2387 = vrot.slane %v2381, 2
        %v2388 = vsel %vm611, %v2386, %v2387
        %v2389 = vrot.slane %v2382, 2
        %v2390 = vsel %vm611, %v2387, %v2389
        %v2394 = vadd.f32 %v2318, %v2388
        %v2395 = vadd.f32 %v2319, %v2390
        %v2396 = vadd.f32 %v2320, %v2389
        %v2397 = vld [vmem:[%s0 + $0x58] sm:$0x1]
        %v2398 = vperm.slane %v2397, 0
        %v2399 = vmul.f32 %v2398, %v1918
        %v2400 = vmul.f32 %v2398, %v1919
        %v2401 = vmul.f32 %v2398, %v1920
        %v2405 = vrot.slane %v2399, 2
        %v2406 = vrot.slane %v2400, 2
        %v2407 = vsel %vm611, %v2405, %v2406
        %v2408 = vrot.slane %v2401, 2
        %v2409 = vsel %vm611, %v2406, %v2408
        %v2413 = vadd.f32 %v2337, %v2407
        %v2414 = vadd.f32 %v2338, %v2409
        %v2415 = vadd.f32 %v2339, %v2408
        %v2416 = vld [vmem:[%s0 + $0x61] sm:$0x1]
        %v2417 = vperm.slane %v2416, 0
        %v2418 = vmul.f32 %v2417, %v1918
        %v2419 = vmul.f32 %v2417, %v1919
        %v2420 = vmul.f32 %v2417, %v1920
        %v2424 = vrot.slane %v2418, 2
        %v2425 = vrot.slane %v2419, 2
        %v2426 = vsel %vm611, %v2424, %v2425
        %v2427 = vrot.slane %v2420, 2
        %v2428 = vsel %vm611, %v2425, %v2427
        %v2432 = vadd.f32 %v2356, %v2426
        %v2433 = vadd.f32 %v2357, %v2428
        %v2434 = vadd.f32 %v2358, %v2427
        %v2435 = vld [vmem:[%s0 + $0x6a] sm:$0x1]
        %v2436 = vperm.slane %v2435, 0
        %v2437 = vmul.f32 %v2436, %v1918
        %v2438 = vmul.f32 %v2436, %v1919
        %v2439 = vmul.f32 %v2436, %v1920
        %v2443 = vrot.slane %v2437, 2
        %v2444 = vrot.slane %v2438, 2
        %v2445 = vsel %vm611, %v2443, %v2444
        %v2446 = vrot.slane %v2439, 2
        %v2447 = vsel %vm611, %v2444, %v2446
        %v2451 = vadd.f32 %v2375, %v2445
        %v2452 = vadd.f32 %v2376, %v2447
        %v2453 = vadd.f32 %v2377, %v2446
        %v2454 = vld [vmem:[%s0 + $0x73] sm:$0x1]
        %v2455 = vperm.slane %v2454, 0
        %v2456 = vmul.f32 %v2455, %v1918
        %v2457 = vmul.f32 %v2455, %v1919
        %v2458 = vmul.f32 %v2455, %v1920
        %v2462 = vrot.slane %v2456, 2
        %v2463 = vrot.slane %v2457, 2
        %v2464 = vsel %vm611, %v2462, %v2463
        %v2465 = vrot.slane %v2458, 2
        %v2466 = vsel %vm611, %v2463, %v2465
        %v2470 = vadd.f32 %v2394, %v2464
        %v2471 = vadd.f32 %v2395, %v2466
        %v2472 = vadd.f32 %v2396, %v2465
        %2476 = vrot.lane.b32.xlu0 %v2413, 110
        %v2477 = vpop.permute.xlu0 %2476
        %2478 = vrot.lane.b32.xlu0 %v2414, 110
        %v2479 = vpop.permute.xlu0 %2478
        %2480 = vrot.lane.b32.xlu0 %v2415, 110
        %v2481 = vpop.permute.xlu0 %2480
        %v2485 = vadd.f32 %v2413, %v2477
        %v2486 = vadd.f32 %v2414, %v2479
        %v2487 = vadd.f32 %v2415, %v2481
        %2488 = vrot.lane.b32.xlu0 %v2413, 92
        %v2489 = vpop.permute.xlu0 %2488
        %2490 = vrot.lane.b32.xlu0 %v2414, 92
        %v2491 = vpop.permute.xlu0 %2490
        %2492 = vrot.lane.b32.xlu0 %v2415, 92
        %v2493 = vpop.permute.xlu0 %2492
        %v2497 = vadd.f32 %v2485, %v2489
        %v2498 = vadd.f32 %v2486, %v2491
        %v2499 = vadd.f32 %v2487, %v2493
        %2500 = vrot.lane.b32.xlu0 %v2413, 74
        %v2501 = vpop.permute.xlu0 %2500
        %2502 = vrot.lane.b32.xlu0 %v2414, 74
        %v2503 = vpop.permute.xlu0 %2502
        %2504 = vrot.lane.b32.xlu0 %v2415, 74
        %v2505 = vpop.permute.xlu0 %2504
        %v2509 = vadd.f32 %v2497, %v2501
        %v2510 = vadd.f32 %v2498, %v2503
        %v2511 = vadd.f32 %v2499, %v2505
        %v2512 = vld [vmem:[%s0 + $0x74] sm:$0x1]
        %v2513 = vperm.slane %v2512, 0
        %v2514 = vadd.f32 %v2509, %v2513
        %v2515 = vadd.f32 %v2510, %v2513
        %v2516 = vadd.f32 %v2511, %v2513
        %v2517 = vmax.f32 %v2514, 0.0
        %v2518 = vmax.f32 %v2515, 0.0
        %v2519 = vmax.f32 %v2516, 0.0
        %v2520 = vmul.f32 %v2517, %v264
        %v2521 = vmul.f32 %v2518, %v265
        %v2522 = vmul.f32 %v2519, %v266
        %2526 = vrot.lane.b32.xlu0 %v2432, 110
        %v2527 = vpop.permute.xlu0 %2526
        %2528 = vrot.lane.b32.xlu0 %v2433, 110
        %v2529 = vpop.permute.xlu0 %2528
        %2530 = vrot.lane.b32.xlu0 %v2434, 110
        %v2531 = vpop.permute.xlu0 %2530
        %v2535 = vadd.f32 %v2432, %v2527
        %v2536 = vadd.f32 %v2433, %v2529
        %v2537 = vadd.f32 %v2434, %v2531
        %2538 = vrot.lane.b32.xlu0 %v2432, 92
        %v2539 = vpop.permute.xlu0 %2538
        %2540 = vrot.lane.b32.xlu0 %v2433, 92
        %v2541 = vpop.permute.xlu0 %2540
        %2542 = vrot.lane.b32.xlu0 %v2434, 92
        %v2543 = vpop.permute.xlu0 %2542
        %v2547 = vadd.f32 %v2535, %v2539
        %v2548 = vadd.f32 %v2536, %v2541
        %v2549 = vadd.f32 %v2537, %v2543
        %2550 = vrot.lane.b32.xlu0 %v2432, 74
        %v2551 = vpop.permute.xlu0 %2550
        %2552 = vrot.lane.b32.xlu0 %v2433, 74
        %v2553 = vpop.permute.xlu0 %2552
        %2554 = vrot.lane.b32.xlu0 %v2434, 74
        %v2555 = vpop.permute.xlu0 %2554
        %v2559 = vadd.f32 %v2547, %v2551
        %v2560 = vadd.f32 %v2548, %v2553
        %v2561 = vadd.f32 %v2549, %v2555
        %v2562 = vld [vmem:[%s0 + $0x75] sm:$0x1]
        %v2563 = vperm.slane %v2562, 0
        %v2564 = vadd.f32 %v2559, %v2563
        %v2565 = vadd.f32 %v2560, %v2563
        %v2566 = vadd.f32 %v2561, %v2563
        %v2567 = vmax.f32 %v2564, 0.0
        %v2568 = vmax.f32 %v2565, 0.0
        %v2569 = vmax.f32 %v2566, 0.0
        %v2570 = vmul.f32 %v2567, %v264
        %v2571 = vmul.f32 %v2568, %v265
        %v2572 = vmul.f32 %v2569, %v266
        %2576 = vrot.lane.b32.xlu0 %v2451, 110
        %v2577 = vpop.permute.xlu0 %2576
        %2578 = vrot.lane.b32.xlu0 %v2452, 110
        %v2579 = vpop.permute.xlu0 %2578
        %2580 = vrot.lane.b32.xlu0 %v2453, 110
        %v2581 = vpop.permute.xlu0 %2580
        %v2585 = vadd.f32 %v2451, %v2577
        %v2586 = vadd.f32 %v2452, %v2579
        %v2587 = vadd.f32 %v2453, %v2581
        %2588 = vrot.lane.b32.xlu0 %v2451, 92
        %v2589 = vpop.permute.xlu0 %2588
        %2590 = vrot.lane.b32.xlu0 %v2452, 92
        %v2591 = vpop.permute.xlu0 %2590
        %2592 = vrot.lane.b32.xlu0 %v2453, 92
        %v2593 = vpop.permute.xlu0 %2592
        %v2597 = vadd.f32 %v2585, %v2589
        %v2598 = vadd.f32 %v2586, %v2591
        %v2599 = vadd.f32 %v2587, %v2593
        %2600 = vrot.lane.b32.xlu0 %v2451, 74
        %v2601 = vpop.permute.xlu0 %2600
        %2602 = vrot.lane.b32.xlu0 %v2452, 74
        %v2603 = vpop.permute.xlu0 %2602
        %2604 = vrot.lane.b32.xlu0 %v2453, 74
        %v2605 = vpop.permute.xlu0 %2604
        %v2609 = vadd.f32 %v2597, %v2601
        %v2610 = vadd.f32 %v2598, %v2603
        %v2611 = vadd.f32 %v2599, %v2605
        %v2612 = vld [vmem:[%s0 + $0x76] sm:$0x1]
        %v2613 = vperm.slane %v2612, 0
        %v2614 = vadd.f32 %v2609, %v2613
        %v2615 = vadd.f32 %v2610, %v2613
        %v2616 = vadd.f32 %v2611, %v2613
        %v2617 = vmax.f32 %v2614, 0.0
        %v2618 = vmax.f32 %v2615, 0.0
        %v2619 = vmax.f32 %v2616, 0.0
        %v2620 = vmul.f32 %v2617, %v264
        %v2621 = vmul.f32 %v2618, %v265
        %v2622 = vmul.f32 %v2619, %v266
        %2626 = vrot.lane.b32.xlu0 %v2470, 110
        %v2627 = vpop.permute.xlu0 %2626
        %2628 = vrot.lane.b32.xlu0 %v2471, 110
        %v2629 = vpop.permute.xlu0 %2628
        %2630 = vrot.lane.b32.xlu0 %v2472, 110
        %v2631 = vpop.permute.xlu0 %2630
        %v2635 = vadd.f32 %v2470, %v2627
        %v2636 = vadd.f32 %v2471, %v2629
        %v2637 = vadd.f32 %v2472, %v2631
        %2638 = vrot.lane.b32.xlu0 %v2470, 92
        %v2639 = vpop.permute.xlu0 %2638
        %2640 = vrot.lane.b32.xlu0 %v2471, 92
        %v2641 = vpop.permute.xlu0 %2640
        %2642 = vrot.lane.b32.xlu0 %v2472, 92
        %v2643 = vpop.permute.xlu0 %2642
        %v2647 = vadd.f32 %v2635, %v2639
        %v2648 = vadd.f32 %v2636, %v2641
        %v2649 = vadd.f32 %v2637, %v2643
        %2650 = vrot.lane.b32.xlu0 %v2470, 74
        %v2651 = vpop.permute.xlu0 %2650
        %2652 = vrot.lane.b32.xlu0 %v2471, 74
        %v2653 = vpop.permute.xlu0 %2652
        %2654 = vrot.lane.b32.xlu0 %v2472, 74
        %v2655 = vpop.permute.xlu0 %2654
        %v2659 = vadd.f32 %v2647, %v2651
        %v2660 = vadd.f32 %v2648, %v2653
        %v2661 = vadd.f32 %v2649, %v2655
        %v2662 = vld [vmem:[%s0 + $0x77] sm:$0x1]
        %v2663 = vperm.slane %v2662, 0
        %v2664 = vadd.f32 %v2659, %v2663
        %v2665 = vadd.f32 %v2660, %v2663
        %v2666 = vadd.f32 %v2661, %v2663
        %v2667 = vmax.f32 %v2664, 0.0
        %v2668 = vmax.f32 %v2665, 0.0
        %v2669 = vmax.f32 %v2666, 0.0
        %v2670 = vmul.f32 %v2667, %v264
        %v2671 = vmul.f32 %v2668, %v265
        %v2672 = vmul.f32 %v2669, %v266
        %2676 = vrot.lane.b32.xlu0 %v2570, 16
        %v2677 = vpop.permute.xlu0 %2676
        %2678 = vrot.lane.b32.xlu0 %v2571, 16
        %v2679 = vpop.permute.xlu0 %2678
        %2680 = vrot.lane.b32.xlu0 %v2572, 16
        %v2681 = vpop.permute.xlu0 %2680
        %2688 = vrot.lane.b32.xlu0 %v2620, 32
        %v2689 = vpop.permute.xlu0 %2688
        %2690 = vrot.lane.b32.xlu0 %v2621, 32
        %v2691 = vpop.permute.xlu0 %2690
        %2692 = vrot.lane.b32.xlu0 %v2622, 32
        %v2693 = vpop.permute.xlu0 %2692
        %2700 = vrot.lane.b32.xlu0 %v2670, 48
        %v2701 = vpop.permute.xlu0 %2700
        %2702 = vrot.lane.b32.xlu0 %v2671, 48
        %v2703 = vpop.permute.xlu0 %2702
        %2704 = vrot.lane.b32.xlu0 %v2672, 48
        %v2705 = vpop.permute.xlu0 %2704
        %v2709 = vsel %vm1068, %v2520, %v2677
        %v2710 = vsel %vm1068, %v2521, %v2679
        %v2711 = vsel %vm1068, %v2522, %v2681
        %v2712 = vsel %vm1072, %v2709, %v2689
        %v2713 = vsel %vm1072, %v2710, %v2691
        %v2714 = vsel %vm1072, %v2711, %v2693
        %v2715 = vsel %vm1076, %v2712, %v2701
        %v2716 = vsel %vm1076, %v2713, %v2703
        %v2717 = vsel %vm1076, %v2714, %v2705
        %2721 = vrot.lane.b32.xlu0 %v2520, 127
        %v2722 = vpop.permute.xlu0 %2721
        %2723 = vrot.lane.b32.xlu0 %v2521, 127
        %v2724 = vpop.permute.xlu0 %2723
        %2725 = vrot.lane.b32.xlu0 %v2522, 127
        %v2726 = vpop.permute.xlu0 %2725
        %2730 = vrot.lane.b32.xlu0 %v2570, 15
        %v2731 = vpop.permute.xlu0 %2730
        %2732 = vrot.lane.b32.xlu0 %v2571, 15
        %v2733 = vpop.permute.xlu0 %2732
        %2734 = vrot.lane.b32.xlu0 %v2572, 15
        %v2735 = vpop.permute.xlu0 %2734
        %2739 = vrot.lane.b32.xlu0 %v2620, 31
        %v2740 = vpop.permute.xlu0 %2739
        %2741 = vrot.lane.b32.xlu0 %v2621, 31
        %v2742 = vpop.permute.xlu0 %2741
        %2743 = vrot.lane.b32.xlu0 %v2622, 31
        %v2744 = vpop.permute.xlu0 %2743
        %2748 = vrot.lane.b32.xlu0 %v2670, 47
        %v2749 = vpop.permute.xlu0 %2748
        %2750 = vrot.lane.b32.xlu0 %v2671, 47
        %v2751 = vpop.permute.xlu0 %2750
        %2752 = vrot.lane.b32.xlu0 %v2672, 47
        %v2753 = vpop.permute.xlu0 %2752
        %v2757 = vsel %vm1068, %v2722, %v2731
        %v2758 = vsel %vm1068, %v2724, %v2733
        %v2759 = vsel %vm1068, %v2726, %v2735
        %v2760 = vsel %vm1072, %v2757, %v2740
        %v2761 = vsel %vm1072, %v2758, %v2742
        %v2762 = vsel %vm1072, %v2759, %v2744
        %v2763 = vsel %vm1076, %v2760, %v2749
        %v2764 = vsel %vm1076, %v2761, %v2751
        %v2765 = vsel %vm1076, %v2762, %v2753
        %2766 = vrot.lane.b32.xlu0 %v2520, 126
        %v2767 = vpop.permute.xlu0 %2766
        %2768 = vrot.lane.b32.xlu0 %v2521, 126
        %v2769 = vpop.permute.xlu0 %2768
        %2770 = vrot.lane.b32.xlu0 %v2522, 126
        %v2771 = vpop.permute.xlu0 %2770
        %2775 = vrot.lane.b32.xlu0 %v2570, 14
        %v2776 = vpop.permute.xlu0 %2775
        %2777 = vrot.lane.b32.xlu0 %v2571, 14
        %v2778 = vpop.permute.xlu0 %2777
        %2779 = vrot.lane.b32.xlu0 %v2572, 14
        %v2780 = vpop.permute.xlu0 %2779
        %2784 = vrot.lane.b32.xlu0 %v2620, 30
        %v2785 = vpop.permute.xlu0 %2784
        %2786 = vrot.lane.b32.xlu0 %v2621, 30
        %v2787 = vpop.permute.xlu0 %2786
        %2788 = vrot.lane.b32.xlu0 %v2622, 30
        %v2789 = vpop.permute.xlu0 %2788
        %2793 = vrot.lane.b32.xlu0 %v2670, 46
        %v2794 = vpop.permute.xlu0 %2793
        %2795 = vrot.lane.b32.xlu0 %v2671, 46
        %v2796 = vpop.permute.xlu0 %2795
        %2797 = vrot.lane.b32.xlu0 %v2672, 46
        %v2798 = vpop.permute.xlu0 %2797
        %v2802 = vsel %vm1068, %v2767, %v2776
        %v2803 = vsel %vm1068, %v2769, %v2778
        %v2804 = vsel %vm1068, %v2771, %v2780
        %v2805 = vsel %vm1072, %v2802, %v2785
        %v2806 = vsel %vm1072, %v2803, %v2787
        %v2807 = vsel %vm1072, %v2804, %v2789
        %v2808 = vsel %vm1076, %v2805, %v2794
        %v2809 = vsel %vm1076, %v2806, %v2796
        %v2810 = vsel %vm1076, %v2807, %v2798
        %v2811 = vld [vmem:[%s0 + $0x78] sm:$0x1]
        %v2812 = vperm.slane %v2811, 0
        %v2813 = vmul.f32 %v2812, %v2715
        %v2814 = vmul.f32 %v2812, %v2716
        %v2815 = vadd.f32 %v2813, 0.0
        %v2816 = vadd.f32 %v2814, 0.0
        %v2817 = vld [vmem:[%s0 + $0x81] sm:$0x1]
        %v2818 = vperm.slane %v2817, 0
        %v2819 = vmul.f32 %v2818, %v2715
        %v2820 = vmul.f32 %v2818, %v2716
        %v2821 = vadd.f32 %v2819, 0.0
        %v2822 = vadd.f32 %v2820, 0.0
        %v2823 = vld [vmem:[%s0 + $0x8a] sm:$0x1]
        %v2824 = vperm.slane %v2823, 0
        %v2825 = vmul.f32 %v2824, %v2715
        %v2826 = vmul.f32 %v2824, %v2716
        %v2827 = vadd.f32 %v2825, 0.0
        %v2828 = vadd.f32 %v2826, 0.0
        %v2829 = vld [vmem:[%s0 + $0x93] sm:$0x1]
        %v2830 = vperm.slane %v2829, 0
        %v2831 = vmul.f32 %v2830, %v2715
        %v2832 = vmul.f32 %v2830, %v2716
        %v2833 = vadd.f32 %v2831, 0.0
        %v2834 = vadd.f32 %v2832, 0.0
        %v2835 = vld [vmem:[%s0 + $0x79] sm:$0x1]
        %v2836 = vperm.slane %v2835, 0
        %v2837 = vmul.f32 %v2836, %v2763
        %v2838 = vmul.f32 %v2836, %v2764
        %v2839 = vadd.f32 %v2815, %v2837
        %v2840 = vadd.f32 %v2816, %v2838
        %v2841 = vld [vmem:[%s0 + $0x82] sm:$0x1]
        %v2842 = vperm.slane %v2841, 0
        %v2843 = vmul.f32 %v2842, %v2763
        %v2844 = vmul.f32 %v2842, %v2764
        %v2845 = vadd.f32 %v2821, %v2843
        %v2846 = vadd.f32 %v2822, %v2844
        %v2847 = vld [vmem:[%s0 + $0x8b] sm:$0x1]
        %v2848 = vperm.slane %v2847, 0
        %v2849 = vmul.f32 %v2848, %v2763
        %v2850 = vmul.f32 %v2848, %v2764
        %v2851 = vadd.f32 %v2827, %v2849
        %v2852 = vadd.f32 %v2828, %v2850
        %v2853 = vld [vmem:[%s0 + $0x94] sm:$0x1]
        %v2854 = vperm.slane %v2853, 0
        %v2855 = vmul.f32 %v2854, %v2763
        %v2856 = vmul.f32 %v2854, %v2764
        %v2857 = vadd.f32 %v2833, %v2855
        %v2858 = vadd.f32 %v2834, %v2856
        %v2859 = vld [vmem:[%s0 + $0x7a] sm:$0x1]
        %v2860 = vperm.slane %v2859, 0
        %v2861 = vmul.f32 %v2860, %v2808
        %v2862 = vmul.f32 %v2860, %v2809
        %v2863 = vadd.f32 %v2839, %v2861
        %v2864 = vadd.f32 %v2840, %v2862
        %v2865 = vld [vmem:[%s0 + $0x83] sm:$0x1]
        %v2866 = vperm.slane %v2865, 0
        %v2867 = vmul.f32 %v2866, %v2808
        %v2868 = vmul.f32 %v2866, %v2809
        %v2869 = vadd.f32 %v2845, %v2867
        %v2870 = vadd.f32 %v2846, %v2868
        %v2871 = vld [vmem:[%s0 + $0x8c] sm:$0x1]
        %v2872 = vperm.slane %v2871, 0
        %v2873 = vmul.f32 %v2872, %v2808
        %v2874 = vmul.f32 %v2872, %v2809
        %v2875 = vadd.f32 %v2851, %v2873
        %v2876 = vadd.f32 %v2852, %v2874
        %v2877 = vld [vmem:[%s0 + $0x95] sm:$0x1]
        %v2878 = vperm.slane %v2877, 0
        %v2879 = vmul.f32 %v2878, %v2808
        %v2880 = vmul.f32 %v2878, %v2809
        %v2881 = vadd.f32 %v2857, %v2879
        %v2882 = vadd.f32 %v2858, %v2880
        %v2883 = vld [vmem:[%s0 + $0x7b] sm:$0x1]
        %v2884 = vperm.slane %v2883, 0
        %v2885 = vmul.f32 %v2884, %v2715
        %v2886 = vmul.f32 %v2884, %v2716
        %v2887 = vmul.f32 %v2884, %v2717
        %v2891 = vrot.slane %v2885, 1
        %v2892 = vrot.slane %v2886, 1
        %v2893 = vsel %vm382, %v2891, %v2892
        %v2894 = vrot.slane %v2887, 1
        %v2895 = vsel %vm382, %v2892, %v2894
        %v2898 = vadd.f32 %v2863, %v2893
        %v2899 = vadd.f32 %v2864, %v2895
        %v2900 = vld [vmem:[%s0 + $0x84] sm:$0x1]
        %v2901 = vperm.slane %v2900, 0
        %v2902 = vmul.f32 %v2901, %v2715
        %v2903 = vmul.f32 %v2901, %v2716
        %v2904 = vmul.f32 %v2901, %v2717
        %v2908 = vrot.slane %v2902, 1
        %v2909 = vrot.slane %v2903, 1
        %v2910 = vsel %vm382, %v2908, %v2909
        %v2911 = vrot.slane %v2904, 1
        %v2912 = vsel %vm382, %v2909, %v2911
        %v2915 = vadd.f32 %v2869, %v2910
        %v2916 = vadd.f32 %v2870, %v2912
        %v2917 = vld [vmem:[%s0 + $0x8d] sm:$0x1]
        %v2918 = vperm.slane %v2917, 0
        %v2919 = vmul.f32 %v2918, %v2715
        %v2920 = vmul.f32 %v2918, %v2716
        %v2921 = vmul.f32 %v2918, %v2717
        %v2925 = vrot.slane %v2919, 1
        %v2926 = vrot.slane %v2920, 1
        %v2927 = vsel %vm382, %v2925, %v2926
        %v2928 = vrot.slane %v2921, 1
        %v2929 = vsel %vm382, %v2926, %v2928
        %v2932 = vadd.f32 %v2875, %v2927
        %v2933 = vadd.f32 %v2876, %v2929
        %v2934 = vld [vmem:[%s0 + $0x96] sm:$0x1]
        %v2935 = vperm.slane %v2934, 0
        %v2936 = vmul.f32 %v2935, %v2715
        %v2937 = vmul.f32 %v2935, %v2716
        %v2938 = vmul.f32 %v2935, %v2717
        %v2942 = vrot.slane %v2936, 1
        %v2943 = vrot.slane %v2937, 1
        %v2944 = vsel %vm382, %v2942, %v2943
        %v2945 = vrot.slane %v2938, 1
        %v2946 = vsel %vm382, %v2943, %v2945
        %v2949 = vadd.f32 %v2881, %v2944
        %v2950 = vadd.f32 %v2882, %v2946
        %v2951 = vld [vmem:[%s0 + $0x7c] sm:$0x1]
        %v2952 = vperm.slane %v2951, 0
        %v2953 = vmul.f32 %v2952, %v2763
        %v2954 = vmul.f32 %v2952, %v2764
        %v2955 = vmul.f32 %v2952, %v2765
        %v2959 = vrot.slane %v2953, 1
        %v2960 = vrot.slane %v2954, 1
        %v2961 = vsel %vm382, %v2959, %v2960
        %v2962 = vrot.slane %v2955, 1
        %v2963 = vsel %vm382, %v2960, %v2962
        %v2966 = vadd.f32 %v2898, %v2961
        %v2967 = vadd.f32 %v2899, %v2963
        %v2968 = vld [vmem:[%s0 + $0x85] sm:$0x1]
        %v2969 = vperm.slane %v2968, 0
        %v2970 = vmul.f32 %v2969, %v2763
        %v2971 = vmul.f32 %v2969, %v2764
        %v2972 = vmul.f32 %v2969, %v2765
        %v2976 = vrot.slane %v2970, 1
        %v2977 = vrot.slane %v2971, 1
        %v2978 = vsel %vm382, %v2976, %v2977
        %v2979 = vrot.slane %v2972, 1
        %v2980 = vsel %vm382, %v2977, %v2979
        %v2983 = vadd.f32 %v2915, %v2978
        %v2984 = vadd.f32 %v2916, %v2980
        %v2985 = vld [vmem:[%s0 + $0x8e] sm:$0x1]
        %v2986 = vperm.slane %v2985, 0
        %v2987 = vmul.f32 %v2986, %v2763
        %v2988 = vmul.f32 %v2986, %v2764
        %v2989 = vmul.f32 %v2986, %v2765
        %v2993 = vrot.slane %v2987, 1
        %v2994 = vrot.slane %v2988, 1
        %v2995 = vsel %vm382, %v2993, %v2994
        %v2996 = vrot.slane %v2989, 1
        %v2997 = vsel %vm382, %v2994, %v2996
        %v3000 = vadd.f32 %v2932, %v2995
        %v3001 = vadd.f32 %v2933, %v2997
        %v3002 = vld [vmem:[%s0 + $0x97] sm:$0x1]
        %v3003 = vperm.slane %v3002, 0
        %v3004 = vmul.f32 %v3003, %v2763
        %v3005 = vmul.f32 %v3003, %v2764
        %v3006 = vmul.f32 %v3003, %v2765
        %v3010 = vrot.slane %v3004, 1
        %v3011 = vrot.slane %v3005, 1
        %v3012 = vsel %vm382, %v3010, %v3011
        %v3013 = vrot.slane %v3006, 1
        %v3014 = vsel %vm382, %v3011, %v3013
        %v3017 = vadd.f32 %v2949, %v3012
        %v3018 = vadd.f32 %v2950, %v3014
        %v3019 = vld [vmem:[%s0 + $0x7d] sm:$0x1]
        %v3020 = vperm.slane %v3019, 0
        %v3021 = vmul.f32 %v3020, %v2808
        %v3022 = vmul.f32 %v3020, %v2809
        %v3023 = vmul.f32 %v3020, %v2810
        %v3027 = vrot.slane %v3021, 1
        %v3028 = vrot.slane %v3022, 1
        %v3029 = vsel %vm382, %v3027, %v3028
        %v3030 = vrot.slane %v3023, 1
        %v3031 = vsel %vm382, %v3028, %v3030
        %v3034 = vadd.f32 %v2966, %v3029
        %v3035 = vadd.f32 %v2967, %v3031
        %v3036 = vld [vmem:[%s0 + $0x86] sm:$0x1]
        %v3037 = vperm.slane %v3036, 0
        %v3038 = vmul.f32 %v3037, %v2808
        %v3039 = vmul.f32 %v3037, %v2809
        %v3040 = vmul.f32 %v3037, %v2810
        %v3044 = vrot.slane %v3038, 1
        %v3045 = vrot.slane %v3039, 1
        %v3046 = vsel %vm382, %v3044, %v3045
        %v3047 = vrot.slane %v3040, 1
        %v3048 = vsel %vm382, %v3045, %v3047
        %v3051 = vadd.f32 %v2983, %v3046
        %v3052 = vadd.f32 %v2984, %v3048
        %v3053 = vld [vmem:[%s0 + $0x8f] sm:$0x1]
        %v3054 = vperm.slane %v3053, 0
        %v3055 = vmul.f32 %v3054, %v2808
        %v3056 = vmul.f32 %v3054, %v2809
        %v3057 = vmul.f32 %v3054, %v2810
        %v3061 = vrot.slane %v3055, 1
        %v3062 = vrot.slane %v3056, 1
        %v3063 = vsel %vm382, %v3061, %v3062
        %v3064 = vrot.slane %v3057, 1
        %v3065 = vsel %vm382, %v3062, %v3064
        %v3068 = vadd.f32 %v3000, %v3063
        %v3069 = vadd.f32 %v3001, %v3065
        %v3070 = vld [vmem:[%s0 + $0x98] sm:$0x1]
        %v3071 = vperm.slane %v3070, 0
        %v3072 = vmul.f32 %v3071, %v2808
        %v3073 = vmul.f32 %v3071, %v2809
        %v3074 = vmul.f32 %v3071, %v2810
        %v3078 = vrot.slane %v3072, 1
        %v3079 = vrot.slane %v3073, 1
        %v3080 = vsel %vm382, %v3078, %v3079
        %v3081 = vrot.slane %v3074, 1
        %v3082 = vsel %vm382, %v3079, %v3081
        %v3085 = vadd.f32 %v3017, %v3080
        %v3086 = vadd.f32 %v3018, %v3082
        %v3087 = vld [vmem:[%s0 + $0x7e] sm:$0x1]
        %v3088 = vperm.slane %v3087, 0
        %v3089 = vmul.f32 %v3088, %v2715
        %v3090 = vmul.f32 %v3088, %v2716
        %v3091 = vmul.f32 %v3088, %v2717
        %v3095 = vrot.slane %v3089, 2
        %v3096 = vrot.slane %v3090, 2
        %v3097 = vsel %vm611, %v3095, %v3096
        %v3098 = vrot.slane %v3091, 2
        %v3099 = vsel %vm611, %v3096, %v3098
        %v3102 = vadd.f32 %v3034, %v3097
        %v3103 = vadd.f32 %v3035, %v3099
        %v3104 = vld [vmem:[%s0 + $0x87] sm:$0x1]
        %v3105 = vperm.slane %v3104, 0
        %v3106 = vmul.f32 %v3105, %v2715
        %v3107 = vmul.f32 %v3105, %v2716
        %v3108 = vmul.f32 %v3105, %v2717
        %v3112 = vrot.slane %v3106, 2
        %v3113 = vrot.slane %v3107, 2
        %v3114 = vsel %vm611, %v3112, %v3113
        %v3115 = vrot.slane %v3108, 2
        %v3116 = vsel %vm611, %v3113, %v3115
        %v3119 = vadd.f32 %v3051, %v3114
        %v3120 = vadd.f32 %v3052, %v3116
        %v3121 = vld [vmem:[%s0 + $0x90] sm:$0x1]
        %v3122 = vperm.slane %v3121, 0
        %v3123 = vmul.f32 %v3122, %v2715
        %v3124 = vmul.f32 %v3122, %v2716
        %v3125 = vmul.f32 %v3122, %v2717
        %v3129 = vrot.slane %v3123, 2
        %v3130 = vrot.slane %v3124, 2
        %v3131 = vsel %vm611, %v3129, %v3130
        %v3132 = vrot.slane %v3125, 2
        %v3133 = vsel %vm611, %v3130, %v3132
        %v3136 = vadd.f32 %v3068, %v3131
        %v3137 = vadd.f32 %v3069, %v3133
        %v3138 = vld [vmem:[%s0 + $0x99] sm:$0x1]
        %v3139 = vperm.slane %v3138, 0
        %v3140 = vmul.f32 %v3139, %v2715
        %v3141 = vmul.f32 %v3139, %v2716
        %v3142 = vmul.f32 %v3139, %v2717
        %v3146 = vrot.slane %v3140, 2
        %v3147 = vrot.slane %v3141, 2
        %v3148 = vsel %vm611, %v3146, %v3147
        %v3149 = vrot.slane %v3142, 2
        %v3150 = vsel %vm611, %v3147, %v3149
        %v3153 = vadd.f32 %v3085, %v3148
        %v3154 = vadd.f32 %v3086, %v3150
        %v3155 = vld [vmem:[%s0 + $0x7f] sm:$0x1]
        %v3156 = vperm.slane %v3155, 0
        %v3157 = vmul.f32 %v3156, %v2763
        %v3158 = vmul.f32 %v3156, %v2764
        %v3159 = vmul.f32 %v3156, %v2765
        %v3163 = vrot.slane %v3157, 2
        %v3164 = vrot.slane %v3158, 2
        %v3165 = vsel %vm611, %v3163, %v3164
        %v3166 = vrot.slane %v3159, 2
        %v3167 = vsel %vm611, %v3164, %v3166
        %v3170 = vadd.f32 %v3102, %v3165
        %v3171 = vadd.f32 %v3103, %v3167
        %v3172 = vld [vmem:[%s0 + $0x88] sm:$0x1]
        %v3173 = vperm.slane %v3172, 0
        %v3174 = vmul.f32 %v3173, %v2763
        %v3175 = vmul.f32 %v3173, %v2764
        %v3176 = vmul.f32 %v3173, %v2765
        %v3180 = vrot.slane %v3174, 2
        %v3181 = vrot.slane %v3175, 2
        %v3182 = vsel %vm611, %v3180, %v3181
        %v3183 = vrot.slane %v3176, 2
        %v3184 = vsel %vm611, %v3181, %v3183
        %v3187 = vadd.f32 %v3119, %v3182
        %v3188 = vadd.f32 %v3120, %v3184
        %v3189 = vld [vmem:[%s0 + $0x91] sm:$0x1]
        %v3190 = vperm.slane %v3189, 0
        %v3191 = vmul.f32 %v3190, %v2763
        %v3192 = vmul.f32 %v3190, %v2764
        %v3193 = vmul.f32 %v3190, %v2765
        %v3197 = vrot.slane %v3191, 2
        %v3198 = vrot.slane %v3192, 2
        %v3199 = vsel %vm611, %v3197, %v3198
        %v3200 = vrot.slane %v3193, 2
        %v3201 = vsel %vm611, %v3198, %v3200
        %v3204 = vadd.f32 %v3136, %v3199
        %v3205 = vadd.f32 %v3137, %v3201
        %v3206 = vld [vmem:[%s0 + $0x9a] sm:$0x1]
        %v3207 = vperm.slane %v3206, 0
        %v3208 = vmul.f32 %v3207, %v2763
        %v3209 = vmul.f32 %v3207, %v2764
        %v3210 = vmul.f32 %v3207, %v2765
        %v3214 = vrot.slane %v3208, 2
        %v3215 = vrot.slane %v3209, 2
        %v3216 = vsel %vm611, %v3214, %v3215
        %v3217 = vrot.slane %v3210, 2
        %v3218 = vsel %vm611, %v3215, %v3217
        %v3221 = vadd.f32 %v3153, %v3216
        %v3222 = vadd.f32 %v3154, %v3218
        %v3223 = vld [vmem:[%s0 + $0x80] sm:$0x1]
        %v3224 = vperm.slane %v3223, 0
        %v3225 = vmul.f32 %v3224, %v2808
        %v3226 = vmul.f32 %v3224, %v2809
        %v3227 = vmul.f32 %v3224, %v2810
        %v3231 = vrot.slane %v3225, 2
        %v3232 = vrot.slane %v3226, 2
        %v3233 = vsel %vm611, %v3231, %v3232
        %v3234 = vrot.slane %v3227, 2
        %v3235 = vsel %vm611, %v3232, %v3234
        %v3238 = vadd.f32 %v3170, %v3233
        %v3239 = vadd.f32 %v3171, %v3235
        %v3240 = vld [vmem:[%s0 + $0x89] sm:$0x1]
        %v3241 = vperm.slane %v3240, 0
        %v3242 = vmul.f32 %v3241, %v2808
        %v3243 = vmul.f32 %v3241, %v2809
        %v3244 = vmul.f32 %v3241, %v2810
        %v3248 = vrot.slane %v3242, 2
        %v3249 = vrot.slane %v3243, 2
        %v3250 = vsel %vm611, %v3248, %v3249
        %v3251 = vrot.slane %v3244, 2
        %v3252 = vsel %vm611, %v3249, %v3251
        %v3255 = vadd.f32 %v3187, %v3250
        %v3256 = vadd.f32 %v3188, %v3252
        %v3257 = vld [vmem:[%s0 + $0x92] sm:$0x1]
        %v3258 = vperm.slane %v3257, 0
        %v3259 = vmul.f32 %v3258, %v2808
        %v3260 = vmul.f32 %v3258, %v2809
        %v3261 = vmul.f32 %v3258, %v2810
        %v3265 = vrot.slane %v3259, 2
        %v3266 = vrot.slane %v3260, 2
        %v3267 = vsel %vm611, %v3265, %v3266
        %v3268 = vrot.slane %v3261, 2
        %v3269 = vsel %vm611, %v3266, %v3268
        %v3272 = vadd.f32 %v3204, %v3267
        %v3273 = vadd.f32 %v3205, %v3269
        %v3274 = vld [vmem:[%s0 + $0x9b] sm:$0x1]
        %v3275 = vperm.slane %v3274, 0
        %v3276 = vmul.f32 %v3275, %v2808
        %v3277 = vmul.f32 %v3275, %v2809
        %v3278 = vmul.f32 %v3275, %v2810
        %v3282 = vrot.slane %v3276, 2
        %v3283 = vrot.slane %v3277, 2
        %v3284 = vsel %vm611, %v3282, %v3283
        %v3285 = vrot.slane %v3278, 2
        %v3286 = vsel %vm611, %v3283, %v3285
        %v3289 = vadd.f32 %v3221, %v3284
        %v3290 = vadd.f32 %v3222, %v3286
        %3293 = vrot.lane.b32.xlu0 %v3238, 112
        %v3294 = vpop.permute.xlu0 %3293
        %3295 = vrot.lane.b32.xlu0 %v3239, 112
        %v3296 = vpop.permute.xlu0 %3295
        %v3299 = vadd.f32 %v3238, %v3294
        %v3300 = vadd.f32 %v3239, %v3296
        %3301 = vrot.lane.b32.xlu0 %v3238, 96
        %v3302 = vpop.permute.xlu0 %3301
        %3303 = vrot.lane.b32.xlu0 %v3239, 96
        %v3304 = vpop.permute.xlu0 %3303
        %v3307 = vadd.f32 %v3299, %v3302
        %v3308 = vadd.f32 %v3300, %v3304
        %3309 = vrot.lane.b32.xlu0 %v3238, 80
        %v3310 = vpop.permute.xlu0 %3309
        %3311 = vrot.lane.b32.xlu0 %v3239, 80
        %v3312 = vpop.permute.xlu0 %3311
        %v3315 = vadd.f32 %v3307, %v3310
        %v3316 = vadd.f32 %v3308, %v3312
        %v3319 = vrot.slane %v3315, 6
        %v3320 = vrot.slane %v3316, 6
        %v3321 = vsel %vm1681, %v3319, %v3320
        %3322 = vrot.lane.b32.xlu0 %v3319, 2
        %v3323 = vpop.permute.xlu0 %3322
        %3324 = vrot.lane.b32.xlu0 %v3321, 2
        %v3325 = vpop.permute.xlu0 %3324
        %3326 = vrot.lane.b32.xlu0 %v3320, 2
        %v3327 = vpop.permute.xlu0 %3326
        %v3331 = vadd.f32 %v1910, %v3323
        %v3332 = vadd.f32 %v1911, %v3325
        %v3333 = vadd.f32 %v1912, %v3327
        %v3334 = vld [vmem:[%s0 + $0x9c] sm:$0x1]
        %v3335 = vperm.slane %v3334, 0
        %3337 = vrot.lane.b32.xlu0 %v3335, 2
        %v3338 = vpop.permute.xlu0 %3337
        %v3340 = vadd.f32 %v3331, %v3338
        %v3341 = vadd.f32 %v3332, %v3338
        %v3342 = vadd.f32 %v3333, %v3338
        %3345 = vrot.lane.b32.xlu0 %v3255, 112
        %v3346 = vpop.permute.xlu0 %3345
        %3347 = vrot.lane.b32.xlu0 %v3256, 112
        %v3348 = vpop.permute.xlu0 %3347
        %v3351 = vadd.f32 %v3255, %v3346
        %v3352 = vadd.f32 %v3256, %v3348
        %3353 = vrot.lane.b32.xlu0 %v3255, 96
        %v3354 = vpop.permute.xlu0 %3353
        %3355 = vrot.lane.b32.xlu0 %v3256, 96
        %v3356 = vpop.permute.xlu0 %3355
        %v3359 = vadd.f32 %v3351, %v3354
        %v3360 = vadd.f32 %v3352, %v3356
        %3361 = vrot.lane.b32.xlu0 %v3255, 80
        %v3362 = vpop.permute.xlu0 %3361
        %3363 = vrot.lane.b32.xlu0 %v3256, 80
        %v3364 = vpop.permute.xlu0 %3363
        %v3367 = vadd.f32 %v3359, %v3362
        %v3368 = vadd.f32 %v3360, %v3364
        %v3371 = vrot.slane %v3367, 6
        %v3372 = vrot.slane %v3368, 6
        %v3373 = vsel %vm1681, %v3371, %v3372
        %3374 = vrot.lane.b32.xlu0 %v3371, 20
        %v3375 = vpop.permute.xlu0 %3374
        %3376 = vrot.lane.b32.xlu0 %v3373, 20
        %v3377 = vpop.permute.xlu0 %3376
        %3378 = vrot.lane.b32.xlu0 %v3372, 20
        %v3379 = vpop.permute.xlu0 %3378
        %v3383 = vadd.f32 %v1910, %v3375
        %v3384 = vadd.f32 %v1911, %v3377
        %v3385 = vadd.f32 %v1912, %v3379
        %v3386 = vld [vmem:[%s0 + $0x9d] sm:$0x1]
        %v3387 = vperm.slane %v3386, 0
        %3389 = vrot.lane.b32.xlu0 %v3387, 20
        %v3390 = vpop.permute.xlu0 %3389
        %v3392 = vadd.f32 %v3383, %v3390
        %v3393 = vadd.f32 %v3384, %v3390
        %v3394 = vadd.f32 %v3385, %v3390
        %3397 = vrot.lane.b32.xlu0 %v3272, 112
        %v3398 = vpop.permute.xlu0 %3397
        %3399 = vrot.lane.b32.xlu0 %v3273, 112
        %v3400 = vpop.permute.xlu0 %3399
        %v3403 = vadd.f32 %v3272, %v3398
        %v3404 = vadd.f32 %v3273, %v3400
        %3405 = vrot.lane.b32.xlu0 %v3272, 96
        %v3406 = vpop.permute.xlu0 %3405
        %3407 = vrot.lane.b32.xlu0 %v3273, 96
        %v3408 = vpop.permute.xlu0 %3407
        %v3411 = vadd.f32 %v3403, %v3406
        %v3412 = vadd.f32 %v3404, %v3408
        %3413 = vrot.lane.b32.xlu0 %v3272, 80
        %v3414 = vpop.permute.xlu0 %3413
        %3415 = vrot.lane.b32.xlu0 %v3273, 80
        %v3416 = vpop.permute.xlu0 %3415
        %v3419 = vadd.f32 %v3411, %v3414
        %v3420 = vadd.f32 %v3412, %v3416
        %v3423 = vrot.slane %v3419, 6
        %v3424 = vrot.slane %v3420, 6
        %v3425 = vsel %vm1681, %v3423, %v3424
        %3426 = vrot.lane.b32.xlu0 %v3423, 38
        %v3427 = vpop.permute.xlu0 %3426
        %3428 = vrot.lane.b32.xlu0 %v3425, 38
        %v3429 = vpop.permute.xlu0 %3428
        %3430 = vrot.lane.b32.xlu0 %v3424, 38
        %v3431 = vpop.permute.xlu0 %3430
        %v3435 = vadd.f32 %v1910, %v3427
        %v3436 = vadd.f32 %v1911, %v3429
        %v3437 = vadd.f32 %v1912, %v3431
        %v3438 = vld [vmem:[%s0 + $0x9e] sm:$0x1]
        %v3439 = vperm.slane %v3438, 0
        %3441 = vrot.lane.b32.xlu0 %v3439, 38
        %v3442 = vpop.permute.xlu0 %3441
        %v3444 = vadd.f32 %v3435, %v3442
        %v3445 = vadd.f32 %v3436, %v3442
        %v3446 = vadd.f32 %v3437, %v3442
        %3449 = vrot.lane.b32.xlu0 %v3289, 112
        %v3450 = vpop.permute.xlu0 %3449
        %3451 = vrot.lane.b32.xlu0 %v3290, 112
        %v3452 = vpop.permute.xlu0 %3451
        %v3455 = vadd.f32 %v3289, %v3450
        %v3456 = vadd.f32 %v3290, %v3452
        %3457 = vrot.lane.b32.xlu0 %v3289, 96
        %v3458 = vpop.permute.xlu0 %3457
        %3459 = vrot.lane.b32.xlu0 %v3290, 96
        %v3460 = vpop.permute.xlu0 %3459
        %v3463 = vadd.f32 %v3455, %v3458
        %v3464 = vadd.f32 %v3456, %v3460
        %3465 = vrot.lane.b32.xlu0 %v3289, 80
        %v3466 = vpop.permute.xlu0 %3465
        %3467 = vrot.lane.b32.xlu0 %v3290, 80
        %v3468 = vpop.permute.xlu0 %3467
        %v3471 = vadd.f32 %v3463, %v3466
        %v3472 = vadd.f32 %v3464, %v3468
        %v3475 = vrot.slane %v3471, 6
        %v3476 = vrot.slane %v3472, 6
        %v3477 = vsel %vm1681, %v3475, %v3476
        %3478 = vrot.lane.b32.xlu0 %v3475, 56
        %v3479 = vpop.permute.xlu0 %3478
        %3480 = vrot.lane.b32.xlu0 %v3477, 56
        %v3481 = vpop.permute.xlu0 %3480
        %3482 = vrot.lane.b32.xlu0 %v3476, 56
        %v3483 = vpop.permute.xlu0 %3482
        %v3487 = vadd.f32 %v1910, %v3479
        %v3488 = vadd.f32 %v1911, %v3481
        %v3489 = vadd.f32 %v1912, %v3483
        %v3490 = vld [vmem:[%s0 + $0x9f] sm:$0x1]
        %v3491 = vperm.slane %v3490, 0
        %3493 = vrot.lane.b32.xlu0 %v3491, 56
        %v3494 = vpop.permute.xlu0 %3493
        %v3496 = vadd.f32 %v3487, %v3494
        %v3497 = vadd.f32 %v3488, %v3494
        %v3498 = vadd.f32 %v3489, %v3494
        %3502 = vrot.lane.b32.xlu0 %v3392, 110
        %v3503 = vpop.permute.xlu0 %3502
        %3504 = vrot.lane.b32.xlu0 %v3393, 110
        %v3505 = vpop.permute.xlu0 %3504
        %3506 = vrot.lane.b32.xlu0 %v3394, 110
        %v3507 = vpop.permute.xlu0 %3506
        %3514 = vrot.lane.b32.xlu0 %v3444, 92
        %v3515 = vpop.permute.xlu0 %3514
        %3516 = vrot.lane.b32.xlu0 %v3445, 92
        %v3517 = vpop.permute.xlu0 %3516
        %3518 = vrot.lane.b32.xlu0 %v3446, 92
        %v3519 = vpop.permute.xlu0 %3518
        %3526 = vrot.lane.b32.xlu0 %v3496, 74
        %v3527 = vpop.permute.xlu0 %3526
        %3528 = vrot.lane.b32.xlu0 %v3497, 74
        %v3529 = vpop.permute.xlu0 %3528
        %3530 = vrot.lane.b32.xlu0 %v3498, 74
        %v3531 = vpop.permute.xlu0 %3530
        %v3535 = vpack.c.bf16 %v3340, %v3340
        %v3536 = vpack.c.bf16 %v3341, %v3341
        %v3537 = vpack.c.bf16 %v3342, %v3342
        %v3538 = vpack.c.bf16 %v3503, %v3503
        %v3539 = vpack.c.bf16 %v3505, %v3505
        %v3540 = vpack.c.bf16 %v3507, %v3507
        %v3541 = vpack.c.bf16 %v3515, %v3515
        %v3542 = vpack.c.bf16 %v3517, %v3517
        %v3543 = vpack.c.bf16 %v3519, %v3519
        %v3544 = vpack.c.bf16 %v3527, %v3527
        %v3545 = vpack.c.bf16 %v3529, %v3529
        %v3546 = vpack.c.bf16 %v3531, %v3531
        %v3550 = vunpack.c.l.b16 %v3535
        %v3551 = vunpack.c.l.b16 %v3536
        %v3552 = vunpack.c.l.b16 %v3537
        %v3553 = vpack.c.b16 %v3551, %v3550
        %v3554 = vpack.c.b16 %v3552, %v3552
        %vm3555 = vcmask 1046528
        %v3556 = vrot.slane %v3553, 1
        %v3557 = vrot.slane %v3554, 1
        %v3558 = vsel %vm3555, %v3556, %v3557
        %3559 = vrot.lane.b32.xlu0 %v3558, 126
        %v3560 = vpop.permute.xlu0 %3559
        %v3564 = vunpack.c.l.b16 %v1898
        %v3565 = vunpack.c.l.b16 %v1899
        %v3566 = vunpack.c.l.b16 %v1900
        %v3567 = vpack.c.b16 %v3565, %v3564
        %v3568 = vpack.c.b16 %v3566, %v3566
        %v3569 = vrot.slane %v3567, 1
        %v3570 = vrot.slane %v3568, 1
        %v3571 = vsel %vm3555, %v3569, %v3570
        %3572 = vrot.lane.b32.xlu0 %v3571, 126
        %v3573 = vpop.permute.xlu0 %3572
        %v3576 = vsel %vm1068, %v3560, 0
        %3578 = vmatpush.bf16.msra.mxu0 0
        %3579 = vmatpush.bf16.msra.mxu0 0
        %3580 = vmatpush.bf16.msra.mxu0 0
        %3581 = vmatpush.bf16.msra.mxu0 0
        %3582 = vmatpush.bf16.msra.mxu0 0
        %3583 = vmatpush.bf16.msra.mxu0 0
        %3584 = vmatpush.bf16.msra.mxu0 0
        %3585 = vmatpush.bf16.msra.mxu0 %v3573
        %3586 = vmatmul.bf16.gmra.mxu0 %v3576
        %v3587 = vpop.f32.mrf.mxu0
        %v3588 = vadd.f32 0.0, %v3587
        %v3589 = vpop.f32.mrf.mxu0
        %v3590 = vadd.f32 0.0, %v3589
        %3591 = vdwg.mxu0
        %v3595 = vunpack.c.l.b16 %v3538
        %v3596 = vunpack.c.l.b16 %v3539
        %v3597 = vunpack.c.l.b16 %v3540
        %v3598 = vpack.c.b16 %v3596, %v3595
        %v3599 = vpack.c.b16 %v3597, %v3597
        %v3600 = vrot.slane %v3598, 1
        %v3601 = vrot.slane %v3599, 1
        %v3602 = vsel %vm3555, %v3600, %v3601
        %3603 = vrot.lane.b32.xlu0 %v3602, 126
        %v3604 = vpop.permute.xlu0 %3603
        %v3608 = vunpack.c.l.b16 %v1901
        %v3609 = vunpack.c.l.b16 %v1902
        %v3610 = vunpack.c.l.b16 %v1903
        %v3611 = vpack.c.b16 %v3609, %v3608
        %v3612 = vpack.c.b16 %v3610, %v3610
        %v3613 = vrot.slane %v3611, 1
        %v3614 = vrot.slane %v3612, 1
        %v3615 = vsel %vm3555, %v3613, %v3614
        %3616 = vrot.lane.b32.xlu0 %v3615, 126
        %v3617 = vpop.permute.xlu0 %3616
        %v3620 = vsel %vm1068, %v3604, 0
        %3622 = vmatpush.bf16.msra.mxu0 0
        %3623 = vmatpush.bf16.msra.mxu0 0
        %3624 = vmatpush.bf16.msra.mxu0 0
        %3625 = vmatpush.bf16.msra.mxu0 0
        %3626 = vmatpush.bf16.msra.mxu0 0
        %3627 = vmatpush.bf16.msra.mxu0 0
        %3628 = vmatpush.bf16.msra.mxu0 0
        %3629 = vmatpush.bf16.msra.mxu0 %v3617
        %3630 = vmatmul.bf16.gmra.mxu0 %v3620
        %v3631 = vpop.f32.mrf.mxu0
        %v3632 = vadd.f32 0.0, %v3631
        %v3633 = vpop.f32.mrf.mxu0
        %v3634 = vadd.f32 0.0, %v3633
        %3635 = vdwg.mxu0
        %v3639 = vunpack.c.l.b16 %v3541
        %v3640 = vunpack.c.l.b16 %v3542
        %v3641 = vunpack.c.l.b16 %v3543
        %v3642 = vpack.c.b16 %v3640, %v3639
        %v3643 = vpack.c.b16 %v3641, %v3641
        %v3644 = vrot.slane %v3642, 1
        %v3645 = vrot.slane %v3643, 1
        %v3646 = vsel %vm3555, %v3644, %v3645
        %3647 = vrot.lane.b32.xlu0 %v3646, 126
        %v3648 = vpop.permute.xlu0 %3647
        %v3652 = vunpack.c.l.b16 %v1904
        %v3653 = vunpack.c.l.b16 %v1905
        %v3654 = vunpack.c.l.b16 %v1906
        %v3655 = vpack.c.b16 %v3653, %v3652
        %v3656 = vpack.c.b16 %v3654, %v3654
        %v3657 = vrot.slane %v3655, 1
        %v3658 = vrot.slane %v3656, 1
        %v3659 = vsel %vm3555, %v3657, %v3658
        %3660 = vrot.lane.b32.xlu0 %v3659, 126
        %v3661 = vpop.permute.xlu0 %3660
        %v3664 = vsel %vm1068, %v3648, 0
        %3666 = vmatpush.bf16.msra.mxu0 0
        %3667 = vmatpush.bf16.msra.mxu0 0
        %3668 = vmatpush.bf16.msra.mxu0 0
        %3669 = vmatpush.bf16.msra.mxu0 0
        %3670 = vmatpush.bf16.msra.mxu0 0
        %3671 = vmatpush.bf16.msra.mxu0 0
        %3672 = vmatpush.bf16.msra.mxu0 0
        %3673 = vmatpush.bf16.msra.mxu0 %v3661
        %3674 = vmatmul.bf16.gmra.mxu0 %v3664
        %v3675 = vpop.f32.mrf.mxu0
        %v3676 = vadd.f32 0.0, %v3675
        %v3677 = vpop.f32.mrf.mxu0
        %v3678 = vadd.f32 0.0, %v3677
        %3679 = vdwg.mxu0
        %v3683 = vunpack.c.l.b16 %v3544
        %v3684 = vunpack.c.l.b16 %v3545
        %v3685 = vunpack.c.l.b16 %v3546
        %v3686 = vpack.c.b16 %v3684, %v3683
        %v3687 = vpack.c.b16 %v3685, %v3685
        %v3688 = vrot.slane %v3686, 1
        %v3689 = vrot.slane %v3687, 1
        %v3690 = vsel %vm3555, %v3688, %v3689
        %3691 = vrot.lane.b32.xlu0 %v3690, 126
        %v3692 = vpop.permute.xlu0 %3691
        %v3696 = vunpack.c.l.b16 %v1907
        %v3697 = vunpack.c.l.b16 %v1908
        %v3698 = vunpack.c.l.b16 %v1909
        %v3699 = vpack.c.b16 %v3697, %v3696
        %v3700 = vpack.c.b16 %v3698, %v3698
        %v3701 = vrot.slane %v3699, 1
        %v3702 = vrot.slane %v3700, 1
        %v3703 = vsel %vm3555, %v3701, %v3702
        %3704 = vrot.lane.b32.xlu0 %v3703, 126
        %v3705 = vpop.permute.xlu0 %3704
        %v3708 = vsel %vm1068, %v3692, 0
        %3710 = vmatpush.bf16.msra.mxu0 0
        %3711 = vmatpush.bf16.msra.mxu0 0
        %3712 = vmatpush.bf16.msra.mxu0 0
        %3713 = vmatpush.bf16.msra.mxu0 0
        %3714 = vmatpush.bf16.msra.mxu0 0
        %3715 = vmatpush.bf16.msra.mxu0 0
        %3716 = vmatpush.bf16.msra.mxu0 0
        %3717 = vmatpush.bf16.msra.mxu0 %v3705
        %3718 = vmatmul.bf16.gmra.mxu0 %v3708
        %v3719 = vpop.f32.mrf.mxu0
        %v3720 = vadd.f32 0.0, %v3719
        %v3721 = vpop.f32.mrf.mxu0
        %v3722 = vadd.f32 0.0, %v3721
        %3723 = vdwg.mxu0
        %v3724 = vxor.u32 %v3588, 2147483648
        %v3725 = vxor.u32 %v3590, 2147483648
        %v3726 = vxor.u32 %v3632, 2147483648
        %v3727 = vxor.u32 %v3634, 2147483648
        %v3728 = vxor.u32 %v3676, 2147483648
        %v3729 = vxor.u32 %v3678, 2147483648
        %v3730 = vxor.u32 %v3720, 2147483648
        %v3731 = vxor.u32 %v3722, 2147483648
        %v3732 = vmul.f32 %v3724, 1.442695
        %v3733 = vpow.pop %v3732
        %v3734 = vmul.f32 %v3725, 1.442695
        %v3735 = vpow.pop %v3734
        %v3736 = vmul.f32 %v3726, 1.442695
        %v3737 = vpow.pop %v3736
        %v3738 = vmul.f32 %v3727, 1.442695
        %v3739 = vpow.pop %v3738
        %v3740 = vmul.f32 %v3728, 1.442695
        %v3741 = vpow.pop %v3740
        %v3742 = vmul.f32 %v3729, 1.442695
        %v3743 = vpow.pop %v3742
        %v3744 = vmul.f32 %v3730, 1.442695
        %v3745 = vpow.pop %v3744
        %v3746 = vmul.f32 %v3731, 1.442695
        %v3747 = vpow.pop %v3746
        %v3748 = vadd.f32 %v3733, 1.0
        %v3749 = vadd.f32 %v3735, 1.0
        %v3750 = vadd.f32 %v3737, 1.0
        %v3751 = vadd.f32 %v3739, 1.0
        %v3752 = vadd.f32 %v3741, 1.0
        %v3753 = vadd.f32 %v3743, 1.0
        %v3754 = vadd.f32 %v3745, 1.0
        %v3755 = vadd.f32 %v3747, 1.0
        %v3756 = vrcp.pop %v3748
        %v3757 = vmul.f32 %v3748, %v3756
        %v3758 = vsub.f32 1.0, %v3757
        %v3759 = vmul.f32 %v3756, %v3758
        %v3760 = vadd.f32 %v3756, %v3759
        %vm3761 = vweird.f32 %v3748
        %vm3762 = vweird.f32 %v3756
        %vm3763 = vmor %vm3761, %vm3762
        %v3764 = vsel %vm3763, %v3756, %v3760
        %v3765 = vand.u32 2147483647, %v3748
        %vm3766 = vcmp.eq.f32.partialorder %v3765, 8.507059e+37
        %v3767 = vand.u32 %v3748, 2147483648
        %v3768 = vor.u32 1.1754944e-38, %v3767
        %v3769 = vsel %vm3766, %v3768, %v3764
        %v3770 = vmul.f32 1.0, %v3769
        %v3771 = vrcp.pop %v3749
        %v3772 = vmul.f32 %v3749, %v3771
        %v3773 = vsub.f32 1.0, %v3772
        %v3774 = vmul.f32 %v3771, %v3773
        %v3775 = vadd.f32 %v3771, %v3774
        %vm3776 = vweird.f32 %v3749
        %vm3777 = vweird.f32 %v3771
        %vm3778 = vmor %vm3776, %vm3777
        %v3779 = vsel %vm3778, %v3771, %v3775
        %v3780 = vand.u32 2147483647, %v3749
        %vm3781 = vcmp.eq.f32.partialorder %v3780, 8.507059e+37
        %v3782 = vand.u32 %v3749, 2147483648
        %v3783 = vor.u32 1.1754944e-38, %v3782
        %v3784 = vsel %vm3781, %v3783, %v3779
        %v3785 = vmul.f32 1.0, %v3784
        %v3786 = vrcp.pop %v3750
        %v3787 = vmul.f32 %v3750, %v3786
        %v3788 = vsub.f32 1.0, %v3787
        %v3789 = vmul.f32 %v3786, %v3788
        %v3790 = vadd.f32 %v3786, %v3789
        %vm3791 = vweird.f32 %v3750
        %vm3792 = vweird.f32 %v3786
        %vm3793 = vmor %vm3791, %vm3792
        %v3794 = vsel %vm3793, %v3786, %v3790
        %v3795 = vand.u32 2147483647, %v3750
        %vm3796 = vcmp.eq.f32.partialorder %v3795, 8.507059e+37
        %v3797 = vand.u32 %v3750, 2147483648
        %v3798 = vor.u32 1.1754944e-38, %v3797
        %v3799 = vsel %vm3796, %v3798, %v3794
        %v3800 = vmul.f32 1.0, %v3799
        %v3801 = vrcp.pop %v3751
        %v3802 = vmul.f32 %v3751, %v3801
        %v3803 = vsub.f32 1.0, %v3802
        %v3804 = vmul.f32 %v3801, %v3803
        %v3805 = vadd.f32 %v3801, %v3804
        %vm3806 = vweird.f32 %v3751
        %vm3807 = vweird.f32 %v3801
        %vm3808 = vmor %vm3806, %vm3807
        %v3809 = vsel %vm3808, %v3801, %v3805
        %v3810 = vand.u32 2147483647, %v3751
        %vm3811 = vcmp.eq.f32.partialorder %v3810, 8.507059e+37
        %v3812 = vand.u32 %v3751, 2147483648
        %v3813 = vor.u32 1.1754944e-38, %v3812
        %v3814 = vsel %vm3811, %v3813, %v3809
        %v3815 = vmul.f32 1.0, %v3814
        %v3816 = vrcp.pop %v3752
        %v3817 = vmul.f32 %v3752, %v3816
        %v3818 = vsub.f32 1.0, %v3817
        %v3819 = vmul.f32 %v3816, %v3818
        %v3820 = vadd.f32 %v3816, %v3819
        %vm3821 = vweird.f32 %v3752
        %vm3822 = vweird.f32 %v3816
        %vm3823 = vmor %vm3821, %vm3822
        %v3824 = vsel %vm3823, %v3816, %v3820
        %v3825 = vand.u32 2147483647, %v3752
        %vm3826 = vcmp.eq.f32.partialorder %v3825, 8.507059e+37
        %v3827 = vand.u32 %v3752, 2147483648
        %v3828 = vor.u32 1.1754944e-38, %v3827
        %v3829 = vsel %vm3826, %v3828, %v3824
        %v3830 = vmul.f32 1.0, %v3829
        %v3831 = vrcp.pop %v3753
        %v3832 = vmul.f32 %v3753, %v3831
        %v3833 = vsub.f32 1.0, %v3832
        %v3834 = vmul.f32 %v3831, %v3833
        %v3835 = vadd.f32 %v3831, %v3834
        %vm3836 = vweird.f32 %v3753
        %vm3837 = vweird.f32 %v3831
        %vm3838 = vmor %vm3836, %vm3837
        %v3839 = vsel %vm3838, %v3831, %v3835
        %v3840 = vand.u32 2147483647, %v3753
        %vm3841 = vcmp.eq.f32.partialorder %v3840, 8.507059e+37
        %v3842 = vand.u32 %v3753, 2147483648
        %v3843 = vor.u32 1.1754944e-38, %v3842
        %v3844 = vsel %vm3841, %v3843, %v3839
        %v3845 = vmul.f32 1.0, %v3844
        %v3846 = vrcp.pop %v3754
        %v3847 = vmul.f32 %v3754, %v3846
        %v3848 = vsub.f32 1.0, %v3847
        %v3849 = vmul.f32 %v3846, %v3848
        %v3850 = vadd.f32 %v3846, %v3849
        %vm3851 = vweird.f32 %v3754
        %vm3852 = vweird.f32 %v3846
        %vm3853 = vmor %vm3851, %vm3852
        %v3854 = vsel %vm3853, %v3846, %v3850
        %v3855 = vand.u32 2147483647, %v3754
        %vm3856 = vcmp.eq.f32.partialorder %v3855, 8.507059e+37
        %v3857 = vand.u32 %v3754, 2147483648
        %v3858 = vor.u32 1.1754944e-38, %v3857
        %v3859 = vsel %vm3856, %v3858, %v3854
        %v3860 = vmul.f32 1.0, %v3859
        %v3861 = vrcp.pop %v3755
        %v3862 = vmul.f32 %v3755, %v3861
        %v3863 = vsub.f32 1.0, %v3862
        %v3864 = vmul.f32 %v3861, %v3863
        %v3865 = vadd.f32 %v3861, %v3864
        %vm3866 = vweird.f32 %v3755
        %vm3867 = vweird.f32 %v3861
        %vm3868 = vmor %vm3866, %vm3867
        %v3869 = vsel %vm3868, %v3861, %v3865
        %v3870 = vand.u32 2147483647, %v3755
        %vm3871 = vcmp.eq.f32.partialorder %v3870, 8.507059e+37
        %v3872 = vand.u32 %v3755, 2147483648
        %v3873 = vor.u32 1.1754944e-38, %v3872
        %v3874 = vsel %vm3871, %v3873, %v3869
        %v3875 = vmul.f32 1.0, %v3874
        %v3876 = vld [vmem:[%s262] sm:$0xff]
        %v3877 = vld [vmem:[%s262 + $0x8] sm:$0xff]
        %v3878 = vld [vmem:[%s262 + $0x10] sm:$0xff]
        %v3879 = vld [vmem:[%s262 + $0x18] sm:$0xff]
        %v3880 = vld [vmem:[%s262 + $0x20] sm:$0xff]
        %v3881 = vld [vmem:[%s262 + $0x28] sm:$0xff]
        %v3882 = vld [vmem:[%s262 + $0x30] sm:$0xff]
        %v3883 = vld [vmem:[%s262 + $0x38] sm:$0xff]
        %v3884 = vmul.f32 %v3770, %v3876
        %v3885 = vmul.f32 %v3785, %v3877
        %v3886 = vmul.f32 %v3800, %v3878
        %v3887 = vmul.f32 %v3815, %v3879
        %v3888 = vmul.f32 %v3830, %v3880
        %v3889 = vmul.f32 %v3845, %v3881
        %v3890 = vmul.f32 %v3860, %v3882
        %v3891 = vmul.f32 %v3875, %v3883
        %v3892 = vadd.f32 %v3884, 0.0
        %v3893 = vadd.f32 %v3885, 0.0
        %v3894 = vadd.f32 %v3886, 0.0
        %v3895 = vadd.f32 %v3887, 0.0
        %v3896 = vadd.f32 %v3888, 0.0
        %v3897 = vadd.f32 %v3889, 0.0
        %v3898 = vadd.f32 %v3890, 0.0
        %v3899 = vadd.f32 %v3891, 0.0
        %v3900 = vadd.f32 %v3770, 0.0
        %v3901 = vadd.f32 %v3785, 0.0
        %v3902 = vadd.f32 %v3800, 0.0
        %v3903 = vadd.f32 %v3815, 0.0
        %v3904 = vadd.f32 %v3830, 0.0
        %v3905 = vadd.f32 %v3845, 0.0
        %v3906 = vadd.f32 %v3860, 0.0
        %v3907 = vadd.f32 %v3875, 0.0
        %s3908 = scalar_lea.vmem %s257, 72
        %v3909 = vld [vmem:[%s3908] sm:$0xff]
        %v3910 = vld [vmem:[%s3908 + $0x8] sm:$0xff]
        %v3911 = vld [vmem:[%s3908 + $0x10] sm:$0xf]
        %s3912 = scalar_lea.vmem %s257, 96
        %v3913 = vld [vmem:[%s3912] sm:$0xff]
        %v3914 = vld [vmem:[%s3912 + $0x8] sm:$0xff]
        %v3915 = vld [vmem:[%s3912 + $0x10] sm:$0xf]
        %s3916 = scalar_lea.vmem %s257, 120
        %v3917 = vld [vmem:[%s3916] sm:$0xff]
        %v3918 = vld [vmem:[%s3916 + $0x8] sm:$0xff]
        %v3919 = vld [vmem:[%s3916 + $0x10] sm:$0xf]
        %v3920 = vmul.f32 %v1922, %v3909
        %v3921 = vmul.f32 %v1922, %v3910
        %v3922 = vmul.f32 %v1922, %v3911
        %v3923 = vadd.f32 %v3920, 0.0
        %v3924 = vadd.f32 %v3921, 0.0
        %v3925 = vadd.f32 %v3922, 0.0
        %v3926 = vmul.f32 %v1930, %v3909
        %v3927 = vmul.f32 %v1930, %v3910
        %v3928 = vmul.f32 %v1930, %v3911
        %v3929 = vadd.f32 %v3926, 0.0
        %v3930 = vadd.f32 %v3927, 0.0
        %v3931 = vadd.f32 %v3928, 0.0
        %v3932 = vmul.f32 %v1938, %v3909
        %v3933 = vmul.f32 %v1938, %v3910
        %v3934 = vmul.f32 %v1938, %v3911
        %v3935 = vadd.f32 %v3932, 0.0
        %v3936 = vadd.f32 %v3933, 0.0
        %v3937 = vadd.f32 %v3934, 0.0
        %v3938 = vmul.f32 %v1946, %v3909
        %v3939 = vmul.f32 %v1946, %v3910
        %v3940 = vmul.f32 %v1946, %v3911
        %v3941 = vadd.f32 %v3938, 0.0
        %v3942 = vadd.f32 %v3939, 0.0
        %v3943 = vadd.f32 %v3940, 0.0
        %v3944 = vmul.f32 %v1954, %v3913
        %v3945 = vmul.f32 %v1954, %v3914
        %v3946 = vmul.f32 %v1954, %v3915
        %v3947 = vadd.f32 %v3923, %v3944
        %v3948 = vadd.f32 %v3924, %v3945
        %v3949 = vadd.f32 %v3925, %v3946
        %v3950 = vmul.f32 %v1962, %v3913
        %v3951 = vmul.f32 %v1962, %v3914
        %v3952 = vmul.f32 %v1962, %v3915
        %v3953 = vadd.f32 %v3929, %v3950
        %v3954 = vadd.f32 %v3930, %v3951
        %v3955 = vadd.f32 %v3931, %v3952
        %v3956 = vmul.f32 %v1970, %v3913
        %v3957 = vmul.f32 %v1970, %v3914
        %v3958 = vmul.f32 %v1970, %v3915
        %v3959 = vadd.f32 %v3935, %v3956
        %v3960 = vadd.f32 %v3936, %v3957
        %v3961 = vadd.f32 %v3937, %v3958
        %v3962 = vmul.f32 %v1978, %v3913
        %v3963 = vmul.f32 %v1978, %v3914
        %v3964 = vmul.f32 %v1978, %v3915
        %v3965 = vadd.f32 %v3941, %v3962
        %v3966 = vadd.f32 %v3942, %v3963
        %v3967 = vadd.f32 %v3943, %v3964
        %v3968 = vmul.f32 %v1986, %v3917
        %v3969 = vmul.f32 %v1986, %v3918
        %v3970 = vmul.f32 %v1986, %v3919
        %v3971 = vadd.f32 %v3947, %v3968
        %v3972 = vadd.f32 %v3948, %v3969
        %v3973 = vadd.f32 %v3949, %v3970
        %v3974 = vmul.f32 %v1994, %v3917
        %v3975 = vmul.f32 %v1994, %v3918
        %v3976 = vmul.f32 %v1994, %v3919
        %v3977 = vadd.f32 %v3953, %v3974
        %v3978 = vadd.f32 %v3954, %v3975
        %v3979 = vadd.f32 %v3955, %v3976
        %v3980 = vmul.f32 %v2002, %v3917
        %v3981 = vmul.f32 %v2002, %v3918
        %v3982 = vmul.f32 %v2002, %v3919
        %v3983 = vadd.f32 %v3959, %v3980
        %v3984 = vadd.f32 %v3960, %v3981
        %v3985 = vadd.f32 %v3961, %v3982
        %v3986 = vmul.f32 %v2010, %v3917
        %v3987 = vmul.f32 %v2010, %v3918
        %v3988 = vmul.f32 %v2010, %v3919
        %v3989 = vadd.f32 %v3965, %v3986
        %v3990 = vadd.f32 %v3966, %v3987
        %v3991 = vadd.f32 %v3967, %v3988
        %v3992 = vmul.f32 %v2018, %v3909
        %v3993 = vmul.f32 %v2018, %v3910
        %v3994 = vmul.f32 %v2018, %v3911
        %v3998 = vrot.slane %v3992, 1
        %v3999 = vrot.slane %v3993, 1
        %v4000 = vsel %vm382, %v3998, %v3999
        %v4001 = vrot.slane %v3994, 1
        %v4002 = vsel %vm382, %v3999, %v4001
        %v4006 = vadd.f32 %v3971, %v4000
        %v4007 = vadd.f32 %v3972, %v4002
        %v4008 = vadd.f32 %v3973, %v4001
        %v4009 = vmul.f32 %v2037, %v3909
        %v4010 = vmul.f32 %v2037, %v3910
        %v4011 = vmul.f32 %v2037, %v3911
        %v4015 = vrot.slane %v4009, 1
        %v4016 = vrot.slane %v4010, 1
        %v4017 = vsel %vm382, %v4015, %v4016
        %v4018 = vrot.slane %v4011, 1
        %v4019 = vsel %vm382, %v4016, %v4018
        %v4023 = vadd.f32 %v3977, %v4017
        %v4024 = vadd.f32 %v3978, %v4019
        %v4025 = vadd.f32 %v3979, %v4018
        %v4026 = vmul.f32 %v2056, %v3909
        %v4027 = vmul.f32 %v2056, %v3910
        %v4028 = vmul.f32 %v2056, %v3911
        %v4032 = vrot.slane %v4026, 1
        %v4033 = vrot.slane %v4027, 1
        %v4034 = vsel %vm382, %v4032, %v4033
        %v4035 = vrot.slane %v4028, 1
        %v4036 = vsel %vm382, %v4033, %v4035
        %v4040 = vadd.f32 %v3983, %v4034
        %v4041 = vadd.f32 %v3984, %v4036
        %v4042 = vadd.f32 %v3985, %v4035
        %v4043 = vmul.f32 %v2075, %v3909
        %v4044 = vmul.f32 %v2075, %v3910
        %v4045 = vmul.f32 %v2075, %v3911
        %v4049 = vrot.slane %v4043, 1
        %v4050 = vrot.slane %v4044, 1
        %v4051 = vsel %vm382, %v4049, %v4050
        %v4052 = vrot.slane %v4045, 1
        %v4053 = vsel %vm382, %v4050, %v4052
        %v4057 = vadd.f32 %v3989, %v4051
        %v4058 = vadd.f32 %v3990, %v4053
        %v4059 = vadd.f32 %v3991, %v4052
        %v4060 = vmul.f32 %v2094, %v3913
        %v4061 = vmul.f32 %v2094, %v3914
        %v4062 = vmul.f32 %v2094, %v3915
        %v4066 = vrot.slane %v4060, 1
        %v4067 = vrot.slane %v4061, 1
        %v4068 = vsel %vm382, %v4066, %v4067
        %v4069 = vrot.slane %v4062, 1
        %v4070 = vsel %vm382, %v4067, %v4069
        %v4074 = vadd.f32 %v4006, %v4068
        %v4075 = vadd.f32 %v4007, %v4070
        %v4076 = vadd.f32 %v4008, %v4069
        %v4077 = vmul.f32 %v2113, %v3913
        %v4078 = vmul.f32 %v2113, %v3914
        %v4079 = vmul.f32 %v2113, %v3915
        %v4083 = vrot.slane %v4077, 1
        %v4084 = vrot.slane %v4078, 1
        %v4085 = vsel %vm382, %v4083, %v4084
        %v4086 = vrot.slane %v4079, 1
        %v4087 = vsel %vm382, %v4084, %v4086
        %v4091 = vadd.f32 %v4023, %v4085
        %v4092 = vadd.f32 %v4024, %v4087
        %v4093 = vadd.f32 %v4025, %v4086
        %v4094 = vmul.f32 %v2132, %v3913
        %v4095 = vmul.f32 %v2132, %v3914
        %v4096 = vmul.f32 %v2132, %v3915
        %v4100 = vrot.slane %v4094, 1
        %v4101 = vrot.slane %v4095, 1
        %v4102 = vsel %vm382, %v4100, %v4101
        %v4103 = vrot.slane %v4096, 1
        %v4104 = vsel %vm382, %v4101, %v4103
        %v4108 = vadd.f32 %v4040, %v4102
        %v4109 = vadd.f32 %v4041, %v4104
        %v4110 = vadd.f32 %v4042, %v4103
        %v4111 = vmul.f32 %v2151, %v3913
        %v4112 = vmul.f32 %v2151, %v3914
        %v4113 = vmul.f32 %v2151, %v3915
        %v4117 = vrot.slane %v4111, 1
        %v4118 = vrot.slane %v4112, 1
        %v4119 = vsel %vm382, %v4117, %v4118
        %v4120 = vrot.slane %v4113, 1
        %v4121 = vsel %vm382, %v4118, %v4120
        %v4125 = vadd.f32 %v4057, %v4119
        %v4126 = vadd.f32 %v4058, %v4121
        %v4127 = vadd.f32 %v4059, %v4120
        %v4128 = vmul.f32 %v2170, %v3917
        %v4129 = vmul.f32 %v2170, %v3918
        %v4130 = vmul.f32 %v2170, %v3919
        %v4134 = vrot.slane %v4128, 1
        %v4135 = vrot.slane %v4129, 1
        %v4136 = vsel %vm382, %v4134, %v4135
        %v4137 = vrot.slane %v4130, 1
        %v4138 = vsel %vm382, %v4135, %v4137
        %v4142 = vadd.f32 %v4074, %v4136
        %v4143 = vadd.f32 %v4075, %v4138
        %v4144 = vadd.f32 %v4076, %v4137
        %v4145 = vmul.f32 %v2189, %v3917
        %v4146 = vmul.f32 %v2189, %v3918
        %v4147 = vmul.f32 %v2189, %v3919
        %v4151 = vrot.slane %v4145, 1
        %v4152 = vrot.slane %v4146, 1
        %v4153 = vsel %vm382, %v4151, %v4152
        %v4154 = vrot.slane %v4147, 1
        %v4155 = vsel %vm382, %v4152, %v4154
        %v4159 = vadd.f32 %v4091, %v4153
        %v4160 = vadd.f32 %v4092, %v4155
        %v4161 = vadd.f32 %v4093, %v4154
        %v4162 = vmul.f32 %v2208, %v3917
        %v4163 = vmul.f32 %v2208, %v3918
        %v4164 = vmul.f32 %v2208, %v3919
        %v4168 = vrot.slane %v4162, 1
        %v4169 = vrot.slane %v4163, 1
        %v4170 = vsel %vm382, %v4168, %v4169
        %v4171 = vrot.slane %v4164, 1
        %v4172 = vsel %vm382, %v4169, %v4171
        %v4176 = vadd.f32 %v4108, %v4170
        %v4177 = vadd.f32 %v4109, %v4172
        %v4178 = vadd.f32 %v4110, %v4171
        %v4179 = vmul.f32 %v2227, %v3917
        %v4180 = vmul.f32 %v2227, %v3918
        %v4181 = vmul.f32 %v2227, %v3919
        %v4185 = vrot.slane %v4179, 1
        %v4186 = vrot.slane %v4180, 1
        %v4187 = vsel %vm382, %v4185, %v4186
        %v4188 = vrot.slane %v4181, 1
        %v4189 = vsel %vm382, %v4186, %v4188
        %v4193 = vadd.f32 %v4125, %v4187
        %v4194 = vadd.f32 %v4126, %v4189
        %v4195 = vadd.f32 %v4127, %v4188
        %v4196 = vmul.f32 %v2246, %v3909
        %v4197 = vmul.f32 %v2246, %v3910
        %v4198 = vmul.f32 %v2246, %v3911
        %v4202 = vrot.slane %v4196, 2
        %v4203 = vrot.slane %v4197, 2
        %v4204 = vsel %vm611, %v4202, %v4203
        %v4205 = vrot.slane %v4198, 2
        %v4206 = vsel %vm611, %v4203, %v4205
        %v4210 = vadd.f32 %v4142, %v4204
        %v4211 = vadd.f32 %v4143, %v4206
        %v4212 = vadd.f32 %v4144, %v4205
        %v4213 = vmul.f32 %v2265, %v3909
        %v4214 = vmul.f32 %v2265, %v3910
        %v4215 = vmul.f32 %v2265, %v3911
        %v4219 = vrot.slane %v4213, 2
        %v4220 = vrot.slane %v4214, 2
        %v4221 = vsel %vm611, %v4219, %v4220
        %v4222 = vrot.slane %v4215, 2
        %v4223 = vsel %vm611, %v4220, %v4222
        %v4227 = vadd.f32 %v4159, %v4221
        %v4228 = vadd.f32 %v4160, %v4223
        %v4229 = vadd.f32 %v4161, %v4222
        %v4230 = vmul.f32 %v2284, %v3909
        %v4231 = vmul.f32 %v2284, %v3910
        %v4232 = vmul.f32 %v2284, %v3911
        %v4236 = vrot.slane %v4230, 2
        %v4237 = vrot.slane %v4231, 2
        %v4238 = vsel %vm611, %v4236, %v4237
        %v4239 = vrot.slane %v4232, 2
        %v4240 = vsel %vm611, %v4237, %v4239
        %v4244 = vadd.f32 %v4176, %v4238
        %v4245 = vadd.f32 %v4177, %v4240
        %v4246 = vadd.f32 %v4178, %v4239
        %v4247 = vmul.f32 %v2303, %v3909
        %v4248 = vmul.f32 %v2303, %v3910
        %v4249 = vmul.f32 %v2303, %v3911
        %v4253 = vrot.slane %v4247, 2
        %v4254 = vrot.slane %v4248, 2
        %v4255 = vsel %vm611, %v4253, %v4254
        %v4256 = vrot.slane %v4249, 2
        %v4257 = vsel %vm611, %v4254, %v4256
        %v4261 = vadd.f32 %v4193, %v4255
        %v4262 = vadd.f32 %v4194, %v4257
        %v4263 = vadd.f32 %v4195, %v4256
        %v4264 = vmul.f32 %v2322, %v3913
        %v4265 = vmul.f32 %v2322, %v3914
        %v4266 = vmul.f32 %v2322, %v3915
        %v4270 = vrot.slane %v4264, 2
        %v4271 = vrot.slane %v4265, 2
        %v4272 = vsel %vm611, %v4270, %v4271
        %v4273 = vrot.slane %v4266, 2
        %v4274 = vsel %vm611, %v4271, %v4273
        %v4278 = vadd.f32 %v4210, %v4272
        %v4279 = vadd.f32 %v4211, %v4274
        %v4280 = vadd.f32 %v4212, %v4273
        %v4281 = vmul.f32 %v2341, %v3913
        %v4282 = vmul.f32 %v2341, %v3914
        %v4283 = vmul.f32 %v2341, %v3915
        %v4287 = vrot.slane %v4281, 2
        %v4288 = vrot.slane %v4282, 2
        %v4289 = vsel %vm611, %v4287, %v4288
        %v4290 = vrot.slane %v4283, 2
        %v4291 = vsel %vm611, %v4288, %v4290
        %v4295 = vadd.f32 %v4227, %v4289
        %v4296 = vadd.f32 %v4228, %v4291
        %v4297 = vadd.f32 %v4229, %v4290
        %v4298 = vmul.f32 %v2360, %v3913
        %v4299 = vmul.f32 %v2360, %v3914
        %v4300 = vmul.f32 %v2360, %v3915
        %v4304 = vrot.slane %v4298, 2
        %v4305 = vrot.slane %v4299, 2
        %v4306 = vsel %vm611, %v4304, %v4305
        %v4307 = vrot.slane %v4300, 2
        %v4308 = vsel %vm611, %v4305, %v4307
        %v4312 = vadd.f32 %v4244, %v4306
        %v4313 = vadd.f32 %v4245, %v4308
        %v4314 = vadd.f32 %v4246, %v4307
        %v4315 = vmul.f32 %v2379, %v3913
        %v4316 = vmul.f32 %v2379, %v3914
        %v4317 = vmul.f32 %v2379, %v3915
        %v4321 = vrot.slane %v4315, 2
        %v4322 = vrot.slane %v4316, 2
        %v4323 = vsel %vm611, %v4321, %v4322
        %v4324 = vrot.slane %v4317, 2
        %v4325 = vsel %vm611, %v4322, %v4324
        %v4329 = vadd.f32 %v4261, %v4323
        %v4330 = vadd.f32 %v4262, %v4325
        %v4331 = vadd.f32 %v4263, %v4324
        %v4332 = vmul.f32 %v2398, %v3917
        %v4333 = vmul.f32 %v2398, %v3918
        %v4334 = vmul.f32 %v2398, %v3919
        %v4338 = vrot.slane %v4332, 2
        %v4339 = vrot.slane %v4333, 2
        %v4340 = vsel %vm611, %v4338, %v4339
        %v4341 = vrot.slane %v4334, 2
        %v4342 = vsel %vm611, %v4339, %v4341
        %v4346 = vadd.f32 %v4278, %v4340
        %v4347 = vadd.f32 %v4279, %v4342
        %v4348 = vadd.f32 %v4280, %v4341
        %v4349 = vmul.f32 %v2417, %v3917
        %v4350 = vmul.f32 %v2417, %v3918
        %v4351 = vmul.f32 %v2417, %v3919
        %v4355 = vrot.slane %v4349, 2
        %v4356 = vrot.slane %v4350, 2
        %v4357 = vsel %vm611, %v4355, %v4356
        %v4358 = vrot.slane %v4351, 2
        %v4359 = vsel %vm611, %v4356, %v4358
        %v4363 = vadd.f32 %v4295, %v4357
        %v4364 = vadd.f32 %v4296, %v4359
        %v4365 = vadd.f32 %v4297, %v4358
        %v4366 = vmul.f32 %v2436, %v3917
        %v4367 = vmul.f32 %v2436, %v3918
        %v4368 = vmul.f32 %v2436, %v3919
        %v4372 = vrot.slane %v4366, 2
        %v4373 = vrot.slane %v4367, 2
        %v4374 = vsel %vm611, %v4372, %v4373
        %v4375 = vrot.slane %v4368, 2
        %v4376 = vsel %vm611, %v4373, %v4375
        %v4380 = vadd.f32 %v4312, %v4374
        %v4381 = vadd.f32 %v4313, %v4376
        %v4382 = vadd.f32 %v4314, %v4375
        %v4383 = vmul.f32 %v2455, %v3917
        %v4384 = vmul.f32 %v2455, %v3918
        %v4385 = vmul.f32 %v2455, %v3919
        %v4389 = vrot.slane %v4383, 2
        %v4390 = vrot.slane %v4384, 2
        %v4391 = vsel %vm611, %v4389, %v4390
        %v4392 = vrot.slane %v4385, 2
        %v4393 = vsel %vm611, %v4390, %v4392
        %v4397 = vadd.f32 %v4329, %v4391
        %v4398 = vadd.f32 %v4330, %v4393
        %v4399 = vadd.f32 %v4331, %v4392
        %4403 = vrot.lane.b32.xlu0 %v4346, 110
        %v4404 = vpop.permute.xlu0 %4403
        %4405 = vrot.lane.b32.xlu0 %v4347, 110
        %v4406 = vpop.permute.xlu0 %4405
        %4407 = vrot.lane.b32.xlu0 %v4348, 110
        %v4408 = vpop.permute.xlu0 %4407
        %v4412 = vadd.f32 %v4346, %v4404
        %v4413 = vadd.f32 %v4347, %v4406
        %v4414 = vadd.f32 %v4348, %v4408
        %4415 = vrot.lane.b32.xlu0 %v4346, 92
        %v4416 = vpop.permute.xlu0 %4415
        %4417 = vrot.lane.b32.xlu0 %v4347, 92
        %v4418 = vpop.permute.xlu0 %4417
        %4419 = vrot.lane.b32.xlu0 %v4348, 92
        %v4420 = vpop.permute.xlu0 %4419
        %v4424 = vadd.f32 %v4412, %v4416
        %v4425 = vadd.f32 %v4413, %v4418
        %v4426 = vadd.f32 %v4414, %v4420
        %4427 = vrot.lane.b32.xlu0 %v4346, 74
        %v4428 = vpop.permute.xlu0 %4427
        %4429 = vrot.lane.b32.xlu0 %v4347, 74
        %v4430 = vpop.permute.xlu0 %4429
        %4431 = vrot.lane.b32.xlu0 %v4348, 74
        %v4432 = vpop.permute.xlu0 %4431
        %v4436 = vadd.f32 %v4424, %v4428
        %v4437 = vadd.f32 %v4425, %v4430
        %v4438 = vadd.f32 %v4426, %v4432
        %v4439 = vadd.f32 %v4436, %v2513
        %v4440 = vadd.f32 %v4437, %v2513
        %v4441 = vadd.f32 %v4438, %v2513
        %v4442 = vmax.f32 %v4439, 0.0
        %v4443 = vmax.f32 %v4440, 0.0
        %v4444 = vmax.f32 %v4441, 0.0
        %v4445 = vmul.f32 %v4442, %v264
        %v4446 = vmul.f32 %v4443, %v265
        %v4447 = vmul.f32 %v4444, %v266
        %4451 = vrot.lane.b32.xlu0 %v4363, 110
        %v4452 = vpop.permute.xlu0 %4451
        %4453 = vrot.lane.b32.xlu0 %v4364, 110
        %v4454 = vpop.permute.xlu0 %4453
        %4455 = vrot.lane.b32.xlu0 %v4365, 110
        %v4456 = vpop.permute.xlu0 %4455
        %v4460 = vadd.f32 %v4363, %v4452
        %v4461 = vadd.f32 %v4364, %v4454
        %v4462 = vadd.f32 %v4365, %v4456
        %4463 = vrot.lane.b32.xlu0 %v4363, 92
        %v4464 = vpop.permute.xlu0 %4463
        %4465 = vrot.lane.b32.xlu0 %v4364, 92
        %v4466 = vpop.permute.xlu0 %4465
        %4467 = vrot.lane.b32.xlu0 %v4365, 92
        %v4468 = vpop.permute.xlu0 %4467
        %v4472 = vadd.f32 %v4460, %v4464
        %v4473 = vadd.f32 %v4461, %v4466
        %v4474 = vadd.f32 %v4462, %v4468
        %4475 = vrot.lane.b32.xlu0 %v4363, 74
        %v4476 = vpop.permute.xlu0 %4475
        %4477 = vrot.lane.b32.xlu0 %v4364, 74
        %v4478 = vpop.permute.xlu0 %4477
        %4479 = vrot.lane.b32.xlu0 %v4365, 74
        %v4480 = vpop.permute.xlu0 %4479
        %v4484 = vadd.f32 %v4472, %v4476
        %v4485 = vadd.f32 %v4473, %v4478
        %v4486 = vadd.f32 %v4474, %v4480
        %v4487 = vadd.f32 %v4484, %v2563
        %v4488 = vadd.f32 %v4485, %v2563
        %v4489 = vadd.f32 %v4486, %v2563
        %v4490 = vmax.f32 %v4487, 0.0
        %v4491 = vmax.f32 %v4488, 0.0
        %v4492 = vmax.f32 %v4489, 0.0
        %v4493 = vmul.f32 %v4490, %v264
        %v4494 = vmul.f32 %v4491, %v265
        %v4495 = vmul.f32 %v4492, %v266
        %4499 = vrot.lane.b32.xlu0 %v4380, 110
        %v4500 = vpop.permute.xlu0 %4499
        %4501 = vrot.lane.b32.xlu0 %v4381, 110
        %v4502 = vpop.permute.xlu0 %4501
        %4503 = vrot.lane.b32.xlu0 %v4382, 110
        %v4504 = vpop.permute.xlu0 %4503
        %v4508 = vadd.f32 %v4380, %v4500
        %v4509 = vadd.f32 %v4381, %v4502
        %v4510 = vadd.f32 %v4382, %v4504
        %4511 = vrot.lane.b32.xlu0 %v4380, 92
        %v4512 = vpop.permute.xlu0 %4511
        %4513 = vrot.lane.b32.xlu0 %v4381, 92
        %v4514 = vpop.permute.xlu0 %4513
        %4515 = vrot.lane.b32.xlu0 %v4382, 92
        %v4516 = vpop.permute.xlu0 %4515
        %v4520 = vadd.f32 %v4508, %v4512
        %v4521 = vadd.f32 %v4509, %v4514
        %v4522 = vadd.f32 %v4510, %v4516
        %4523 = vrot.lane.b32.xlu0 %v4380, 74
        %v4524 = vpop.permute.xlu0 %4523
        %4525 = vrot.lane.b32.xlu0 %v4381, 74
        %v4526 = vpop.permute.xlu0 %4525
        %4527 = vrot.lane.b32.xlu0 %v4382, 74
        %v4528 = vpop.permute.xlu0 %4527
        %v4532 = vadd.f32 %v4520, %v4524
        %v4533 = vadd.f32 %v4521, %v4526
        %v4534 = vadd.f32 %v4522, %v4528
        %v4535 = vadd.f32 %v4532, %v2613
        %v4536 = vadd.f32 %v4533, %v2613
        %v4537 = vadd.f32 %v4534, %v2613
        %v4538 = vmax.f32 %v4535, 0.0
        %v4539 = vmax.f32 %v4536, 0.0
        %v4540 = vmax.f32 %v4537, 0.0
        %v4541 = vmul.f32 %v4538, %v264
        %v4542 = vmul.f32 %v4539, %v265
        %v4543 = vmul.f32 %v4540, %v266
        %4547 = vrot.lane.b32.xlu0 %v4397, 110
        %v4548 = vpop.permute.xlu0 %4547
        %4549 = vrot.lane.b32.xlu0 %v4398, 110
        %v4550 = vpop.permute.xlu0 %4549
        %4551 = vrot.lane.b32.xlu0 %v4399, 110
        %v4552 = vpop.permute.xlu0 %4551
        %v4556 = vadd.f32 %v4397, %v4548
        %v4557 = vadd.f32 %v4398, %v4550
        %v4558 = vadd.f32 %v4399, %v4552
        %4559 = vrot.lane.b32.xlu0 %v4397, 92
        %v4560 = vpop.permute.xlu0 %4559
        %4561 = vrot.lane.b32.xlu0 %v4398, 92
        %v4562 = vpop.permute.xlu0 %4561
        %4563 = vrot.lane.b32.xlu0 %v4399, 92
        %v4564 = vpop.permute.xlu0 %4563
        %v4568 = vadd.f32 %v4556, %v4560
        %v4569 = vadd.f32 %v4557, %v4562
        %v4570 = vadd.f32 %v4558, %v4564
        %4571 = vrot.lane.b32.xlu0 %v4397, 74
        %v4572 = vpop.permute.xlu0 %4571
        %4573 = vrot.lane.b32.xlu0 %v4398, 74
        %v4574 = vpop.permute.xlu0 %4573
        %4575 = vrot.lane.b32.xlu0 %v4399, 74
        %v4576 = vpop.permute.xlu0 %4575
        %v4580 = vadd.f32 %v4568, %v4572
        %v4581 = vadd.f32 %v4569, %v4574
        %v4582 = vadd.f32 %v4570, %v4576
        %v4583 = vadd.f32 %v4580, %v2663
        %v4584 = vadd.f32 %v4581, %v2663
        %v4585 = vadd.f32 %v4582, %v2663
        %v4586 = vmax.f32 %v4583, 0.0
        %v4587 = vmax.f32 %v4584, 0.0
        %v4588 = vmax.f32 %v4585, 0.0
        %v4589 = vmul.f32 %v4586, %v264
        %v4590 = vmul.f32 %v4587, %v265
        %v4591 = vmul.f32 %v4588, %v266
        %4595 = vrot.lane.b32.xlu0 %v4493, 16
        %v4596 = vpop.permute.xlu0 %4595
        %4597 = vrot.lane.b32.xlu0 %v4494, 16
        %v4598 = vpop.permute.xlu0 %4597
        %4599 = vrot.lane.b32.xlu0 %v4495, 16
        %v4600 = vpop.permute.xlu0 %4599
        %4607 = vrot.lane.b32.xlu0 %v4541, 32
        %v4608 = vpop.permute.xlu0 %4607
        %4609 = vrot.lane.b32.xlu0 %v4542, 32
        %v4610 = vpop.permute.xlu0 %4609
        %4611 = vrot.lane.b32.xlu0 %v4543, 32
        %v4612 = vpop.permute.xlu0 %4611
        %4619 = vrot.lane.b32.xlu0 %v4589, 48
        %v4620 = vpop.permute.xlu0 %4619
        %4621 = vrot.lane.b32.xlu0 %v4590, 48
        %v4622 = vpop.permute.xlu0 %4621
        %4623 = vrot.lane.b32.xlu0 %v4591, 48
        %v4624 = vpop.permute.xlu0 %4623
        %v4628 = vsel %vm1068, %v4445, %v4596
        %v4629 = vsel %vm1068, %v4446, %v4598
        %v4630 = vsel %vm1068, %v4447, %v4600
        %v4631 = vsel %vm1072, %v4628, %v4608
        %v4632 = vsel %vm1072, %v4629, %v4610
        %v4633 = vsel %vm1072, %v4630, %v4612
        %v4634 = vsel %vm1076, %v4631, %v4620
        %v4635 = vsel %vm1076, %v4632, %v4622
        %v4636 = vsel %vm1076, %v4633, %v4624
        %4640 = vrot.lane.b32.xlu0 %v4445, 127
        %v4641 = vpop.permute.xlu0 %4640
        %4642 = vrot.lane.b32.xlu0 %v4446, 127
        %v4643 = vpop.permute.xlu0 %4642
        %4644 = vrot.lane.b32.xlu0 %v4447, 127
        %v4645 = vpop.permute.xlu0 %4644
        %4649 = vrot.lane.b32.xlu0 %v4493, 15
        %v4650 = vpop.permute.xlu0 %4649
        %4651 = vrot.lane.b32.xlu0 %v4494, 15
        %v4652 = vpop.permute.xlu0 %4651
        %4653 = vrot.lane.b32.xlu0 %v4495, 15
        %v4654 = vpop.permute.xlu0 %4653
        %4658 = vrot.lane.b32.xlu0 %v4541, 31
        %v4659 = vpop.permute.xlu0 %4658
        %4660 = vrot.lane.b32.xlu0 %v4542, 31
        %v4661 = vpop.permute.xlu0 %4660
        %4662 = vrot.lane.b32.xlu0 %v4543, 31
        %v4663 = vpop.permute.xlu0 %4662
        %4667 = vrot.lane.b32.xlu0 %v4589, 47
        %v4668 = vpop.permute.xlu0 %4667
        %4669 = vrot.lane.b32.xlu0 %v4590, 47
        %v4670 = vpop.permute.xlu0 %4669
        %4671 = vrot.lane.b32.xlu0 %v4591, 47
        %v4672 = vpop.permute.xlu0 %4671
        %v4676 = vsel %vm1068, %v4641, %v4650
        %v4677 = vsel %vm1068, %v4643, %v4652
        %v4678 = vsel %vm1068, %v4645, %v4654
        %v4679 = vsel %vm1072, %v4676, %v4659
        %v4680 = vsel %vm1072, %v4677, %v4661
        %v4681 = vsel %vm1072, %v4678, %v4663
        %v4682 = vsel %vm1076, %v4679, %v4668
        %v4683 = vsel %vm1076, %v4680, %v4670
        %v4684 = vsel %vm1076, %v4681, %v4672
        %4685 = vrot.lane.b32.xlu0 %v4445, 126
        %v4686 = vpop.permute.xlu0 %4685
        %4687 = vrot.lane.b32.xlu0 %v4446, 126
        %v4688 = vpop.permute.xlu0 %4687
        %4689 = vrot.lane.b32.xlu0 %v4447, 126
        %v4690 = vpop.permute.xlu0 %4689
        %4694 = vrot.lane.b32.xlu0 %v4493, 14
        %v4695 = vpop.permute.xlu0 %4694
        %4696 = vrot.lane.b32.xlu0 %v4494, 14
        %v4697 = vpop.permute.xlu0 %4696
        %4698 = vrot.lane.b32.xlu0 %v4495, 14
        %v4699 = vpop.permute.xlu0 %4698
        %4703 = vrot.lane.b32.xlu0 %v4541, 30
        %v4704 = vpop.permute.xlu0 %4703
        %4705 = vrot.lane.b32.xlu0 %v4542, 30
        %v4706 = vpop.permute.xlu0 %4705
        %4707 = vrot.lane.b32.xlu0 %v4543, 30
        %v4708 = vpop.permute.xlu0 %4707
        %4712 = vrot.lane.b32.xlu0 %v4589, 46
        %v4713 = vpop.permute.xlu0 %4712
        %4714 = vrot.lane.b32.xlu0 %v4590, 46
        %v4715 = vpop.permute.xlu0 %4714
        %4716 = vrot.lane.b32.xlu0 %v4591, 46
        %v4717 = vpop.permute.xlu0 %4716
        %v4721 = vsel %vm1068, %v4686, %v4695
        %v4722 = vsel %vm1068, %v4688, %v4697
        %v4723 = vsel %vm1068, %v4690, %v4699
        %v4724 = vsel %vm1072, %v4721, %v4704
        %v4725 = vsel %vm1072, %v4722, %v4706
        %v4726 = vsel %vm1072, %v4723, %v4708
        %v4727 = vsel %vm1076, %v4724, %v4713
        %v4728 = vsel %vm1076, %v4725, %v4715
        %v4729 = vsel %vm1076, %v4726, %v4717
        %v4730 = vmul.f32 %v2812, %v4634
        %v4731 = vmul.f32 %v2812, %v4635
        %v4732 = vadd.f32 %v4730, 0.0
        %v4733 = vadd.f32 %v4731, 0.0
        %v4734 = vmul.f32 %v2818, %v4634
        %v4735 = vmul.f32 %v2818, %v4635
        %v4736 = vadd.f32 %v4734, 0.0
        %v4737 = vadd.f32 %v4735, 0.0
        %v4738 = vmul.f32 %v2824, %v4634
        %v4739 = vmul.f32 %v2824, %v4635
        %v4740 = vadd.f32 %v4738, 0.0
        %v4741 = vadd.f32 %v4739, 0.0
        %v4742 = vmul.f32 %v2830, %v4634
        %v4743 = vmul.f32 %v2830, %v4635
        %v4744 = vadd.f32 %v4742, 0.0
        %v4745 = vadd.f32 %v4743, 0.0
        %v4746 = vmul.f32 %v2836, %v4682
        %v4747 = vmul.f32 %v2836, %v4683
        %v4748 = vadd.f32 %v4732, %v4746
        %v4749 = vadd.f32 %v4733, %v4747
        %v4750 = vmul.f32 %v2842, %v4682
        %v4751 = vmul.f32 %v2842, %v4683
        %v4752 = vadd.f32 %v4736, %v4750
        %v4753 = vadd.f32 %v4737, %v4751
        %v4754 = vmul.f32 %v2848, %v4682
        %v4755 = vmul.f32 %v2848, %v4683
        %v4756 = vadd.f32 %v4740, %v4754
        %v4757 = vadd.f32 %v4741, %v4755
        %v4758 = vmul.f32 %v2854, %v4682
        %v4759 = vmul.f32 %v2854, %v4683
        %v4760 = vadd.f32 %v4744, %v4758
        %v4761 = vadd.f32 %v4745, %v4759
        %v4762 = vmul.f32 %v2860, %v4727
        %v4763 = vmul.f32 %v2860, %v4728
        %v4764 = vadd.f32 %v4748, %v4762
        %v4765 = vadd.f32 %v4749, %v4763
        %v4766 = vmul.f32 %v2866, %v4727
        %v4767 = vmul.f32 %v2866, %v4728
        %v4768 = vadd.f32 %v4752, %v4766
        %v4769 = vadd.f32 %v4753, %v4767
        %v4770 = vmul.f32 %v2872, %v4727
        %v4771 = vmul.f32 %v2872, %v4728
        %v4772 = vadd.f32 %v4756, %v4770
        %v4773 = vadd.f32 %v4757, %v4771
        %v4774 = vmul.f32 %v2878, %v4727
        %v4775 = vmul.f32 %v2878, %v4728
        %v4776 = vadd.f32 %v4760, %v4774
        %v4777 = vadd.f32 %v4761, %v4775
        %v4778 = vmul.f32 %v2884, %v4634
        %v4779 = vmul.f32 %v2884, %v4635
        %v4780 = vmul.f32 %v2884, %v4636
        %v4784 = vrot.slane %v4778, 1
        %v4785 = vrot.slane %v4779, 1
        %v4786 = vsel %vm382, %v4784, %v4785
        %v4787 = vrot.slane %v4780, 1
        %v4788 = vsel %vm382, %v4785, %v4787
        %v4791 = vadd.f32 %v4764, %v4786
        %v4792 = vadd.f32 %v4765, %v4788
        %v4793 = vmul.f32 %v2901, %v4634
        %v4794 = vmul.f32 %v2901, %v4635
        %v4795 = vmul.f32 %v2901, %v4636
        %v4799 = vrot.slane %v4793, 1
        %v4800 = vrot.slane %v4794, 1
        %v4801 = vsel %vm382, %v4799, %v4800
        %v4802 = vrot.slane %v4795, 1
        %v4803 = vsel %vm382, %v4800, %v4802
        %v4806 = vadd.f32 %v4768, %v4801
        %v4807 = vadd.f32 %v4769, %v4803
        %v4808 = vmul.f32 %v2918, %v4634
        %v4809 = vmul.f32 %v2918, %v4635
        %v4810 = vmul.f32 %v2918, %v4636
        %v4814 = vrot.slane %v4808, 1
        %v4815 = vrot.slane %v4809, 1
        %v4816 = vsel %vm382, %v4814, %v4815
        %v4817 = vrot.slane %v4810, 1
        %v4818 = vsel %vm382, %v4815, %v4817
        %v4821 = vadd.f32 %v4772, %v4816
        %v4822 = vadd.f32 %v4773, %v4818
        %v4823 = vmul.f32 %v2935, %v4634
        %v4824 = vmul.f32 %v2935, %v4635
        %v4825 = vmul.f32 %v2935, %v4636
        %v4829 = vrot.slane %v4823, 1
        %v4830 = vrot.slane %v4824, 1
        %v4831 = vsel %vm382, %v4829, %v4830
        %v4832 = vrot.slane %v4825, 1
        %v4833 = vsel %vm382, %v4830, %v4832
        %v4836 = vadd.f32 %v4776, %v4831
        %v4837 = vadd.f32 %v4777, %v4833
        %v4838 = vmul.f32 %v2952, %v4682
        %v4839 = vmul.f32 %v2952, %v4683
        %v4840 = vmul.f32 %v2952, %v4684
        %v4844 = vrot.slane %v4838, 1
        %v4845 = vrot.slane %v4839, 1
        %v4846 = vsel %vm382, %v4844, %v4845
        %v4847 = vrot.slane %v4840, 1
        %v4848 = vsel %vm382, %v4845, %v4847
        %v4851 = vadd.f32 %v4791, %v4846
        %v4852 = vadd.f32 %v4792, %v4848
        %v4853 = vmul.f32 %v2969, %v4682
        %v4854 = vmul.f32 %v2969, %v4683
        %v4855 = vmul.f32 %v2969, %v4684
        %v4859 = vrot.slane %v4853, 1
        %v4860 = vrot.slane %v4854, 1
        %v4861 = vsel %vm382, %v4859, %v4860
        %v4862 = vrot.slane %v4855, 1
        %v4863 = vsel %vm382, %v4860, %v4862
        %v4866 = vadd.f32 %v4806, %v4861
        %v4867 = vadd.f32 %v4807, %v4863
        %v4868 = vmul.f32 %v2986, %v4682
        %v4869 = vmul.f32 %v2986, %v4683
        %v4870 = vmul.f32 %v2986, %v4684
        %v4874 = vrot.slane %v4868, 1
        %v4875 = vrot.slane %v4869, 1
        %v4876 = vsel %vm382, %v4874, %v4875
        %v4877 = vrot.slane %v4870, 1
        %v4878 = vsel %vm382, %v4875, %v4877
        %v4881 = vadd.f32 %v4821, %v4876
        %v4882 = vadd.f32 %v4822, %v4878
        %v4883 = vmul.f32 %v3003, %v4682
        %v4884 = vmul.f32 %v3003, %v4683
        %v4885 = vmul.f32 %v3003, %v4684
        %v4889 = vrot.slane %v4883, 1
        %v4890 = vrot.slane %v4884, 1
        %v4891 = vsel %vm382, %v4889, %v4890
        %v4892 = vrot.slane %v4885, 1
        %v4893 = vsel %vm382, %v4890, %v4892
        %v4896 = vadd.f32 %v4836, %v4891
        %v4897 = vadd.f32 %v4837, %v4893
        %v4898 = vmul.f32 %v3020, %v4727
        %v4899 = vmul.f32 %v3020, %v4728
        %v4900 = vmul.f32 %v3020, %v4729
        %v4904 = vrot.slane %v4898, 1
        %v4905 = vrot.slane %v4899, 1
        %v4906 = vsel %vm382, %v4904, %v4905
        %v4907 = vrot.slane %v4900, 1
        %v4908 = vsel %vm382, %v4905, %v4907
        %v4911 = vadd.f32 %v4851, %v4906
        %v4912 = vadd.f32 %v4852, %v4908
        %v4913 = vmul.f32 %v3037, %v4727
        %v4914 = vmul.f32 %v3037, %v4728
        %v4915 = vmul.f32 %v3037, %v4729
        %v4919 = vrot.slane %v4913, 1
        %v4920 = vrot.slane %v4914, 1
        %v4921 = vsel %vm382, %v4919, %v4920
        %v4922 = vrot.slane %v4915, 1
        %v4923 = vsel %vm382, %v4920, %v4922
        %v4926 = vadd.f32 %v4866, %v4921
        %v4927 = vadd.f32 %v4867, %v4923
        %v4928 = vmul.f32 %v3054, %v4727
        %v4929 = vmul.f32 %v3054, %v4728
        %v4930 = vmul.f32 %v3054, %v4729
        %v4934 = vrot.slane %v4928, 1
        %v4935 = vrot.slane %v4929, 1
        %v4936 = vsel %vm382, %v4934, %v4935
        %v4937 = vrot.slane %v4930, 1
        %v4938 = vsel %vm382, %v4935, %v4937
        %v4941 = vadd.f32 %v4881, %v4936
        %v4942 = vadd.f32 %v4882, %v4938
        %v4943 = vmul.f32 %v3071, %v4727
        %v4944 = vmul.f32 %v3071, %v4728
        %v4945 = vmul.f32 %v3071, %v4729
        %v4949 = vrot.slane %v4943, 1
        %v4950 = vrot.slane %v4944, 1
        %v4951 = vsel %vm382, %v4949, %v4950
        %v4952 = vrot.slane %v4945, 1
        %v4953 = vsel %vm382, %v4950, %v4952
        %v4956 = vadd.f32 %v4896, %v4951
        %v4957 = vadd.f32 %v4897, %v4953
        %v4958 = vmul.f32 %v3088, %v4634
        %v4959 = vmul.f32 %v3088, %v4635
        %v4960 = vmul.f32 %v3088, %v4636
        %v4964 = vrot.slane %v4958, 2
        %v4965 = vrot.slane %v4959, 2
        %v4966 = vsel %vm611, %v4964, %v4965
        %v4967 = vrot.slane %v4960, 2
        %v4968 = vsel %vm611, %v4965, %v4967
        %v4971 = vadd.f32 %v4911, %v4966
        %v4972 = vadd.f32 %v4912, %v4968
        %v4973 = vmul.f32 %v3105, %v4634
        %v4974 = vmul.f32 %v3105, %v4635
        %v4975 = vmul.f32 %v3105, %v4636
        %v4979 = vrot.slane %v4973, 2
        %v4980 = vrot.slane %v4974, 2
        %v4981 = vsel %vm611, %v4979, %v4980
        %v4982 = vrot.slane %v4975, 2
        %v4983 = vsel %vm611, %v4980, %v4982
        %v4986 = vadd.f32 %v4926, %v4981
        %v4987 = vadd.f32 %v4927, %v4983
        %v4988 = vmul.f32 %v3122, %v4634
        %v4989 = vmul.f32 %v3122, %v4635
        %v4990 = vmul.f32 %v3122, %v4636
        %v4994 = vrot.slane %v4988, 2
        %v4995 = vrot.slane %v4989, 2
        %v4996 = vsel %vm611, %v4994, %v4995
        %v4997 = vrot.slane %v4990, 2
        %v4998 = vsel %vm611, %v4995, %v4997
        %v5001 = vadd.f32 %v4941, %v4996
        %v5002 = vadd.f32 %v4942, %v4998
        %v5003 = vmul.f32 %v3139, %v4634
        %v5004 = vmul.f32 %v3139, %v4635
        %v5005 = vmul.f32 %v3139, %v4636
        %v5009 = vrot.slane %v5003, 2
        %v5010 = vrot.slane %v5004, 2
        %v5011 = vsel %vm611, %v5009, %v5010
        %v5012 = vrot.slane %v5005, 2
        %v5013 = vsel %vm611, %v5010, %v5012
        %v5016 = vadd.f32 %v4956, %v5011
        %v5017 = vadd.f32 %v4957, %v5013
        %v5018 = vmul.f32 %v3156, %v4682
        %v5019 = vmul.f32 %v3156, %v4683
        %v5020 = vmul.f32 %v3156, %v4684
        %v5024 = vrot.slane %v5018, 2
        %v5025 = vrot.slane %v5019, 2
        %v5026 = vsel %vm611, %v5024, %v5025
        %v5027 = vrot.slane %v5020, 2
        %v5028 = vsel %vm611, %v5025, %v5027
        %v5031 = vadd.f32 %v4971, %v5026
        %v5032 = vadd.f32 %v4972, %v5028
        %v5033 = vmul.f32 %v3173, %v4682
        %v5034 = vmul.f32 %v3173, %v4683
        %v5035 = vmul.f32 %v3173, %v4684
        %v5039 = vrot.slane %v5033, 2
        %v5040 = vrot.slane %v5034, 2
        %v5041 = vsel %vm611, %v5039, %v5040
        %v5042 = vrot.slane %v5035, 2
        %v5043 = vsel %vm611, %v5040, %v5042
        %v5046 = vadd.f32 %v4986, %v5041
        %v5047 = vadd.f32 %v4987, %v5043
        %v5048 = vmul.f32 %v3190, %v4682
        %v5049 = vmul.f32 %v3190, %v4683
        %v5050 = vmul.f32 %v3190, %v4684
        %v5054 = vrot.slane %v5048, 2
        %v5055 = vrot.slane %v5049, 2
        %v5056 = vsel %vm611, %v5054, %v5055
        %v5057 = vrot.slane %v5050, 2
        %v5058 = vsel %vm611, %v5055, %v5057
        %v5061 = vadd.f32 %v5001, %v5056
        %v5062 = vadd.f32 %v5002, %v5058
        %v5063 = vmul.f32 %v3207, %v4682
        %v5064 = vmul.f32 %v3207, %v4683
        %v5065 = vmul.f32 %v3207, %v4684
        %v5069 = vrot.slane %v5063, 2
        %v5070 = vrot.slane %v5064, 2
        %v5071 = vsel %vm611, %v5069, %v5070
        %v5072 = vrot.slane %v5065, 2
        %v5073 = vsel %vm611, %v5070, %v5072
        %v5076 = vadd.f32 %v5016, %v5071
        %v5077 = vadd.f32 %v5017, %v5073
        %v5078 = vmul.f32 %v3224, %v4727
        %v5079 = vmul.f32 %v3224, %v4728
        %v5080 = vmul.f32 %v3224, %v4729
        %v5084 = vrot.slane %v5078, 2
        %v5085 = vrot.slane %v5079, 2
        %v5086 = vsel %vm611, %v5084, %v5085
        %v5087 = vrot.slane %v5080, 2
        %v5088 = vsel %vm611, %v5085, %v5087
        %v5091 = vadd.f32 %v5031, %v5086
        %v5092 = vadd.f32 %v5032, %v5088
        %v5093 = vmul.f32 %v3241, %v4727
        %v5094 = vmul.f32 %v3241, %v4728
        %v5095 = vmul.f32 %v3241, %v4729
        %v5099 = vrot.slane %v5093, 2
        %v5100 = vrot.slane %v5094, 2
        %v5101 = vsel %vm611, %v5099, %v5100
        %v5102 = vrot.slane %v5095, 2
        %v5103 = vsel %vm611, %v5100, %v5102
        %v5106 = vadd.f32 %v5046, %v5101
        %v5107 = vadd.f32 %v5047, %v5103
        %v5108 = vmul.f32 %v3258, %v4727
        %v5109 = vmul.f32 %v3258, %v4728
        %v5110 = vmul.f32 %v3258, %v4729
        %v5114 = vrot.slane %v5108, 2
        %v5115 = vrot.slane %v5109, 2
        %v5116 = vsel %vm611, %v5114, %v5115
        %v5117 = vrot.slane %v5110, 2
        %v5118 = vsel %vm611, %v5115, %v5117
        %v5121 = vadd.f32 %v5061, %v5116
        %v5122 = vadd.f32 %v5062, %v5118
        %v5123 = vmul.f32 %v3275, %v4727
        %v5124 = vmul.f32 %v3275, %v4728
        %v5125 = vmul.f32 %v3275, %v4729
        %v5129 = vrot.slane %v5123, 2
        %v5130 = vrot.slane %v5124, 2
        %v5131 = vsel %vm611, %v5129, %v5130
        %v5132 = vrot.slane %v5125, 2
        %v5133 = vsel %vm611, %v5130, %v5132
        %v5136 = vadd.f32 %v5076, %v5131
        %v5137 = vadd.f32 %v5077, %v5133
        %5140 = vrot.lane.b32.xlu0 %v5091, 112
        %v5141 = vpop.permute.xlu0 %5140
        %5142 = vrot.lane.b32.xlu0 %v5092, 112
        %v5143 = vpop.permute.xlu0 %5142
        %v5146 = vadd.f32 %v5091, %v5141
        %v5147 = vadd.f32 %v5092, %v5143
        %5148 = vrot.lane.b32.xlu0 %v5091, 96
        %v5149 = vpop.permute.xlu0 %5148
        %5150 = vrot.lane.b32.xlu0 %v5092, 96
        %v5151 = vpop.permute.xlu0 %5150
        %v5154 = vadd.f32 %v5146, %v5149
        %v5155 = vadd.f32 %v5147, %v5151
        %5156 = vrot.lane.b32.xlu0 %v5091, 80
        %v5157 = vpop.permute.xlu0 %5156
        %5158 = vrot.lane.b32.xlu0 %v5092, 80
        %v5159 = vpop.permute.xlu0 %5158
        %v5162 = vadd.f32 %v5154, %v5157
        %v5163 = vadd.f32 %v5155, %v5159
        %v5166 = vrot.slane %v5162, 6
        %v5167 = vrot.slane %v5163, 6
        %v5168 = vsel %vm1681, %v5166, %v5167
        %5169 = vrot.lane.b32.xlu0 %v5166, 2
        %v5170 = vpop.permute.xlu0 %5169
        %5171 = vrot.lane.b32.xlu0 %v5168, 2
        %v5172 = vpop.permute.xlu0 %5171
        %5173 = vrot.lane.b32.xlu0 %v5167, 2
        %v5174 = vpop.permute.xlu0 %5173
        %v5178 = vadd.f32 %v3909, %v5170
        %v5179 = vadd.f32 %v3910, %v5172
        %v5180 = vadd.f32 %v3911, %v5174
        %v5181 = vadd.f32 %v5178, %v3338
        %v5182 = vadd.f32 %v5179, %v3338
        %v5183 = vadd.f32 %v5180, %v3338
        %5186 = vrot.lane.b32.xlu0 %v5106, 112
        %v5187 = vpop.permute.xlu0 %5186
        %5188 = vrot.lane.b32.xlu0 %v5107, 112
        %v5189 = vpop.permute.xlu0 %5188
        %v5192 = vadd.f32 %v5106, %v5187
        %v5193 = vadd.f32 %v5107, %v5189
        %5194 = vrot.lane.b32.xlu0 %v5106, 96
        %v5195 = vpop.permute.xlu0 %5194
        %5196 = vrot.lane.b32.xlu0 %v5107, 96
        %v5197 = vpop.permute.xlu0 %5196
        %v5200 = vadd.f32 %v5192, %v5195
        %v5201 = vadd.f32 %v5193, %v5197
        %5202 = vrot.lane.b32.xlu0 %v5106, 80
        %v5203 = vpop.permute.xlu0 %5202
        %5204 = vrot.lane.b32.xlu0 %v5107, 80
        %v5205 = vpop.permute.xlu0 %5204
        %v5208 = vadd.f32 %v5200, %v5203
        %v5209 = vadd.f32 %v5201, %v5205
        %v5212 = vrot.slane %v5208, 6
        %v5213 = vrot.slane %v5209, 6
        %v5214 = vsel %vm1681, %v5212, %v5213
        %5215 = vrot.lane.b32.xlu0 %v5212, 20
        %v5216 = vpop.permute.xlu0 %5215
        %5217 = vrot.lane.b32.xlu0 %v5214, 20
        %v5218 = vpop.permute.xlu0 %5217
        %5219 = vrot.lane.b32.xlu0 %v5213, 20
        %v5220 = vpop.permute.xlu0 %5219
        %v5224 = vadd.f32 %v3909, %v5216
        %v5225 = vadd.f32 %v3910, %v5218
        %v5226 = vadd.f32 %v3911, %v5220
        %v5227 = vadd.f32 %v5224, %v3390
        %v5228 = vadd.f32 %v5225, %v3390
        %v5229 = vadd.f32 %v5226, %v3390
        %5232 = vrot.lane.b32.xlu0 %v5121, 112
        %v5233 = vpop.permute.xlu0 %5232
        %5234 = vrot.lane.b32.xlu0 %v5122, 112
        %v5235 = vpop.permute.xlu0 %5234
        %v5238 = vadd.f32 %v5121, %v5233
        %v5239 = vadd.f32 %v5122, %v5235
        %5240 = vrot.lane.b32.xlu0 %v5121, 96
        %v5241 = vpop.permute.xlu0 %5240
        %5242 = vrot.lane.b32.xlu0 %v5122, 96
        %v5243 = vpop.permute.xlu0 %5242
        %v5246 = vadd.f32 %v5238, %v5241
        %v5247 = vadd.f32 %v5239, %v5243
        %5248 = vrot.lane.b32.xlu0 %v5121, 80
        %v5249 = vpop.permute.xlu0 %5248
        %5250 = vrot.lane.b32.xlu0 %v5122, 80
        %v5251 = vpop.permute.xlu0 %5250
        %v5254 = vadd.f32 %v5246, %v5249
        %v5255 = vadd.f32 %v5247, %v5251
        %v5258 = vrot.slane %v5254, 6
        %v5259 = vrot.slane %v5255, 6
        %v5260 = vsel %vm1681, %v5258, %v5259
        %5261 = vrot.lane.b32.xlu0 %v5258, 38
        %v5262 = vpop.permute.xlu0 %5261
        %5263 = vrot.lane.b32.xlu0 %v5260, 38
        %v5264 = vpop.permute.xlu0 %5263
        %5265 = vrot.lane.b32.xlu0 %v5259, 38
        %v5266 = vpop.permute.xlu0 %5265
        %v5270 = vadd.f32 %v3909, %v5262
        %v5271 = vadd.f32 %v3910, %v5264
        %v5272 = vadd.f32 %v3911, %v5266
        %v5273 = vadd.f32 %v5270, %v3442
        %v5274 = vadd.f32 %v5271, %v3442
        %v5275 = vadd.f32 %v5272, %v3442
        %5278 = vrot.lane.b32.xlu0 %v5136, 112
        %v5279 = vpop.permute.xlu0 %5278
        %5280 = vrot.lane.b32.xlu0 %v5137, 112
        %v5281 = vpop.permute.xlu0 %5280
        %v5284 = vadd.f32 %v5136, %v5279
        %v5285 = vadd.f32 %v5137, %v5281
        %5286 = vrot.lane.b32.xlu0 %v5136, 96
        %v5287 = vpop.permute.xlu0 %5286
        %5288 = vrot.lane.b32.xlu0 %v5137, 96
        %v5289 = vpop.permute.xlu0 %5288
        %v5292 = vadd.f32 %v5284, %v5287
        %v5293 = vadd.f32 %v5285, %v5289
        %5294 = vrot.lane.b32.xlu0 %v5136, 80
        %v5295 = vpop.permute.xlu0 %5294
        %5296 = vrot.lane.b32.xlu0 %v5137, 80
        %v5297 = vpop.permute.xlu0 %5296
        %v5300 = vadd.f32 %v5292, %v5295
        %v5301 = vadd.f32 %v5293, %v5297
        %v5304 = vrot.slane %v5300, 6
        %v5305 = vrot.slane %v5301, 6
        %v5306 = vsel %vm1681, %v5304, %v5305
        %5307 = vrot.lane.b32.xlu0 %v5304, 56
        %v5308 = vpop.permute.xlu0 %5307
        %5309 = vrot.lane.b32.xlu0 %v5306, 56
        %v5310 = vpop.permute.xlu0 %5309
        %5311 = vrot.lane.b32.xlu0 %v5305, 56
        %v5312 = vpop.permute.xlu0 %5311
        %v5316 = vadd.f32 %v3909, %v5308
        %v5317 = vadd.f32 %v3910, %v5310
        %v5318 = vadd.f32 %v3911, %v5312
        %v5319 = vadd.f32 %v5316, %v3494
        %v5320 = vadd.f32 %v5317, %v3494
        %v5321 = vadd.f32 %v5318, %v3494
        %5325 = vrot.lane.b32.xlu0 %v5227, 110
        %v5326 = vpop.permute.xlu0 %5325
        %5327 = vrot.lane.b32.xlu0 %v5228, 110
        %v5328 = vpop.permute.xlu0 %5327
        %5329 = vrot.lane.b32.xlu0 %v5229, 110
        %v5330 = vpop.permute.xlu0 %5329
        %5337 = vrot.lane.b32.xlu0 %v5273, 92
        %v5338 = vpop.permute.xlu0 %5337
        %5339 = vrot.lane.b32.xlu0 %v5274, 92
        %v5340 = vpop.permute.xlu0 %5339
        %5341 = vrot.lane.b32.xlu0 %v5275, 92
        %v5342 = vpop.permute.xlu0 %5341
        %5349 = vrot.lane.b32.xlu0 %v5319, 74
        %v5350 = vpop.permute.xlu0 %5349
        %5351 = vrot.lane.b32.xlu0 %v5320, 74
        %v5352 = vpop.permute.xlu0 %5351
        %5353 = vrot.lane.b32.xlu0 %v5321, 74
        %v5354 = vpop.permute.xlu0 %5353
        %v5358 = vpack.c.bf16 %v5181, %v5181
        %v5359 = vpack.c.bf16 %v5182, %v5182
        %v5360 = vpack.c.bf16 %v5183, %v5183
        %v5361 = vpack.c.bf16 %v5326, %v5326
        %v5362 = vpack.c.bf16 %v5328, %v5328
        %v5363 = vpack.c.bf16 %v5330, %v5330
        %v5364 = vpack.c.bf16 %v5338, %v5338
        %v5365 = vpack.c.bf16 %v5340, %v5340
        %v5366 = vpack.c.bf16 %v5342, %v5342
        %v5367 = vpack.c.bf16 %v5350, %v5350
        %v5368 = vpack.c.bf16 %v5352, %v5352
        %v5369 = vpack.c.bf16 %v5354, %v5354
        %v5373 = vunpack.c.l.b16 %v5358
        %v5374 = vunpack.c.l.b16 %v5359
        %v5375 = vunpack.c.l.b16 %v5360
        %v5376 = vpack.c.b16 %v5374, %v5373
        %v5377 = vpack.c.b16 %v5375, %v5375
        %v5378 = vrot.slane %v5376, 1
        %v5379 = vrot.slane %v5377, 1
        %v5380 = vsel %vm3555, %v5378, %v5379
        %5381 = vrot.lane.b32.xlu0 %v5380, 126
        %v5382 = vpop.permute.xlu0 %5381
        %v5384 = vsel %vm1068, %v5382, 0
        %5386 = vmatpush.bf16.msra.mxu0 0
        %5387 = vmatpush.bf16.msra.mxu0 0
        %5388 = vmatpush.bf16.msra.mxu0 0
        %5389 = vmatpush.bf16.msra.mxu0 0
        %5390 = vmatpush.bf16.msra.mxu0 0
        %5391 = vmatpush.bf16.msra.mxu0 0
        %5392 = vmatpush.bf16.msra.mxu0 0
        %5393 = vmatpush.bf16.msra.mxu0 %v3573
        %5394 = vmatmul.bf16.gmra.mxu0 %v5384
        %v5395 = vpop.f32.mrf.mxu0
        %v5396 = vadd.f32 0.0, %v5395
        %v5397 = vpop.f32.mrf.mxu0
        %v5398 = vadd.f32 0.0, %v5397
        %5399 = vdwg.mxu0
        %v5403 = vunpack.c.l.b16 %v5361
        %v5404 = vunpack.c.l.b16 %v5362
        %v5405 = vunpack.c.l.b16 %v5363
        %v5406 = vpack.c.b16 %v5404, %v5403
        %v5407 = vpack.c.b16 %v5405, %v5405
        %v5408 = vrot.slane %v5406, 1
        %v5409 = vrot.slane %v5407, 1
        %v5410 = vsel %vm3555, %v5408, %v5409
        %5411 = vrot.lane.b32.xlu0 %v5410, 126
        %v5412 = vpop.permute.xlu0 %5411
        %v5414 = vsel %vm1068, %v5412, 0
        %5416 = vmatpush.bf16.msra.mxu0 0
        %5417 = vmatpush.bf16.msra.mxu0 0
        %5418 = vmatpush.bf16.msra.mxu0 0
        %5419 = vmatpush.bf16.msra.mxu0 0
        %5420 = vmatpush.bf16.msra.mxu0 0
        %5421 = vmatpush.bf16.msra.mxu0 0
        %5422 = vmatpush.bf16.msra.mxu0 0
        %5423 = vmatpush.bf16.msra.mxu0 %v3617
        %5424 = vmatmul.bf16.gmra.mxu0 %v5414
        %v5425 = vpop.f32.mrf.mxu0
        %v5426 = vadd.f32 0.0, %v5425
        %v5427 = vpop.f32.mrf.mxu0
        %v5428 = vadd.f32 0.0, %v5427
        %5429 = vdwg.mxu0
        %v5433 = vunpack.c.l.b16 %v5364
        %v5434 = vunpack.c.l.b16 %v5365
        %v5435 = vunpack.c.l.b16 %v5366
        %v5436 = vpack.c.b16 %v5434, %v5433
        %v5437 = vpack.c.b16 %v5435, %v5435
        %v5438 = vrot.slane %v5436, 1
        %v5439 = vrot.slane %v5437, 1
        %v5440 = vsel %vm3555, %v5438, %v5439
        %5441 = vrot.lane.b32.xlu0 %v5440, 126
        %v5442 = vpop.permute.xlu0 %5441
        %v5444 = vsel %vm1068, %v5442, 0
        %5446 = vmatpush.bf16.msra.mxu0 0
        %5447 = vmatpush.bf16.msra.mxu0 0
        %5448 = vmatpush.bf16.msra.mxu0 0
        %5449 = vmatpush.bf16.msra.mxu0 0
        %5450 = vmatpush.bf16.msra.mxu0 0
        %5451 = vmatpush.bf16.msra.mxu0 0
        %5452 = vmatpush.bf16.msra.mxu0 0
        %5453 = vmatpush.bf16.msra.mxu0 %v3661
        %5454 = vmatmul.bf16.gmra.mxu0 %v5444
        %v5455 = vpop.f32.mrf.mxu0
        %v5456 = vadd.f32 0.0, %v5455
        %v5457 = vpop.f32.mrf.mxu0
        %v5458 = vadd.f32 0.0, %v5457
        %5459 = vdwg.mxu0
        %v5463 = vunpack.c.l.b16 %v5367
        %v5464 = vunpack.c.l.b16 %v5368
        %v5465 = vunpack.c.l.b16 %v5369
        %v5466 = vpack.c.b16 %v5464, %v5463
        %v5467 = vpack.c.b16 %v5465, %v5465
        %v5468 = vrot.slane %v5466, 1
        %v5469 = vrot.slane %v5467, 1
        %v5470 = vsel %vm3555, %v5468, %v5469
        %5471 = vrot.lane.b32.xlu0 %v5470, 126
        %v5472 = vpop.permute.xlu0 %5471
        %v5474 = vsel %vm1068, %v5472, 0
        %5476 = vmatpush.bf16.msra.mxu0 0
        %5477 = vmatpush.bf16.msra.mxu0 0
        %5478 = vmatpush.bf16.msra.mxu0 0
        %5479 = vmatpush.bf16.msra.mxu0 0
        %5480 = vmatpush.bf16.msra.mxu0 0
        %5481 = vmatpush.bf16.msra.mxu0 0
        %5482 = vmatpush.bf16.msra.mxu0 0
        %5483 = vmatpush.bf16.msra.mxu0 %v3705
        %5484 = vmatmul.bf16.gmra.mxu0 %v5474
        %v5485 = vpop.f32.mrf.mxu0
        %v5486 = vadd.f32 0.0, %v5485
        %v5487 = vpop.f32.mrf.mxu0
        %v5488 = vadd.f32 0.0, %v5487
        %5489 = vdwg.mxu0
        %v5490 = vxor.u32 %v5396, 2147483648
        %v5491 = vxor.u32 %v5398, 2147483648
        %v5492 = vxor.u32 %v5426, 2147483648
        %v5493 = vxor.u32 %v5428, 2147483648
        %v5494 = vxor.u32 %v5456, 2147483648
        %v5495 = vxor.u32 %v5458, 2147483648
        %v5496 = vxor.u32 %v5486, 2147483648
        %v5497 = vxor.u32 %v5488, 2147483648
        %v5498 = vmul.f32 %v5490, 1.442695
        %v5499 = vpow.pop %v5498
        %v5500 = vmul.f32 %v5491, 1.442695
        %v5501 = vpow.pop %v5500
        %v5502 = vmul.f32 %v5492, 1.442695
        %v5503 = vpow.pop %v5502
        %v5504 = vmul.f32 %v5493, 1.442695
        %v5505 = vpow.pop %v5504
        %v5506 = vmul.f32 %v5494, 1.442695
        %v5507 = vpow.pop %v5506
        %v5508 = vmul.f32 %v5495, 1.442695
        %v5509 = vpow.pop %v5508
        %v5510 = vmul.f32 %v5496, 1.442695
        %v5511 = vpow.pop %v5510
        %v5512 = vmul.f32 %v5497, 1.442695
        %v5513 = vpow.pop %v5512
        %v5514 = vadd.f32 %v5499, 1.0
        %v5515 = vadd.f32 %v5501, 1.0
        %v5516 = vadd.f32 %v5503, 1.0
        %v5517 = vadd.f32 %v5505, 1.0
        %v5518 = vadd.f32 %v5507, 1.0
        %v5519 = vadd.f32 %v5509, 1.0
        %v5520 = vadd.f32 %v5511, 1.0
        %v5521 = vadd.f32 %v5513, 1.0
        %v5522 = vrcp.pop %v5514
        %v5523 = vmul.f32 %v5514, %v5522
        %v5524 = vsub.f32 1.0, %v5523
        %v5525 = vmul.f32 %v5522, %v5524
        %v5526 = vadd.f32 %v5522, %v5525
        %vm5527 = vweird.f32 %v5514
        %vm5528 = vweird.f32 %v5522
        %vm5529 = vmor %vm5527, %vm5528
        %v5530 = vsel %vm5529, %v5522, %v5526
        %v5531 = vand.u32 2147483647, %v5514
        %vm5532 = vcmp.eq.f32.partialorder %v5531, 8.507059e+37
        %v5533 = vand.u32 %v5514, 2147483648
        %v5534 = vor.u32 1.1754944e-38, %v5533
        %v5535 = vsel %vm5532, %v5534, %v5530
        %v5536 = vmul.f32 1.0, %v5535
        %v5537 = vrcp.pop %v5515
        %v5538 = vmul.f32 %v5515, %v5537
        %v5539 = vsub.f32 1.0, %v5538
        %v5540 = vmul.f32 %v5537, %v5539
        %v5541 = vadd.f32 %v5537, %v5540
        %vm5542 = vweird.f32 %v5515
        %vm5543 = vweird.f32 %v5537
        %vm5544 = vmor %vm5542, %vm5543
        %v5545 = vsel %vm5544, %v5537, %v5541
        %v5546 = vand.u32 2147483647, %v5515
        %vm5547 = vcmp.eq.f32.partialorder %v5546, 8.507059e+37
        %v5548 = vand.u32 %v5515, 2147483648
        %v5549 = vor.u32 1.1754944e-38, %v5548
        %v5550 = vsel %vm5547, %v5549, %v5545
        %v5551 = vmul.f32 1.0, %v5550
        %v5552 = vrcp.pop %v5516
        %v5553 = vmul.f32 %v5516, %v5552
        %v5554 = vsub.f32 1.0, %v5553
        %v5555 = vmul.f32 %v5552, %v5554
        %v5556 = vadd.f32 %v5552, %v5555
        %vm5557 = vweird.f32 %v5516
        %vm5558 = vweird.f32 %v5552
        %vm5559 = vmor %vm5557, %vm5558
        %v5560 = vsel %vm5559, %v5552, %v5556
        %v5561 = vand.u32 2147483647, %v5516
        %vm5562 = vcmp.eq.f32.partialorder %v5561, 8.507059e+37
        %v5563 = vand.u32 %v5516, 2147483648
        %v5564 = vor.u32 1.1754944e-38, %v5563
        %v5565 = vsel %vm5562, %v5564, %v5560
        %v5566 = vmul.f32 1.0, %v5565
        %v5567 = vrcp.pop %v5517
        %v5568 = vmul.f32 %v5517, %v5567
        %v5569 = vsub.f32 1.0, %v5568
        %v5570 = vmul.f32 %v5567, %v5569
        %v5571 = vadd.f32 %v5567, %v5570
        %vm5572 = vweird.f32 %v5517
        %vm5573 = vweird.f32 %v5567
        %vm5574 = vmor %vm5572, %vm5573
        %v5575 = vsel %vm5574, %v5567, %v5571
        %v5576 = vand.u32 2147483647, %v5517
        %vm5577 = vcmp.eq.f32.partialorder %v5576, 8.507059e+37
        %v5578 = vand.u32 %v5517, 2147483648
        %v5579 = vor.u32 1.1754944e-38, %v5578
        %v5580 = vsel %vm5577, %v5579, %v5575
        %v5581 = vmul.f32 1.0, %v5580
        %v5582 = vrcp.pop %v5518
        %v5583 = vmul.f32 %v5518, %v5582
        %v5584 = vsub.f32 1.0, %v5583
        %v5585 = vmul.f32 %v5582, %v5584
        %v5586 = vadd.f32 %v5582, %v5585
        %vm5587 = vweird.f32 %v5518
        %vm5588 = vweird.f32 %v5582
        %vm5589 = vmor %vm5587, %vm5588
        %v5590 = vsel %vm5589, %v5582, %v5586
        %v5591 = vand.u32 2147483647, %v5518
        %vm5592 = vcmp.eq.f32.partialorder %v5591, 8.507059e+37
        %v5593 = vand.u32 %v5518, 2147483648
        %v5594 = vor.u32 1.1754944e-38, %v5593
        %v5595 = vsel %vm5592, %v5594, %v5590
        %v5596 = vmul.f32 1.0, %v5595
        %v5597 = vrcp.pop %v5519
        %v5598 = vmul.f32 %v5519, %v5597
        %v5599 = vsub.f32 1.0, %v5598
        %v5600 = vmul.f32 %v5597, %v5599
        %v5601 = vadd.f32 %v5597, %v5600
        %vm5602 = vweird.f32 %v5519
        %vm5603 = vweird.f32 %v5597
        %vm5604 = vmor %vm5602, %vm5603
        %v5605 = vsel %vm5604, %v5597, %v5601
        %v5606 = vand.u32 2147483647, %v5519
        %vm5607 = vcmp.eq.f32.partialorder %v5606, 8.507059e+37
        %v5608 = vand.u32 %v5519, 2147483648
        %v5609 = vor.u32 1.1754944e-38, %v5608
        %v5610 = vsel %vm5607, %v5609, %v5605
        %v5611 = vmul.f32 1.0, %v5610
        %v5612 = vrcp.pop %v5520
        %v5613 = vmul.f32 %v5520, %v5612
        %v5614 = vsub.f32 1.0, %v5613
        %v5615 = vmul.f32 %v5612, %v5614
        %v5616 = vadd.f32 %v5612, %v5615
        %vm5617 = vweird.f32 %v5520
        %vm5618 = vweird.f32 %v5612
        %vm5619 = vmor %vm5617, %vm5618
        %v5620 = vsel %vm5619, %v5612, %v5616
        %v5621 = vand.u32 2147483647, %v5520
        %vm5622 = vcmp.eq.f32.partialorder %v5621, 8.507059e+37
        %v5623 = vand.u32 %v5520, 2147483648
        %v5624 = vor.u32 1.1754944e-38, %v5623
        %v5625 = vsel %vm5622, %v5624, %v5620
        %v5626 = vmul.f32 1.0, %v5625
        %v5627 = vrcp.pop %v5521
        %v5628 = vmul.f32 %v5521, %v5627
        %v5629 = vsub.f32 1.0, %v5628
        %v5630 = vmul.f32 %v5627, %v5629
        %v5631 = vadd.f32 %v5627, %v5630
        %vm5632 = vweird.f32 %v5521
        %vm5633 = vweird.f32 %v5627
        %vm5634 = vmor %vm5632, %vm5633
        %v5635 = vsel %vm5634, %v5627, %v5631
        %v5636 = vand.u32 2147483647, %v5521
        %vm5637 = vcmp.eq.f32.partialorder %v5636, 8.507059e+37
        %v5638 = vand.u32 %v5521, 2147483648
        %v5639 = vor.u32 1.1754944e-38, %v5638
        %v5640 = vsel %vm5637, %v5639, %v5635
        %v5641 = vmul.f32 1.0, %v5640
        %s5642 = scalar_lea.vmem %s262, 64
        %v5643 = vld [vmem:[%s5642] sm:$0xff]
        %v5644 = vld [vmem:[%s5642 + $0x8] sm:$0xff]
        %v5645 = vld [vmem:[%s5642 + $0x10] sm:$0xff]
        %v5646 = vld [vmem:[%s5642 + $0x18] sm:$0xff]
        %v5647 = vld [vmem:[%s5642 + $0x20] sm:$0xff]
        %v5648 = vld [vmem:[%s5642 + $0x28] sm:$0xff]
        %v5649 = vld [vmem:[%s5642 + $0x30] sm:$0xff]
        %v5650 = vld [vmem:[%s5642 + $0x38] sm:$0xff]
        %v5651 = vmul.f32 %v5536, %v5643
        %v5652 = vmul.f32 %v5551, %v5644
        %v5653 = vmul.f32 %v5566, %v5645
        %v5654 = vmul.f32 %v5581, %v5646
        %v5655 = vmul.f32 %v5596, %v5647
        %v5656 = vmul.f32 %v5611, %v5648
        %v5657 = vmul.f32 %v5626, %v5649
        %v5658 = vmul.f32 %v5641, %v5650
        %v5659 = vadd.f32 %v3892, %v5651
        %v5660 = vadd.f32 %v3893, %v5652
        %v5661 = vadd.f32 %v3894, %v5653
        %v5662 = vadd.f32 %v3895, %v5654
        %v5663 = vadd.f32 %v3896, %v5655
        %v5664 = vadd.f32 %v3897, %v5656
        %v5665 = vadd.f32 %v3898, %v5657
        %v5666 = vadd.f32 %v3899, %v5658
        %v5667 = vadd.f32 %v3900, %v5536
        %v5668 = vadd.f32 %v3901, %v5551
        %v5669 = vadd.f32 %v3902, %v5566
        %v5670 = vadd.f32 %v3903, %v5581
        %v5671 = vadd.f32 %v3904, %v5596
        %v5672 = vadd.f32 %v3905, %v5611
        %v5673 = vadd.f32 %v3906, %v5626
        %v5674 = vadd.f32 %v3907, %v5641
        %s5675 = scalar_lea.vmem %s257, 144
        %v5676 = vld [vmem:[%s5675] sm:$0xff]
        %v5677 = vld [vmem:[%s5675 + $0x8] sm:$0xff]
        %v5678 = vld [vmem:[%s5675 + $0x10] sm:$0xf]
        %s5679 = scalar_lea.vmem %s257, 168
        %v5680 = vld [vmem:[%s5679] sm:$0xff]
        %v5681 = vld [vmem:[%s5679 + $0x8] sm:$0xff]
        %v5682 = vld [vmem:[%s5679 + $0x10] sm:$0xf]
        %s5683 = scalar_lea.vmem %s257, 192
        %v5684 = vld [vmem:[%s5683] sm:$0xff]
        %v5685 = vld [vmem:[%s5683 + $0x8] sm:$0xff]
        %v5686 = vld [vmem:[%s5683 + $0x10] sm:$0xf]
        %v5687 = vmul.f32 %v1922, %v5676
        %v5688 = vmul.f32 %v1922, %v5677
        %v5689 = vmul.f32 %v1922, %v5678
        %v5690 = vadd.f32 %v5687, 0.0
        %v5691 = vadd.f32 %v5688, 0.0
        %v5692 = vadd.f32 %v5689, 0.0
        %v5693 = vmul.f32 %v1930, %v5676
        %v5694 = vmul.f32 %v1930, %v5677
        %v5695 = vmul.f32 %v1930, %v5678
        %v5696 = vadd.f32 %v5693, 0.0
        %v5697 = vadd.f32 %v5694, 0.0
        %v5698 = vadd.f32 %v5695, 0.0
        %v5699 = vmul.f32 %v1938, %v5676
        %v5700 = vmul.f32 %v1938, %v5677
        %v5701 = vmul.f32 %v1938, %v5678
        %v5702 = vadd.f32 %v5699, 0.0
        %v5703 = vadd.f32 %v5700, 0.0
        %v5704 = vadd.f32 %v5701, 0.0
        %v5705 = vmul.f32 %v1946, %v5676
        %v5706 = vmul.f32 %v1946, %v5677
        %v5707 = vmul.f32 %v1946, %v5678
        %v5708 = vadd.f32 %v5705, 0.0
        %v5709 = vadd.f32 %v5706, 0.0
        %v5710 = vadd.f32 %v5707, 0.0
        %v5711 = vmul.f32 %v1954, %v5680
        %v5712 = vmul.f32 %v1954, %v5681
        %v5713 = vmul.f32 %v1954, %v5682
        %v5714 = vadd.f32 %v5690, %v5711
        %v5715 = vadd.f32 %v5691, %v5712
        %v5716 = vadd.f32 %v5692, %v5713
        %v5717 = vmul.f32 %v1962, %v5680
        %v5718 = vmul.f32 %v1962, %v5681
        %v5719 = vmul.f32 %v1962, %v5682
        %v5720 = vadd.f32 %v5696, %v5717
        %v5721 = vadd.f32 %v5697, %v5718
        %v5722 = vadd.f32 %v5698, %v5719
        %v5723 = vmul.f32 %v1970, %v5680
        %v5724 = vmul.f32 %v1970, %v5681
        %v5725 = vmul.f32 %v1970, %v5682
        %v5726 = vadd.f32 %v5702, %v5723
        %v5727 = vadd.f32 %v5703, %v5724
        %v5728 = vadd.f32 %v5704, %v5725
        %v5729 = vmul.f32 %v1978, %v5680
        %v5730 = vmul.f32 %v1978, %v5681
        %v5731 = vmul.f32 %v1978, %v5682
        %v5732 = vadd.f32 %v5708, %v5729
        %v5733 = vadd.f32 %v5709, %v5730
        %v5734 = vadd.f32 %v5710, %v5731
        %v5735 = vmul.f32 %v1986, %v5684
        %v5736 = vmul.f32 %v1986, %v5685
        %v5737 = vmul.f32 %v1986, %v5686
        %v5738 = vadd.f32 %v5714, %v5735
        %v5739 = vadd.f32 %v5715, %v5736
        %v5740 = vadd.f32 %v5716, %v5737
        %v5741 = vmul.f32 %v1994, %v5684
        %v5742 = vmul.f32 %v1994, %v5685
        %v5743 = vmul.f32 %v1994, %v5686
        %v5744 = vadd.f32 %v5720, %v5741
        %v5745 = vadd.f32 %v5721, %v5742
        %v5746 = vadd.f32 %v5722, %v5743
        %v5747 = vmul.f32 %v2002, %v5684
        %v5748 = vmul.f32 %v2002, %v5685
        %v5749 = vmul.f32 %v2002, %v5686
        %v5750 = vadd.f32 %v5726, %v5747
        %v5751 = vadd.f32 %v5727, %v5748
        %v5752 = vadd.f32 %v5728, %v5749
        %v5753 = vmul.f32 %v2010, %v5684
        %v5754 = vmul.f32 %v2010, %v5685
        %v5755 = vmul.f32 %v2010, %v5686
        %v5756 = vadd.f32 %v5732, %v5753
        %v5757 = vadd.f32 %v5733, %v5754
        %v5758 = vadd.f32 %v5734, %v5755
        %v5759 = vmul.f32 %v2018, %v5676
        %v5760 = vmul.f32 %v2018, %v5677
        %v5761 = vmul.f32 %v2018, %v5678
        %v5765 = vrot.slane %v5759, 1
        %v5766 = vrot.slane %v5760, 1
        %v5767 = vsel %vm382, %v5765, %v5766
        %v5768 = vrot.slane %v5761, 1
        %v5769 = vsel %vm382, %v5766, %v5768
        %v5773 = vadd.f32 %v5738, %v5767
        %v5774 = vadd.f32 %v5739, %v5769
        %v5775 = vadd.f32 %v5740, %v5768
        %v5776 = vmul.f32 %v2037, %v5676
        %v5777 = vmul.f32 %v2037, %v5677
        %v5778 = vmul.f32 %v2037, %v5678
        %v5782 = vrot.slane %v5776, 1
        %v5783 = vrot.slane %v5777, 1
        %v5784 = vsel %vm382, %v5782, %v5783
        %v5785 = vrot.slane %v5778, 1
        %v5786 = vsel %vm382, %v5783, %v5785
        %v5790 = vadd.f32 %v5744, %v5784
        %v5791 = vadd.f32 %v5745, %v5786
        %v5792 = vadd.f32 %v5746, %v5785
        %v5793 = vmul.f32 %v2056, %v5676
        %v5794 = vmul.f32 %v2056, %v5677
        %v5795 = vmul.f32 %v2056, %v5678
        %v5799 = vrot.slane %v5793, 1
        %v5800 = vrot.slane %v5794, 1
        %v5801 = vsel %vm382, %v5799, %v5800
        %v5802 = vrot.slane %v5795, 1
        %v5803 = vsel %vm382, %v5800, %v5802
        %v5807 = vadd.f32 %v5750, %v5801
        %v5808 = vadd.f32 %v5751, %v5803
        %v5809 = vadd.f32 %v5752, %v5802
        %v5810 = vmul.f32 %v2075, %v5676
        %v5811 = vmul.f32 %v2075, %v5677
        %v5812 = vmul.f32 %v2075, %v5678
        %v5816 = vrot.slane %v5810, 1
        %v5817 = vrot.slane %v5811, 1
        %v5818 = vsel %vm382, %v5816, %v5817
        %v5819 = vrot.slane %v5812, 1
        %v5820 = vsel %vm382, %v5817, %v5819
        %v5824 = vadd.f32 %v5756, %v5818
        %v5825 = vadd.f32 %v5757, %v5820
        %v5826 = vadd.f32 %v5758, %v5819
        %v5827 = vmul.f32 %v2094, %v5680
        %v5828 = vmul.f32 %v2094, %v5681
        %v5829 = vmul.f32 %v2094, %v5682
        %v5833 = vrot.slane %v5827, 1
        %v5834 = vrot.slane %v5828, 1
        %v5835 = vsel %vm382, %v5833, %v5834
        %v5836 = vrot.slane %v5829, 1
        %v5837 = vsel %vm382, %v5834, %v5836
        %v5841 = vadd.f32 %v5773, %v5835
        %v5842 = vadd.f32 %v5774, %v5837
        %v5843 = vadd.f32 %v5775, %v5836
        %v5844 = vmul.f32 %v2113, %v5680
        %v5845 = vmul.f32 %v2113, %v5681
        %v5846 = vmul.f32 %v2113, %v5682
        %v5850 = vrot.slane %v5844, 1
        %v5851 = vrot.slane %v5845, 1
        %v5852 = vsel %vm382, %v5850, %v5851
        %v5853 = vrot.slane %v5846, 1
        %v5854 = vsel %vm382, %v5851, %v5853
        %v5858 = vadd.f32 %v5790, %v5852
        %v5859 = vadd.f32 %v5791, %v5854
        %v5860 = vadd.f32 %v5792, %v5853
        %v5861 = vmul.f32 %v2132, %v5680
        %v5862 = vmul.f32 %v2132, %v5681
        %v5863 = vmul.f32 %v2132, %v5682
        %v5867 = vrot.slane %v5861, 1
        %v5868 = vrot.slane %v5862, 1
        %v5869 = vsel %vm382, %v5867, %v5868
        %v5870 = vrot.slane %v5863, 1
        %v5871 = vsel %vm382, %v5868, %v5870
        %v5875 = vadd.f32 %v5807, %v5869
        %v5876 = vadd.f32 %v5808, %v5871
        %v5877 = vadd.f32 %v5809, %v5870
        %v5878 = vmul.f32 %v2151, %v5680
        %v5879 = vmul.f32 %v2151, %v5681
        %v5880 = vmul.f32 %v2151, %v5682
        %v5884 = vrot.slane %v5878, 1
        %v5885 = vrot.slane %v5879, 1
        %v5886 = vsel %vm382, %v5884, %v5885
        %v5887 = vrot.slane %v5880, 1
        %v5888 = vsel %vm382, %v5885, %v5887
        %v5892 = vadd.f32 %v5824, %v5886
        %v5893 = vadd.f32 %v5825, %v5888
        %v5894 = vadd.f32 %v5826, %v5887
        %v5895 = vmul.f32 %v2170, %v5684
        %v5896 = vmul.f32 %v2170, %v5685
        %v5897 = vmul.f32 %v2170, %v5686
        %v5901 = vrot.slane %v5895, 1
        %v5902 = vrot.slane %v5896, 1
        %v5903 = vsel %vm382, %v5901, %v5902
        %v5904 = vrot.slane %v5897, 1
        %v5905 = vsel %vm382, %v5902, %v5904
        %v5909 = vadd.f32 %v5841, %v5903
        %v5910 = vadd.f32 %v5842, %v5905
        %v5911 = vadd.f32 %v5843, %v5904
        %v5912 = vmul.f32 %v2189, %v5684
        %v5913 = vmul.f32 %v2189, %v5685
        %v5914 = vmul.f32 %v2189, %v5686
        %v5918 = vrot.slane %v5912, 1
        %v5919 = vrot.slane %v5913, 1
        %v5920 = vsel %vm382, %v5918, %v5919
        %v5921 = vrot.slane %v5914, 1
        %v5922 = vsel %vm382, %v5919, %v5921
        %v5926 = vadd.f32 %v5858, %v5920
        %v5927 = vadd.f32 %v5859, %v5922
        %v5928 = vadd.f32 %v5860, %v5921
        %v5929 = vmul.f32 %v2208, %v5684
        %v5930 = vmul.f32 %v2208, %v5685
        %v5931 = vmul.f32 %v2208, %v5686
        %v5935 = vrot.slane %v5929, 1
        %v5936 = vrot.slane %v5930, 1
        %v5937 = vsel %vm382, %v5935, %v5936
        %v5938 = vrot.slane %v5931, 1
        %v5939 = vsel %vm382, %v5936, %v5938
        %v5943 = vadd.f32 %v5875, %v5937
        %v5944 = vadd.f32 %v5876, %v5939
        %v5945 = vadd.f32 %v5877, %v5938
        %v5946 = vmul.f32 %v2227, %v5684
        %v5947 = vmul.f32 %v2227, %v5685
        %v5948 = vmul.f32 %v2227, %v5686
        %v5952 = vrot.slane %v5946, 1
        %v5953 = vrot.slane %v5947, 1
        %v5954 = vsel %vm382, %v5952, %v5953
        %v5955 = vrot.slane %v5948, 1
        %v5956 = vsel %vm382, %v5953, %v5955
        %v5960 = vadd.f32 %v5892, %v5954
        %v5961 = vadd.f32 %v5893, %v5956
        %v5962 = vadd.f32 %v5894, %v5955
        %v5963 = vmul.f32 %v2246, %v5676
        %v5964 = vmul.f32 %v2246, %v5677
        %v5965 = vmul.f32 %v2246, %v5678
        %v5969 = vrot.slane %v5963, 2
        %v5970 = vrot.slane %v5964, 2
        %v5971 = vsel %vm611, %v5969, %v5970
        %v5972 = vrot.slane %v5965, 2
        %v5973 = vsel %vm611, %v5970, %v5972
        %v5977 = vadd.f32 %v5909, %v5971
        %v5978 = vadd.f32 %v5910, %v5973
        %v5979 = vadd.f32 %v5911, %v5972
        %v5980 = vmul.f32 %v2265, %v5676
        %v5981 = vmul.f32 %v2265, %v5677
        %v5982 = vmul.f32 %v2265, %v5678
        %v5986 = vrot.slane %v5980, 2
        %v5987 = vrot.slane %v5981, 2
        %v5988 = vsel %vm611, %v5986, %v5987
        %v5989 = vrot.slane %v5982, 2
        %v5990 = vsel %vm611, %v5987, %v5989
        %v5994 = vadd.f32 %v5926, %v5988
        %v5995 = vadd.f32 %v5927, %v5990
        %v5996 = vadd.f32 %v5928, %v5989
        %v5997 = vmul.f32 %v2284, %v5676
        %v5998 = vmul.f32 %v2284, %v5677
        %v5999 = vmul.f32 %v2284, %v5678
        %v6003 = vrot.slane %v5997, 2
        %v6004 = vrot.slane %v5998, 2
        %v6005 = vsel %vm611, %v6003, %v6004
        %v6006 = vrot.slane %v5999, 2
        %v6007 = vsel %vm611, %v6004, %v6006
        %v6011 = vadd.f32 %v5943, %v6005
        %v6012 = vadd.f32 %v5944, %v6007
        %v6013 = vadd.f32 %v5945, %v6006
        %v6014 = vmul.f32 %v2303, %v5676
        %v6015 = vmul.f32 %v2303, %v5677
        %v6016 = vmul.f32 %v2303, %v5678
        %v6020 = vrot.slane %v6014, 2
        %v6021 = vrot.slane %v6015, 2
        %v6022 = vsel %vm611, %v6020, %v6021
        %v6023 = vrot.slane %v6016, 2
        %v6024 = vsel %vm611, %v6021, %v6023
        %v6028 = vadd.f32 %v5960, %v6022
        %v6029 = vadd.f32 %v5961, %v6024
        %v6030 = vadd.f32 %v5962, %v6023
        %v6031 = vmul.f32 %v2322, %v5680
        %v6032 = vmul.f32 %v2322, %v5681
        %v6033 = vmul.f32 %v2322, %v5682
        %v6037 = vrot.slane %v6031, 2
        %v6038 = vrot.slane %v6032, 2
        %v6039 = vsel %vm611, %v6037, %v6038
        %v6040 = vrot.slane %v6033, 2
        %v6041 = vsel %vm611, %v6038, %v6040
        %v6045 = vadd.f32 %v5977, %v6039
        %v6046 = vadd.f32 %v5978, %v6041
        %v6047 = vadd.f32 %v5979, %v6040
        %v6048 = vmul.f32 %v2341, %v5680
        %v6049 = vmul.f32 %v2341, %v5681
        %v6050 = vmul.f32 %v2341, %v5682
        %v6054 = vrot.slane %v6048, 2
        %v6055 = vrot.slane %v6049, 2
        %v6056 = vsel %vm611, %v6054, %v6055
        %v6057 = vrot.slane %v6050, 2
        %v6058 = vsel %vm611, %v6055, %v6057
        %v6062 = vadd.f32 %v5994, %v6056
        %v6063 = vadd.f32 %v5995, %v6058
        %v6064 = vadd.f32 %v5996, %v6057
        %v6065 = vmul.f32 %v2360, %v5680
        %v6066 = vmul.f32 %v2360, %v5681
        %v6067 = vmul.f32 %v2360, %v5682
        %v6071 = vrot.slane %v6065, 2
        %v6072 = vrot.slane %v6066, 2
        %v6073 = vsel %vm611, %v6071, %v6072
        %v6074 = vrot.slane %v6067, 2
        %v6075 = vsel %vm611, %v6072, %v6074
        %v6079 = vadd.f32 %v6011, %v6073
        %v6080 = vadd.f32 %v6012, %v6075
        %v6081 = vadd.f32 %v6013, %v6074
        %v6082 = vmul.f32 %v2379, %v5680
        %v6083 = vmul.f32 %v2379, %v5681
        %v6084 = vmul.f32 %v2379, %v5682
        %v6088 = vrot.slane %v6082, 2
        %v6089 = vrot.slane %v6083, 2
        %v6090 = vsel %vm611, %v6088, %v6089
        %v6091 = vrot.slane %v6084, 2
        %v6092 = vsel %vm611, %v6089, %v6091
        %v6096 = vadd.f32 %v6028, %v6090
        %v6097 = vadd.f32 %v6029, %v6092
        %v6098 = vadd.f32 %v6030, %v6091
        %v6099 = vmul.f32 %v2398, %v5684
        %v6100 = vmul.f32 %v2398, %v5685
        %v6101 = vmul.f32 %v2398, %v5686
        %v6105 = vrot.slane %v6099, 2
        %v6106 = vrot.slane %v6100, 2
        %v6107 = vsel %vm611, %v6105, %v6106
        %v6108 = vrot.slane %v6101, 2
        %v6109 = vsel %vm611, %v6106, %v6108
        %v6113 = vadd.f32 %v6045, %v6107
        %v6114 = vadd.f32 %v6046, %v6109
        %v6115 = vadd.f32 %v6047, %v6108
        %v6116 = vmul.f32 %v2417, %v5684
        %v6117 = vmul.f32 %v2417, %v5685
        %v6118 = vmul.f32 %v2417, %v5686
        %v6122 = vrot.slane %v6116, 2
        %v6123 = vrot.slane %v6117, 2
        %v6124 = vsel %vm611, %v6122, %v6123
        %v6125 = vrot.slane %v6118, 2
        %v6126 = vsel %vm611, %v6123, %v6125
        %v6130 = vadd.f32 %v6062, %v6124
        %v6131 = vadd.f32 %v6063, %v6126
        %v6132 = vadd.f32 %v6064, %v6125
        %v6133 = vmul.f32 %v2436, %v5684
        %v6134 = vmul.f32 %v2436, %v5685
        %v6135 = vmul.f32 %v2436, %v5686
        %v6139 = vrot.slane %v6133, 2
        %v6140 = vrot.slane %v6134, 2
        %v6141 = vsel %vm611, %v6139, %v6140
        %v6142 = vrot.slane %v6135, 2
        %v6143 = vsel %vm611, %v6140, %v6142
        %v6147 = vadd.f32 %v6079, %v6141
        %v6148 = vadd.f32 %v6080, %v6143
        %v6149 = vadd.f32 %v6081, %v6142
        %v6150 = vmul.f32 %v2455, %v5684
        %v6151 = vmul.f32 %v2455, %v5685
        %v6152 = vmul.f32 %v2455, %v5686
        %v6156 = vrot.slane %v6150, 2
        %v6157 = vrot.slane %v6151, 2
        %v6158 = vsel %vm611, %v6156, %v6157
        %v6159 = vrot.slane %v6152, 2
        %v6160 = vsel %vm611, %v6157, %v6159
        %v6164 = vadd.f32 %v6096, %v6158
        %v6165 = vadd.f32 %v6097, %v6160
        %v6166 = vadd.f32 %v6098, %v6159
        %6170 = vrot.lane.b32.xlu0 %v6113, 110
        %v6171 = vpop.permute.xlu0 %6170
        %6172 = vrot.lane.b32.xlu0 %v6114, 110
        %v6173 = vpop.permute.xlu0 %6172
        %6174 = vrot.lane.b32.xlu0 %v6115, 110
        %v6175 = vpop.permute.xlu0 %6174
        %v6179 = vadd.f32 %v6113, %v6171
        %v6180 = vadd.f32 %v6114, %v6173
        %v6181 = vadd.f32 %v6115, %v6175
        %6182 = vrot.lane.b32.xlu0 %v6113, 92
        %v6183 = vpop.permute.xlu0 %6182
        %6184 = vrot.lane.b32.xlu0 %v6114, 92
        %v6185 = vpop.permute.xlu0 %6184
        %6186 = vrot.lane.b32.xlu0 %v6115, 92
        %v6187 = vpop.permute.xlu0 %6186
        %v6191 = vadd.f32 %v6179, %v6183
        %v6192 = vadd.f32 %v6180, %v6185
        %v6193 = vadd.f32 %v6181, %v6187
        %6194 = vrot.lane.b32.xlu0 %v6113, 74
        %v6195 = vpop.permute.xlu0 %6194
        %6196 = vrot.lane.b32.xlu0 %v6114, 74
        %v6197 = vpop.permute.xlu0 %6196
        %6198 = vrot.lane.b32.xlu0 %v6115, 74
        %v6199 = vpop.permute.xlu0 %6198
        %v6203 = vadd.f32 %v6191, %v6195
        %v6204 = vadd.f32 %v6192, %v6197
        %v6205 = vadd.f32 %v6193, %v6199
        %v6206 = vadd.f32 %v6203, %v2513
        %v6207 = vadd.f32 %v6204, %v2513
        %v6208 = vadd.f32 %v6205, %v2513
        %v6209 = vmax.f32 %v6206, 0.0
        %v6210 = vmax.f32 %v6207, 0.0
        %v6211 = vmax.f32 %v6208, 0.0
        %v6212 = vmul.f32 %v6209, %v264
        %v6213 = vmul.f32 %v6210, %v265
        %v6214 = vmul.f32 %v6211, %v266
        %6218 = vrot.lane.b32.xlu0 %v6130, 110
        %v6219 = vpop.permute.xlu0 %6218
        %6220 = vrot.lane.b32.xlu0 %v6131, 110
        %v6221 = vpop.permute.xlu0 %6220
        %6222 = vrot.lane.b32.xlu0 %v6132, 110
        %v6223 = vpop.permute.xlu0 %6222
        %v6227 = vadd.f32 %v6130, %v6219
        %v6228 = vadd.f32 %v6131, %v6221
        %v6229 = vadd.f32 %v6132, %v6223
        %6230 = vrot.lane.b32.xlu0 %v6130, 92
        %v6231 = vpop.permute.xlu0 %6230
        %6232 = vrot.lane.b32.xlu0 %v6131, 92
        %v6233 = vpop.permute.xlu0 %6232
        %6234 = vrot.lane.b32.xlu0 %v6132, 92
        %v6235 = vpop.permute.xlu0 %6234
        %v6239 = vadd.f32 %v6227, %v6231
        %v6240 = vadd.f32 %v6228, %v6233
        %v6241 = vadd.f32 %v6229, %v6235
        %6242 = vrot.lane.b32.xlu0 %v6130, 74
        %v6243 = vpop.permute.xlu0 %6242
        %6244 = vrot.lane.b32.xlu0 %v6131, 74
        %v6245 = vpop.permute.xlu0 %6244
        %6246 = vrot.lane.b32.xlu0 %v6132, 74
        %v6247 = vpop.permute.xlu0 %6246
        %v6251 = vadd.f32 %v6239, %v6243
        %v6252 = vadd.f32 %v6240, %v6245
        %v6253 = vadd.f32 %v6241, %v6247
        %v6254 = vadd.f32 %v6251, %v2563
        %v6255 = vadd.f32 %v6252, %v2563
        %v6256 = vadd.f32 %v6253, %v2563
        %v6257 = vmax.f32 %v6254, 0.0
        %v6258 = vmax.f32 %v6255, 0.0
        %v6259 = vmax.f32 %v6256, 0.0
        %v6260 = vmul.f32 %v6257, %v264
        %v6261 = vmul.f32 %v6258, %v265
        %v6262 = vmul.f32 %v6259, %v266
        %6266 = vrot.lane.b32.xlu0 %v6147, 110
        %v6267 = vpop.permute.xlu0 %6266
        %6268 = vrot.lane.b32.xlu0 %v6148, 110
        %v6269 = vpop.permute.xlu0 %6268
        %6270 = vrot.lane.b32.xlu0 %v6149, 110
        %v6271 = vpop.permute.xlu0 %6270
        %v6275 = vadd.f32 %v6147, %v6267
        %v6276 = vadd.f32 %v6148, %v6269
        %v6277 = vadd.f32 %v6149, %v6271
        %6278 = vrot.lane.b32.xlu0 %v6147, 92
        %v6279 = vpop.permute.xlu0 %6278
        %6280 = vrot.lane.b32.xlu0 %v6148, 92
        %v6281 = vpop.permute.xlu0 %6280
        %6282 = vrot.lane.b32.xlu0 %v6149, 92
        %v6283 = vpop.permute.xlu0 %6282
        %v6287 = vadd.f32 %v6275, %v6279
        %v6288 = vadd.f32 %v6276, %v6281
        %v6289 = vadd.f32 %v6277, %v6283
        %6290 = vrot.lane.b32.xlu0 %v6147, 74
        %v6291 = vpop.permute.xlu0 %6290
        %6292 = vrot.lane.b32.xlu0 %v6148, 74
        %v6293 = vpop.permute.xlu0 %6292
        %6294 = vrot.lane.b32.xlu0 %v6149, 74
        %v6295 = vpop.permute.xlu0 %6294
        %v6299 = vadd.f32 %v6287, %v6291
        %v6300 = vadd.f32 %v6288, %v6293
        %v6301 = vadd.f32 %v6289, %v6295
        %v6302 = vadd.f32 %v6299, %v2613
        %v6303 = vadd.f32 %v6300, %v2613
        %v6304 = vadd.f32 %v6301, %v2613
        %v6305 = vmax.f32 %v6302, 0.0
        %v6306 = vmax.f32 %v6303, 0.0
        %v6307 = vmax.f32 %v6304, 0.0
        %v6308 = vmul.f32 %v6305, %v264
        %v6309 = vmul.f32 %v6306, %v265
        %v6310 = vmul.f32 %v6307, %v266
        %6314 = vrot.lane.b32.xlu0 %v6164, 110
        %v6315 = vpop.permute.xlu0 %6314
        %6316 = vrot.lane.b32.xlu0 %v6165, 110
        %v6317 = vpop.permute.xlu0 %6316
        %6318 = vrot.lane.b32.xlu0 %v6166, 110
        %v6319 = vpop.permute.xlu0 %6318
        %v6323 = vadd.f32 %v6164, %v6315
        %v6324 = vadd.f32 %v6165, %v6317
        %v6325 = vadd.f32 %v6166, %v6319
        %6326 = vrot.lane.b32.xlu0 %v6164, 92
        %v6327 = vpop.permute.xlu0 %6326
        %6328 = vrot.lane.b32.xlu0 %v6165, 92
        %v6329 = vpop.permute.xlu0 %6328
        %6330 = vrot.lane.b32.xlu0 %v6166, 92
        %v6331 = vpop.permute.xlu0 %6330
        %v6335 = vadd.f32 %v6323, %v6327
        %v6336 = vadd.f32 %v6324, %v6329
        %v6337 = vadd.f32 %v6325, %v6331
        %6338 = vrot.lane.b32.xlu0 %v6164, 74
        %v6339 = vpop.permute.xlu0 %6338
        %6340 = vrot.lane.b32.xlu0 %v6165, 74
        %v6341 = vpop.permute.xlu0 %6340
        %6342 = vrot.lane.b32.xlu0 %v6166, 74
        %v6343 = vpop.permute.xlu0 %6342
        %v6347 = vadd.f32 %v6335, %v6339
        %v6348 = vadd.f32 %v6336, %v6341
        %v6349 = vadd.f32 %v6337, %v6343
        %v6350 = vadd.f32 %v6347, %v2663
        %v6351 = vadd.f32 %v6348, %v2663
        %v6352 = vadd.f32 %v6349, %v2663
        %v6353 = vmax.f32 %v6350, 0.0
        %v6354 = vmax.f32 %v6351, 0.0
        %v6355 = vmax.f32 %v6352, 0.0
        %v6356 = vmul.f32 %v6353, %v264
        %v6357 = vmul.f32 %v6354, %v265
        %v6358 = vmul.f32 %v6355, %v266
        %6362 = vrot.lane.b32.xlu0 %v6260, 16
        %v6363 = vpop.permute.xlu0 %6362
        %6364 = vrot.lane.b32.xlu0 %v6261, 16
        %v6365 = vpop.permute.xlu0 %6364
        %6366 = vrot.lane.b32.xlu0 %v6262, 16
        %v6367 = vpop.permute.xlu0 %6366
        %6374 = vrot.lane.b32.xlu0 %v6308, 32
        %v6375 = vpop.permute.xlu0 %6374
        %6376 = vrot.lane.b32.xlu0 %v6309, 32
        %v6377 = vpop.permute.xlu0 %6376
        %6378 = vrot.lane.b32.xlu0 %v6310, 32
        %v6379 = vpop.permute.xlu0 %6378
        %6386 = vrot.lane.b32.xlu0 %v6356, 48
        %v6387 = vpop.permute.xlu0 %6386
        %6388 = vrot.lane.b32.xlu0 %v6357, 48
        %v6389 = vpop.permute.xlu0 %6388
        %6390 = vrot.lane.b32.xlu0 %v6358, 48
        %v6391 = vpop.permute.xlu0 %6390
        %v6395 = vsel %vm1068, %v6212, %v6363
        %v6396 = vsel %vm1068, %v6213, %v6365
        %v6397 = vsel %vm1068, %v6214, %v6367
        %v6398 = vsel %vm1072, %v6395, %v6375
        %v6399 = vsel %vm1072, %v6396, %v6377
        %v6400 = vsel %vm1072, %v6397, %v6379
        %v6401 = vsel %vm1076, %v6398, %v6387
        %v6402 = vsel %vm1076, %v6399, %v6389
        %v6403 = vsel %vm1076, %v6400, %v6391
        %6407 = vrot.lane.b32.xlu0 %v6212, 127
        %v6408 = vpop.permute.xlu0 %6407
        %6409 = vrot.lane.b32.xlu0 %v6213, 127
        %v6410 = vpop.permute.xlu0 %6409
        %6411 = vrot.lane.b32.xlu0 %v6214, 127
        %v6412 = vpop.permute.xlu0 %6411
        %6416 = vrot.lane.b32.xlu0 %v6260, 15
        %v6417 = vpop.permute.xlu0 %6416
        %6418 = vrot.lane.b32.xlu0 %v6261, 15
        %v6419 = vpop.permute.xlu0 %6418
        %6420 = vrot.lane.b32.xlu0 %v6262, 15
        %v6421 = vpop.permute.xlu0 %6420
        %6425 = vrot.lane.b32.xlu0 %v6308, 31
        %v6426 = vpop.permute.xlu0 %6425
        %6427 = vrot.lane.b32.xlu0 %v6309, 31
        %v6428 = vpop.permute.xlu0 %6427
        %6429 = vrot.lane.b32.xlu0 %v6310, 31
        %v6430 = vpop.permute.xlu0 %6429
        %6434 = vrot.lane.b32.xlu0 %v6356, 47
        %v6435 = vpop.permute.xlu0 %6434
        %6436 = vrot.lane.b32.xlu0 %v6357, 47
        %v6437 = vpop.permute.xlu0 %6436
        %6438 = vrot.lane.b32.xlu0 %v6358, 47
        %v6439 = vpop.permute.xlu0 %6438
        %v6443 = vsel %vm1068, %v6408, %v6417
        %v6444 = vsel %vm1068, %v6410, %v6419
        %v6445 = vsel %vm1068, %v6412, %v6421
        %v6446 = vsel %vm1072, %v6443, %v6426
        %v6447 = vsel %vm1072, %v6444, %v6428
        %v6448 = vsel %vm1072, %v6445, %v6430
        %v6449 = vsel %vm1076, %v6446, %v6435
        %v6450 = vsel %vm1076, %v6447, %v6437
        %v6451 = vsel %vm1076, %v6448, %v6439
        %6452 = vrot.lane.b32.xlu0 %v6212, 126
        %v6453 = vpop.permute.xlu0 %6452
        %6454 = vrot.lane.b32.xlu0 %v6213, 126
        %v6455 = vpop.permute.xlu0 %6454
        %6456 = vrot.lane.b32.xlu0 %v6214, 126
        %v6457 = vpop.permute.xlu0 %6456
        %6461 = vrot.lane.b32.xlu0 %v6260, 14
        %v6462 = vpop.permute.xlu0 %6461
        %6463 = vrot.lane.b32.xlu0 %v6261, 14
        %v6464 = vpop.permute.xlu0 %6463
        %6465 = vrot.lane.b32.xlu0 %v6262, 14
        %v6466 = vpop.permute.xlu0 %6465
        %6470 = vrot.lane.b32.xlu0 %v6308, 30
        %v6471 = vpop.permute.xlu0 %6470
        %6472 = vrot.lane.b32.xlu0 %v6309, 30
        %v6473 = vpop.permute.xlu0 %6472
        %6474 = vrot.lane.b32.xlu0 %v6310, 30
        %v6475 = vpop.permute.xlu0 %6474
        %6479 = vrot.lane.b32.xlu0 %v6356, 46
        %v6480 = vpop.permute.xlu0 %6479
        %6481 = vrot.lane.b32.xlu0 %v6357, 46
        %v6482 = vpop.permute.xlu0 %6481
        %6483 = vrot.lane.b32.xlu0 %v6358, 46
        %v6484 = vpop.permute.xlu0 %6483
        %v6488 = vsel %vm1068, %v6453, %v6462
        %v6489 = vsel %vm1068, %v6455, %v6464
        %v6490 = vsel %vm1068, %v6457, %v6466
        %v6491 = vsel %vm1072, %v6488, %v6471
        %v6492 = vsel %vm1072, %v6489, %v6473
        %v6493 = vsel %vm1072, %v6490, %v6475
        %v6494 = vsel %vm1076, %v6491, %v6480
        %v6495 = vsel %vm1076, %v6492, %v6482
        %v6496 = vsel %vm1076, %v6493, %v6484
        %v6497 = vmul.f32 %v2812, %v6401
        %v6498 = vmul.f32 %v2812, %v6402
        %v6499 = vadd.f32 %v6497, 0.0
        %v6500 = vadd.f32 %v6498, 0.0
        %v6501 = vmul.f32 %v2818, %v6401
        %v6502 = vmul.f32 %v2818, %v6402
        %v6503 = vadd.f32 %v6501, 0.0
        %v6504 = vadd.f32 %v6502, 0.0
        %v6505 = vmul.f32 %v2824, %v6401
        %v6506 = vmul.f32 %v2824, %v6402
        %v6507 = vadd.f32 %v6505, 0.0
        %v6508 = vadd.f32 %v6506, 0.0
        %v6509 = vmul.f32 %v2830, %v6401
        %v6510 = vmul.f32 %v2830, %v6402
        %v6511 = vadd.f32 %v6509, 0.0
        %v6512 = vadd.f32 %v6510, 0.0
        %v6513 = vmul.f32 %v2836, %v6449
        %v6514 = vmul.f32 %v2836, %v6450
        %v6515 = vadd.f32 %v6499, %v6513
        %v6516 = vadd.f32 %v6500, %v6514
        %v6517 = vmul.f32 %v2842, %v6449
        %v6518 = vmul.f32 %v2842, %v6450
        %v6519 = vadd.f32 %v6503, %v6517
        %v6520 = vadd.f32 %v6504, %v6518
        %v6521 = vmul.f32 %v2848, %v6449
        %v6522 = vmul.f32 %v2848, %v6450
        %v6523 = vadd.f32 %v6507, %v6521
        %v6524 = vadd.f32 %v6508, %v6522
        %v6525 = vmul.f32 %v2854, %v6449
        %v6526 = vmul.f32 %v2854, %v6450
        %v6527 = vadd.f32 %v6511, %v6525
        %v6528 = vadd.f32 %v6512, %v6526
        %v6529 = vmul.f32 %v2860, %v6494
        %v6530 = vmul.f32 %v2860, %v6495
        %v6531 = vadd.f32 %v6515, %v6529
        %v6532 = vadd.f32 %v6516, %v6530
        %v6533 = vmul.f32 %v2866, %v6494
        %v6534 = vmul.f32 %v2866, %v6495
        %v6535 = vadd.f32 %v6519, %v6533
        %v6536 = vadd.f32 %v6520, %v6534
        %v6537 = vmul.f32 %v2872, %v6494
        %v6538 = vmul.f32 %v2872, %v6495
        %v6539 = vadd.f32 %v6523, %v6537
        %v6540 = vadd.f32 %v6524, %v6538
        %v6541 = vmul.f32 %v2878, %v6494
        %v6542 = vmul.f32 %v2878, %v6495
        %v6543 = vadd.f32 %v6527, %v6541
        %v6544 = vadd.f32 %v6528, %v6542
        %v6545 = vmul.f32 %v2884, %v6401
        %v6546 = vmul.f32 %v2884, %v6402
        %v6547 = vmul.f32 %v2884, %v6403
        %v6551 = vrot.slane %v6545, 1
        %v6552 = vrot.slane %v6546, 1
        %v6553 = vsel %vm382, %v6551, %v6552
        %v6554 = vrot.slane %v6547, 1
        %v6555 = vsel %vm382, %v6552, %v6554
        %v6558 = vadd.f32 %v6531, %v6553
        %v6559 = vadd.f32 %v6532, %v6555
        %v6560 = vmul.f32 %v2901, %v6401
        %v6561 = vmul.f32 %v2901, %v6402
        %v6562 = vmul.f32 %v2901, %v6403
        %v6566 = vrot.slane %v6560, 1
        %v6567 = vrot.slane %v6561, 1
        %v6568 = vsel %vm382, %v6566, %v6567
        %v6569 = vrot.slane %v6562, 1
        %v6570 = vsel %vm382, %v6567, %v6569
        %v6573 = vadd.f32 %v6535, %v6568
        %v6574 = vadd.f32 %v6536, %v6570
        %v6575 = vmul.f32 %v2918, %v6401
        %v6576 = vmul.f32 %v2918, %v6402
        %v6577 = vmul.f32 %v2918, %v6403
        %v6581 = vrot.slane %v6575, 1
        %v6582 = vrot.slane %v6576, 1
        %v6583 = vsel %vm382, %v6581, %v6582
        %v6584 = vrot.slane %v6577, 1
        %v6585 = vsel %vm382, %v6582, %v6584
        %v6588 = vadd.f32 %v6539, %v6583
        %v6589 = vadd.f32 %v6540, %v6585
        %v6590 = vmul.f32 %v2935, %v6401
        %v6591 = vmul.f32 %v2935, %v6402
        %v6592 = vmul.f32 %v2935, %v6403
        %v6596 = vrot.slane %v6590, 1
        %v6597 = vrot.slane %v6591, 1
        %v6598 = vsel %vm382, %v6596, %v6597
        %v6599 = vrot.slane %v6592, 1
        %v6600 = vsel %vm382, %v6597, %v6599
        %v6603 = vadd.f32 %v6543, %v6598
        %v6604 = vadd.f32 %v6544, %v6600
        %v6605 = vmul.f32 %v2952, %v6449
        %v6606 = vmul.f32 %v2952, %v6450
        %v6607 = vmul.f32 %v2952, %v6451
        %v6611 = vrot.slane %v6605, 1
        %v6612 = vrot.slane %v6606, 1
        %v6613 = vsel %vm382, %v6611, %v6612
        %v6614 = vrot.slane %v6607, 1
        %v6615 = vsel %vm382, %v6612, %v6614
        %v6618 = vadd.f32 %v6558, %v6613
        %v6619 = vadd.f32 %v6559, %v6615
        %v6620 = vmul.f32 %v2969, %v6449
        %v6621 = vmul.f32 %v2969, %v6450
        %v6622 = vmul.f32 %v2969, %v6451
        %v6626 = vrot.slane %v6620, 1
        %v6627 = vrot.slane %v6621, 1
        %v6628 = vsel %vm382, %v6626, %v6627
        %v6629 = vrot.slane %v6622, 1
        %v6630 = vsel %vm382, %v6627, %v6629
        %v6633 = vadd.f32 %v6573, %v6628
        %v6634 = vadd.f32 %v6574, %v6630
        %v6635 = vmul.f32 %v2986, %v6449
        %v6636 = vmul.f32 %v2986, %v6450
        %v6637 = vmul.f32 %v2986, %v6451
        %v6641 = vrot.slane %v6635, 1
        %v6642 = vrot.slane %v6636, 1
        %v6643 = vsel %vm382, %v6641, %v6642
        %v6644 = vrot.slane %v6637, 1
        %v6645 = vsel %vm382, %v6642, %v6644
        %v6648 = vadd.f32 %v6588, %v6643
        %v6649 = vadd.f32 %v6589, %v6645
        %v6650 = vmul.f32 %v3003, %v6449
        %v6651 = vmul.f32 %v3003, %v6450
        %v6652 = vmul.f32 %v3003, %v6451
        %v6656 = vrot.slane %v6650, 1
        %v6657 = vrot.slane %v6651, 1
        %v6658 = vsel %vm382, %v6656, %v6657
        %v6659 = vrot.slane %v6652, 1
        %v6660 = vsel %vm382, %v6657, %v6659
        %v6663 = vadd.f32 %v6603, %v6658
        %v6664 = vadd.f32 %v6604, %v6660
        %v6665 = vmul.f32 %v3020, %v6494
        %v6666 = vmul.f32 %v3020, %v6495
        %v6667 = vmul.f32 %v3020, %v6496
        %v6671 = vrot.slane %v6665, 1
        %v6672 = vrot.slane %v6666, 1
        %v6673 = vsel %vm382, %v6671, %v6672
        %v6674 = vrot.slane %v6667, 1
        %v6675 = vsel %vm382, %v6672, %v6674
        %v6678 = vadd.f32 %v6618, %v6673
        %v6679 = vadd.f32 %v6619, %v6675
        %v6680 = vmul.f32 %v3037, %v6494
        %v6681 = vmul.f32 %v3037, %v6495
        %v6682 = vmul.f32 %v3037, %v6496
        %v6686 = vrot.slane %v6680, 1
        %v6687 = vrot.slane %v6681, 1
        %v6688 = vsel %vm382, %v6686, %v6687
        %v6689 = vrot.slane %v6682, 1
        %v6690 = vsel %vm382, %v6687, %v6689
        %v6693 = vadd.f32 %v6633, %v6688
        %v6694 = vadd.f32 %v6634, %v6690
        %v6695 = vmul.f32 %v3054, %v6494
        %v6696 = vmul.f32 %v3054, %v6495
        %v6697 = vmul.f32 %v3054, %v6496
        %v6701 = vrot.slane %v6695, 1
        %v6702 = vrot.slane %v6696, 1
        %v6703 = vsel %vm382, %v6701, %v6702
        %v6704 = vrot.slane %v6697, 1
        %v6705 = vsel %vm382, %v6702, %v6704
        %v6708 = vadd.f32 %v6648, %v6703
        %v6709 = vadd.f32 %v6649, %v6705
        %v6710 = vmul.f32 %v3071, %v6494
        %v6711 = vmul.f32 %v3071, %v6495
        %v6712 = vmul.f32 %v3071, %v6496
        %v6716 = vrot.slane %v6710, 1
        %v6717 = vrot.slane %v6711, 1
        %v6718 = vsel %vm382, %v6716, %v6717
        %v6719 = vrot.slane %v6712, 1
        %v6720 = vsel %vm382, %v6717, %v6719
        %v6723 = vadd.f32 %v6663, %v6718
        %v6724 = vadd.f32 %v6664, %v6720
        %v6725 = vmul.f32 %v3088, %v6401
        %v6726 = vmul.f32 %v3088, %v6402
        %v6727 = vmul.f32 %v3088, %v6403
        %v6731 = vrot.slane %v6725, 2
        %v6732 = vrot.slane %v6726, 2
        %v6733 = vsel %vm611, %v6731, %v6732
        %v6734 = vrot.slane %v6727, 2
        %v6735 = vsel %vm611, %v6732, %v6734
        %v6738 = vadd.f32 %v6678, %v6733
        %v6739 = vadd.f32 %v6679, %v6735
        %v6740 = vmul.f32 %v3105, %v6401
        %v6741 = vmul.f32 %v3105, %v6402
        %v6742 = vmul.f32 %v3105, %v6403
        %v6746 = vrot.slane %v6740, 2
        %v6747 = vrot.slane %v6741, 2
        %v6748 = vsel %vm611, %v6746, %v6747
        %v6749 = vrot.slane %v6742, 2
        %v6750 = vsel %vm611, %v6747, %v6749
        %v6753 = vadd.f32 %v6693, %v6748
        %v6754 = vadd.f32 %v6694, %v6750
        %v6755 = vmul.f32 %v3122, %v6401
        %v6756 = vmul.f32 %v3122, %v6402
        %v6757 = vmul.f32 %v3122, %v6403
        %v6761 = vrot.slane %v6755, 2
        %v6762 = vrot.slane %v6756, 2
        %v6763 = vsel %vm611, %v6761, %v6762
        %v6764 = vrot.slane %v6757, 2
        %v6765 = vsel %vm611, %v6762, %v6764
        %v6768 = vadd.f32 %v6708, %v6763
        %v6769 = vadd.f32 %v6709, %v6765
        %v6770 = vmul.f32 %v3139, %v6401
        %v6771 = vmul.f32 %v3139, %v6402
        %v6772 = vmul.f32 %v3139, %v6403
        %v6776 = vrot.slane %v6770, 2
        %v6777 = vrot.slane %v6771, 2
        %v6778 = vsel %vm611, %v6776, %v6777
        %v6779 = vrot.slane %v6772, 2
        %v6780 = vsel %vm611, %v6777, %v6779
        %v6783 = vadd.f32 %v6723, %v6778
        %v6784 = vadd.f32 %v6724, %v6780
        %v6785 = vmul.f32 %v3156, %v6449
        %v6786 = vmul.f32 %v3156, %v6450
        %v6787 = vmul.f32 %v3156, %v6451
        %v6791 = vrot.slane %v6785, 2
        %v6792 = vrot.slane %v6786, 2
        %v6793 = vsel %vm611, %v6791, %v6792
        %v6794 = vrot.slane %v6787, 2
        %v6795 = vsel %vm611, %v6792, %v6794
        %v6798 = vadd.f32 %v6738, %v6793
        %v6799 = vadd.f32 %v6739, %v6795
        %v6800 = vmul.f32 %v3173, %v6449
        %v6801 = vmul.f32 %v3173, %v6450
        %v6802 = vmul.f32 %v3173, %v6451
        %v6806 = vrot.slane %v6800, 2
        %v6807 = vrot.slane %v6801, 2
        %v6808 = vsel %vm611, %v6806, %v6807
        %v6809 = vrot.slane %v6802, 2
        %v6810 = vsel %vm611, %v6807, %v6809
        %v6813 = vadd.f32 %v6753, %v6808
        %v6814 = vadd.f32 %v6754, %v6810
        %v6815 = vmul.f32 %v3190, %v6449
        %v6816 = vmul.f32 %v3190, %v6450
        %v6817 = vmul.f32 %v3190, %v6451
        %v6821 = vrot.slane %v6815, 2
        %v6822 = vrot.slane %v6816, 2
        %v6823 = vsel %vm611, %v6821, %v6822
        %v6824 = vrot.slane %v6817, 2
        %v6825 = vsel %vm611, %v6822, %v6824
        %v6828 = vadd.f32 %v6768, %v6823
        %v6829 = vadd.f32 %v6769, %v6825
        %v6830 = vmul.f32 %v3207, %v6449
        %v6831 = vmul.f32 %v3207, %v6450
        %v6832 = vmul.f32 %v3207, %v6451
        %v6836 = vrot.slane %v6830, 2
        %v6837 = vrot.slane %v6831, 2
        %v6838 = vsel %vm611, %v6836, %v6837
        %v6839 = vrot.slane %v6832, 2
        %v6840 = vsel %vm611, %v6837, %v6839
        %v6843 = vadd.f32 %v6783, %v6838
        %v6844 = vadd.f32 %v6784, %v6840
        %v6845 = vmul.f32 %v3224, %v6494
        %v6846 = vmul.f32 %v3224, %v6495
        %v6847 = vmul.f32 %v3224, %v6496
        %v6851 = vrot.slane %v6845, 2
        %v6852 = vrot.slane %v6846, 2
        %v6853 = vsel %vm611, %v6851, %v6852
        %v6854 = vrot.slane %v6847, 2
        %v6855 = vsel %vm611, %v6852, %v6854
        %v6858 = vadd.f32 %v6798, %v6853
        %v6859 = vadd.f32 %v6799, %v6855
        %v6860 = vmul.f32 %v3241, %v6494
        %v6861 = vmul.f32 %v3241, %v6495
        %v6862 = vmul.f32 %v3241, %v6496
        %v6866 = vrot.slane %v6860, 2
        %v6867 = vrot.slane %v6861, 2
        %v6868 = vsel %vm611, %v6866, %v6867
        %v6869 = vrot.slane %v6862, 2
        %v6870 = vsel %vm611, %v6867, %v6869
        %v6873 = vadd.f32 %v6813, %v6868
        %v6874 = vadd.f32 %v6814, %v6870
        %v6875 = vmul.f32 %v3258, %v6494
        %v6876 = vmul.f32 %v3258, %v6495
        %v6877 = vmul.f32 %v3258, %v6496
        %v6881 = vrot.slane %v6875, 2
        %v6882 = vrot.slane %v6876, 2
        %v6883 = vsel %vm611, %v6881, %v6882
        %v6884 = vrot.slane %v6877, 2
        %v6885 = vsel %vm611, %v6882, %v6884
        %v6888 = vadd.f32 %v6828, %v6883
        %v6889 = vadd.f32 %v6829, %v6885
        %v6890 = vmul.f32 %v3275, %v6494
        %v6891 = vmul.f32 %v3275, %v6495
        %v6892 = vmul.f32 %v3275, %v6496
        %v6896 = vrot.slane %v6890, 2
        %v6897 = vrot.slane %v6891, 2
        %v6898 = vsel %vm611, %v6896, %v6897
        %v6899 = vrot.slane %v6892, 2
        %v6900 = vsel %vm611, %v6897, %v6899
        %v6903 = vadd.f32 %v6843, %v6898
        %v6904 = vadd.f32 %v6844, %v6900
        %6907 = vrot.lane.b32.xlu0 %v6858, 112
        %v6908 = vpop.permute.xlu0 %6907
        %6909 = vrot.lane.b32.xlu0 %v6859, 112
        %v6910 = vpop.permute.xlu0 %6909
        %v6913 = vadd.f32 %v6858, %v6908
        %v6914 = vadd.f32 %v6859, %v6910
        %6915 = vrot.lane.b32.xlu0 %v6858, 96
        %v6916 = vpop.permute.xlu0 %6915
        %6917 = vrot.lane.b32.xlu0 %v6859, 96
        %v6918 = vpop.permute.xlu0 %6917
        %v6921 = vadd.f32 %v6913, %v6916
        %v6922 = vadd.f32 %v6914, %v6918
        %6923 = vrot.lane.b32.xlu0 %v6858, 80
        %v6924 = vpop.permute.xlu0 %6923
        %6925 = vrot.lane.b32.xlu0 %v6859, 80
        %v6926 = vpop.permute.xlu0 %6925
        %v6929 = vadd.f32 %v6921, %v6924
        %v6930 = vadd.f32 %v6922, %v6926
        %v6933 = vrot.slane %v6929, 6
        %v6934 = vrot.slane %v6930, 6
        %v6935 = vsel %vm1681, %v6933, %v6934
        %6936 = vrot.lane.b32.xlu0 %v6933, 2
        %v6937 = vpop.permute.xlu0 %6936
        %6938 = vrot.lane.b32.xlu0 %v6935, 2
        %v6939 = vpop.permute.xlu0 %6938
        %6940 = vrot.lane.b32.xlu0 %v6934, 2
        %v6941 = vpop.permute.xlu0 %6940
        %v6945 = vadd.f32 %v5676, %v6937
        %v6946 = vadd.f32 %v5677, %v6939
        %v6947 = vadd.f32 %v5678, %v6941
        %v6948 = vadd.f32 %v6945, %v3338
        %v6949 = vadd.f32 %v6946, %v3338
        %v6950 = vadd.f32 %v6947, %v3338
        %6953 = vrot.lane.b32.xlu0 %v6873, 112
        %v6954 = vpop.permute.xlu0 %6953
        %6955 = vrot.lane.b32.xlu0 %v6874, 112
        %v6956 = vpop.permute.xlu0 %6955
        %v6959 = vadd.f32 %v6873, %v6954
        %v6960 = vadd.f32 %v6874, %v6956
        %6961 = vrot.lane.b32.xlu0 %v6873, 96
        %v6962 = vpop.permute.xlu0 %6961
        %6963 = vrot.lane.b32.xlu0 %v6874, 96
        %v6964 = vpop.permute.xlu0 %6963
        %v6967 = vadd.f32 %v6959, %v6962
        %v6968 = vadd.f32 %v6960, %v6964
        %6969 = vrot.lane.b32.xlu0 %v6873, 80
        %v6970 = vpop.permute.xlu0 %6969
        %6971 = vrot.lane.b32.xlu0 %v6874, 80
        %v6972 = vpop.permute.xlu0 %6971
        %v6975 = vadd.f32 %v6967, %v6970
        %v6976 = vadd.f32 %v6968, %v6972
        %v6979 = vrot.slane %v6975, 6
        %v6980 = vrot.slane %v6976, 6
        %v6981 = vsel %vm1681, %v6979, %v6980
        %6982 = vrot.lane.b32.xlu0 %v6979, 20
        %v6983 = vpop.permute.xlu0 %6982
        %6984 = vrot.lane.b32.xlu0 %v6981, 20
        %v6985 = vpop.permute.xlu0 %6984
        %6986 = vrot.lane.b32.xlu0 %v6980, 20
        %v6987 = vpop.permute.xlu0 %6986
        %v6991 = vadd.f32 %v5676, %v6983
        %v6992 = vadd.f32 %v5677, %v6985
        %v6993 = vadd.f32 %v5678, %v6987
        %v6994 = vadd.f32 %v6991, %v3390
        %v6995 = vadd.f32 %v6992, %v3390
        %v6996 = vadd.f32 %v6993, %v3390
        %6999 = vrot.lane.b32.xlu0 %v6888, 112
        %v7000 = vpop.permute.xlu0 %6999
        %7001 = vrot.lane.b32.xlu0 %v6889, 112
        %v7002 = vpop.permute.xlu0 %7001
        %v7005 = vadd.f32 %v6888, %v7000
        %v7006 = vadd.f32 %v6889, %v7002
        %7007 = vrot.lane.b32.xlu0 %v6888, 96
        %v7008 = vpop.permute.xlu0 %7007
        %7009 = vrot.lane.b32.xlu0 %v6889, 96
        %v7010 = vpop.permute.xlu0 %7009
        %v7013 = vadd.f32 %v7005, %v7008
        %v7014 = vadd.f32 %v7006, %v7010
        %7015 = vrot.lane.b32.xlu0 %v6888, 80
        %v7016 = vpop.permute.xlu0 %7015
        %7017 = vrot.lane.b32.xlu0 %v6889, 80
        %v7018 = vpop.permute.xlu0 %7017
        %v7021 = vadd.f32 %v7013, %v7016
        %v7022 = vadd.f32 %v7014, %v7018
        %v7025 = vrot.slane %v7021, 6
        %v7026 = vrot.slane %v7022, 6
        %v7027 = vsel %vm1681, %v7025, %v7026
        %7028 = vrot.lane.b32.xlu0 %v7025, 38
        %v7029 = vpop.permute.xlu0 %7028
        %7030 = vrot.lane.b32.xlu0 %v7027, 38
        %v7031 = vpop.permute.xlu0 %7030
        %7032 = vrot.lane.b32.xlu0 %v7026, 38
        %v7033 = vpop.permute.xlu0 %7032
        %v7037 = vadd.f32 %v5676, %v7029
        %v7038 = vadd.f32 %v5677, %v7031
        %v7039 = vadd.f32 %v5678, %v7033
        %v7040 = vadd.f32 %v7037, %v3442
        %v7041 = vadd.f32 %v7038, %v3442
        %v7042 = vadd.f32 %v7039, %v3442
        %7045 = vrot.lane.b32.xlu0 %v6903, 112
        %v7046 = vpop.permute.xlu0 %7045
        %7047 = vrot.lane.b32.xlu0 %v6904, 112
        %v7048 = vpop.permute.xlu0 %7047
        %v7051 = vadd.f32 %v6903, %v7046
        %v7052 = vadd.f32 %v6904, %v7048
        %7053 = vrot.lane.b32.xlu0 %v6903, 96
        %v7054 = vpop.permute.xlu0 %7053
        %7055 = vrot.lane.b32.xlu0 %v6904, 96
        %v7056 = vpop.permute.xlu0 %7055
        %v7059 = vadd.f32 %v7051, %v7054
        %v7060 = vadd.f32 %v7052, %v7056
        %7061 = vrot.lane.b32.xlu0 %v6903, 80
        %v7062 = vpop.permute.xlu0 %7061
        %7063 = vrot.lane.b32.xlu0 %v6904, 80
        %v7064 = vpop.permute.xlu0 %7063
        %v7067 = vadd.f32 %v7059, %v7062
        %v7068 = vadd.f32 %v7060, %v7064
        %v7071 = vrot.slane %v7067, 6
        %v7072 = vrot.slane %v7068, 6
        %v7073 = vsel %vm1681, %v7071, %v7072
        %7074 = vrot.lane.b32.xlu0 %v7071, 56
        %v7075 = vpop.permute.xlu0 %7074
        %7076 = vrot.lane.b32.xlu0 %v7073, 56
        %v7077 = vpop.permute.xlu0 %7076
        %7078 = vrot.lane.b32.xlu0 %v7072, 56
        %v7079 = vpop.permute.xlu0 %7078
        %v7083 = vadd.f32 %v5676, %v7075
        %v7084 = vadd.f32 %v5677, %v7077
        %v7085 = vadd.f32 %v5678, %v7079
        %v7086 = vadd.f32 %v7083, %v3494
        %v7087 = vadd.f32 %v7084, %v3494
        %v7088 = vadd.f32 %v7085, %v3494
        %7092 = vrot.lane.b32.xlu0 %v6994, 110
        %v7093 = vpop.permute.xlu0 %7092
        %7094 = vrot.lane.b32.xlu0 %v6995, 110
        %v7095 = vpop.permute.xlu0 %7094
        %7096 = vrot.lane.b32.xlu0 %v6996, 110
        %v7097 = vpop.permute.xlu0 %7096
        %7104 = vrot.lane.b32.xlu0 %v7040, 92
        %v7105 = vpop.permute.xlu0 %7104
        %7106 = vrot.lane.b32.xlu0 %v7041, 92
        %v7107 = vpop.permute.xlu0 %7106
        %7108 = vrot.lane.b32.xlu0 %v7042, 92
        %v7109 = vpop.permute.xlu0 %7108
        %7116 = vrot.lane.b32.xlu0 %v7086, 74
        %v7117 = vpop.permute.xlu0 %7116
        %7118 = vrot.lane.b32.xlu0 %v7087, 74
        %v7119 = vpop.permute.xlu0 %7118
        %7120 = vrot.lane.b32.xlu0 %v7088, 74
        %v7121 = vpop.permute.xlu0 %7120
        %v7125 = vpack.c.bf16 %v6948, %v6948
        %v7126 = vpack.c.bf16 %v6949, %v6949
        %v7127 = vpack.c.bf16 %v6950, %v6950
        %v7128 = vpack.c.bf16 %v7093, %v7093
        %v7129 = vpack.c.bf16 %v7095, %v7095
        %v7130 = vpack.c.bf16 %v7097, %v7097
        %v7131 = vpack.c.bf16 %v7105, %v7105
        %v7132 = vpack.c.bf16 %v7107, %v7107
        %v7133 = vpack.c.bf16 %v7109, %v7109
        %v7134 = vpack.c.bf16 %v7117, %v7117
        %v7135 = vpack.c.bf16 %v7119, %v7119
        %v7136 = vpack.c.bf16 %v7121, %v7121
        %v7140 = vunpack.c.l.b16 %v7125
        %v7141 = vunpack.c.l.b16 %v7126
        %v7142 = vunpack.c.l.b16 %v7127
        %v7143 = vpack.c.b16 %v7141, %v7140
        %v7144 = vpack.c.b16 %v7142, %v7142
        %v7145 = vrot.slane %v7143, 1
        %v7146 = vrot.slane %v7144, 1
        %v7147 = vsel %vm3555, %v7145, %v7146
        %7148 = vrot.lane.b32.xlu0 %v7147, 126
        %v7149 = vpop.permute.xlu0 %7148
        %v7151 = vsel %vm1068, %v7149, 0
        %7153 = vmatpush.bf16.msra.mxu0 0
        %7154 = vmatpush.bf16.msra.mxu0 0
        %7155 = vmatpush.bf16.msra.mxu0 0
        %7156 = vmatpush.bf16.msra.mxu0 0
        %7157 = vmatpush.bf16.msra.mxu0 0
        %7158 = vmatpush.bf16.msra.mxu0 0
        %7159 = vmatpush.bf16.msra.mxu0 0
        %7160 = vmatpush.bf16.msra.mxu0 %v3573
        %7161 = vmatmul.bf16.gmra.mxu0 %v7151
        %v7162 = vpop.f32.mrf.mxu0
        %v7163 = vadd.f32 0.0, %v7162
        %v7164 = vpop.f32.mrf.mxu0
        %v7165 = vadd.f32 0.0, %v7164
        %7166 = vdwg.mxu0
        %v7170 = vunpack.c.l.b16 %v7128
        %v7171 = vunpack.c.l.b16 %v7129
        %v7172 = vunpack.c.l.b16 %v7130
        %v7173 = vpack.c.b16 %v7171, %v7170
        %v7174 = vpack.c.b16 %v7172, %v7172
        %v7175 = vrot.slane %v7173, 1
        %v7176 = vrot.slane %v7174, 1
        %v7177 = vsel %vm3555, %v7175, %v7176
        %7178 = vrot.lane.b32.xlu0 %v7177, 126
        %v7179 = vpop.permute.xlu0 %7178
        %v7181 = vsel %vm1068, %v7179, 0
        %7183 = vmatpush.bf16.msra.mxu0 0
        %7184 = vmatpush.bf16.msra.mxu0 0
        %7185 = vmatpush.bf16.msra.mxu0 0
        %7186 = vmatpush.bf16.msra.mxu0 0
        %7187 = vmatpush.bf16.msra.mxu0 0
        %7188 = vmatpush.bf16.msra.mxu0 0
        %7189 = vmatpush.bf16.msra.mxu0 0
        %7190 = vmatpush.bf16.msra.mxu0 %v3617
        %7191 = vmatmul.bf16.gmra.mxu0 %v7181
        %v7192 = vpop.f32.mrf.mxu0
        %v7193 = vadd.f32 0.0, %v7192
        %v7194 = vpop.f32.mrf.mxu0
        %v7195 = vadd.f32 0.0, %v7194
        %7196 = vdwg.mxu0
        %v7200 = vunpack.c.l.b16 %v7131
        %v7201 = vunpack.c.l.b16 %v7132
        %v7202 = vunpack.c.l.b16 %v7133
        %v7203 = vpack.c.b16 %v7201, %v7200
        %v7204 = vpack.c.b16 %v7202, %v7202
        %v7205 = vrot.slane %v7203, 1
        %v7206 = vrot.slane %v7204, 1
        %v7207 = vsel %vm3555, %v7205, %v7206
        %7208 = vrot.lane.b32.xlu0 %v7207, 126
        %v7209 = vpop.permute.xlu0 %7208
        %v7211 = vsel %vm1068, %v7209, 0
        %7213 = vmatpush.bf16.msra.mxu0 0
        %7214 = vmatpush.bf16.msra.mxu0 0
        %7215 = vmatpush.bf16.msra.mxu0 0
        %7216 = vmatpush.bf16.msra.mxu0 0
        %7217 = vmatpush.bf16.msra.mxu0 0
        %7218 = vmatpush.bf16.msra.mxu0 0
        %7219 = vmatpush.bf16.msra.mxu0 0
        %7220 = vmatpush.bf16.msra.mxu0 %v3661
        %7221 = vmatmul.bf16.gmra.mxu0 %v7211
        %v7222 = vpop.f32.mrf.mxu0
        %v7223 = vadd.f32 0.0, %v7222
        %v7224 = vpop.f32.mrf.mxu0
        %v7225 = vadd.f32 0.0, %v7224
        %7226 = vdwg.mxu0
        %v7230 = vunpack.c.l.b16 %v7134
        %v7231 = vunpack.c.l.b16 %v7135
        %v7232 = vunpack.c.l.b16 %v7136
        %v7233 = vpack.c.b16 %v7231, %v7230
        %v7234 = vpack.c.b16 %v7232, %v7232
        %v7235 = vrot.slane %v7233, 1
        %v7236 = vrot.slane %v7234, 1
        %v7237 = vsel %vm3555, %v7235, %v7236
        %7238 = vrot.lane.b32.xlu0 %v7237, 126
        %v7239 = vpop.permute.xlu0 %7238
        %v7241 = vsel %vm1068, %v7239, 0
        %7243 = vmatpush.bf16.msra.mxu0 0
        %7244 = vmatpush.bf16.msra.mxu0 0
        %7245 = vmatpush.bf16.msra.mxu0 0
        %7246 = vmatpush.bf16.msra.mxu0 0
        %7247 = vmatpush.bf16.msra.mxu0 0
        %7248 = vmatpush.bf16.msra.mxu0 0
        %7249 = vmatpush.bf16.msra.mxu0 0
        %7250 = vmatpush.bf16.msra.mxu0 %v3705
        %7251 = vmatmul.bf16.gmra.mxu0 %v7241
        %v7252 = vpop.f32.mrf.mxu0
        %v7253 = vadd.f32 0.0, %v7252
        %v7254 = vpop.f32.mrf.mxu0
        %v7255 = vadd.f32 0.0, %v7254
        %7256 = vdwg.mxu0
        %v7257 = vxor.u32 %v7163, 2147483648
        %v7258 = vxor.u32 %v7165, 2147483648
        %v7259 = vxor.u32 %v7193, 2147483648
        %v7260 = vxor.u32 %v7195, 2147483648
        %v7261 = vxor.u32 %v7223, 2147483648
        %v7262 = vxor.u32 %v7225, 2147483648
        %v7263 = vxor.u32 %v7253, 2147483648
        %v7264 = vxor.u32 %v7255, 2147483648
        %v7265 = vmul.f32 %v7257, 1.442695
        %v7266 = vpow.pop %v7265
        %v7267 = vmul.f32 %v7258, 1.442695
        %v7268 = vpow.pop %v7267
        %v7269 = vmul.f32 %v7259, 1.442695
        %v7270 = vpow.pop %v7269
        %v7271 = vmul.f32 %v7260, 1.442695
        %v7272 = vpow.pop %v7271
        %v7273 = vmul.f32 %v7261, 1.442695
        %v7274 = vpow.pop %v7273
        %v7275 = vmul.f32 %v7262, 1.442695
        %v7276 = vpow.pop %v7275
        %v7277 = vmul.f32 %v7263, 1.442695
        %v7278 = vpow.pop %v7277
        %v7279 = vmul.f32 %v7264, 1.442695
        %v7280 = vpow.pop %v7279
        %v7281 = vadd.f32 %v7266, 1.0
        %v7282 = vadd.f32 %v7268, 1.0
        %v7283 = vadd.f32 %v7270, 1.0
        %v7284 = vadd.f32 %v7272, 1.0
        %v7285 = vadd.f32 %v7274, 1.0
        %v7286 = vadd.f32 %v7276, 1.0
        %v7287 = vadd.f32 %v7278, 1.0
        %v7288 = vadd.f32 %v7280, 1.0
        %v7289 = vrcp.pop %v7281
        %v7290 = vmul.f32 %v7281, %v7289
        %v7291 = vsub.f32 1.0, %v7290
        %v7292 = vmul.f32 %v7289, %v7291
        %v7293 = vadd.f32 %v7289, %v7292
        %vm7294 = vweird.f32 %v7281
        %vm7295 = vweird.f32 %v7289
        %vm7296 = vmor %vm7294, %vm7295
        %v7297 = vsel %vm7296, %v7289, %v7293
        %v7298 = vand.u32 2147483647, %v7281
        %vm7299 = vcmp.eq.f32.partialorder %v7298, 8.507059e+37
        %v7300 = vand.u32 %v7281, 2147483648
        %v7301 = vor.u32 1.1754944e-38, %v7300
        %v7302 = vsel %vm7299, %v7301, %v7297
        %v7303 = vmul.f32 1.0, %v7302
        %v7304 = vrcp.pop %v7282
        %v7305 = vmul.f32 %v7282, %v7304
        %v7306 = vsub.f32 1.0, %v7305
        %v7307 = vmul.f32 %v7304, %v7306
        %v7308 = vadd.f32 %v7304, %v7307
        %vm7309 = vweird.f32 %v7282
        %vm7310 = vweird.f32 %v7304
        %vm7311 = vmor %vm7309, %vm7310
        %v7312 = vsel %vm7311, %v7304, %v7308
        %v7313 = vand.u32 2147483647, %v7282
        %vm7314 = vcmp.eq.f32.partialorder %v7313, 8.507059e+37
        %v7315 = vand.u32 %v7282, 2147483648
        %v7316 = vor.u32 1.1754944e-38, %v7315
        %v7317 = vsel %vm7314, %v7316, %v7312
        %v7318 = vmul.f32 1.0, %v7317
        %v7319 = vrcp.pop %v7283
        %v7320 = vmul.f32 %v7283, %v7319
        %v7321 = vsub.f32 1.0, %v7320
        %v7322 = vmul.f32 %v7319, %v7321
        %v7323 = vadd.f32 %v7319, %v7322
        %vm7324 = vweird.f32 %v7283
        %vm7325 = vweird.f32 %v7319
        %vm7326 = vmor %vm7324, %vm7325
        %v7327 = vsel %vm7326, %v7319, %v7323
        %v7328 = vand.u32 2147483647, %v7283
        %vm7329 = vcmp.eq.f32.partialorder %v7328, 8.507059e+37
        %v7330 = vand.u32 %v7283, 2147483648
        %v7331 = vor.u32 1.1754944e-38, %v7330
        %v7332 = vsel %vm7329, %v7331, %v7327
        %v7333 = vmul.f32 1.0, %v7332
        %v7334 = vrcp.pop %v7284
        %v7335 = vmul.f32 %v7284, %v7334
        %v7336 = vsub.f32 1.0, %v7335
        %v7337 = vmul.f32 %v7334, %v7336
        %v7338 = vadd.f32 %v7334, %v7337
        %vm7339 = vweird.f32 %v7284
        %vm7340 = vweird.f32 %v7334
        %vm7341 = vmor %vm7339, %vm7340
        %v7342 = vsel %vm7341, %v7334, %v7338
        %v7343 = vand.u32 2147483647, %v7284
        %vm7344 = vcmp.eq.f32.partialorder %v7343, 8.507059e+37
        %v7345 = vand.u32 %v7284, 2147483648
        %v7346 = vor.u32 1.1754944e-38, %v7345
        %v7347 = vsel %vm7344, %v7346, %v7342
        %v7348 = vmul.f32 1.0, %v7347
        %v7349 = vrcp.pop %v7285
        %v7350 = vmul.f32 %v7285, %v7349
        %v7351 = vsub.f32 1.0, %v7350
        %v7352 = vmul.f32 %v7349, %v7351
        %v7353 = vadd.f32 %v7349, %v7352
        %vm7354 = vweird.f32 %v7285
        %vm7355 = vweird.f32 %v7349
        %vm7356 = vmor %vm7354, %vm7355
        %v7357 = vsel %vm7356, %v7349, %v7353
        %v7358 = vand.u32 2147483647, %v7285
        %vm7359 = vcmp.eq.f32.partialorder %v7358, 8.507059e+37
        %v7360 = vand.u32 %v7285, 2147483648
        %v7361 = vor.u32 1.1754944e-38, %v7360
        %v7362 = vsel %vm7359, %v7361, %v7357
        %v7363 = vmul.f32 1.0, %v7362
        %v7364 = vrcp.pop %v7286
        %v7365 = vmul.f32 %v7286, %v7364
        %v7366 = vsub.f32 1.0, %v7365
        %v7367 = vmul.f32 %v7364, %v7366
        %v7368 = vadd.f32 %v7364, %v7367
        %vm7369 = vweird.f32 %v7286
        %vm7370 = vweird.f32 %v7364
        %vm7371 = vmor %vm7369, %vm7370
        %v7372 = vsel %vm7371, %v7364, %v7368
        %v7373 = vand.u32 2147483647, %v7286
        %vm7374 = vcmp.eq.f32.partialorder %v7373, 8.507059e+37
        %v7375 = vand.u32 %v7286, 2147483648
        %v7376 = vor.u32 1.1754944e-38, %v7375
        %v7377 = vsel %vm7374, %v7376, %v7372
        %v7378 = vmul.f32 1.0, %v7377
        %v7379 = vrcp.pop %v7287
        %v7380 = vmul.f32 %v7287, %v7379
        %v7381 = vsub.f32 1.0, %v7380
        %v7382 = vmul.f32 %v7379, %v7381
        %v7383 = vadd.f32 %v7379, %v7382
        %vm7384 = vweird.f32 %v7287
        %vm7385 = vweird.f32 %v7379
        %vm7386 = vmor %vm7384, %vm7385
        %v7387 = vsel %vm7386, %v7379, %v7383
        %v7388 = vand.u32 2147483647, %v7287
        %vm7389 = vcmp.eq.f32.partialorder %v7388, 8.507059e+37
        %v7390 = vand.u32 %v7287, 2147483648
        %v7391 = vor.u32 1.1754944e-38, %v7390
        %v7392 = vsel %vm7389, %v7391, %v7387
        %v7393 = vmul.f32 1.0, %v7392
        %v7394 = vrcp.pop %v7288
        %v7395 = vmul.f32 %v7288, %v7394
        %v7396 = vsub.f32 1.0, %v7395
        %v7397 = vmul.f32 %v7394, %v7396
        %v7398 = vadd.f32 %v7394, %v7397
        %vm7399 = vweird.f32 %v7288
        %vm7400 = vweird.f32 %v7394
        %vm7401 = vmor %vm7399, %vm7400
        %v7402 = vsel %vm7401, %v7394, %v7398
        %v7403 = vand.u32 2147483647, %v7288
        %vm7404 = vcmp.eq.f32.partialorder %v7403, 8.507059e+37
        %v7405 = vand.u32 %v7288, 2147483648
        %v7406 = vor.u32 1.1754944e-38, %v7405
        %v7407 = vsel %vm7404, %v7406, %v7402
        %v7408 = vmul.f32 1.0, %v7407
        %s7409 = scalar_lea.vmem %s262, 128
        %v7410 = vld [vmem:[%s7409] sm:$0xff]
        %v7411 = vld [vmem:[%s7409 + $0x8] sm:$0xff]
        %v7412 = vld [vmem:[%s7409 + $0x10] sm:$0xff]
        %v7413 = vld [vmem:[%s7409 + $0x18] sm:$0xff]
        %v7414 = vld [vmem:[%s7409 + $0x20] sm:$0xff]
        %v7415 = vld [vmem:[%s7409 + $0x28] sm:$0xff]
        %v7416 = vld [vmem:[%s7409 + $0x30] sm:$0xff]
        %v7417 = vld [vmem:[%s7409 + $0x38] sm:$0xff]
        %v7418 = vmul.f32 %v7303, %v7410
        %v7419 = vmul.f32 %v7318, %v7411
        %v7420 = vmul.f32 %v7333, %v7412
        %v7421 = vmul.f32 %v7348, %v7413
        %v7422 = vmul.f32 %v7363, %v7414
        %v7423 = vmul.f32 %v7378, %v7415
        %v7424 = vmul.f32 %v7393, %v7416
        %v7425 = vmul.f32 %v7408, %v7417
        %v7426 = vadd.f32 %v5659, %v7418
        %v7427 = vadd.f32 %v5660, %v7419
        %v7428 = vadd.f32 %v5661, %v7420
        %v7429 = vadd.f32 %v5662, %v7421
        %v7430 = vadd.f32 %v5663, %v7422
        %v7431 = vadd.f32 %v5664, %v7423
        %v7432 = vadd.f32 %v5665, %v7424
        %v7433 = vadd.f32 %v5666, %v7425
        %v7434 = vadd.f32 %v5667, %v7303
        %v7435 = vadd.f32 %v5668, %v7318
        %v7436 = vadd.f32 %v5669, %v7333
        %v7437 = vadd.f32 %v5670, %v7348
        %v7438 = vadd.f32 %v5671, %v7363
        %v7439 = vadd.f32 %v5672, %v7378
        %v7440 = vadd.f32 %v5673, %v7393
        %v7441 = vadd.f32 %v5674, %v7408
        %7445 = vrot.lane.b32.xlu0 %v267, 110
        %v7446 = vpop.permute.xlu0 %7445
        %7447 = vrot.lane.b32.xlu0 %v268, 110
        %v7448 = vpop.permute.xlu0 %7447
        %7449 = vrot.lane.b32.xlu0 %v269, 110
        %v7450 = vpop.permute.xlu0 %7449
        %7451 = vrot.lane.b32.xlu0 %v267, 92
        %v7452 = vpop.permute.xlu0 %7451
        %7453 = vrot.lane.b32.xlu0 %v268, 92
        %v7454 = vpop.permute.xlu0 %7453
        %7455 = vrot.lane.b32.xlu0 %v269, 92
        %v7456 = vpop.permute.xlu0 %7455
        %7457 = vrot.lane.b32.xlu0 %v267, 74
        %v7458 = vpop.permute.xlu0 %7457
        %7459 = vrot.lane.b32.xlu0 %v268, 74
        %v7460 = vpop.permute.xlu0 %7459
        %7461 = vrot.lane.b32.xlu0 %v269, 74
        %v7462 = vpop.permute.xlu0 %7461
        %v7463 = vrcp.pop %v7434
        %v7464 = vrcp.pop %v7435
        %v7465 = vrcp.pop %v7436
        %v7466 = vrcp.pop %v7437
        %v7467 = vrcp.pop %v7438
        %v7468 = vrcp.pop %v7439
        %v7469 = vrcp.pop %v7440
        %v7470 = vrcp.pop %v7441
        %v7471 = vmul.f32 %v7426, %v7463
        %v7472 = vmul.f32 %v7427, %v7464
        %v7473 = vmul.f32 %v7428, %v7465
        %v7474 = vmul.f32 %v7429, %v7466
        %v7475 = vmul.f32 %v7430, %v7467
        %v7476 = vmul.f32 %v7431, %v7468
        %v7477 = vmul.f32 %v7432, %v7469
        %v7478 = vmul.f32 %v7433, %v7470
        %v7479 = vrot.slane %v267, 2
        %v7480 = vrot.slane %v268, 2
        %v7481 = vsel %vm611, %v7479, %v7480
        %v7482 = vrot.slane %v269, 2
        %v7483 = vsel %vm611, %v7480, %v7482
        %v7484 = vrot.slane %v7446, 2
        %v7485 = vrot.slane %v7448, 2
        %v7486 = vsel %vm611, %v7484, %v7485
        %v7487 = vrot.slane %v7450, 2
        %v7488 = vsel %vm611, %v7485, %v7487
        %v7489 = vrot.slane %v7452, 2
        %v7490 = vrot.slane %v7454, 2
        %v7491 = vsel %vm611, %v7489, %v7490
        %v7492 = vrot.slane %v7456, 2
        %v7493 = vsel %vm611, %v7490, %v7492
        %v7494 = vrot.slane %v7458, 2
        %v7495 = vrot.slane %v7460, 2
        %v7496 = vsel %vm611, %v7494, %v7495
        %v7497 = vrot.slane %v7462, 2
        %v7498 = vsel %vm611, %v7495, %v7497
        %7499 = vrot.lane.b32.xlu0 %v7481, 126
        %v7500 = vpop.permute.xlu0 %7499
        %7501 = vrot.lane.b32.xlu0 %v7483, 126
        %v7502 = vpop.permute.xlu0 %7501
        %7503 = vrot.lane.b32.xlu0 %v7486, 126
        %v7504 = vpop.permute.xlu0 %7503
        %7505 = vrot.lane.b32.xlu0 %v7488, 126
        %v7506 = vpop.permute.xlu0 %7505
        %7507 = vrot.lane.b32.xlu0 %v7491, 126
        %v7508 = vpop.permute.xlu0 %7507
        %7509 = vrot.lane.b32.xlu0 %v7493, 126
        %v7510 = vpop.permute.xlu0 %7509
        %7511 = vrot.lane.b32.xlu0 %v7496, 126
        %v7512 = vpop.permute.xlu0 %7511
        %7513 = vrot.lane.b32.xlu0 %v7498, 126
        %v7514 = vpop.permute.xlu0 %7513
        %v7523 = vadd.f32 %v7471, %v7500
        %v7524 = vadd.f32 %v7472, %v7502
        %v7525 = vadd.f32 %v7473, %v7504
        %v7526 = vadd.f32 %v7474, %v7506
        %v7527 = vadd.f32 %v7475, %v7508
        %v7528 = vadd.f32 %v7476, %v7510
        %v7529 = vadd.f32 %v7477, %v7512
        %v7530 = vadd.f32 %v7478, %v7514
        %7531 = vst.msk [vmem:[%s247] sm:$0xff] %vm1068, %v7523
        %7532 = vst.msk [vmem:[%s247 + $0x8] sm:$0xff] %vm1068, %v7524
        %7533 = vst.msk [vmem:[%s247 + $0x10] sm:$0xff] %vm1068, %v7525
        %7534 = vst.msk [vmem:[%s247 + $0x18] sm:$0xff] %vm1068, %v7526
        %7535 = vst.msk [vmem:[%s247 + $0x20] sm:$0xff] %vm1068, %v7527
        %7536 = vst.msk [vmem:[%s247 + $0x28] sm:$0xff] %vm1068, %v7528
        %7537 = vst.msk [vmem:[%s247 + $0x30] sm:$0xff] %vm1068, %v7529
        %7538 = vst.msk [vmem:[%s247 + $0x38] sm:$0xff] %vm1068, %v7530
        %s7539 = sand.u32 %s147, 1
        %s7540 = scalar_lea.sflag [#allocation3], %s7539
        %s7541 = sand.u32 %s147, 1
        %s7542 = smul.addr %s7541, 64
        %s7543 = scalar_lea.vmem [#allocation2], %s7542
        // Predicated region
        $region41: #{tpu_custom_call.1} parent=39 // pred_check
          %p7544 = pneg %p157
        $region42: #{tpu_custom_call.1} parent=39 // pred_check_branch
          %7546 = sbr.rel (%p7544) target = $region44
        $region43: #{tpu_custom_call.1} parent=39 // pred_region
          %7548 = vsyncadd %s7540, 0
          %s7549 = smul.addr %s19, 8
          %s7550 = smul.addr %s7549, 8
          %s7551 = scalar_lea.hbm %s5, %s7550
          %s7552 = sshll.u32 %s7543, 4
          %s7553 = int_to_ptr.vmem [resolvable:$true] %s7552
          %s7554 = sshll.u32 %s7551, 4
          %s7555 = int_to_ptr.hbm [resolvable:$true] %s7554
          %7560 = dma.vmem_to_hbm [thread:$0]  %s7553, 1024, %s7555, %s7540, 128, 128, 8
        $region44: #{tpu_custom_call.1} parent=39 // pred_fallthru
          _
      $region40: #{tpu_custom_call.1} parent=5 // pred_fallthru
        _
      %p7561 = scmp.le.s32.totalorder 2, %s14
      // Predicated region
      $region45: #{tpu_custom_call.1} parent=5 // pred_check
        %p7562 = pneg %p7561
      $region46: #{tpu_custom_call.1} parent=5 // pred_check_branch
        %7564 = sbr.rel (%p7562) target = $region48
      $region47: #{tpu_custom_call.1} parent=5 // pred_region
        %s7565 = ssub.s32 %s14, 2
        // Predicated region
        $region49: #{tpu_custom_call.1} parent=47 // pred_check
          %p7566 = pneg %p163
        $region50: #{tpu_custom_call.1} parent=47 // pred_check_branch
          %7568 = sbr.rel (%p7566) target = $region52
        $region51: #{tpu_custom_call.1} parent=47 // pred_region
          %s7569 = sand.u32 %s148, 1
          %s7570 = scalar_lea.sflag [#allocation3], %s7569
          %s7571 = sand.u32 %s148, 1
          %s7572 = smul.addr %s7571, 64
          %s7573 = scalar_lea.vmem [#allocation2], %s7572
          %7575 = dma.done %s7570, 1024
        $region52: #{tpu_custom_call.1} parent=47 // pred_fallthru
          _
      $region48: #{tpu_custom_call.1} parent=5 // pred_fallthru
        _
    $region6: #{tpu_custom_call.1} parent=1 // loop_footer
      %s18 = sadd.s32 1, %s14
    $region7: #{tpu_custom_call.1} parent=1 // loop_footer_branch
      %13 = sbr.rel target = $region3
    $region8: #{tpu_custom_call.1} parent=1 // loop_exit
      _
    %7576 = vsyncpa [#allocation3], 1
    %s7577 = scalar_lea.sflag [#allocation3], 1
    %7578 = vsyncpa %s7577, 1

</llo_original>
